<compile_context>
chip_gen: v7x
topology: tpu7x:2x2x1
jax: 0.10.0
libtpu: 0.0.40
codegen_flags: <defaults>
</compile_context>

<pallas_src>
import math

import jax
import jax.numpy as jnp
from jax.experimental import pallas as pl
from jax.experimental.pallas import tpu as pltpu


def silu(x):
    return x * jax.nn.sigmoid(x)


def make_kernel(BT, N, D, F, H, L):
    NN = N * N

    def kernel(x_ref, nmask_ref, emask_ref, h0_ref, embW_ref, embb_ref,
               Wh3_ref, Wmats_ref, vecs_ref, vel_ref):
        f32 = jnp.float32

        nmask3 = nmask_ref[...]                              # (BT, N, 1)
        nmask = nmask3.reshape(BT * N, 1)                    # (BT*N, 1)  flat node rows
        emask4 = emask_ref[...]                              # (BT, N, N, 1)
        emask_flat = emask4.reshape(BT * NN, 1)              # hoisted; reused every layer

        x = x_ref[...] * nmask3                              # (BT, N, D) masked input coords
        x0 = x

        # node embedding: Linear(F, H) on (h_initial * t); rows pre-tiled per batch element
        h = jnp.dot(h0_ref[...], embW_ref[...],
                    preferred_element_type=f32) + embb_ref[...]          # (BT*N, H)

        # fixed edge attribute: squared distance on the *initial* masked coordinates
        d0 = x0[:, :, None, :] - x0[:, None, :, :]                       # (BT, N, N, D)
        eattr = jnp.sum(d0 * d0, axis=-1, keepdims=True)                 # (BT, N, N, 1)

        # TODO(synk): for production-sized N (N^2*H edge intermediates approaching v7x's
        # 64 MiB VMEM) this layer body should additionally tile the j (neighbor) axis.
        for l in range(L):                                   # E_GCL layers (static unroll)
            We2 = Wmats_ref[l, 0]
            Wc1 = Wmats_ref[l, 1]
            Wna = Wmats_ref[l, 2]
            Wn2 = Wmats_ref[l, 3]
            wrad = vecs_ref[l, 0:1, :]
            wattr = vecs_ref[l, 1:2, :]
            wc2 = vecs_ref[l, 2:3, :]
            be1 = vecs_ref[l, 3:4, :]
            be2 = vecs_ref[l, 4:5, :]
            bc1 = vecs_ref[l, 5:6, :]
            bn1 = vecs_ref[l, 6:7, :]
            bn2 = vecs_ref[l, 7:8, :]

            diff = x[:, :, None, :] - x[:, None, :, :]                   # (BT, N, N, D)
            radial = jnp.sum(diff * diff, axis=-1, keepdims=True)        # (BT, N, N, 1)
            diff_n = diff * pl.reciprocal(jnp.sqrt(radial) + 1.0)        # norm_diff=True

            # fused h-LHS matmul: [h@Whi | h@Whj | h@Wnh] in one (BT*N, H) @ (H, 3H)
            hcat = jnp.dot(h, Wh3_ref[l], preferred_element_type=f32)    # (BT*N, 3H)
            ti = hcat[:, 0 * H:1 * H].reshape(BT, N, H)
            tj = hcat[:, 1 * H:2 * H].reshape(BT, N, H)
            hn = hcat[:, 2 * H:3 * H]                                    # (BT*N, H)

            # ---- edge MLP: split form of concat([h_i, h_j, radial, eattr]) @ W1 ----
            pre = (ti[:, :, None, :] + tj[:, None, :, :]
                   + radial * wrad + eattr * wattr + be1)                # (BT, N, N, H)
            m = silu(pre).reshape(BT * NN, H)                            # flat edge rows
            m = silu(jnp.dot(m, We2, preferred_element_type=f32) + be2)
            m = m * emask_flat                                           # masked messages

            # ---- coordinate update ----
            c = silu(jnp.dot(m, Wc1, preferred_element_type=f32) + bc1)  # (BT*NN, H)
            # phi on VPU/XLU (multiply + lane reduce) instead of a (.,H)@(H,1) MXU pass
            phi = jnp.sum(c * wc2, axis=-1, keepdims=True)               # (BT*NN, 1)
            phi = phi.reshape(BT, N, N, 1)
            trans = diff_n * (phi * emask4)                              # (BT, N, N, D)
            x = (x + jnp.sum(trans, axis=2)) * nmask3

            # ---- node update (recurrent) ----
            aggh = jnp.sum(m.reshape(BT, N, N, H), axis=2).reshape(BT * N, H)
            npre = silu(hn + jnp.dot(aggh, Wna, preferred_element_type=f32) + bn1)
            h = (h + jnp.dot(npre, Wn2, preferred_element_type=f32) + bn2) * nmask

        # TODO(synk): EGNN.embedding_out(h) is skipped — it does not affect the returned
        # velocity (only x_final is used by EGNN_dynamics_AD2.forward).

        vel = (x - x0) * nmask3                                          # (BT, N, D)
        n_nodes = jnp.sum(nmask3, axis=1, keepdims=True)                 # (BT, 1, 1)
        mean = jnp.sum(vel, axis=1, keepdims=True) / jnp.maximum(n_nodes, 1.0)
        vel_ref[...] = vel - mean * nmask3                               # remove_mean_with_mask

    return kernel


def egnn_dynamics_ad2_forward(t, xs, node_mask, edge_mask, h_initial, params,
                              n_layers, batch_tile=None):
    B, N, D = xs.shape
    F = h_initial.shape[1]
    H = params["emb_W"].shape[1]
    L = n_layers

    # Pack BT batch elements per grid step: target a few thousand edge rows (BT*N*N) per
    # step for dense MXU tiles, while keeping the (BT*N*N, H) f32 edge intermediates well
    # inside VMEM (rows_cap=8192, H=32 -> ~1 MiB per live edge tensor).
    if batch_tile is None:
        rows_cap = max(N * N, 8192)
        batch_tile = max(1, min(B, rows_cap // (N * N)))
    BT = int(batch_tile)
    n_tiles = (B + BT - 1) // BT
    B_pad = n_tiles * BT

    xs = xs.astype(jnp.float32)
    node_mask = node_mask.astype(jnp.float32)
    edge_mask = edge_mask.astype(jnp.float32)
    if B_pad != B:
        pad = B_pad - B
        xs = jnp.concatenate([xs, jnp.zeros((pad, N, D), jnp.float32)], axis=0)
        node_mask = jnp.concatenate([node_mask, jnp.zeros((pad, N, 1), jnp.float32)], axis=0)
        edge_mask = jnp.concatenate([edge_mask, jnp.zeros((pad, N, N), jnp.float32)], axis=0)
    emask4 = edge_mask.reshape(B_pad, N, N, 1)       # edge-row layout done host-side

    # h = h_initial * t, identical rows for every batch element (t is a scalar);
    # pre-tile to the per-step row count so the kernel does a single (BT*N, F)@(F, H).
    h_tiled = jnp.tile((h_initial * t).astype(jnp.float32), (BT, 1))     # (BT*N, F)

    # ---- pack per-layer weights into a few grid-invariant VMEM-resident arrays ----
    Wh3 = jnp.concatenate([params["Whi"], params["Whj"], params["Wnh"]], axis=-1)   # (L,H,3H)
    Wmats = jnp.stack([params["We2"], params["Wc1"], params["Wna"], params["Wn2"]],
                      axis=1)                                                        # (L,4,H,H)
    vecs = jnp.concatenate([params["wrad"], params["wattr"],
                            jnp.swapaxes(params["wc2"], 1, 2),
                            params["be1"], params["be2"], params["bc1"],
                            params["bn1"], params["bn2"]], axis=1)                   # (L,8,H)
    emb_W = params["emb_W"]
    emb_b = params["emb_b"]

    def const_spec(a):
        nd = a.ndim
        return pl.BlockSpec(a.shape, lambda g, _nd=nd: (0,) * _nd)

    in_specs = [
        pl.BlockSpec((BT, N, D), lambda g: (g, 0, 0)),        # xs
        pl.BlockSpec((BT, N, 1), lambda g: (g, 0, 0)),        # node_mask
        pl.BlockSpec((BT, N, N, 1), lambda g: (g, 0, 0, 0)),  # edge_mask (edge-row layout)
        const_spec(h_tiled),
        const_spec(emb_W), const_spec(emb_b),
        const_spec(Wh3), const_spec(Wmats), const_spec(vecs),
    ]

    vel = pl.pallas_call(
        make_kernel(BT, N, D, F, H, L),
        out_shape=jax.ShapeDtypeStruct((B_pad, N, D), jnp.float32),
        grid=(n_tiles,),
        in_specs=in_specs,
        out_specs=pl.BlockSpec((BT, N, D), lambda g: (g, 0, 0)),
        compiler_params=pltpu.CompilerParams(
            dimension_semantics=("parallel",),   # batch tiles are independent (v7x: 2 TCs)
        ),
    )(xs, node_mask, emask4, h_tiled, emb_W, emb_b, Wh3, Wmats, vecs)

    return vel[:B].reshape(B, N * D)


def init_params(key, F, H, L):
    """Deterministic synthetic weights; also returns un-split weights for the reference."""
    def uniform(k, shape, bound):
        return jax.random.uniform(k, shape, jnp.float32, -bound, bound)

    k_emb, k_layers = jax.random.split(key)
    ke_w, ke_b = jax.random.split(k_emb)
    bound = 1.0 / math.sqrt(F)
    emb_W = uniform(ke_w, (F, H), bound)
    emb_b = uniform(ke_b, (1, H), bound)

    Whi, Whj, wrad, wattr, be1 = [], [], [], [], []
    We2, be2, Wc1, bc1, wc2 = [], [], [], [], []
    Wnh, Wna, bn1, Wn2, bn2 = [], [], [], [], []
    W1_full, Wn1_full = [], []

    lkeys = jax.random.split(k_layers, L)
    for l in range(L):
        ks = jax.random.split(lkeys[l], 11)
        # edge_mlp: Linear(2H+2, H) -> SiLU -> Linear(H, H) -> SiLU
        b_in = 1.0 / math.sqrt(2 * H + 2)
        W1 = uniform(ks[0], (2 * H + 2, H), b_in)
        W1_full.append(W1)
        Whi.append(W1[:H]); Whj.append(W1[H:2 * H])
        wrad.append(W1[2 * H:2 * H + 1]); wattr.append(W1[2 * H + 1:])
        be1.append(uniform(ks[1], (1, H), b_in))
        b_h = 1.0 / math.sqrt(H)
        We2.append(uniform(ks[2], (H, H), b_h))
        be2.append(uniform(ks[3], (1, H), b_h))
        # coord_mlp: Linear(H, H) -> SiLU -> Linear(H, 1, bias=False)
        Wc1.append(uniform(ks[4], (H, H), b_h))
        bc1.append(uniform(ks[5], (1, H), b_h))
        wc2.append(uniform(ks[6], (H, 1), 0.05))   # small init (xavier gain in torch code)
        # node_mlp: Linear(2H, H) -> SiLU -> Linear(H, H)
        bn_in = 1.0 / math.sqrt(2 * H)
        Wn1 = uniform(ks[7], (2 * H, H), bn_in)
        Wn1_full.append(Wn1)
        Wnh.append(Wn1[:H]); Wna.append(Wn1[H:])
        bn1.append(uniform(ks[8], (1, H), bn_in))
        Wn2.append(uniform(ks[9], (H, H), b_h))
        bn2.append(uniform(ks[10], (1, H), b_h))

    stack = lambda xs: jnp.stack(xs, axis=0)
    params = dict(
        emb_W=emb_W, emb_b=emb_b,
        Whi=stack(Whi), Whj=stack(Whj), wrad=stack(wrad), wattr=stack(wattr),
        be1=stack(be1), We2=stack(We2), be2=stack(be2),
        Wc1=stack(Wc1), bc1=stack(bc1), wc2=stack(wc2),
        Wnh=stack(Wnh), Wna=stack(Wna), bn1=stack(bn1),
        Wn2=stack(Wn2), bn2=stack(bn2),
    )
    ref_params = dict(
        emb_W=emb_W, emb_b=emb_b,
        W1=stack(W1_full), be1=params["be1"], We2=params["We2"], be2=params["be2"],
        Wc1=params["Wc1"], bc1=params["bc1"], wc2=params["wc2"],
        Wn1=stack(Wn1_full), bn1=params["bn1"], Wn2=params["Wn2"], bn2=params["bn2"],
    )
    return params, ref_params


def reference_forward(t, xs, node_mask, edge_mask, h_initial, rp, L):
    """Pure-JAX edge-list reference following the PyTorch code structure."""
    B, N, D = xs.shape
    F = h_initial.shape[1]
    H = rp["emb_W"].shape[1]

    rows, cols = [], []
    for i in range(N):
        for j in range(i + 1, N):
            rows += [i, j]
            cols += [j, i]
    rows = jnp.array(rows, jnp.int32)
    cols = jnp.array(cols, jnp.int32)
    rows_all = jnp.concatenate([rows + b * N for b in range(B)])
    cols_all = jnp.concatenate([cols + b * N for b in range(B)])

    nm = node_mask.reshape(B * N, 1)
    x = xs.reshape(B * N, D) * nm
    em_flat = edge_mask.reshape(-1)
    eidx = (rows_all // N) * N * N + (rows_all % N) * N + (cols_all % N)
    em = em_flat[eidx][:, None]

    h = jnp.tile((h_initial * t).reshape(1, -1), (B, 1)).reshape(B * N, F)
    h = h @ rp["emb_W"] + rp["emb_b"]

    eattr = jnp.sum((x[rows_all] - x[cols_all]) ** 2, axis=1, keepdims=True)
    x0 = x
    for l in range(L):
        diff = x[rows_all] - x[cols_all]
        radial = jnp.sum(diff ** 2, axis=1, keepdims=True)
        diff_n = diff / (jnp.sqrt(radial) + 1.0)
        inp = jnp.concatenate([h[rows_all], h[cols_all], radial, eattr], axis=1)
        m = silu(inp @ rp["W1"][l] + rp["be1"][l])
        m = silu(m @ rp["We2"][l] + rp["be2"][l])
        m = m * em
        c = silu(m @ rp["Wc1"][l] + rp["bc1"][l])
        phi = c @ rp["wc2"][l]
        trans = diff_n * phi * em
        x = (x + jnp.zeros((B * N, D)).at[rows_all].add(trans)) * nm
        aggh = jnp.zeros((B * N, H)).at[rows_all].add(m)
        npre = silu(jnp.concatenate([h, aggh], axis=1) @ rp["Wn1"][l] + rp["bn1"][l])
        h = (h + npre @ rp["Wn2"][l] + rp["bn2"][l]) * nm

    vel = ((x - x0) * nm).reshape(B, N, D)
    n_nodes = jnp.sum(node_mask, axis=1, keepdims=True)
    mean = jnp.sum(vel, axis=1, keepdims=True) / n_nodes
    vel = vel - mean * node_mask
    return vel.reshape(B, N * D)


if __name__ == "__main__":
    B, N, D, F, H, L = 2, 8, 3, 8, 32, 4
    key = jax.random.PRNGKey(0)
    k1, k2, k3 = jax.random.split(key, 3)

    h_initial = jax.random.normal(k1, (N, F), jnp.float32)
    xs = jax.random.normal(k2, (B, N, D), jnp.float32)
    t = jnp.float32(0.5)

    # node mask: batch 0 fully active, batch 1 has the last two nodes masked out
    node_mask = jnp.ones((B, N, 1), jnp.float32)
    node_mask = node_mask.at[1, N - 2:, 0].set(0.0)
    eye = jnp.eye(N, dtype=jnp.float32)
    edge_mask = (node_mask * jnp.swapaxes(node_mask, 1, 2)) * (1.0 - eye)  # (B, N, N)

    params, ref_params = init_params(k3, F, H, L)

    vel = egnn_dynamics_ad2_forward(t, xs, node_mask, edge_mask, h_initial, params, L)
    vel = jax.block_until_ready(vel)

    vel_ref = reference_forward(t, xs, node_mask, edge_mask, h_initial, ref_params, L)
    err = float(jnp.max(jnp.abs(vel - vel_ref)))
    assert err < 5e-4, f"max abs diff vs reference: {err}"
    print("KERNEL_OK")
</pallas_src>

<mosaic_0001>
module attributes {stable_mosaic.version = 11 : i64} {
  func.func @kernel(%arg0: i32, %arg1: memref<2x8x3xf32, #tpu.memory_space<vmem>>, %arg2: memref<2x8x1xf32, #tpu.memory_space<vmem>>, %arg3: memref<2x8x8x1xf32, #tpu.memory_space<vmem>>, %arg4: memref<16x8xf32, #tpu.memory_space<vmem>>, %arg5: memref<8x32xf32, #tpu.memory_space<vmem>>, %arg6: memref<1x32xf32, #tpu.memory_space<vmem>>, %arg7: memref<4x32x96xf32, #tpu.memory_space<vmem>>, %arg8: memref<4x4x32x32xf32, #tpu.memory_space<vmem>>, %arg9: memref<4x8x32xf32, #tpu.memory_space<vmem>>, %arg10: memref<2x8x3xf32, #tpu.memory_space<vmem>>) attributes {dimension_semantics = [#tpu.dimension_semantics<parallel>], iteration_bounds = array<i64: 1>, scalar_prefetch = 0 : i64, scratch_operands = 0 : i64, tpu.core_type = #tpu.core_type<tc>, window_params = [{transform_indices = @transform_0, window_bounds = array<i64: 2, 8, 3>}, {transform_indices = @transform_1, window_bounds = array<i64: 2, 8, 1>}, {transform_indices = @transform_2, window_bounds = array<i64: 2, 8, 8, 1>}, {pipeline_mode = #tpu.pipeline_mode<synchronous>, transform_indices = @transform_3, window_bounds = array<i64: 16, 8>}, {pipeline_mode = #tpu.pipeline_mode<synchronous>, transform_indices = @transform_4, window_bounds = array<i64: 8, 32>}, {pipeline_mode = #tpu.pipeline_mode<synchronous>, transform_indices = @transform_5, window_bounds = array<i64: 1, 32>}, {pipeline_mode = #tpu.pipeline_mode<synchronous>, transform_indices = @transform_6, window_bounds = array<i64: 4, 32, 96>}, {pipeline_mode = #tpu.pipeline_mode<synchronous>, transform_indices = @transform_7, window_bounds = array<i64: 4, 4, 32, 32>}, {pipeline_mode = #tpu.pipeline_mode<synchronous>, transform_indices = @transform_8, window_bounds = array<i64: 4, 8, 32>}, {transform_indices = @transform_9, window_bounds = array<i64: 2, 8, 3>}]} {
    %c0 = arith.constant 0 : index
    %c0_0 = arith.constant 0 : index
    %c0_1 = arith.constant 0 : index
    %0 = vector.load %arg2[%c0, %c0_0, %c0_1] : memref<2x8x1xf32, #tpu.memory_space<vmem>>, vector<2x8x1xf32>
    %1 = vector.shape_cast %0 : vector<2x8x1xf32> to vector<16x1xf32>
    %c0_2 = arith.constant 0 : index
    %c0_3 = arith.constant 0 : index
    %c0_4 = arith.constant 0 : index
    %c0_5 = arith.constant 0 : index
    %2 = vector.load %arg3[%c0_2, %c0_3, %c0_4, %c0_5] : memref<2x8x8x1xf32, #tpu.memory_space<vmem>>, vector<2x8x8x1xf32>
    %3 = vector.shape_cast %2 : vector<2x8x8x1xf32> to vector<128x1xf32>
    %c0_6 = arith.constant 0 : index
    %c0_7 = arith.constant 0 : index
    %c0_8 = arith.constant 0 : index
    %4 = vector.load %arg1[%c0_6, %c0_7, %c0_8] : memref<2x8x3xf32, #tpu.memory_space<vmem>>, vector<2x8x3xf32>
    %5 = vector.broadcast %0 : vector<2x8x1xf32> to vector<2x8x3xf32>
    %6 = arith.mulf %4, %5 : vector<2x8x3xf32>
    %c0_9 = arith.constant 0 : index
    %c0_10 = arith.constant 0 : index
    %7 = vector.load %arg4[%c0_9, %c0_10] : memref<16x8xf32, #tpu.memory_space<vmem>>, vector<16x8xf32>
    %c0_11 = arith.constant 0 : index
    %c0_12 = arith.constant 0 : index
    %8 = vector.load %arg5[%c0_11, %c0_12] : memref<8x32xf32, #tpu.memory_space<vmem>>, vector<8x32xf32>
    %cst = arith.constant dense<0.000000e+00> : vector<16x32xf32>
    %9 = tpu.matmul %7, %8, %cst {dimension_numbers = #tpu.dot_dimension_numbers<[1], [0], [0], [1], [0, 0, 1, 1], [], []>} : vector<16x8xf32>, vector<8x32xf32>, vector<16x32xf32> -> vector<16x32xf32>
    %c0_13 = arith.constant 0 : index
    %c0_14 = arith.constant 0 : index
    %10 = vector.load %arg6[%c0_13, %c0_14] : memref<1x32xf32, #tpu.memory_space<vmem>>, vector<1x32xf32>
    %11 = vector.broadcast %10 : vector<1x32xf32> to vector<16x32xf32>
    %12 = arith.addf %9, %11 : vector<16x32xf32>
    %13 = vector.shape_cast %6 : vector<2x8x3xf32> to vector<2x8x1x3xf32>
    %14 = vector.shape_cast %6 : vector<2x8x3xf32> to vector<2x1x8x3xf32>
    %15 = vector.broadcast %13 : vector<2x8x1x3xf32> to vector<2x8x8x3xf32>
    %16 = vector.broadcast %14 : vector<2x1x8x3xf32> to vector<2x8x8x3xf32>
    %17 = arith.subf %15, %16 : vector<2x8x8x3xf32>
    %18 = arith.mulf %17, %17 : vector<2x8x8x3xf32>
    %cst_15 = arith.constant dense<0.000000e+00> : vector<2x8x8xf32>
    %19 = vector.multi_reduction <add>, %18, %cst_15 [3] : vector<2x8x8x3xf32> to vector<2x8x8xf32>
    %20 = vector.shape_cast %19 : vector<2x8x8xf32> to vector<2x8x8x1xf32>
    %c0_16 = arith.constant 0 : index
    %c0_17 = arith.constant 0 : index
    %c0_18 = arith.constant 0 : index
    %c0_19 = arith.constant 0 : index
    %21 = vector.load %arg8[%c0_16, %c0_17, %c0_18, %c0_19] : memref<4x4x32x32xf32, #tpu.memory_space<vmem>>, vector<1x1x32x32xf32>
    %22 = vector.shape_cast %21 : vector<1x1x32x32xf32> to vector<32x32xf32>
    %c0_20 = arith.constant 0 : index
    %c1 = arith.constant 1 : index
    %c0_21 = arith.constant 0 : index
    %c0_22 = arith.constant 0 : index
    %23 = vector.load %arg8[%c0_20, %c1, %c0_21, %c0_22] : memref<4x4x32x32xf32, #tpu.memory_space<vmem>>, vector<1x1x32x32xf32>
    %24 = vector.shape_cast %23 : vector<1x1x32x32xf32> to vector<32x32xf32>
    %c0_23 = arith.constant 0 : index
    %c2 = arith.constant 2 : index
    %c0_24 = arith.constant 0 : index
    %c0_25 = arith.constant 0 : index
    %25 = vector.load %arg8[%c0_23, %c2, %c0_24, %c0_25] : memref<4x4x32x32xf32, #tpu.memory_space<vmem>>, vector<1x1x32x32xf32>
    %26 = vector.shape_cast %25 : vector<1x1x32x32xf32> to vector<32x32xf32>
    %c0_26 = arith.constant 0 : index
    %c3 = arith.constant 3 : index
    %c0_27 = arith.constant 0 : index
    %c0_28 = arith.constant 0 : index
    %27 = vector.load %arg8[%c0_26, %c3, %c0_27, %c0_28] : memref<4x4x32x32xf32, #tpu.memory_space<vmem>>, vector<1x1x32x32xf32>
    %28 = vector.shape_cast %27 : vector<1x1x32x32xf32> to vector<32x32xf32>
    %c0_29 = arith.constant 0 : index
    %c0_30 = arith.constant 0 : index
    %c0_31 = arith.constant 0 : index
    %29 = vector.load %arg9[%c0_29, %c0_30, %c0_31] : memref<4x8x32xf32, #tpu.memory_space<vmem>>, vector<1x1x32xf32>
    %30 = vector.shape_cast %29 : vector<1x1x32xf32> to vector<1x32xf32>
    %c0_32 = arith.constant 0 : index
    %c1_33 = arith.constant 1 : index
    %c0_34 = arith.constant 0 : index
    %31 = vector.load %arg9[%c0_32, %c1_33, %c0_34] : memref<4x8x32xf32, #tpu.memory_space<vmem>>, vector<1x1x32xf32>
    %32 = vector.shape_cast %31 : vector<1x1x32xf32> to vector<1x32xf32>
    %c0_35 = arith.constant 0 : index
    %c2_36 = arith.constant 2 : index
    %c0_37 = arith.constant 0 : index
    %33 = vector.load %arg9[%c0_35, %c2_36, %c0_37] : memref<4x8x32xf32, #tpu.memory_space<vmem>>, vector<1x1x32xf32>
    %34 = vector.shape_cast %33 : vector<1x1x32xf32> to vector<1x32xf32>
    %c0_38 = arith.constant 0 : index
    %c3_39 = arith.constant 3 : index
    %c0_40 = arith.constant 0 : index
    %35 = vector.load %arg9[%c0_38, %c3_39, %c0_40] : memref<4x8x32xf32, #tpu.memory_space<vmem>>, vector<1x1x32xf32>
    %36 = vector.shape_cast %35 : vector<1x1x32xf32> to vector<1x32xf32>
    %c0_41 = arith.constant 0 : index
    %c4 = arith.constant 4 : index
    %c0_42 = arith.constant 0 : index
    %37 = vector.load %arg9[%c0_41, %c4, %c0_42] : memref<4x8x32xf32, #tpu.memory_space<vmem>>, vector<1x1x32xf32>
    %38 = vector.shape_cast %37 : vector<1x1x32xf32> to vector<1x32xf32>
    %c0_43 = arith.constant 0 : index
    %c5 = arith.constant 5 : index
    %c0_44 = arith.constant 0 : index
    %39 = vector.load %arg9[%c0_43, %c5, %c0_44] : memref<4x8x32xf32, #tpu.memory_space<vmem>>, vector<1x1x32xf32>
    %40 = vector.shape_cast %39 : vector<1x1x32xf32> to vector<1x32xf32>
    %c0_45 = arith.constant 0 : index
    %c6 = arith.constant 6 : index
    %c0_46 = arith.constant 0 : index
    %41 = vector.load %arg9[%c0_45, %c6, %c0_46] : memref<4x8x32xf32, #tpu.memory_space<vmem>>, vector<1x1x32xf32>
    %42 = vector.shape_cast %41 : vector<1x1x32xf32> to vector<1x32xf32>
    %c0_47 = arith.constant 0 : index
    %c7 = arith.constant 7 : index
    %c0_48 = arith.constant 0 : index
    %43 = vector.load %arg9[%c0_47, %c7, %c0_48] : memref<4x8x32xf32, #tpu.memory_space<vmem>>, vector<1x1x32xf32>
    %44 = vector.shape_cast %43 : vector<1x1x32xf32> to vector<1x32xf32>
    %45 = vector.shape_cast %6 : vector<2x8x3xf32> to vector<2x8x1x3xf32>
    %46 = vector.shape_cast %6 : vector<2x8x3xf32> to vector<2x1x8x3xf32>
    %47 = vector.broadcast %45 : vector<2x8x1x3xf32> to vector<2x8x8x3xf32>
    %48 = vector.broadcast %46 : vector<2x1x8x3xf32> to vector<2x8x8x3xf32>
    %49 = arith.subf %47, %48 : vector<2x8x8x3xf32>
    %50 = arith.mulf %49, %49 : vector<2x8x8x3xf32>
    %cst_49 = arith.constant dense<0.000000e+00> : vector<2x8x8xf32>
    %51 = vector.multi_reduction <add>, %50, %cst_49 [3] : vector<2x8x8x3xf32> to vector<2x8x8xf32>
    %52 = vector.shape_cast %51 : vector<2x8x8xf32> to vector<2x8x8x1xf32>
    %53 = math.sqrt %52 : vector<2x8x8x1xf32>
    %cst_50 = arith.constant 1.000000e+00 : f32
    %54 = vector.broadcast %cst_50 : f32 to vector<2x8x8x1xf32>
    %55 = arith.addf %53, %54 : vector<2x8x8x1xf32>
    %56 = tpu.reciprocal %55 : vector<2x8x8x1xf32> -> vector<2x8x8x1xf32>
    %57 = vector.broadcast %56 : vector<2x8x8x1xf32> to vector<2x8x8x3xf32>
    %58 = arith.mulf %49, %57 : vector<2x8x8x3xf32>
    %c0_51 = arith.constant 0 : index
    %c0_52 = arith.constant 0 : index
    %c0_53 = arith.constant 0 : index
    %59 = vector.load %arg7[%c0_51, %c0_52, %c0_53] : memref<4x32x96xf32, #tpu.memory_space<vmem>>, vector<1x32x96xf32>
    %60 = vector.shape_cast %59 : vector<1x32x96xf32> to vector<32x96xf32>
    %cst_54 = arith.constant dense<0.000000e+00> : vector<16x96xf32>
    %61 = tpu.matmul %12, %60, %cst_54 {dimension_numbers = #tpu.dot_dimension_numbers<[1], [0], [0], [1], [0, 0, 1, 1], [], []>} : vector<16x32xf32>, vector<32x96xf32>, vector<16x96xf32> -> vector<16x96xf32>
    %62 = vector.extract_strided_slice %61 {offsets = [0, 0], sizes = [16, 32], strides = [1, 1]} : vector<16x96xf32> to vector<16x32xf32>
    %63 = vector.shape_cast %62 : vector<16x32xf32> to vector<2x8x32xf32>
    %64 = vector.extract_strided_slice %61 {offsets = [0, 32], sizes = [16, 32], strides = [1, 1]} : vector<16x96xf32> to vector<16x32xf32>
    %65 = vector.shape_cast %64 : vector<16x32xf32> to vector<2x8x32xf32>
    %66 = vector.extract_strided_slice %61 {offsets = [0, 64], sizes = [16, 32], strides = [1, 1]} : vector<16x96xf32> to vector<16x32xf32>
    %67 = vector.shape_cast %63 : vector<2x8x32xf32> to vector<2x8x1x32xf32>
    %68 = vector.shape_cast %65 : vector<2x8x32xf32> to vector<2x1x8x32xf32>
    %69 = vector.broadcast %67 : vector<2x8x1x32xf32> to vector<2x8x8x32xf32>
    %70 = vector.broadcast %68 : vector<2x1x8x32xf32> to vector<2x8x8x32xf32>
    %71 = arith.addf %69, %70 : vector<2x8x8x32xf32>
    %72 = vector.shape_cast %30 : vector<1x32xf32> to vector<1x1x1x32xf32>
    %73 = vector.broadcast %52 : vector<2x8x8x1xf32> to vector<2x8x8x32xf32>
    %74 = vector.broadcast %72 : vector<1x1x1x32xf32> to vector<2x8x8x32xf32>
    %75 = arith.mulf %73, %74 : vector<2x8x8x32xf32>
    %76 = arith.addf %71, %75 : vector<2x8x8x32xf32>
    %77 = vector.shape_cast %32 : vector<1x32xf32> to vector<1x1x1x32xf32>
    %78 = vector.broadcast %20 : vector<2x8x8x1xf32> to vector<2x8x8x32xf32>
    %79 = vector.broadcast %77 : vector<1x1x1x32xf32> to vector<2x8x8x32xf32>
    %80 = arith.mulf %78, %79 : vector<2x8x8x32xf32>
    %81 = arith.addf %76, %80 : vector<2x8x8x32xf32>
    %82 = vector.shape_cast %36 : vector<1x32xf32> to vector<1x1x1x32xf32>
    %83 = vector.broadcast %82 : vector<1x1x1x32xf32> to vector<2x8x8x32xf32>
    %84 = arith.addf %81, %83 : vector<2x8x8x32xf32>
    %85 = arith.negf %84 : vector<2x8x8x32xf32>
    %86 = math.exp %85 : vector<2x8x8x32xf32>
    %cst_55 = arith.constant 1.000000e+00 : f32
    %87 = vector.broadcast %cst_55 : f32 to vector<2x8x8x32xf32>
    %88 = arith.addf %87, %86 : vector<2x8x8x32xf32>
    %89 = arith.divf %87, %88 : vector<2x8x8x32xf32>
    %90 = arith.mulf %84, %89 : vector<2x8x8x32xf32>
    %91 = vector.shape_cast %90 : vector<2x8x8x32xf32> to vector<128x32xf32>
    %cst_56 = arith.constant dense<0.000000e+00> : vector<128x32xf32>
    %92 = tpu.matmul %91, %22, %cst_56 {dimension_numbers = #tpu.dot_dimension_numbers<[1], [0], [0], [1], [0, 0, 1, 1], [], []>} : vector<128x32xf32>, vector<32x32xf32>, vector<128x32xf32> -> vector<128x32xf32>
    %93 = vector.broadcast %38 : vector<1x32xf32> to vector<128x32xf32>
    %94 = arith.addf %92, %93 : vector<128x32xf32>
    %95 = arith.negf %94 : vector<128x32xf32>
    %96 = math.exp %95 : vector<128x32xf32>
    %cst_57 = arith.constant 1.000000e+00 : f32
    %97 = vector.broadcast %cst_57 : f32 to vector<128x32xf32>
    %98 = arith.addf %97, %96 : vector<128x32xf32>
    %99 = arith.divf %97, %98 : vector<128x32xf32>
    %100 = arith.mulf %94, %99 : vector<128x32xf32>
    %101 = vector.broadcast %3 : vector<128x1xf32> to vector<128x32xf32>
    %102 = arith.mulf %100, %101 : vector<128x32xf32>
    %cst_58 = arith.constant dense<0.000000e+00> : vector<128x32xf32>
    %103 = tpu.matmul %102, %24, %cst_58 {dimension_numbers = #tpu.dot_dimension_numbers<[1], [0], [0], [1], [0, 0, 1, 1], [], []>} : vector<128x32xf32>, vector<32x32xf32>, vector<128x32xf32> -> vector<128x32xf32>
    %104 = vector.broadcast %40 : vector<1x32xf32> to vector<128x32xf32>
    %105 = arith.addf %103, %104 : vector<128x32xf32>
    %106 = arith.negf %105 : vector<128x32xf32>
    %107 = math.exp %106 : vector<128x32xf32>
    %cst_59 = arith.constant 1.000000e+00 : f32
    %108 = vector.broadcast %cst_59 : f32 to vector<128x32xf32>
    %109 = arith.addf %108, %107 : vector<128x32xf32>
    %110 = arith.divf %108, %109 : vector<128x32xf32>
    %111 = arith.mulf %105, %110 : vector<128x32xf32>
    %112 = vector.broadcast %34 : vector<1x32xf32> to vector<128x32xf32>
    %113 = arith.mulf %111, %112 : vector<128x32xf32>
    %cst_60 = arith.constant dense<0.000000e+00> : vector<128xf32>
    %114 = vector.multi_reduction <add>, %113, %cst_60 [1] : vector<128x32xf32> to vector<128xf32>
    %115 = vector.shape_cast %114 : vector<128xf32> to vector<128x1xf32>
    %116 = vector.shape_cast %115 : vector<128x1xf32> to vector<2x8x8x1xf32>
    %117 = arith.mulf %116, %2 : vector<2x8x8x1xf32>
    %118 = vector.broadcast %117 : vector<2x8x8x1xf32> to vector<2x8x8x3xf32>
    %119 = arith.mulf %58, %118 : vector<2x8x8x3xf32>
    %cst_61 = arith.constant dense<0.000000e+00> : vector<2x8x3xf32>
    %120 = vector.multi_reduction <add>, %119, %cst_61 [2] : vector<2x8x8x3xf32> to vector<2x8x3xf32>
    %121 = arith.addf %6, %120 : vector<2x8x3xf32>
    %122 = vector.broadcast %0 : vector<2x8x1xf32> to vector<2x8x3xf32>
    %123 = arith.mulf %121, %122 : vector<2x8x3xf32>
    %124 = vector.shape_cast %102 : vector<128x32xf32> to vector<2x8x8x32xf32>
    %cst_62 = arith.constant dense<0.000000e+00> : vector<2x8x32xf32>
    %125 = vector.multi_reduction <add>, %124, %cst_62 [2] : vector<2x8x8x32xf32> to vector<2x8x32xf32>
    %126 = vector.shape_cast %125 : vector<2x8x32xf32> to vector<16x32xf32>
    %cst_63 = arith.constant dense<0.000000e+00> : vector<16x32xf32>
    %127 = tpu.matmul %126, %26, %cst_63 {dimension_numbers = #tpu.dot_dimension_numbers<[1], [0], [0], [1], [0, 0, 1, 1], [], []>} : vector<16x32xf32>, vector<32x32xf32>, vector<16x32xf32> -> vector<16x32xf32>
    %128 = arith.addf %66, %127 : vector<16x32xf32>
    %129 = vector.broadcast %42 : vector<1x32xf32> to vector<16x32xf32>
    %130 = arith.addf %128, %129 : vector<16x32xf32>
    %131 = arith.negf %130 : vector<16x32xf32>
    %132 = math.exp %131 : vector<16x32xf32>
    %cst_64 = arith.constant 1.000000e+00 : f32
    %133 = vector.broadcast %cst_64 : f32 to vector<16x32xf32>
    %134 = arith.addf %133, %132 : vector<16x32xf32>
    %135 = arith.divf %133, %134 : vector<16x32xf32>
    %136 = arith.mulf %130, %135 : vector<16x32xf32>
    %cst_65 = arith.constant dense<0.000000e+00> : vector<16x32xf32>
    %137 = tpu.matmul %136, %28, %cst_65 {dimension_numbers = #tpu.dot_dimension_numbers<[1], [0], [0], [1], [0, 0, 1, 1], [], []>} : vector<16x32xf32>, vector<32x32xf32>, vector<16x32xf32> -> vector<16x32xf32>
    %138 = arith.addf %12, %137 : vector<16x32xf32>
    %139 = vector.broadcast %44 : vector<1x32xf32> to vector<16x32xf32>
    %140 = arith.addf %138, %139 : vector<16x32xf32>
    %141 = vector.broadcast %1 : vector<16x1xf32> to vector<16x32xf32>
    %142 = arith.mulf %140, %141 : vector<16x32xf32>
    %c1_66 = arith.constant 1 : index
    %c0_67 = arith.constant 0 : index
    %c0_68 = arith.constant 0 : index
    %c0_69 = arith.constant 0 : index
    %143 = vector.load %arg8[%c1_66, %c0_67, %c0_68, %c0_69] : memref<4x4x32x32xf32, #tpu.memory_space<vmem>>, vector<1x1x32x32xf32>
    %144 = vector.shape_cast %143 : vector<1x1x32x32xf32> to vector<32x32xf32>
    %c1_70 = arith.constant 1 : index
    %c1_71 = arith.constant 1 : index
    %c0_72 = arith.constant 0 : index
    %c0_73 = arith.constant 0 : index
    %145 = vector.load %arg8[%c1_70, %c1_71, %c0_72, %c0_73] : memref<4x4x32x32xf32, #tpu.memory_space<vmem>>, vector<1x1x32x32xf32>
    %146 = vector.shape_cast %145 : vector<1x1x32x32xf32> to vector<32x32xf32>
    %c1_74 = arith.constant 1 : index
    %c2_75 = arith.constant 2 : index
    %c0_76 = arith.constant 0 : index
    %c0_77 = arith.constant 0 : index
    %147 = vector.load %arg8[%c1_74, %c2_75, %c0_76, %c0_77] : memref<4x4x32x32xf32, #tpu.memory_space<vmem>>, vector<1x1x32x32xf32>
    %148 = vector.shape_cast %147 : vector<1x1x32x32xf32> to vector<32x32xf32>
    %c1_78 = arith.constant 1 : index
    %c3_79 = arith.constant 3 : index
    %c0_80 = arith.constant 0 : index
    %c0_81 = arith.constant 0 : index
    %149 = vector.load %arg8[%c1_78, %c3_79, %c0_80, %c0_81] : memref<4x4x32x32xf32, #tpu.memory_space<vmem>>, vector<1x1x32x32xf32>
    %150 = vector.shape_cast %149 : vector<1x1x32x32xf32> to vector<32x32xf32>
    %c1_82 = arith.constant 1 : index
    %c0_83 = arith.constant 0 : index
    %c0_84 = arith.constant 0 : index
    %151 = vector.load %arg9[%c1_82, %c0_83, %c0_84] : memref<4x8x32xf32, #tpu.memory_space<vmem>>, vector<1x1x32xf32>
    %152 = vector.shape_cast %151 : vector<1x1x32xf32> to vector<1x32xf32>
    %c1_85 = arith.constant 1 : index
    %c1_86 = arith.constant 1 : index
    %c0_87 = arith.constant 0 : index
    %153 = vector.load %arg9[%c1_85, %c1_86, %c0_87] : memref<4x8x32xf32, #tpu.memory_space<vmem>>, vector<1x1x32xf32>
    %154 = vector.shape_cast %153 : vector<1x1x32xf32> to vector<1x32xf32>
    %c1_88 = arith.constant 1 : index
    %c2_89 = arith.constant 2 : index
    %c0_90 = arith.constant 0 : index
    %155 = vector.load %arg9[%c1_88, %c2_89, %c0_90] : memref<4x8x32xf32, #tpu.memory_space<vmem>>, vector<1x1x32xf32>
    %156 = vector.shape_cast %155 : vector<1x1x32xf32> to vector<1x32xf32>
    %c1_91 = arith.constant 1 : index
    %c3_92 = arith.constant 3 : index
    %c0_93 = arith.constant 0 : index
    %157 = vector.load %arg9[%c1_91, %c3_92, %c0_93] : memref<4x8x32xf32, #tpu.memory_space<vmem>>, vector<1x1x32xf32>
    %158 = vector.shape_cast %157 : vector<1x1x32xf32> to vector<1x32xf32>
    %c1_94 = arith.constant 1 : index
    %c4_95 = arith.constant 4 : index
    %c0_96 = arith.constant 0 : index
    %159 = vector.load %arg9[%c1_94, %c4_95, %c0_96] : memref<4x8x32xf32, #tpu.memory_space<vmem>>, vector<1x1x32xf32>
    %160 = vector.shape_cast %159 : vector<1x1x32xf32> to vector<1x32xf32>
    %c1_97 = arith.constant 1 : index
    %c5_98 = arith.constant 5 : index
    %c0_99 = arith.constant 0 : index
    %161 = vector.load %arg9[%c1_97, %c5_98, %c0_99] : memref<4x8x32xf32, #tpu.memory_space<vmem>>, vector<1x1x32xf32>
    %162 = vector.shape_cast %161 : vector<1x1x32xf32> to vector<1x32xf32>
    %c1_100 = arith.constant 1 : index
    %c6_101 = arith.constant 6 : index
    %c0_102 = arith.constant 0 : index
    %163 = vector.load %arg9[%c1_100, %c6_101, %c0_102] : memref<4x8x32xf32, #tpu.memory_space<vmem>>, vector<1x1x32xf32>
    %164 = vector.shape_cast %163 : vector<1x1x32xf32> to vector<1x32xf32>
    %c1_103 = arith.constant 1 : index
    %c7_104 = arith.constant 7 : index
    %c0_105 = arith.constant 0 : index
    %165 = vector.load %arg9[%c1_103, %c7_104, %c0_105] : memref<4x8x32xf32, #tpu.memory_space<vmem>>, vector<1x1x32xf32>
    %166 = vector.shape_cast %165 : vector<1x1x32xf32> to vector<1x32xf32>
    %167 = vector.shape_cast %123 : vector<2x8x3xf32> to vector<2x8x1x3xf32>
    %168 = vector.shape_cast %123 : vector<2x8x3xf32> to vector<2x1x8x3xf32>
    %169 = vector.broadcast %167 : vector<2x8x1x3xf32> to vector<2x8x8x3xf32>
    %170 = vector.broadcast %168 : vector<2x1x8x3xf32> to vector<2x8x8x3xf32>
    %171 = arith.subf %169, %170 : vector<2x8x8x3xf32>
    %172 = arith.mulf %171, %171 : vector<2x8x8x3xf32>
    %cst_106 = arith.constant dense<0.000000e+00> : vector<2x8x8xf32>
    %173 = vector.multi_reduction <add>, %172, %cst_106 [3] : vector<2x8x8x3xf32> to vector<2x8x8xf32>
    %174 = vector.shape_cast %173 : vector<2x8x8xf32> to vector<2x8x8x1xf32>
    %175 = math.sqrt %174 : vector<2x8x8x1xf32>
    %cst_107 = arith.constant 1.000000e+00 : f32
    %176 = vector.broadcast %cst_107 : f32 to vector<2x8x8x1xf32>
    %177 = arith.addf %175, %176 : vector<2x8x8x1xf32>
    %178 = tpu.reciprocal %177 : vector<2x8x8x1xf32> -> vector<2x8x8x1xf32>
    %179 = vector.broadcast %178 : vector<2x8x8x1xf32> to vector<2x8x8x3xf32>
    %180 = arith.mulf %171, %179 : vector<2x8x8x3xf32>
    %c1_108 = arith.constant 1 : index
    %c0_109 = arith.constant 0 : index
    %c0_110 = arith.constant 0 : index
    %181 = vector.load %arg7[%c1_108, %c0_109, %c0_110] : memref<4x32x96xf32, #tpu.memory_space<vmem>>, vector<1x32x96xf32>
    %182 = vector.shape_cast %181 : vector<1x32x96xf32> to vector<32x96xf32>
    %cst_111 = arith.constant dense<0.000000e+00> : vector<16x96xf32>
    %183 = tpu.matmul %142, %182, %cst_111 {dimension_numbers = #tpu.dot_dimension_numbers<[1], [0], [0], [1], [0, 0, 1, 1], [], []>} : vector<16x32xf32>, vector<32x96xf32>, vector<16x96xf32> -> vector<16x96xf32>
    %184 = vector.extract_strided_slice %183 {offsets = [0, 0], sizes = [16, 32], strides = [1, 1]} : vector<16x96xf32> to vector<16x32xf32>
    %185 = vector.shape_cast %184 : vector<16x32xf32> to vector<2x8x32xf32>
    %186 = vector.extract_strided_slice %183 {offsets = [0, 32], sizes = [16, 32], strides = [1, 1]} : vector<16x96xf32> to vector<16x32xf32>
    %187 = vector.shape_cast %186 : vector<16x32xf32> to vector<2x8x32xf32>
    %188 = vector.extract_strided_slice %183 {offsets = [0, 64], sizes = [16, 32], strides = [1, 1]} : vector<16x96xf32> to vector<16x32xf32>
    %189 = vector.shape_cast %185 : vector<2x8x32xf32> to vector<2x8x1x32xf32>
    %190 = vector.shape_cast %187 : vector<2x8x32xf32> to vector<2x1x8x32xf32>
    %191 = vector.broadcast %189 : vector<2x8x1x32xf32> to vector<2x8x8x32xf32>
    %192 = vector.broadcast %190 : vector<2x1x8x32xf32> to vector<2x8x8x32xf32>
    %193 = arith.addf %191, %192 : vector<2x8x8x32xf32>
    %194 = vector.shape_cast %152 : vector<1x32xf32> to vector<1x1x1x32xf32>
    %195 = vector.broadcast %174 : vector<2x8x8x1xf32> to vector<2x8x8x32xf32>
    %196 = vector.broadcast %194 : vector<1x1x1x32xf32> to vector<2x8x8x32xf32>
    %197 = arith.mulf %195, %196 : vector<2x8x8x32xf32>
    %198 = arith.addf %193, %197 : vector<2x8x8x32xf32>
    %199 = vector.shape_cast %154 : vector<1x32xf32> to vector<1x1x1x32xf32>
    %200 = vector.broadcast %20 : vector<2x8x8x1xf32> to vector<2x8x8x32xf32>
    %201 = vector.broadcast %199 : vector<1x1x1x32xf32> to vector<2x8x8x32xf32>
    %202 = arith.mulf %200, %201 : vector<2x8x8x32xf32>
    %203 = arith.addf %198, %202 : vector<2x8x8x32xf32>
    %204 = vector.shape_cast %158 : vector<1x32xf32> to vector<1x1x1x32xf32>
    %205 = vector.broadcast %204 : vector<1x1x1x32xf32> to vector<2x8x8x32xf32>
    %206 = arith.addf %203, %205 : vector<2x8x8x32xf32>
    %207 = arith.negf %206 : vector<2x8x8x32xf32>
    %208 = math.exp %207 : vector<2x8x8x32xf32>
    %cst_112 = arith.constant 1.000000e+00 : f32
    %209 = vector.broadcast %cst_112 : f32 to vector<2x8x8x32xf32>
    %210 = arith.addf %209, %208 : vector<2x8x8x32xf32>
    %211 = arith.divf %209, %210 : vector<2x8x8x32xf32>
    %212 = arith.mulf %206, %211 : vector<2x8x8x32xf32>
    %213 = vector.shape_cast %212 : vector<2x8x8x32xf32> to vector<128x32xf32>
    %cst_113 = arith.constant dense<0.000000e+00> : vector<128x32xf32>
    %214 = tpu.matmul %213, %144, %cst_113 {dimension_numbers = #tpu.dot_dimension_numbers<[1], [0], [0], [1], [0, 0, 1, 1], [], []>} : vector<128x32xf32>, vector<32x32xf32>, vector<128x32xf32> -> vector<128x32xf32>
    %215 = vector.broadcast %160 : vector<1x32xf32> to vector<128x32xf32>
    %216 = arith.addf %214, %215 : vector<128x32xf32>
    %217 = arith.negf %216 : vector<128x32xf32>
    %218 = math.exp %217 : vector<128x32xf32>
    %cst_114 = arith.constant 1.000000e+00 : f32
    %219 = vector.broadcast %cst_114 : f32 to vector<128x32xf32>
    %220 = arith.addf %219, %218 : vector<128x32xf32>
    %221 = arith.divf %219, %220 : vector<128x32xf32>
    %222 = arith.mulf %216, %221 : vector<128x32xf32>
    %223 = vector.broadcast %3 : vector<128x1xf32> to vector<128x32xf32>
    %224 = arith.mulf %222, %223 : vector<128x32xf32>
    %cst_115 = arith.constant dense<0.000000e+00> : vector<128x32xf32>
    %225 = tpu.matmul %224, %146, %cst_115 {dimension_numbers = #tpu.dot_dimension_numbers<[1], [0], [0], [1], [0, 0, 1, 1], [], []>} : vector<128x32xf32>, vector<32x32xf32>, vector<128x32xf32> -> vector<128x32xf32>
    %226 = vector.broadcast %162 : vector<1x32xf32> to vector<128x32xf32>
    %227 = arith.addf %225, %226 : vector<128x32xf32>
    %228 = arith.negf %227 : vector<128x32xf32>
    %229 = math.exp %228 : vector<128x32xf32>
    %cst_116 = arith.constant 1.000000e+00 : f32
    %230 = vector.broadcast %cst_116 : f32 to vector<128x32xf32>
    %231 = arith.addf %230, %229 : vector<128x32xf32>
    %232 = arith.divf %230, %231 : vector<128x32xf32>
    %233 = arith.mulf %227, %232 : vector<128x32xf32>
    %234 = vector.broadcast %156 : vector<1x32xf32> to vector<128x32xf32>
    %235 = arith.mulf %233, %234 : vector<128x32xf32>
    %cst_117 = arith.constant dense<0.000000e+00> : vector<128xf32>
    %236 = vector.multi_reduction <add>, %235, %cst_117 [1] : vector<128x32xf32> to vector<128xf32>
    %237 = vector.shape_cast %236 : vector<128xf32> to vector<128x1xf32>
    %238 = vector.shape_cast %237 : vector<128x1xf32> to vector<2x8x8x1xf32>
    %239 = arith.mulf %238, %2 : vector<2x8x8x1xf32>
    %240 = vector.broadcast %239 : vector<2x8x8x1xf32> to vector<2x8x8x3xf32>
    %241 = arith.mulf %180, %240 : vector<2x8x8x3xf32>
    %cst_118 = arith.constant dense<0.000000e+00> : vector<2x8x3xf32>
    %242 = vector.multi_reduction <add>, %241, %cst_118 [2] : vector<2x8x8x3xf32> to vector<2x8x3xf32>
    %243 = arith.addf %123, %242 : vector<2x8x3xf32>
    %244 = vector.broadcast %0 : vector<2x8x1xf32> to vector<2x8x3xf32>
    %245 = arith.mulf %243, %244 : vector<2x8x3xf32>
    %246 = vector.shape_cast %224 : vector<128x32xf32> to vector<2x8x8x32xf32>
    %cst_119 = arith.constant dense<0.000000e+00> : vector<2x8x32xf32>
    %247 = vector.multi_reduction <add>, %246, %cst_119 [2] : vector<2x8x8x32xf32> to vector<2x8x32xf32>
    %248 = vector.shape_cast %247 : vector<2x8x32xf32> to vector<16x32xf32>
    %cst_120 = arith.constant dense<0.000000e+00> : vector<16x32xf32>
    %249 = tpu.matmul %248, %148, %cst_120 {dimension_numbers = #tpu.dot_dimension_numbers<[1], [0], [0], [1], [0, 0, 1, 1], [], []>} : vector<16x32xf32>, vector<32x32xf32>, vector<16x32xf32> -> vector<16x32xf32>
    %250 = arith.addf %188, %249 : vector<16x32xf32>
    %251 = vector.broadcast %164 : vector<1x32xf32> to vector<16x32xf32>
    %252 = arith.addf %250, %251 : vector<16x32xf32>
    %253 = arith.negf %252 : vector<16x32xf32>
    %254 = math.exp %253 : vector<16x32xf32>
    %cst_121 = arith.constant 1.000000e+00 : f32
    %255 = vector.broadcast %cst_121 : f32 to vector<16x32xf32>
    %256 = arith.addf %255, %254 : vector<16x32xf32>
    %257 = arith.divf %255, %256 : vector<16x32xf32>
    %258 = arith.mulf %252, %257 : vector<16x32xf32>
    %cst_122 = arith.constant dense<0.000000e+00> : vector<16x32xf32>
    %259 = tpu.matmul %258, %150, %cst_122 {dimension_numbers = #tpu.dot_dimension_numbers<[1], [0], [0], [1], [0, 0, 1, 1], [], []>} : vector<16x32xf32>, vector<32x32xf32>, vector<16x32xf32> -> vector<16x32xf32>
    %260 = arith.addf %142, %259 : vector<16x32xf32>
    %261 = vector.broadcast %166 : vector<1x32xf32> to vector<16x32xf32>
    %262 = arith.addf %260, %261 : vector<16x32xf32>
    %263 = vector.broadcast %1 : vector<16x1xf32> to vector<16x32xf32>
    %264 = arith.mulf %262, %263 : vector<16x32xf32>
    %c2_123 = arith.constant 2 : index
    %c0_124 = arith.constant 0 : index
    %c0_125 = arith.constant 0 : index
    %c0_126 = arith.constant 0 : index
    %265 = vector.load %arg8[%c2_123, %c0_124, %c0_125, %c0_126] : memref<4x4x32x32xf32, #tpu.memory_space<vmem>>, vector<1x1x32x32xf32>
    %266 = vector.shape_cast %265 : vector<1x1x32x32xf32> to vector<32x32xf32>
    %c2_127 = arith.constant 2 : index
    %c1_128 = arith.constant 1 : index
    %c0_129 = arith.constant 0 : index
    %c0_130 = arith.constant 0 : index
    %267 = vector.load %arg8[%c2_127, %c1_128, %c0_129, %c0_130] : memref<4x4x32x32xf32, #tpu.memory_space<vmem>>, vector<1x1x32x32xf32>
    %268 = vector.shape_cast %267 : vector<1x1x32x32xf32> to vector<32x32xf32>
    %c2_131 = arith.constant 2 : index
    %c2_132 = arith.constant 2 : index
    %c0_133 = arith.constant 0 : index
    %c0_134 = arith.constant 0 : index
    %269 = vector.load %arg8[%c2_131, %c2_132, %c0_133, %c0_134] : memref<4x4x32x32xf32, #tpu.memory_space<vmem>>, vector<1x1x32x32xf32>
    %270 = vector.shape_cast %269 : vector<1x1x32x32xf32> to vector<32x32xf32>
    %c2_135 = arith.constant 2 : index
    %c3_136 = arith.constant 3 : index
    %c0_137 = arith.constant 0 : index
    %c0_138 = arith.constant 0 : index
    %271 = vector.load %arg8[%c2_135, %c3_136, %c0_137, %c0_138] : memref<4x4x32x32xf32, #tpu.memory_space<vmem>>, vector<1x1x32x32xf32>
    %272 = vector.shape_cast %271 : vector<1x1x32x32xf32> to vector<32x32xf32>
    %c2_139 = arith.constant 2 : index
    %c0_140 = arith.constant 0 : index
    %c0_141 = arith.constant 0 : index
    %273 = vector.load %arg9[%c2_139, %c0_140, %c0_141] : memref<4x8x32xf32, #tpu.memory_space<vmem>>, vector<1x1x32xf32>
    %274 = vector.shape_cast %273 : vector<1x1x32xf32> to vector<1x32xf32>
    %c2_142 = arith.constant 2 : index
    %c1_143 = arith.constant 1 : index
    %c0_144 = arith.constant 0 : index
    %275 = vector.load %arg9[%c2_142, %c1_143, %c0_144] : memref<4x8x32xf32, #tpu.memory_space<vmem>>, vector<1x1x32xf32>
    %276 = vector.shape_cast %275 : vector<1x1x32xf32> to vector<1x32xf32>
    %c2_145 = arith.constant 2 : index
    %c2_146 = arith.constant 2 : index
    %c0_147 = arith.constant 0 : index
    %277 = vector.load %arg9[%c2_145, %c2_146, %c0_147] : memref<4x8x32xf32, #tpu.memory_space<vmem>>, vector<1x1x32xf32>
    %278 = vector.shape_cast %277 : vector<1x1x32xf32> to vector<1x32xf32>
    %c2_148 = arith.constant 2 : index
    %c3_149 = arith.constant 3 : index
    %c0_150 = arith.constant 0 : index
    %279 = vector.load %arg9[%c2_148, %c3_149, %c0_150] : memref<4x8x32xf32, #tpu.memory_space<vmem>>, vector<1x1x32xf32>
    %280 = vector.shape_cast %279 : vector<1x1x32xf32> to vector<1x32xf32>
    %c2_151 = arith.constant 2 : index
    %c4_152 = arith.constant 4 : index
    %c0_153 = arith.constant 0 : index
    %281 = vector.load %arg9[%c2_151, %c4_152, %c0_153] : memref<4x8x32xf32, #tpu.memory_space<vmem>>, vector<1x1x32xf32>
    %282 = vector.shape_cast %281 : vector<1x1x32xf32> to vector<1x32xf32>
    %c2_154 = arith.constant 2 : index
    %c5_155 = arith.constant 5 : index
    %c0_156 = arith.constant 0 : index
    %283 = vector.load %arg9[%c2_154, %c5_155, %c0_156] : memref<4x8x32xf32, #tpu.memory_space<vmem>>, vector<1x1x32xf32>
    %284 = vector.shape_cast %283 : vector<1x1x32xf32> to vector<1x32xf32>
    %c2_157 = arith.constant 2 : index
    %c6_158 = arith.constant 6 : index
    %c0_159 = arith.constant 0 : index
    %285 = vector.load %arg9[%c2_157, %c6_158, %c0_159] : memref<4x8x32xf32, #tpu.memory_space<vmem>>, vector<1x1x32xf32>
    %286 = vector.shape_cast %285 : vector<1x1x32xf32> to vector<1x32xf32>
    %c2_160 = arith.constant 2 : index
    %c7_161 = arith.constant 7 : index
    %c0_162 = arith.constant 0 : index
    %287 = vector.load %arg9[%c2_160, %c7_161, %c0_162] : memref<4x8x32xf32, #tpu.memory_space<vmem>>, vector<1x1x32xf32>
    %288 = vector.shape_cast %287 : vector<1x1x32xf32> to vector<1x32xf32>
    %289 = vector.shape_cast %245 : vector<2x8x3xf32> to vector<2x8x1x3xf32>
    %290 = vector.shape_cast %245 : vector<2x8x3xf32> to vector<2x1x8x3xf32>
    %291 = vector.broadcast %289 : vector<2x8x1x3xf32> to vector<2x8x8x3xf32>
    %292 = vector.broadcast %290 : vector<2x1x8x3xf32> to vector<2x8x8x3xf32>
    %293 = arith.subf %291, %292 : vector<2x8x8x3xf32>
    %294 = arith.mulf %293, %293 : vector<2x8x8x3xf32>
    %cst_163 = arith.constant dense<0.000000e+00> : vector<2x8x8xf32>
    %295 = vector.multi_reduction <add>, %294, %cst_163 [3] : vector<2x8x8x3xf32> to vector<2x8x8xf32>
    %296 = vector.shape_cast %295 : vector<2x8x8xf32> to vector<2x8x8x1xf32>
    %297 = math.sqrt %296 : vector<2x8x8x1xf32>
    %cst_164 = arith.constant 1.000000e+00 : f32
    %298 = vector.broadcast %cst_164 : f32 to vector<2x8x8x1xf32>
    %299 = arith.addf %297, %298 : vector<2x8x8x1xf32>
    %300 = tpu.reciprocal %299 : vector<2x8x8x1xf32> -> vector<2x8x8x1xf32>
    %301 = vector.broadcast %300 : vector<2x8x8x1xf32> to vector<2x8x8x3xf32>
    %302 = arith.mulf %293, %301 : vector<2x8x8x3xf32>
    %c2_165 = arith.constant 2 : index
    %c0_166 = arith.constant 0 : index
    %c0_167 = arith.constant 0 : index
    %303 = vector.load %arg7[%c2_165, %c0_166, %c0_167] : memref<4x32x96xf32, #tpu.memory_space<vmem>>, vector<1x32x96xf32>
    %304 = vector.shape_cast %303 : vector<1x32x96xf32> to vector<32x96xf32>
    %cst_168 = arith.constant dense<0.000000e+00> : vector<16x96xf32>
    %305 = tpu.matmul %264, %304, %cst_168 {dimension_numbers = #tpu.dot_dimension_numbers<[1], [0], [0], [1], [0, 0, 1, 1], [], []>} : vector<16x32xf32>, vector<32x96xf32>, vector<16x96xf32> -> vector<16x96xf32>
    %306 = vector.extract_strided_slice %305 {offsets = [0, 0], sizes = [16, 32], strides = [1, 1]} : vector<16x96xf32> to vector<16x32xf32>
    %307 = vector.shape_cast %306 : vector<16x32xf32> to vector<2x8x32xf32>
    %308 = vector.extract_strided_slice %305 {offsets = [0, 32], sizes = [16, 32], strides = [1, 1]} : vector<16x96xf32> to vector<16x32xf32>
    %309 = vector.shape_cast %308 : vector<16x32xf32> to vector<2x8x32xf32>
    %310 = vector.extract_strided_slice %305 {offsets = [0, 64], sizes = [16, 32], strides = [1, 1]} : vector<16x96xf32> to vector<16x32xf32>
    %311 = vector.shape_cast %307 : vector<2x8x32xf32> to vector<2x8x1x32xf32>
    %312 = vector.shape_cast %309 : vector<2x8x32xf32> to vector<2x1x8x32xf32>
    %313 = vector.broadcast %311 : vector<2x8x1x32xf32> to vector<2x8x8x32xf32>
    %314 = vector.broadcast %312 : vector<2x1x8x32xf32> to vector<2x8x8x32xf32>
    %315 = arith.addf %313, %314 : vector<2x8x8x32xf32>
    %316 = vector.shape_cast %274 : vector<1x32xf32> to vector<1x1x1x32xf32>
    %317 = vector.broadcast %296 : vector<2x8x8x1xf32> to vector<2x8x8x32xf32>
    %318 = vector.broadcast %316 : vector<1x1x1x32xf32> to vector<2x8x8x32xf32>
    %319 = arith.mulf %317, %318 : vector<2x8x8x32xf32>
    %320 = arith.addf %315, %319 : vector<2x8x8x32xf32>
    %321 = vector.shape_cast %276 : vector<1x32xf32> to vector<1x1x1x32xf32>
    %322 = vector.broadcast %20 : vector<2x8x8x1xf32> to vector<2x8x8x32xf32>
    %323 = vector.broadcast %321 : vector<1x1x1x32xf32> to vector<2x8x8x32xf32>
    %324 = arith.mulf %322, %323 : vector<2x8x8x32xf32>
    %325 = arith.addf %320, %324 : vector<2x8x8x32xf32>
    %326 = vector.shape_cast %280 : vector<1x32xf32> to vector<1x1x1x32xf32>
    %327 = vector.broadcast %326 : vector<1x1x1x32xf32> to vector<2x8x8x32xf32>
    %328 = arith.addf %325, %327 : vector<2x8x8x32xf32>
    %329 = arith.negf %328 : vector<2x8x8x32xf32>
    %330 = math.exp %329 : vector<2x8x8x32xf32>
    %cst_169 = arith.constant 1.000000e+00 : f32
    %331 = vector.broadcast %cst_169 : f32 to vector<2x8x8x32xf32>
    %332 = arith.addf %331, %330 : vector<2x8x8x32xf32>
    %333 = arith.divf %331, %332 : vector<2x8x8x32xf32>
    %334 = arith.mulf %328, %333 : vector<2x8x8x32xf32>
    %335 = vector.shape_cast %334 : vector<2x8x8x32xf32> to vector<128x32xf32>
    %cst_170 = arith.constant dense<0.000000e+00> : vector<128x32xf32>
    %336 = tpu.matmul %335, %266, %cst_170 {dimension_numbers = #tpu.dot_dimension_numbers<[1], [0], [0], [1], [0, 0, 1, 1], [], []>} : vector<128x32xf32>, vector<32x32xf32>, vector<128x32xf32> -> vector<128x32xf32>
    %337 = vector.broadcast %282 : vector<1x32xf32> to vector<128x32xf32>
    %338 = arith.addf %336, %337 : vector<128x32xf32>
    %339 = arith.negf %338 : vector<128x32xf32>
    %340 = math.exp %339 : vector<128x32xf32>
    %cst_171 = arith.constant 1.000000e+00 : f32
    %341 = vector.broadcast %cst_171 : f32 to vector<128x32xf32>
    %342 = arith.addf %341, %340 : vector<128x32xf32>
    %343 = arith.divf %341, %342 : vector<128x32xf32>
    %344 = arith.mulf %338, %343 : vector<128x32xf32>
    %345 = vector.broadcast %3 : vector<128x1xf32> to vector<128x32xf32>
    %346 = arith.mulf %344, %345 : vector<128x32xf32>
    %cst_172 = arith.constant dense<0.000000e+00> : vector<128x32xf32>
    %347 = tpu.matmul %346, %268, %cst_172 {dimension_numbers = #tpu.dot_dimension_numbers<[1], [0], [0], [1], [0, 0, 1, 1], [], []>} : vector<128x32xf32>, vector<32x32xf32>, vector<128x32xf32> -> vector<128x32xf32>
    %348 = vector.broadcast %284 : vector<1x32xf32> to vector<128x32xf32>
    %349 = arith.addf %347, %348 : vector<128x32xf32>
    %350 = arith.negf %349 : vector<128x32xf32>
    %351 = math.exp %350 : vector<128x32xf32>
    %cst_173 = arith.constant 1.000000e+00 : f32
    %352 = vector.broadcast %cst_173 : f32 to vector<128x32xf32>
    %353 = arith.addf %352, %351 : vector<128x32xf32>
    %354 = arith.divf %352, %353 : vector<128x32xf32>
    %355 = arith.mulf %349, %354 : vector<128x32xf32>
    %356 = vector.broadcast %278 : vector<1x32xf32> to vector<128x32xf32>
    %357 = arith.mulf %355, %356 : vector<128x32xf32>
    %cst_174 = arith.constant dense<0.000000e+00> : vector<128xf32>
    %358 = vector.multi_reduction <add>, %357, %cst_174 [1] : vector<128x32xf32> to vector<128xf32>
    %359 = vector.shape_cast %358 : vector<128xf32> to vector<128x1xf32>
    %360 = vector.shape_cast %359 : vector<128x1xf32> to vector<2x8x8x1xf32>
    %361 = arith.mulf %360, %2 : vector<2x8x8x1xf32>
    %362 = vector.broadcast %361 : vector<2x8x8x1xf32> to vector<2x8x8x3xf32>
    %363 = arith.mulf %302, %362 : vector<2x8x8x3xf32>
    %cst_175 = arith.constant dense<0.000000e+00> : vector<2x8x3xf32>
    %364 = vector.multi_reduction <add>, %363, %cst_175 [2] : vector<2x8x8x3xf32> to vector<2x8x3xf32>
    %365 = arith.addf %245, %364 : vector<2x8x3xf32>
    %366 = vector.broadcast %0 : vector<2x8x1xf32> to vector<2x8x3xf32>
    %367 = arith.mulf %365, %366 : vector<2x8x3xf32>
    %368 = vector.shape_cast %346 : vector<128x32xf32> to vector<2x8x8x32xf32>
    %cst_176 = arith.constant dense<0.000000e+00> : vector<2x8x32xf32>
    %369 = vector.multi_reduction <add>, %368, %cst_176 [2] : vector<2x8x8x32xf32> to vector<2x8x32xf32>
    %370 = vector.shape_cast %369 : vector<2x8x32xf32> to vector<16x32xf32>
    %cst_177 = arith.constant dense<0.000000e+00> : vector<16x32xf32>
    %371 = tpu.matmul %370, %270, %cst_177 {dimension_numbers = #tpu.dot_dimension_numbers<[1], [0], [0], [1], [0, 0, 1, 1], [], []>} : vector<16x32xf32>, vector<32x32xf32>, vector<16x32xf32> -> vector<16x32xf32>
    %372 = arith.addf %310, %371 : vector<16x32xf32>
    %373 = vector.broadcast %286 : vector<1x32xf32> to vector<16x32xf32>
    %374 = arith.addf %372, %373 : vector<16x32xf32>
    %375 = arith.negf %374 : vector<16x32xf32>
    %376 = math.exp %375 : vector<16x32xf32>
    %cst_178 = arith.constant 1.000000e+00 : f32
    %377 = vector.broadcast %cst_178 : f32 to vector<16x32xf32>
    %378 = arith.addf %377, %376 : vector<16x32xf32>
    %379 = arith.divf %377, %378 : vector<16x32xf32>
    %380 = arith.mulf %374, %379 : vector<16x32xf32>
    %cst_179 = arith.constant dense<0.000000e+00> : vector<16x32xf32>
    %381 = tpu.matmul %380, %272, %cst_179 {dimension_numbers = #tpu.dot_dimension_numbers<[1], [0], [0], [1], [0, 0, 1, 1], [], []>} : vector<16x32xf32>, vector<32x32xf32>, vector<16x32xf32> -> vector<16x32xf32>
    %382 = arith.addf %264, %381 : vector<16x32xf32>
    %383 = vector.broadcast %288 : vector<1x32xf32> to vector<16x32xf32>
    %384 = arith.addf %382, %383 : vector<16x32xf32>
    %385 = vector.broadcast %1 : vector<16x1xf32> to vector<16x32xf32>
    %386 = arith.mulf %384, %385 : vector<16x32xf32>
    %c3_180 = arith.constant 3 : index
    %c0_181 = arith.constant 0 : index
    %c0_182 = arith.constant 0 : index
    %c0_183 = arith.constant 0 : index
    %387 = vector.load %arg8[%c3_180, %c0_181, %c0_182, %c0_183] : memref<4x4x32x32xf32, #tpu.memory_space<vmem>>, vector<1x1x32x32xf32>
    %388 = vector.shape_cast %387 : vector<1x1x32x32xf32> to vector<32x32xf32>
    %c3_184 = arith.constant 3 : index
    %c1_185 = arith.constant 1 : index
    %c0_186 = arith.constant 0 : index
    %c0_187 = arith.constant 0 : index
    %389 = vector.load %arg8[%c3_184, %c1_185, %c0_186, %c0_187] : memref<4x4x32x32xf32, #tpu.memory_space<vmem>>, vector<1x1x32x32xf32>
    %390 = vector.shape_cast %389 : vector<1x1x32x32xf32> to vector<32x32xf32>
    %c3_188 = arith.constant 3 : index
    %c0_189 = arith.constant 0 : index
    %c0_190 = arith.constant 0 : index
    %391 = vector.load %arg9[%c3_188, %c0_189, %c0_190] : memref<4x8x32xf32, #tpu.memory_space<vmem>>, vector<1x1x32xf32>
    %392 = vector.shape_cast %391 : vector<1x1x32xf32> to vector<1x32xf32>
    %c3_191 = arith.constant 3 : index
    %c1_192 = arith.constant 1 : index
    %c0_193 = arith.constant 0 : index
    %393 = vector.load %arg9[%c3_191, %c1_192, %c0_193] : memref<4x8x32xf32, #tpu.memory_space<vmem>>, vector<1x1x32xf32>
    %394 = vector.shape_cast %393 : vector<1x1x32xf32> to vector<1x32xf32>
    %c3_194 = arith.constant 3 : index
    %c2_195 = arith.constant 2 : index
    %c0_196 = arith.constant 0 : index
    %395 = vector.load %arg9[%c3_194, %c2_195, %c0_196] : memref<4x8x32xf32, #tpu.memory_space<vmem>>, vector<1x1x32xf32>
    %396 = vector.shape_cast %395 : vector<1x1x32xf32> to vector<1x32xf32>
    %c3_197 = arith.constant 3 : index
    %c3_198 = arith.constant 3 : index
    %c0_199 = arith.constant 0 : index
    %397 = vector.load %arg9[%c3_197, %c3_198, %c0_199] : memref<4x8x32xf32, #tpu.memory_space<vmem>>, vector<1x1x32xf32>
    %398 = vector.shape_cast %397 : vector<1x1x32xf32> to vector<1x32xf32>
    %c3_200 = arith.constant 3 : index
    %c4_201 = arith.constant 4 : index
    %c0_202 = arith.constant 0 : index
    %399 = vector.load %arg9[%c3_200, %c4_201, %c0_202] : memref<4x8x32xf32, #tpu.memory_space<vmem>>, vector<1x1x32xf32>
    %400 = vector.shape_cast %399 : vector<1x1x32xf32> to vector<1x32xf32>
    %c3_203 = arith.constant 3 : index
    %c5_204 = arith.constant 5 : index
    %c0_205 = arith.constant 0 : index
    %401 = vector.load %arg9[%c3_203, %c5_204, %c0_205] : memref<4x8x32xf32, #tpu.memory_space<vmem>>, vector<1x1x32xf32>
    %402 = vector.shape_cast %401 : vector<1x1x32xf32> to vector<1x32xf32>
    %403 = vector.shape_cast %367 : vector<2x8x3xf32> to vector<2x8x1x3xf32>
    %404 = vector.shape_cast %367 : vector<2x8x3xf32> to vector<2x1x8x3xf32>
    %405 = vector.broadcast %403 : vector<2x8x1x3xf32> to vector<2x8x8x3xf32>
    %406 = vector.broadcast %404 : vector<2x1x8x3xf32> to vector<2x8x8x3xf32>
    %407 = arith.subf %405, %406 : vector<2x8x8x3xf32>
    %408 = arith.mulf %407, %407 : vector<2x8x8x3xf32>
    %cst_206 = arith.constant dense<0.000000e+00> : vector<2x8x8xf32>
    %409 = vector.multi_reduction <add>, %408, %cst_206 [3] : vector<2x8x8x3xf32> to vector<2x8x8xf32>
    %410 = vector.shape_cast %409 : vector<2x8x8xf32> to vector<2x8x8x1xf32>
    %411 = math.sqrt %410 : vector<2x8x8x1xf32>
    %cst_207 = arith.constant 1.000000e+00 : f32
    %412 = vector.broadcast %cst_207 : f32 to vector<2x8x8x1xf32>
    %413 = arith.addf %411, %412 : vector<2x8x8x1xf32>
    %414 = tpu.reciprocal %413 : vector<2x8x8x1xf32> -> vector<2x8x8x1xf32>
    %415 = vector.broadcast %414 : vector<2x8x8x1xf32> to vector<2x8x8x3xf32>
    %416 = arith.mulf %407, %415 : vector<2x8x8x3xf32>
    %c3_208 = arith.constant 3 : index
    %c0_209 = arith.constant 0 : index
    %c0_210 = arith.constant 0 : index
    %417 = vector.load %arg7[%c3_208, %c0_209, %c0_210] : memref<4x32x96xf32, #tpu.memory_space<vmem>>, vector<1x32x96xf32>
    %418 = vector.shape_cast %417 : vector<1x32x96xf32> to vector<32x96xf32>
    %cst_211 = arith.constant dense<0.000000e+00> : vector<16x96xf32>
    %419 = tpu.matmul %386, %418, %cst_211 {dimension_numbers = #tpu.dot_dimension_numbers<[1], [0], [0], [1], [0, 0, 1, 1], [], []>} : vector<16x32xf32>, vector<32x96xf32>, vector<16x96xf32> -> vector<16x96xf32>
    %420 = vector.extract_strided_slice %419 {offsets = [0, 0], sizes = [16, 32], strides = [1, 1]} : vector<16x96xf32> to vector<16x32xf32>
    %421 = vector.shape_cast %420 : vector<16x32xf32> to vector<2x8x32xf32>
    %422 = vector.extract_strided_slice %419 {offsets = [0, 32], sizes = [16, 32], strides = [1, 1]} : vector<16x96xf32> to vector<16x32xf32>
    %423 = vector.shape_cast %422 : vector<16x32xf32> to vector<2x8x32xf32>
    %424 = vector.shape_cast %421 : vector<2x8x32xf32> to vector<2x8x1x32xf32>
    %425 = vector.shape_cast %423 : vector<2x8x32xf32> to vector<2x1x8x32xf32>
    %426 = vector.broadcast %424 : vector<2x8x1x32xf32> to vector<2x8x8x32xf32>
    %427 = vector.broadcast %425 : vector<2x1x8x32xf32> to vector<2x8x8x32xf32>
    %428 = arith.addf %426, %427 : vector<2x8x8x32xf32>
    %429 = vector.shape_cast %392 : vector<1x32xf32> to vector<1x1x1x32xf32>
    %430 = vector.broadcast %410 : vector<2x8x8x1xf32> to vector<2x8x8x32xf32>
    %431 = vector.broadcast %429 : vector<1x1x1x32xf32> to vector<2x8x8x32xf32>
    %432 = arith.mulf %430, %431 : vector<2x8x8x32xf32>
    %433 = arith.addf %428, %432 : vector<2x8x8x32xf32>
    %434 = vector.shape_cast %394 : vector<1x32xf32> to vector<1x1x1x32xf32>
    %435 = vector.broadcast %20 : vector<2x8x8x1xf32> to vector<2x8x8x32xf32>
    %436 = vector.broadcast %434 : vector<1x1x1x32xf32> to vector<2x8x8x32xf32>
    %437 = arith.mulf %435, %436 : vector<2x8x8x32xf32>
    %438 = arith.addf %433, %437 : vector<2x8x8x32xf32>
    %439 = vector.shape_cast %398 : vector<1x32xf32> to vector<1x1x1x32xf32>
    %440 = vector.broadcast %439 : vector<1x1x1x32xf32> to vector<2x8x8x32xf32>
    %441 = arith.addf %438, %440 : vector<2x8x8x32xf32>
    %442 = arith.negf %441 : vector<2x8x8x32xf32>
    %443 = math.exp %442 : vector<2x8x8x32xf32>
    %cst_212 = arith.constant 1.000000e+00 : f32
    %444 = vector.broadcast %cst_212 : f32 to vector<2x8x8x32xf32>
    %445 = arith.addf %444, %443 : vector<2x8x8x32xf32>
    %446 = arith.divf %444, %445 : vector<2x8x8x32xf32>
    %447 = arith.mulf %441, %446 : vector<2x8x8x32xf32>
    %448 = vector.shape_cast %447 : vector<2x8x8x32xf32> to vector<128x32xf32>
    %cst_213 = arith.constant dense<0.000000e+00> : vector<128x32xf32>
    %449 = tpu.matmul %448, %388, %cst_213 {dimension_numbers = #tpu.dot_dimension_numbers<[1], [0], [0], [1], [0, 0, 1, 1], [], []>} : vector<128x32xf32>, vector<32x32xf32>, vector<128x32xf32> -> vector<128x32xf32>
    %450 = vector.broadcast %400 : vector<1x32xf32> to vector<128x32xf32>
    %451 = arith.addf %449, %450 : vector<128x32xf32>
    %452 = arith.negf %451 : vector<128x32xf32>
    %453 = math.exp %452 : vector<128x32xf32>
    %cst_214 = arith.constant 1.000000e+00 : f32
    %454 = vector.broadcast %cst_214 : f32 to vector<128x32xf32>
    %455 = arith.addf %454, %453 : vector<128x32xf32>
    %456 = arith.divf %454, %455 : vector<128x32xf32>
    %457 = arith.mulf %451, %456 : vector<128x32xf32>
    %458 = vector.broadcast %3 : vector<128x1xf32> to vector<128x32xf32>
    %459 = arith.mulf %457, %458 : vector<128x32xf32>
    %cst_215 = arith.constant dense<0.000000e+00> : vector<128x32xf32>
    %460 = tpu.matmul %459, %390, %cst_215 {dimension_numbers = #tpu.dot_dimension_numbers<[1], [0], [0], [1], [0, 0, 1, 1], [], []>} : vector<128x32xf32>, vector<32x32xf32>, vector<128x32xf32> -> vector<128x32xf32>
    %461 = vector.broadcast %402 : vector<1x32xf32> to vector<128x32xf32>
    %462 = arith.addf %460, %461 : vector<128x32xf32>
    %463 = arith.negf %462 : vector<128x32xf32>
    %464 = math.exp %463 : vector<128x32xf32>
    %cst_216 = arith.constant 1.000000e+00 : f32
    %465 = vector.broadcast %cst_216 : f32 to vector<128x32xf32>
    %466 = arith.addf %465, %464 : vector<128x32xf32>
    %467 = arith.divf %465, %466 : vector<128x32xf32>
    %468 = arith.mulf %462, %467 : vector<128x32xf32>
    %469 = vector.broadcast %396 : vector<1x32xf32> to vector<128x32xf32>
    %470 = arith.mulf %468, %469 : vector<128x32xf32>
    %cst_217 = arith.constant dense<0.000000e+00> : vector<128xf32>
    %471 = vector.multi_reduction <add>, %470, %cst_217 [1] : vector<128x32xf32> to vector<128xf32>
    %472 = vector.shape_cast %471 : vector<128xf32> to vector<128x1xf32>
    %473 = vector.shape_cast %472 : vector<128x1xf32> to vector<2x8x8x1xf32>
    %474 = arith.mulf %473, %2 : vector<2x8x8x1xf32>
    %475 = vector.broadcast %474 : vector<2x8x8x1xf32> to vector<2x8x8x3xf32>
    %476 = arith.mulf %416, %475 : vector<2x8x8x3xf32>
    %cst_218 = arith.constant dense<0.000000e+00> : vector<2x8x3xf32>
    %477 = vector.multi_reduction <add>, %476, %cst_218 [2] : vector<2x8x8x3xf32> to vector<2x8x3xf32>
    %478 = arith.addf %367, %477 : vector<2x8x3xf32>
    %479 = vector.broadcast %0 : vector<2x8x1xf32> to vector<2x8x3xf32>
    %480 = arith.mulf %478, %479 : vector<2x8x3xf32>
    %481 = arith.subf %480, %6 : vector<2x8x3xf32>
    %482 = vector.broadcast %0 : vector<2x8x1xf32> to vector<2x8x3xf32>
    %483 = arith.mulf %481, %482 : vector<2x8x3xf32>
    %cst_219 = arith.constant dense<0.000000e+00> : vector<2x1xf32>
    %484 = vector.multi_reduction <add>, %0, %cst_219 [1] : vector<2x8x1xf32> to vector<2x1xf32>
    %485 = vector.shape_cast %484 : vector<2x1xf32> to vector<2x1x1xf32>
    %cst_220 = arith.constant dense<0.000000e+00> : vector<2x3xf32>
    %486 = vector.multi_reduction <add>, %483, %cst_220 [1] : vector<2x8x3xf32> to vector<2x3xf32>
    %487 = vector.shape_cast %486 : vector<2x3xf32> to vector<2x1x3xf32>
    %cst_221 = arith.constant 1.000000e+00 : f32
    %488 = vector.broadcast %cst_221 : f32 to vector<2x1x1xf32>
    %489 = arith.maximumf %485, %488 : vector<2x1x1xf32>
    %490 = vector.broadcast %489 : vector<2x1x1xf32> to vector<2x1x3xf32>
    %491 = arith.divf %487, %490 : vector<2x1x3xf32>
    %492 = vector.broadcast %491 : vector<2x1x3xf32> to vector<2x8x3xf32>
    %493 = vector.broadcast %0 : vector<2x8x1xf32> to vector<2x8x3xf32>
    %494 = arith.mulf %492, %493 : vector<2x8x3xf32>
    %495 = arith.subf %483, %494 : vector<2x8x3xf32>
    %c0_222 = arith.constant 0 : index
    %c0_223 = arith.constant 0 : index
    %c0_224 = arith.constant 0 : index
    %496 = vector.load %arg10[%c0_222, %c0_223, %c0_224] : memref<2x8x3xf32, #tpu.memory_space<vmem>>, vector<2x8x3xf32>
    tpu.vector_store %arg10[%c0_222, %c0_223, %c0_224], %495 {strides = array<i32>} : memref<2x8x3xf32, #tpu.memory_space<vmem>>, vector<2x8x3xf32>,
    return
  }
  func.func @transform_0(%arg0: i32) -> (i32, i32, i32) {
    %c0_i32 = arith.constant 0 : i32
    %c0_i32_0 = arith.constant 0 : i32
    %c0_i32_1 = arith.constant 0 : i32
    return %arg0, %c0_i32, %c0_i32_0 : i32, i32, i32
  }
  func.func @transform_1(%arg0: i32) -> (i32, i32, i32) {
    %c0_i32 = arith.constant 0 : i32
    %c0_i32_0 = arith.constant 0 : i32
    %c0_i32_1 = arith.constant 0 : i32
    return %arg0, %c0_i32, %c0_i32_0 : i32, i32, i32
  }
  func.func @transform_2(%arg0: i32) -> (i32, i32, i32, i32) {
    %c0_i32 = arith.constant 0 : i32
    %c0_i32_0 = arith.constant 0 : i32
    %c0_i32_1 = arith.constant 0 : i32
    %c0_i32_2 = arith.constant 0 : i32
    return %arg0, %c0_i32, %c0_i32_0, %c0_i32_1 : i32, i32, i32, i32
  }
  func.func @transform_3(%arg0: i32) -> (i32, i32) {
    %c0_i32 = arith.constant 0 : i32
    %c0_i32_0 = arith.constant 0 : i32
    %c0_i32_1 = arith.constant 0 : i32
    return %c0_i32, %c0_i32_0 : i32, i32
  }
  func.func @transform_4(%arg0: i32) -> (i32, i32) {
    %c0_i32 = arith.constant 0 : i32
    %c0_i32_0 = arith.constant 0 : i32
    %c0_i32_1 = arith.constant 0 : i32
    return %c0_i32, %c0_i32_0 : i32, i32
  }
  func.func @transform_5(%arg0: i32) -> (i32, i32) {
    %c0_i32 = arith.constant 0 : i32
    %c0_i32_0 = arith.constant 0 : i32
    %c0_i32_1 = arith.constant 0 : i32
    return %c0_i32, %c0_i32_0 : i32, i32
  }
  func.func @transform_6(%arg0: i32) -> (i32, i32, i32) {
    %c0_i32 = arith.constant 0 : i32
    %c0_i32_0 = arith.constant 0 : i32
    %c0_i32_1 = arith.constant 0 : i32
    %c0_i32_2 = arith.constant 0 : i32
    return %c0_i32, %c0_i32_0, %c0_i32_1 : i32, i32, i32
  }
  func.func @transform_7(%arg0: i32) -> (i32, i32, i32, i32) {
    %c0_i32 = arith.constant 0 : i32
    %c0_i32_0 = arith.constant 0 : i32
    %c0_i32_1 = arith.constant 0 : i32
    %c0_i32_2 = arith.constant 0 : i32
    %c0_i32_3 = arith.constant 0 : i32
    return %c0_i32, %c0_i32_0, %c0_i32_1, %c0_i32_2 : i32, i32, i32, i32
  }
  func.func @transform_8(%arg0: i32) -> (i32, i32, i32) {
    %c0_i32 = arith.constant 0 : i32
    %c0_i32_0 = arith.constant 0 : i32
    %c0_i32_1 = arith.constant 0 : i32
    %c0_i32_2 = arith.constant 0 : i32
    return %c0_i32, %c0_i32_0, %c0_i32_1 : i32, i32, i32
  }
  func.func @transform_9(%arg0: i32) -> (i32, i32, i32) {
    %c0_i32 = arith.constant 0 : i32
    %c0_i32_0 = arith.constant 0 : i32
    %c0_i32_1 = arith.constant 0 : i32
    return %arg0, %c0_i32, %c0_i32_0 : i32, i32, i32
  }
}

</mosaic_0001>

<llo_original>
// kernel: tpu_custom_call.1
$region0: #{tpu_custom_call.1}
  #allocation0 [shape = 'u32[]', space=smem, size = 0x4, offset = 0x4, fixed_abs, tag = 'smem constant byte address 0x4 - core index']
  #allocation1 [shape = 'u32[144,128]{1,0:T(1,128)}', space=vmem, size = 0x12000, scoped, tag = 'internal scratch']
  %s0 = inlined_call_operand.vmem [shape: f32[2,8,3], index: 0, kind: input, shape index: {}]
  %s1 = inlined_call_operand.vmem [shape: f32[2,8,1], index: 1, kind: input, shape index: {}]
  %s2 = inlined_call_operand.vmem [shape: f32[2,8,8,1], index: 2, kind: input, shape index: {}]
  %s3 = inlined_call_operand.vmem [shape: f32[16,8], index: 3, kind: input, shape index: {}]
  %s4 = inlined_call_operand.vmem [shape: f32[8,32], index: 4, kind: input, shape index: {}]
  %s5 = inlined_call_operand.vmem [shape: f32[1,32], index: 5, kind: input, shape index: {}]
  %s6 = inlined_call_operand.vmem [shape: f32[4,32,96], index: 6, kind: input, shape index: {}]
  %s7 = inlined_call_operand.hbm [shape: f32[4,4,32,32], index: 7, kind: input, shape index: {}]
  %s8 = inlined_call_operand.vmem [shape: f32[4,8,32], index: 8, kind: input, shape index: {}]
  %s9 = inlined_call_operand.vmem [shape: f32[2,8,3], index: 9, kind: output, shape index: {}]
  %s10 = sld [smem:[#allocation0]]
  $region50: #{tpu_custom_call.1} parent=0
    _
  %s12 = ssub.s32 1, %s10
  %s13 = scalar_select 0, %s12, %s10
  $region1: #{tpu_custom_call.1} parent=0
    #allocation2 [shape = 'u8[262144]{0}', space=vmem, size = 0x40000, scoped, tag = 'input window, operand 7, single buffered']
    #allocation3 [shape = 's32[1]{0}', space=sflag, size = 0x4, scoped, tag = 'scoped memory for tpu_custom_call.1']
    %14 = vsyncpa [#allocation3], 0
    // Predicated region
    $region2: #{tpu_custom_call.1} parent=1 // pred_check
      _
    $region3: #{tpu_custom_call.1} parent=1 // pred_check_branch
      %16 = sbr.rel (0) target = $region5
    $region4: #{tpu_custom_call.1} parent=1 // pred_region
      _
    $region5: #{tpu_custom_call.1} parent=1 // pred_fallthru
      _
    // Predicated region
    $region6: #{tpu_custom_call.1} parent=1 // pred_check
      _
    $region7: #{tpu_custom_call.1} parent=1 // pred_check_branch
      %18 = sbr.rel (0) target = $region9
    $region8: #{tpu_custom_call.1} parent=1 // pred_region
      _
    $region9: #{tpu_custom_call.1} parent=1 // pred_fallthru
      _
    // Predicated region
    $region10: #{tpu_custom_call.1} parent=1 // pred_check
      _
    $region11: #{tpu_custom_call.1} parent=1 // pred_check_branch
      %20 = sbr.rel (0) target = $region13
    $region12: #{tpu_custom_call.1} parent=1 // pred_region
      _
    $region13: #{tpu_custom_call.1} parent=1 // pred_fallthru
      _
    // Predicated region
    $region14: #{tpu_custom_call.1} parent=1 // pred_check
      _
    $region15: #{tpu_custom_call.1} parent=1 // pred_check_branch
      %22 = sbr.rel (0) target = $region17
    $region16: #{tpu_custom_call.1} parent=1 // pred_region
      _
    $region17: #{tpu_custom_call.1} parent=1 // pred_fallthru
      _
    // Predicated region
    $region18: #{tpu_custom_call.1} parent=1 // pred_check
      _
    $region19: #{tpu_custom_call.1} parent=1 // pred_check_branch
      %24 = sbr.rel (0) target = $region21
    $region20: #{tpu_custom_call.1} parent=1 // pred_region
      _
    $region21: #{tpu_custom_call.1} parent=1 // pred_fallthru
      _
    // Predicated region
    $region22: #{tpu_custom_call.1} parent=1 // pred_check
      _
    $region23: #{tpu_custom_call.1} parent=1 // pred_check_branch
      %26 = sbr.rel (0) target = $region25
    $region24: #{tpu_custom_call.1} parent=1 // pred_region
      _
    $region25: #{tpu_custom_call.1} parent=1 // pred_fallthru
      _
    // Predicated region
    $region26: #{tpu_custom_call.1} parent=1 // pred_check
      _
    $region27: #{tpu_custom_call.1} parent=1 // pred_check_branch
      %28 = sbr.rel (0) target = $region29
    $region28: #{tpu_custom_call.1} parent=1 // pred_region
      _
    $region29: #{tpu_custom_call.1} parent=1 // pred_fallthru
      _
    // Predicated region
    $region30: #{tpu_custom_call.1} parent=1 // pred_check
      _
    $region31: #{tpu_custom_call.1} parent=1 // pred_check_branch
      %30 = sbr.rel (0) target = $region33
    $region32: #{tpu_custom_call.1} parent=1 // pred_region
      %s32 = ssub.s32 8192, 8192
      %33 = vsyncadd [#allocation3], %s32
      %s34 = sshll.u32 [#allocation2], 4
      %s35 = int_to_ptr.vmem [resolvable:$true] %s34
      %40 = dma.hbm_to_vmem [thread:$0]  %s7, 8192, %s35, [#allocation3], 128, 128, 8
    $region33: #{tpu_custom_call.1} parent=1 // pred_fallthru
      _
    // Predicated region
    $region34: #{tpu_custom_call.1} parent=1 // pred_check
      _
    $region35: #{tpu_custom_call.1} parent=1 // pred_check_branch
      %42 = sbr.rel (0) target = $region37
    $region36: #{tpu_custom_call.1} parent=1 // pred_region
      _
    $region37: #{tpu_custom_call.1} parent=1 // pred_fallthru
      _
    // Predicated region
    $region38: #{tpu_custom_call.1} parent=1 // pred_check
      _
    $region39: #{tpu_custom_call.1} parent=1 // pred_check_branch
      %44 = sbr.rel (0) target = $region41
    $region40: #{tpu_custom_call.1} parent=1 // pred_region
      %45 = dma.done [#allocation3], 8192
    $region41: #{tpu_custom_call.1} parent=1 // pred_fallthru
      _
    %v46 = vld [vmem:[%s1] sm:$0xff]
    %v47 = vld [vmem:[%s1 + $0x8] sm:$0xff]
    %v48 = vld [vmem:[%s2] sm:$0xff]
    %v49 = vld [vmem:[%s2 + $0x8] sm:$0xff]
    %v50 = vld [vmem:[%s2 + $0x10] sm:$0xff]
    %v51 = vld [vmem:[%s2 + $0x18] sm:$0xff]
    %v52 = vld [vmem:[%s2 + $0x20] sm:$0xff]
    %v53 = vld [vmem:[%s2 + $0x28] sm:$0xff]
    %v54 = vld [vmem:[%s2 + $0x30] sm:$0xff]
    %v55 = vld [vmem:[%s2 + $0x38] sm:$0xff]
    %v56 = vld [vmem:[%s2 + $0x40] sm:$0xff]
    %v57 = vld [vmem:[%s2 + $0x48] sm:$0xff]
    %v58 = vld [vmem:[%s2 + $0x50] sm:$0xff]
    %v59 = vld [vmem:[%s2 + $0x58] sm:$0xff]
    %v60 = vld [vmem:[%s2 + $0x60] sm:$0xff]
    %v61 = vld [vmem:[%s2 + $0x68] sm:$0xff]
    %v62 = vld [vmem:[%s2 + $0x70] sm:$0xff]
    %v63 = vld [vmem:[%s2 + $0x78] sm:$0xff]
    %v64 = vld [vmem:[%s0] sm:$0xff]
    %v65 = vld [vmem:[%s0 + $0x8] sm:$0xff]
    %67 = vset.pattern.permute.xlu0 0
    %68 = vperm.xlu0 %67, %v46
    %v69 = vpop.permute.xlu0 %68
    %72 = vset.pattern.permute.xlu0 0
    %73 = vperm.xlu0 %72, %v47
    %v74 = vpop.permute.xlu0 %73
    %v76 = vmul.f32 %v64, %v69
    %v77 = vmul.f32 %v65, %v74
    %v78 = vld [vmem:[%s3] sm:$0xff]
    %v79 = vld [vmem:[%s3 + $0x8] sm:$0xff]
    %v80 = vld [vmem:[%s4] sm:$0xff]
    %v81 = vld [vmem:[%s5] sm:$0x1]
    %v83 = vlaneseq
    %v84 = vshrl.u32 %v83, 7
    %v85 = vsub.s32 0, %v84
    %v86 = vrot.slane %v81, %v85
    %vm88 = vcmask 64512
    %v90 = vsel %vm88, %v78, 0
    %v93 = vsel %vm88, %v79, 0
    %95 = vmatprep.subr.mxu0 0.0
    %96 = vmatpush1.msra.mxu0 %v80
    %97 = vmatprep.subr.mxu0 0.0
    %98 = vmatpush1.msra.mxu0 0.0
    %99 = vmatprep.subr.mxu0 0.0
    %100 = vmatpush1.msra.mxu0 0.0
    %101 = vmatprep.subr.mxu0 0.0
    %102 = vmatpush1.msra.mxu0 0.0
    %103 = vmatprep.subr.mxu0 0.0
    %104 = vmatpush1.msra.mxu0 0.0
    %105 = vmatprep.subr.mxu0 0.0
    %106 = vmatpush1.msra.mxu0 0.0
    %107 = vmatprep.subr.mxu0 0.0
    %108 = vmatpush1.msra.mxu0 0.0
    %109 = vmatprep.subr.mxu0 0.0
    %110 = vmatpush1.msra.mxu0 0.0
    %111 = vmatprep.subr.mxu0 0.0
    %112 = vmatpush1.msra.mxu0 0.0
    %113 = vmatprep.subr.mxu0 0.0
    %114 = vmatpush1.msra.mxu0 0.0
    %115 = vmatprep.subr.mxu0 0.0
    %116 = vmatpush1.msra.mxu0 0.0
    %117 = vmatprep.subr.mxu0 0.0
    %118 = vmatpush1.msra.mxu0 0.0
    %119 = vmatprep.subr.mxu0 0.0
    %120 = vmatpush1.msra.mxu0 0.0
    %121 = vmatprep.subr.mxu0 0.0
    %122 = vmatpush1.msra.mxu0 0.0
    %123 = vmatprep.subr.mxu0 0.0
    %124 = vmatpush1.msra.mxu0 0.0
    %125 = vmatprep.subr.mxu0 0.0
    %126 = vmatpush1.msra.mxu0 0.0
    %127 = vmatprep.subr.mxu0 0.0
    %128 = vmatpush1.msra.mxu0 0.0
    %129 = vmatprep.subr.mxu0 0.0
    %130 = vmatpush1.msra.mxu0 0.0
    %131 = vmatprep.subr.mxu0 0.0
    %132 = vmatpush1.msra.mxu0 0.0
    %133 = vmatprep.subr.mxu0 0.0
    %134 = vmatpush1.msra.mxu0 0.0
    %135 = vmatprep.subr.mxu0 0.0
    %136 = vmatpush1.msra.mxu0 0.0
    %137 = vmatprep.subr.mxu0 0.0
    %138 = vmatpush1.msra.mxu0 0.0
    %139 = vmatprep.subr.mxu0 0.0
    %140 = vmatpush1.msra.mxu0 0.0
    %141 = vmatprep.subr.mxu0 0.0
    %142 = vmatpush1.msra.mxu0 0.0
    %143 = vmatprep.subr.mxu0 0.0
    %144 = vmatpush1.msra.mxu0 0.0
    %145 = vmatprep.subr.mxu0 0.0
    %146 = vmatpush1.msra.mxu0 0.0
    %147 = vmatprep.subr.mxu0 0.0
    %148 = vmatpush1.msra.mxu0 0.0
    %149 = vmatprep.subr.mxu0 0.0
    %150 = vmatpush1.msra.mxu0 0.0
    %151 = vmatprep.subr.mxu0 0.0
    %152 = vmatpush1.msra.mxu0 0.0
    %153 = vmatprep.subr.mxu0 0.0
    %154 = vmatpush1.msra.mxu0 0.0
    %155 = vmatprep.subr.mxu0 0.0
    %156 = vmatpush1.msra.mxu0 0.0
    %157 = vmatprep.subr.mxu0 0.0
    %158 = vmatpush1.msra.mxu0 0.0
    %159 = vmatprep.mubr.f32.mxu0 0.0
    %160 = vmatmul.mubr.f32.gmra.mrb[0].mxu0 %v90
    %v161 = vpop.f32.mrb[0].mxu0
    %v162 = vadd.f32 %v86, %v161
    %v163 = vpop.f32.mrb[0].mxu0
    %164 = vmatprep.mubr.f32.mxu0 0.0
    %165 = vmatmul.mubr.f32.gmra.mrb[0].mxu0 %v93
    %v166 = vpop.f32.mrb[0].mxu0
    %v167 = vadd.f32 %v86, %v166
    %v168 = vpop.f32.mrb[0].mxu0
    %169 = vdwg.mxu0
    %v172 = vcombine.high %v76, %v76
    %v174 = vunpack.c.l.s4 1966171168
    %v175 = vunpack.c.0.s8 %v174
    %v176 = vlaneseq
    %v177 = vshrl.u32 %v176, 7
    %v178 = vsub.s32 %v175, %v177
    %v179 = vrot.slane %v76, %v178
    %v181 = vunpack.c.l.s4 1966171168
    %v182 = vunpack.c.0.s8 %v181
    %v183 = vlaneseq
    %v184 = vshrl.u32 %v183, 7
    %v185 = vsub.s32 %v182, %v184
    %v186 = vrot.slane %v172, %v185
    %v187 = vcombine.high %v179, %v179
    %v188 = vcombine.high %v186, %v186
    %v190 = vunpack.c.l.s4 1966171168
    %v191 = vunpack.c.0.s8 %v190
    %v192 = vlaneseq
    %v193 = vshrl.u32 %v192, 7
    %v194 = vsub.s32 %v191, %v193
    %v195 = vrot.slane %v179, %v194
    %v197 = vunpack.c.l.s4 1966171168
    %v198 = vunpack.c.0.s8 %v197
    %v199 = vlaneseq
    %v200 = vshrl.u32 %v199, 7
    %v201 = vsub.s32 %v198, %v200
    %v202 = vrot.slane %v186, %v201
    %v204 = vunpack.c.l.s4 1966171168
    %v205 = vunpack.c.0.s8 %v204
    %v206 = vlaneseq
    %v207 = vshrl.u32 %v206, 7
    %v208 = vsub.s32 %v205, %v207
    %v209 = vrot.slane %v187, %v208
    %v211 = vunpack.c.l.s4 1966171168
    %v212 = vunpack.c.0.s8 %v211
    %v213 = vlaneseq
    %v214 = vshrl.u32 %v213, 7
    %v215 = vsub.s32 %v212, %v214
    %v216 = vrot.slane %v188, %v215
    %v217 = vcombine.high %v195, %v195
    %v218 = vcombine.high %v202, %v202
    %v219 = vcombine.high %v209, %v209
    %v220 = vcombine.high %v216, %v216
    %v221 = vcombine.high %v77, %v77
    %v223 = vunpack.c.l.s4 1966171168
    %v224 = vunpack.c.0.s8 %v223
    %v225 = vlaneseq
    %v226 = vshrl.u32 %v225, 7
    %v227 = vsub.s32 %v224, %v226
    %v228 = vrot.slane %v77, %v227
    %v230 = vunpack.c.l.s4 1966171168
    %v231 = vunpack.c.0.s8 %v230
    %v232 = vlaneseq
    %v233 = vshrl.u32 %v232, 7
    %v234 = vsub.s32 %v231, %v233
    %v235 = vrot.slane %v221, %v234
    %v236 = vcombine.high %v228, %v228
    %v237 = vcombine.high %v235, %v235
    %v239 = vunpack.c.l.s4 1966171168
    %v240 = vunpack.c.0.s8 %v239
    %v241 = vlaneseq
    %v242 = vshrl.u32 %v241, 7
    %v243 = vsub.s32 %v240, %v242
    %v244 = vrot.slane %v228, %v243
    %v246 = vunpack.c.l.s4 1966171168
    %v247 = vunpack.c.0.s8 %v246
    %v248 = vlaneseq
    %v249 = vshrl.u32 %v248, 7
    %v250 = vsub.s32 %v247, %v249
    %v251 = vrot.slane %v235, %v250
    %v253 = vunpack.c.l.s4 1966171168
    %v254 = vunpack.c.0.s8 %v253
    %v255 = vlaneseq
    %v256 = vshrl.u32 %v255, 7
    %v257 = vsub.s32 %v254, %v256
    %v258 = vrot.slane %v236, %v257
    %v260 = vunpack.c.l.s4 1966171168
    %v261 = vunpack.c.0.s8 %v260
    %v262 = vlaneseq
    %v263 = vshrl.u32 %v262, 7
    %v264 = vsub.s32 %v261, %v263
    %v265 = vrot.slane %v237, %v264
    %v266 = vcombine.high %v244, %v244
    %v267 = vcombine.high %v251, %v251
    %v268 = vcombine.high %v258, %v258
    %v269 = vcombine.high %v265, %v265
    %v270 = vlaneseq
    %v271 = vshrl.u32 %v270, 7
    %v272 = vsub.s32 0, %v271
    %v273 = vrot.slane %v195, %v272
    %v274 = vlaneseq
    %v275 = vshrl.u32 %v274, 7
    %v276 = vsub.s32 0, %v275
    %v277 = vrot.slane %v209, %v276
    %v278 = vlaneseq
    %v279 = vshrl.u32 %v278, 7
    %v280 = vsub.s32 0, %v279
    %v281 = vrot.slane %v217, %v280
    %v282 = vlaneseq
    %v283 = vshrl.u32 %v282, 7
    %v284 = vsub.s32 0, %v283
    %v285 = vrot.slane %v219, %v284
    %v286 = vlaneseq
    %v287 = vshrl.u32 %v286, 7
    %v288 = vsub.s32 0, %v287
    %v289 = vrot.slane %v202, %v288
    %v290 = vlaneseq
    %v291 = vshrl.u32 %v290, 7
    %v292 = vsub.s32 0, %v291
    %v293 = vrot.slane %v216, %v292
    %v294 = vlaneseq
    %v295 = vshrl.u32 %v294, 7
    %v296 = vsub.s32 0, %v295
    %v297 = vrot.slane %v218, %v296
    %v298 = vlaneseq
    %v299 = vshrl.u32 %v298, 7
    %v300 = vsub.s32 0, %v299
    %v301 = vrot.slane %v220, %v300
    %v302 = vlaneseq
    %v303 = vshrl.u32 %v302, 7
    %v304 = vsub.s32 0, %v303
    %v305 = vrot.slane %v244, %v304
    %v306 = vlaneseq
    %v307 = vshrl.u32 %v306, 7
    %v308 = vsub.s32 0, %v307
    %v309 = vrot.slane %v258, %v308
    %v310 = vlaneseq
    %v311 = vshrl.u32 %v310, 7
    %v312 = vsub.s32 0, %v311
    %v313 = vrot.slane %v266, %v312
    %v314 = vlaneseq
    %v315 = vshrl.u32 %v314, 7
    %v316 = vsub.s32 0, %v315
    %v317 = vrot.slane %v268, %v316
    %v318 = vlaneseq
    %v319 = vshrl.u32 %v318, 7
    %v320 = vsub.s32 0, %v319
    %v321 = vrot.slane %v251, %v320
    %v322 = vlaneseq
    %v323 = vshrl.u32 %v322, 7
    %v324 = vsub.s32 0, %v323
    %v325 = vrot.slane %v265, %v324
    %v326 = vlaneseq
    %v327 = vshrl.u32 %v326, 7
    %v328 = vsub.s32 0, %v327
    %v329 = vrot.slane %v267, %v328
    %v330 = vlaneseq
    %v331 = vshrl.u32 %v330, 7
    %v332 = vsub.s32 0, %v331
    %v333 = vrot.slane %v269, %v332
    %v350 = vsub.f32 %v273, %v76
    %v351 = vsub.f32 %v277, %v76
    %v352 = vsub.f32 %v281, %v76
    %v353 = vsub.f32 %v285, %v76
    %v354 = vsub.f32 %v289, %v76
    %v355 = vsub.f32 %v293, %v76
    %v356 = vsub.f32 %v297, %v76
    %v357 = vsub.f32 %v301, %v76
    %v358 = vsub.f32 %v305, %v77
    %v359 = vsub.f32 %v309, %v77
    %v360 = vsub.f32 %v313, %v77
    %v361 = vsub.f32 %v317, %v77
    %v362 = vsub.f32 %v321, %v77
    %v363 = vsub.f32 %v325, %v77
    %v364 = vsub.f32 %v329, %v77
    %v365 = vsub.f32 %v333, %v77
    %v366 = vmul.f32 %v350, %v350
    %v367 = vmul.f32 %v351, %v351
    %v368 = vmul.f32 %v352, %v352
    %v369 = vmul.f32 %v353, %v353
    %v370 = vmul.f32 %v354, %v354
    %v371 = vmul.f32 %v355, %v355
    %v372 = vmul.f32 %v356, %v356
    %v373 = vmul.f32 %v357, %v357
    %v374 = vmul.f32 %v358, %v358
    %v375 = vmul.f32 %v359, %v359
    %v376 = vmul.f32 %v360, %v360
    %v377 = vmul.f32 %v361, %v361
    %v378 = vmul.f32 %v362, %v362
    %v379 = vmul.f32 %v363, %v363
    %v380 = vmul.f32 %v364, %v364
    %v381 = vmul.f32 %v365, %v365
    %vm382 = vcmask 23552
    %v383 = vsel %vm382, %v366, 0.0
    %384 = vadd.xlane.f32.xlu0 %v383
    %v385 = vpop.xlane.xlu0 %384
    %v386 = vsel %vm382, %v367, 0.0
    %387 = vadd.xlane.f32.xlu0 %v386
    %v388 = vpop.xlane.xlu0 %387
    %v389 = vsel %vm382, %v368, 0.0
    %390 = vadd.xlane.f32.xlu0 %v389
    %v391 = vpop.xlane.xlu0 %390
    %v392 = vsel %vm382, %v369, 0.0
    %393 = vadd.xlane.f32.xlu0 %v392
    %v394 = vpop.xlane.xlu0 %393
    %v395 = vsel %vm382, %v370, 0.0
    %396 = vadd.xlane.f32.xlu0 %v395
    %v397 = vpop.xlane.xlu0 %396
    %v398 = vsel %vm382, %v371, 0.0
    %399 = vadd.xlane.f32.xlu0 %v398
    %v400 = vpop.xlane.xlu0 %399
    %v401 = vsel %vm382, %v372, 0.0
    %402 = vadd.xlane.f32.xlu0 %v401
    %v403 = vpop.xlane.xlu0 %402
    %v404 = vsel %vm382, %v373, 0.0
    %405 = vadd.xlane.f32.xlu0 %v404
    %v406 = vpop.xlane.xlu0 %405
    %v407 = vsel %vm382, %v374, 0.0
    %408 = vadd.xlane.f32.xlu0 %v407
    %v409 = vpop.xlane.xlu0 %408
    %v410 = vsel %vm382, %v375, 0.0
    %411 = vadd.xlane.f32.xlu0 %v410
    %v412 = vpop.xlane.xlu0 %411
    %v413 = vsel %vm382, %v376, 0.0
    %414 = vadd.xlane.f32.xlu0 %v413
    %v415 = vpop.xlane.xlu0 %414
    %v416 = vsel %vm382, %v377, 0.0
    %417 = vadd.xlane.f32.xlu0 %v416
    %v418 = vpop.xlane.xlu0 %417
    %v419 = vsel %vm382, %v378, 0.0
    %420 = vadd.xlane.f32.xlu0 %v419
    %v421 = vpop.xlane.xlu0 %420
    %v422 = vsel %vm382, %v379, 0.0
    %423 = vadd.xlane.f32.xlu0 %v422
    %v424 = vpop.xlane.xlu0 %423
    %v425 = vsel %vm382, %v380, 0.0
    %426 = vadd.xlane.f32.xlu0 %v425
    %v427 = vpop.xlane.xlu0 %426
    %v428 = vsel %vm382, %v381, 0.0
    %429 = vadd.xlane.f32.xlu0 %v428
    %v430 = vpop.xlane.xlu0 %429
    %v431 = vld [vmem:[#allocation2] sm:$0xff]
    %v432 = vld [vmem:[#allocation2 + $0x8] sm:$0xff]
    %v433 = vld [vmem:[#allocation2 + $0x10] sm:$0xff]
    %v434 = vld [vmem:[#allocation2 + $0x18] sm:$0xff]
    %s435 = scalar_lea.vmem [#allocation2], 32
    %v436 = vld [vmem:[%s435] sm:$0xff]
    %v437 = vld [vmem:[%s435 + $0x8] sm:$0xff]
    %v438 = vld [vmem:[%s435 + $0x10] sm:$0xff]
    %v439 = vld [vmem:[%s435 + $0x18] sm:$0xff]
    %s440 = scalar_lea.vmem [#allocation2], 64
    %v441 = vld [vmem:[%s440] sm:$0xff]
    %v442 = vld [vmem:[%s440 + $0x8] sm:$0xff]
    %v443 = vld [vmem:[%s440 + $0x10] sm:$0xff]
    %v444 = vld [vmem:[%s440 + $0x18] sm:$0xff]
    %s445 = scalar_lea.vmem [#allocation2], 96
    %v446 = vld [vmem:[%s445] sm:$0xff]
    %v447 = vld [vmem:[%s445 + $0x8] sm:$0xff]
    %v448 = vld [vmem:[%s445 + $0x10] sm:$0xff]
    %v449 = vld [vmem:[%s445 + $0x18] sm:$0xff]
    %v450 = vld [vmem:[%s8] sm:$0x1]
    %v451 = vld [vmem:[%s8 + $0x1] sm:$0x1]
    %v452 = vld [vmem:[%s8 + $0x2] sm:$0x1]
    %v453 = vld [vmem:[%s8 + $0x3] sm:$0x1]
    %v454 = vld [vmem:[%s8 + $0x4] sm:$0x1]
    %v455 = vld [vmem:[%s8 + $0x5] sm:$0x1]
    %v456 = vld [vmem:[%s8 + $0x6] sm:$0x1]
    %v457 = vld [vmem:[%s8 + $0x7] sm:$0x1]
    %v458 = vrsqrt.pop %v385
    %v459 = vmul.f32 %v385, %v458
    %vm460 = vcmp.eq.f32.partialorder %v385, inf
    %v461 = vsel %vm460, %v385, %v459
    %vm462 = vcmp.eq.f32.partialorder %v385, 0.0
    %v463 = vand.u32 %v385, 2147483648
    %v464 = vsel %vm462, %v463, %v461
    %v465 = vrsqrt.pop %v388
    %v466 = vmul.f32 %v388, %v465
    %vm467 = vcmp.eq.f32.partialorder %v388, inf
    %v468 = vsel %vm467, %v388, %v466
    %vm469 = vcmp.eq.f32.partialorder %v388, 0.0
    %v470 = vand.u32 %v388, 2147483648
    %v471 = vsel %vm469, %v470, %v468
    %v472 = vrsqrt.pop %v391
    %v473 = vmul.f32 %v391, %v472
    %vm474 = vcmp.eq.f32.partialorder %v391, inf
    %v475 = vsel %vm474, %v391, %v473
    %vm476 = vcmp.eq.f32.partialorder %v391, 0.0
    %v477 = vand.u32 %v391, 2147483648
    %v478 = vsel %vm476, %v477, %v475
    %v479 = vrsqrt.pop %v394
    %v480 = vmul.f32 %v394, %v479
    %vm481 = vcmp.eq.f32.partialorder %v394, inf
    %v482 = vsel %vm481, %v394, %v480
    %vm483 = vcmp.eq.f32.partialorder %v394, 0.0
    %v484 = vand.u32 %v394, 2147483648
    %v485 = vsel %vm483, %v484, %v482
    %v486 = vrsqrt.pop %v397
    %v487 = vmul.f32 %v397, %v486
    %vm488 = vcmp.eq.f32.partialorder %v397, inf
    %v489 = vsel %vm488, %v397, %v487
    %vm490 = vcmp.eq.f32.partialorder %v397, 0.0
    %v491 = vand.u32 %v397, 2147483648
    %v492 = vsel %vm490, %v491, %v489
    %v493 = vrsqrt.pop %v400
    %v494 = vmul.f32 %v400, %v493
    %vm495 = vcmp.eq.f32.partialorder %v400, inf
    %v496 = vsel %vm495, %v400, %v494
    %vm497 = vcmp.eq.f32.partialorder %v400, 0.0
    %v498 = vand.u32 %v400, 2147483648
    %v499 = vsel %vm497, %v498, %v496
    %v500 = vrsqrt.pop %v403
    %v501 = vmul.f32 %v403, %v500
    %vm502 = vcmp.eq.f32.partialorder %v403, inf
    %v503 = vsel %vm502, %v403, %v501
    %vm504 = vcmp.eq.f32.partialorder %v403, 0.0
    %v505 = vand.u32 %v403, 2147483648
    %v506 = vsel %vm504, %v505, %v503
    %v507 = vrsqrt.pop %v406
    %v508 = vmul.f32 %v406, %v507
    %vm509 = vcmp.eq.f32.partialorder %v406, inf
    %v510 = vsel %vm509, %v406, %v508
    %vm511 = vcmp.eq.f32.partialorder %v406, 0.0
    %v512 = vand.u32 %v406, 2147483648
    %v513 = vsel %vm511, %v512, %v510
    %v514 = vrsqrt.pop %v409
    %v515 = vmul.f32 %v409, %v514
    %vm516 = vcmp.eq.f32.partialorder %v409, inf
    %v517 = vsel %vm516, %v409, %v515
    %vm518 = vcmp.eq.f32.partialorder %v409, 0.0
    %v519 = vand.u32 %v409, 2147483648
    %v520 = vsel %vm518, %v519, %v517
    %v521 = vrsqrt.pop %v412
    %v522 = vmul.f32 %v412, %v521
    %vm523 = vcmp.eq.f32.partialorder %v412, inf
    %v524 = vsel %vm523, %v412, %v522
    %vm525 = vcmp.eq.f32.partialorder %v412, 0.0
    %v526 = vand.u32 %v412, 2147483648
    %v527 = vsel %vm525, %v526, %v524
    %v528 = vrsqrt.pop %v415
    %v529 = vmul.f32 %v415, %v528
    %vm530 = vcmp.eq.f32.partialorder %v415, inf
    %v531 = vsel %vm530, %v415, %v529
    %vm532 = vcmp.eq.f32.partialorder %v415, 0.0
    %v533 = vand.u32 %v415, 2147483648
    %v534 = vsel %vm532, %v533, %v531
    %v535 = vrsqrt.pop %v418
    %v536 = vmul.f32 %v418, %v535
    %vm537 = vcmp.eq.f32.partialorder %v418, inf
    %v538 = vsel %vm537, %v418, %v536
    %vm539 = vcmp.eq.f32.partialorder %v418, 0.0
    %v540 = vand.u32 %v418, 2147483648
    %v541 = vsel %vm539, %v540, %v538
    %v542 = vrsqrt.pop %v421
    %v543 = vmul.f32 %v421, %v542
    %vm544 = vcmp.eq.f32.partialorder %v421, inf
    %v545 = vsel %vm544, %v421, %v543
    %vm546 = vcmp.eq.f32.partialorder %v421, 0.0
    %v547 = vand.u32 %v421, 2147483648
    %v548 = vsel %vm546, %v547, %v545
    %v549 = vrsqrt.pop %v424
    %v550 = vmul.f32 %v424, %v549
    %vm551 = vcmp.eq.f32.partialorder %v424, inf
    %v552 = vsel %vm551, %v424, %v550
    %vm553 = vcmp.eq.f32.partialorder %v424, 0.0
    %v554 = vand.u32 %v424, 2147483648
    %v555 = vsel %vm553, %v554, %v552
    %v556 = vrsqrt.pop %v427
    %v557 = vmul.f32 %v427, %v556
    %vm558 = vcmp.eq.f32.partialorder %v427, inf
    %v559 = vsel %vm558, %v427, %v557
    %vm560 = vcmp.eq.f32.partialorder %v427, 0.0
    %v561 = vand.u32 %v427, 2147483648
    %v562 = vsel %vm560, %v561, %v559
    %v563 = vrsqrt.pop %v430
    %v564 = vmul.f32 %v430, %v563
    %vm565 = vcmp.eq.f32.partialorder %v430, inf
    %v566 = vsel %vm565, %v430, %v564
    %vm567 = vcmp.eq.f32.partialorder %v430, 0.0
    %v568 = vand.u32 %v430, 2147483648
    %v569 = vsel %vm567, %v568, %v566
    %v570 = vadd.f32 %v464, 1.0
    %v571 = vadd.f32 %v471, 1.0
    %v572 = vadd.f32 %v478, 1.0
    %v573 = vadd.f32 %v485, 1.0
    %v574 = vadd.f32 %v492, 1.0
    %v575 = vadd.f32 %v499, 1.0
    %v576 = vadd.f32 %v506, 1.0
    %v577 = vadd.f32 %v513, 1.0
    %v578 = vadd.f32 %v520, 1.0
    %v579 = vadd.f32 %v527, 1.0
    %v580 = vadd.f32 %v534, 1.0
    %v581 = vadd.f32 %v541, 1.0
    %v582 = vadd.f32 %v548, 1.0
    %v583 = vadd.f32 %v555, 1.0
    %v584 = vadd.f32 %v562, 1.0
    %v585 = vadd.f32 %v569, 1.0
    %v586 = vrcp.pop %v570
    %v587 = vrcp.pop %v571
    %v588 = vrcp.pop %v572
    %v589 = vrcp.pop %v573
    %v590 = vrcp.pop %v574
    %v591 = vrcp.pop %v575
    %v592 = vrcp.pop %v576
    %v593 = vrcp.pop %v577
    %v594 = vrcp.pop %v578
    %v595 = vrcp.pop %v579
    %v596 = vrcp.pop %v580
    %v597 = vrcp.pop %v581
    %v598 = vrcp.pop %v582
    %v599 = vrcp.pop %v583
    %v600 = vrcp.pop %v584
    %v601 = vrcp.pop %v585
    %v602 = vmul.f32 %v350, %v586
    %v603 = vmul.f32 %v351, %v587
    %v604 = vmul.f32 %v352, %v588
    %v605 = vmul.f32 %v353, %v589
    %v606 = vmul.f32 %v354, %v590
    %v607 = vmul.f32 %v355, %v591
    %v608 = vmul.f32 %v356, %v592
    %v609 = vmul.f32 %v357, %v593
    %v610 = vmul.f32 %v358, %v594
    %v611 = vmul.f32 %v359, %v595
    %v612 = vmul.f32 %v360, %v596
    %v613 = vmul.f32 %v361, %v597
    %v614 = vmul.f32 %v362, %v598
    %v615 = vmul.f32 %v363, %v599
    %v616 = vmul.f32 %v364, %v600
    %v617 = vmul.f32 %v365, %v601
    %v618 = vld [vmem:[%s6] sm:$0xff]
    %v619 = vld [vmem:[%s6 + $0x8] sm:$0xff]
    %v620 = vld [vmem:[%s6 + $0x10] sm:$0xff]
    %v621 = vld [vmem:[%s6 + $0x18] sm:$0xff]
    %vm622 = vcmask 261120
    %v624 = vsel %vm622, %v162, 0
    %v627 = vsel %vm622, %v167, 0
    %629 = vmatprep.subr.mxu0 0.0
    %630 = vmatpush1.msra.mxu0 %v618
    %631 = vmatprep.subr.mxu0 0.0
    %632 = vmatpush1.msra.mxu0 %v619
    %633 = vmatprep.subr.mxu0 0.0
    %634 = vmatpush1.msra.mxu0 %v620
    %635 = vmatprep.subr.mxu0 0.0
    %636 = vmatpush1.msra.mxu0 %v621
    %637 = vmatprep.subr.mxu0 0.0
    %638 = vmatpush1.msra.mxu0 0.0
    %639 = vmatprep.subr.mxu0 0.0
    %640 = vmatpush1.msra.mxu0 0.0
    %641 = vmatprep.subr.mxu0 0.0
    %642 = vmatpush1.msra.mxu0 0.0
    %643 = vmatprep.subr.mxu0 0.0
    %644 = vmatpush1.msra.mxu0 0.0
    %645 = vmatprep.subr.mxu0 0.0
    %646 = vmatpush1.msra.mxu0 0.0
    %647 = vmatprep.subr.mxu0 0.0
    %648 = vmatpush1.msra.mxu0 0.0
    %649 = vmatprep.subr.mxu0 0.0
    %650 = vmatpush1.msra.mxu0 0.0
    %651 = vmatprep.subr.mxu0 0.0
    %652 = vmatpush1.msra.mxu0 0.0
    %653 = vmatprep.subr.mxu0 0.0
    %654 = vmatpush1.msra.mxu0 0.0
    %655 = vmatprep.subr.mxu0 0.0
    %656 = vmatpush1.msra.mxu0 0.0
    %657 = vmatprep.subr.mxu0 0.0
    %658 = vmatpush1.msra.mxu0 0.0
    %659 = vmatprep.subr.mxu0 0.0
    %660 = vmatpush1.msra.mxu0 0.0
    %661 = vmatprep.subr.mxu0 0.0
    %662 = vmatpush1.msra.mxu0 0.0
    %663 = vmatprep.subr.mxu0 0.0
    %664 = vmatpush1.msra.mxu0 0.0
    %665 = vmatprep.subr.mxu0 0.0
    %666 = vmatpush1.msra.mxu0 0.0
    %667 = vmatprep.subr.mxu0 0.0
    %668 = vmatpush1.msra.mxu0 0.0
    %669 = vmatprep.subr.mxu0 0.0
    %670 = vmatpush1.msra.mxu0 0.0
    %671 = vmatprep.subr.mxu0 0.0
    %672 = vmatpush1.msra.mxu0 0.0
    %673 = vmatprep.subr.mxu0 0.0
    %674 = vmatpush1.msra.mxu0 0.0
    %675 = vmatprep.subr.mxu0 0.0
    %676 = vmatpush1.msra.mxu0 0.0
    %677 = vmatprep.subr.mxu0 0.0
    %678 = vmatpush1.msra.mxu0 0.0
    %679 = vmatprep.subr.mxu0 0.0
    %680 = vmatpush1.msra.mxu0 0.0
    %681 = vmatprep.subr.mxu0 0.0
    %682 = vmatpush1.msra.mxu0 0.0
    %683 = vmatprep.subr.mxu0 0.0
    %684 = vmatpush1.msra.mxu0 0.0
    %685 = vmatprep.subr.mxu0 0.0
    %686 = vmatpush1.msra.mxu0 0.0
    %687 = vmatprep.subr.mxu0 0.0
    %688 = vmatpush1.msra.mxu0 0.0
    %689 = vmatprep.subr.mxu0 0.0
    %690 = vmatpush1.msra.mxu0 0.0
    %691 = vmatprep.subr.mxu0 0.0
    %692 = vmatpush1.msra.mxu0 0.0
    %693 = vmatprep.mubr.f32.mxu0 0.0
    %694 = vmatmul.mubr.f32.gmra.mrb[0].mxu0 %v624
    %v695 = vpop.f32.mrb[0].mxu0
    %v696 = vadd.f32 0.0, %v695
    %v697 = vpop.f32.mrb[0].mxu0
    %698 = vmatprep.mubr.f32.mxu0 0.0
    %699 = vmatmul.mubr.f32.gmra.mrb[0].mxu0 %v627
    %v700 = vpop.f32.mrb[0].mxu0
    %v701 = vadd.f32 0.0, %v700
    %v702 = vpop.f32.mrb[0].mxu0
    %703 = vdwg.mxu0
    %v706 = vcombine.high %v696, %v696
    %v708 = vunpack.c.l.s4 1966171168
    %v709 = vunpack.c.0.s8 %v708
    %v710 = vlaneseq
    %v711 = vshrl.u32 %v710, 7
    %v712 = vsub.s32 %v709, %v711
    %v713 = vrot.slane %v696, %v712
    %v715 = vunpack.c.l.s4 1966171168
    %v716 = vunpack.c.0.s8 %v715
    %v717 = vlaneseq
    %v718 = vshrl.u32 %v717, 7
    %v719 = vsub.s32 %v716, %v718
    %v720 = vrot.slane %v706, %v719
    %v721 = vcombine.high %v713, %v713
    %v722 = vcombine.high %v720, %v720
    %v724 = vunpack.c.l.s4 1966171168
    %v725 = vunpack.c.0.s8 %v724
    %v726 = vlaneseq
    %v727 = vshrl.u32 %v726, 7
    %v728 = vsub.s32 %v725, %v727
    %v729 = vrot.slane %v713, %v728
    %v731 = vunpack.c.l.s4 1966171168
    %v732 = vunpack.c.0.s8 %v731
    %v733 = vlaneseq
    %v734 = vshrl.u32 %v733, 7
    %v735 = vsub.s32 %v732, %v734
    %v736 = vrot.slane %v720, %v735
    %v738 = vunpack.c.l.s4 1966171168
    %v739 = vunpack.c.0.s8 %v738
    %v740 = vlaneseq
    %v741 = vshrl.u32 %v740, 7
    %v742 = vsub.s32 %v739, %v741
    %v743 = vrot.slane %v721, %v742
    %v745 = vunpack.c.l.s4 1966171168
    %v746 = vunpack.c.0.s8 %v745
    %v747 = vlaneseq
    %v748 = vshrl.u32 %v747, 7
    %v749 = vsub.s32 %v746, %v748
    %v750 = vrot.slane %v722, %v749
    %v751 = vcombine.high %v729, %v729
    %v752 = vcombine.high %v736, %v736
    %v753 = vcombine.high %v743, %v743
    %v754 = vcombine.high %v750, %v750
    %v755 = vcombine.high %v701, %v701
    %v757 = vunpack.c.l.s4 1966171168
    %v758 = vunpack.c.0.s8 %v757
    %v759 = vlaneseq
    %v760 = vshrl.u32 %v759, 7
    %v761 = vsub.s32 %v758, %v760
    %v762 = vrot.slane %v701, %v761
    %v764 = vunpack.c.l.s4 1966171168
    %v765 = vunpack.c.0.s8 %v764
    %v766 = vlaneseq
    %v767 = vshrl.u32 %v766, 7
    %v768 = vsub.s32 %v765, %v767
    %v769 = vrot.slane %v755, %v768
    %v770 = vcombine.high %v762, %v762
    %v771 = vcombine.high %v769, %v769
    %v773 = vunpack.c.l.s4 1966171168
    %v774 = vunpack.c.0.s8 %v773
    %v775 = vlaneseq
    %v776 = vshrl.u32 %v775, 7
    %v777 = vsub.s32 %v774, %v776
    %v778 = vrot.slane %v762, %v777
    %v780 = vunpack.c.l.s4 1966171168
    %v781 = vunpack.c.0.s8 %v780
    %v782 = vlaneseq
    %v783 = vshrl.u32 %v782, 7
    %v784 = vsub.s32 %v781, %v783
    %v785 = vrot.slane %v769, %v784
    %v787 = vunpack.c.l.s4 1966171168
    %v788 = vunpack.c.0.s8 %v787
    %v789 = vlaneseq
    %v790 = vshrl.u32 %v789, 7
    %v791 = vsub.s32 %v788, %v790
    %v792 = vrot.slane %v770, %v791
    %v794 = vunpack.c.l.s4 1966171168
    %v795 = vunpack.c.0.s8 %v794
    %v796 = vlaneseq
    %v797 = vshrl.u32 %v796, 7
    %v798 = vsub.s32 %v795, %v797
    %v799 = vrot.slane %v771, %v798
    %v800 = vcombine.high %v778, %v778
    %v801 = vcombine.high %v785, %v785
    %v802 = vcombine.high %v792, %v792
    %v803 = vcombine.high %v799, %v799
    %v804 = vlaneseq
    %v805 = vshrl.u32 %v804, 7
    %v806 = vsub.s32 0, %v805
    %v807 = vrot.slane %v729, %v806
    %v808 = vlaneseq
    %v809 = vshrl.u32 %v808, 7
    %v810 = vsub.s32 0, %v809
    %v811 = vrot.slane %v743, %v810
    %v812 = vlaneseq
    %v813 = vshrl.u32 %v812, 7
    %v814 = vsub.s32 0, %v813
    %v815 = vrot.slane %v751, %v814
    %v816 = vlaneseq
    %v817 = vshrl.u32 %v816, 7
    %v818 = vsub.s32 0, %v817
    %v819 = vrot.slane %v753, %v818
    %v820 = vlaneseq
    %v821 = vshrl.u32 %v820, 7
    %v822 = vsub.s32 0, %v821
    %v823 = vrot.slane %v736, %v822
    %v824 = vlaneseq
    %v825 = vshrl.u32 %v824, 7
    %v826 = vsub.s32 0, %v825
    %v827 = vrot.slane %v750, %v826
    %v828 = vlaneseq
    %v829 = vshrl.u32 %v828, 7
    %v830 = vsub.s32 0, %v829
    %v831 = vrot.slane %v752, %v830
    %v832 = vlaneseq
    %v833 = vshrl.u32 %v832, 7
    %v834 = vsub.s32 0, %v833
    %v835 = vrot.slane %v754, %v834
    %v836 = vlaneseq
    %v837 = vshrl.u32 %v836, 7
    %v838 = vsub.s32 0, %v837
    %v839 = vrot.slane %v778, %v838
    %v840 = vlaneseq
    %v841 = vshrl.u32 %v840, 7
    %v842 = vsub.s32 0, %v841
    %v843 = vrot.slane %v792, %v842
    %v844 = vlaneseq
    %v845 = vshrl.u32 %v844, 7
    %v846 = vsub.s32 0, %v845
    %v847 = vrot.slane %v800, %v846
    %v848 = vlaneseq
    %v849 = vshrl.u32 %v848, 7
    %v850 = vsub.s32 0, %v849
    %v851 = vrot.slane %v802, %v850
    %v852 = vlaneseq
    %v853 = vshrl.u32 %v852, 7
    %v854 = vsub.s32 0, %v853
    %v855 = vrot.slane %v785, %v854
    %v856 = vlaneseq
    %v857 = vshrl.u32 %v856, 7
    %v858 = vsub.s32 0, %v857
    %v859 = vrot.slane %v799, %v858
    %v860 = vlaneseq
    %v861 = vshrl.u32 %v860, 7
    %v862 = vsub.s32 0, %v861
    %v863 = vrot.slane %v801, %v862
    %v864 = vlaneseq
    %v865 = vshrl.u32 %v864, 7
    %v866 = vsub.s32 0, %v865
    %v867 = vrot.slane %v803, %v866
    %884 = vrot.lane.b32.xlu0 %v696, 96
    %v885 = vpop.permute.xlu0 %884
    %886 = vrot.lane.b32.xlu0 %v701, 96
    %v887 = vpop.permute.xlu0 %886
    %v890 = vadd.f32 %v807, %v885
    %v891 = vadd.f32 %v811, %v885
    %v892 = vadd.f32 %v815, %v885
    %v893 = vadd.f32 %v819, %v885
    %v894 = vadd.f32 %v823, %v885
    %v895 = vadd.f32 %v827, %v885
    %v896 = vadd.f32 %v831, %v885
    %v897 = vadd.f32 %v835, %v885
    %v898 = vadd.f32 %v839, %v887
    %v899 = vadd.f32 %v843, %v887
    %v900 = vadd.f32 %v847, %v887
    %v901 = vadd.f32 %v851, %v887
    %v902 = vadd.f32 %v855, %v887
    %v903 = vadd.f32 %v859, %v887
    %v904 = vadd.f32 %v863, %v887
    %v905 = vadd.f32 %v867, %v887
    %v906 = vlaneseq
    %v907 = vshrl.u32 %v906, 7
    %v908 = vsub.s32 0, %v907
    %v909 = vrot.slane %v450, %v908
    %v910 = vmul.f32 %v385, %v909
    %v911 = vmul.f32 %v388, %v909
    %v912 = vmul.f32 %v391, %v909
    %v913 = vmul.f32 %v394, %v909
    %v914 = vmul.f32 %v397, %v909
    %v915 = vmul.f32 %v400, %v909
    %v916 = vmul.f32 %v403, %v909
    %v917 = vmul.f32 %v406, %v909
    %v918 = vmul.f32 %v409, %v909
    %v919 = vmul.f32 %v412, %v909
    %v920 = vmul.f32 %v415, %v909
    %v921 = vmul.f32 %v418, %v909
    %v922 = vmul.f32 %v421, %v909
    %v923 = vmul.f32 %v424, %v909
    %v924 = vmul.f32 %v427, %v909
    %v925 = vmul.f32 %v430, %v909
    %v926 = vadd.f32 %v890, %v910
    %v927 = vadd.f32 %v891, %v911
    %v928 = vadd.f32 %v892, %v912
    %v929 = vadd.f32 %v893, %v913
    %v930 = vadd.f32 %v894, %v914
    %v931 = vadd.f32 %v895, %v915
    %v932 = vadd.f32 %v896, %v916
    %v933 = vadd.f32 %v897, %v917
    %v934 = vadd.f32 %v898, %v918
    %v935 = vadd.f32 %v899, %v919
    %v936 = vadd.f32 %v900, %v920
    %v937 = vadd.f32 %v901, %v921
    %v938 = vadd.f32 %v902, %v922
    %v939 = vadd.f32 %v903, %v923
    %v940 = vadd.f32 %v904, %v924
    %v941 = vadd.f32 %v905, %v925
    %v942 = vlaneseq
    %v943 = vshrl.u32 %v942, 7
    %v944 = vsub.s32 0, %v943
    %v945 = vrot.slane %v451, %v944
    %v946 = vmul.f32 %v385, %v945
    %v947 = vmul.f32 %v388, %v945
    %v948 = vmul.f32 %v391, %v945
    %v949 = vmul.f32 %v394, %v945
    %v950 = vmul.f32 %v397, %v945
    %v951 = vmul.f32 %v400, %v945
    %v952 = vmul.f32 %v403, %v945
    %v953 = vmul.f32 %v406, %v945
    %v954 = vmul.f32 %v409, %v945
    %v955 = vmul.f32 %v412, %v945
    %v956 = vmul.f32 %v415, %v945
    %v957 = vmul.f32 %v418, %v945
    %v958 = vmul.f32 %v421, %v945
    %v959 = vmul.f32 %v424, %v945
    %v960 = vmul.f32 %v427, %v945
    %v961 = vmul.f32 %v430, %v945
    %v962 = vadd.f32 %v926, %v946
    %v963 = vadd.f32 %v927, %v947
    %v964 = vadd.f32 %v928, %v948
    %v965 = vadd.f32 %v929, %v949
    %v966 = vadd.f32 %v930, %v950
    %v967 = vadd.f32 %v931, %v951
    %v968 = vadd.f32 %v932, %v952
    %v969 = vadd.f32 %v933, %v953
    %v970 = vadd.f32 %v934, %v954
    %v971 = vadd.f32 %v935, %v955
    %v972 = vadd.f32 %v936, %v956
    %v973 = vadd.f32 %v937, %v957
    %v974 = vadd.f32 %v938, %v958
    %v975 = vadd.f32 %v939, %v959
    %v976 = vadd.f32 %v940, %v960
    %v977 = vadd.f32 %v941, %v961
    %v978 = vlaneseq
    %v979 = vshrl.u32 %v978, 7
    %v980 = vsub.s32 0, %v979
    %v981 = vrot.slane %v453, %v980
    %v982 = vadd.f32 %v962, %v981
    %v983 = vadd.f32 %v963, %v981
    %v984 = vadd.f32 %v964, %v981
    %v985 = vadd.f32 %v965, %v981
    %v986 = vadd.f32 %v966, %v981
    %v987 = vadd.f32 %v967, %v981
    %v988 = vadd.f32 %v968, %v981
    %v989 = vadd.f32 %v969, %v981
    %v990 = vadd.f32 %v970, %v981
    %v991 = vadd.f32 %v971, %v981
    %v992 = vadd.f32 %v972, %v981
    %v993 = vadd.f32 %v973, %v981
    %v994 = vadd.f32 %v974, %v981
    %v995 = vadd.f32 %v975, %v981
    %v996 = vadd.f32 %v976, %v981
    %v997 = vadd.f32 %v977, %v981
    %v998 = vxor.u32 %v982, 2147483648
    %v999 = vxor.u32 %v983, 2147483648
    %v1000 = vxor.u32 %v984, 2147483648
    %v1001 = vxor.u32 %v985, 2147483648
    %v1002 = vxor.u32 %v986, 2147483648
    %v1003 = vxor.u32 %v987, 2147483648
    %v1004 = vxor.u32 %v988, 2147483648
    %v1005 = vxor.u32 %v989, 2147483648
    %v1006 = vxor.u32 %v990, 2147483648
    %v1007 = vxor.u32 %v991, 2147483648
    %v1008 = vxor.u32 %v992, 2147483648
    %v1009 = vxor.u32 %v993, 2147483648
    %v1010 = vxor.u32 %v994, 2147483648
    %v1011 = vxor.u32 %v995, 2147483648
    %v1012 = vxor.u32 %v996, 2147483648
    %v1013 = vxor.u32 %v997, 2147483648
    %v1014 = vmul.f32 %v998, 1.442695
    %v1015 = vpow.pop %v1014
    %v1016 = vmul.f32 %v999, 1.442695
    %v1017 = vpow.pop %v1016
    %v1018 = vmul.f32 %v1000, 1.442695
    %v1019 = vpow.pop %v1018
    %v1020 = vmul.f32 %v1001, 1.442695
    %v1021 = vpow.pop %v1020
    %v1022 = vmul.f32 %v1002, 1.442695
    %v1023 = vpow.pop %v1022
    %v1024 = vmul.f32 %v1003, 1.442695
    %v1025 = vpow.pop %v1024
    %v1026 = vmul.f32 %v1004, 1.442695
    %v1027 = vpow.pop %v1026
    %v1028 = vmul.f32 %v1005, 1.442695
    %v1029 = vpow.pop %v1028
    %v1030 = vmul.f32 %v1006, 1.442695
    %v1031 = vpow.pop %v1030
    %v1032 = vmul.f32 %v1007, 1.442695
    %v1033 = vpow.pop %v1032
    %v1034 = vmul.f32 %v1008, 1.442695
    %v1035 = vpow.pop %v1034
    %v1036 = vmul.f32 %v1009, 1.442695
    %v1037 = vpow.pop %v1036
    %v1038 = vmul.f32 %v1010, 1.442695
    %v1039 = vpow.pop %v1038
    %v1040 = vmul.f32 %v1011, 1.442695
    %v1041 = vpow.pop %v1040
    %v1042 = vmul.f32 %v1012, 1.442695
    %v1043 = vpow.pop %v1042
    %v1044 = vmul.f32 %v1013, 1.442695
    %v1045 = vpow.pop %v1044
    %v1046 = vadd.f32 %v1015, 1.0
    %v1047 = vadd.f32 %v1017, 1.0
    %v1048 = vadd.f32 %v1019, 1.0
    %v1049 = vadd.f32 %v1021, 1.0
    %v1050 = vadd.f32 %v1023, 1.0
    %v1051 = vadd.f32 %v1025, 1.0
    %v1052 = vadd.f32 %v1027, 1.0
    %v1053 = vadd.f32 %v1029, 1.0
    %v1054 = vadd.f32 %v1031, 1.0
    %v1055 = vadd.f32 %v1033, 1.0
    %v1056 = vadd.f32 %v1035, 1.0
    %v1057 = vadd.f32 %v1037, 1.0
    %v1058 = vadd.f32 %v1039, 1.0
    %v1059 = vadd.f32 %v1041, 1.0
    %v1060 = vadd.f32 %v1043, 1.0
    %v1061 = vadd.f32 %v1045, 1.0
    %v1062 = vrcp.pop %v1046
    %v1063 = vmul.f32 1.0, %v1062
    %v1064 = vrcp.pop %v1047
    %v1065 = vmul.f32 1.0, %v1064
    %v1066 = vrcp.pop %v1048
    %v1067 = vmul.f32 1.0, %v1066
    %v1068 = vrcp.pop %v1049
    %v1069 = vmul.f32 1.0, %v1068
    %v1070 = vrcp.pop %v1050
    %v1071 = vmul.f32 1.0, %v1070
    %v1072 = vrcp.pop %v1051
    %v1073 = vmul.f32 1.0, %v1072
    %v1074 = vrcp.pop %v1052
    %v1075 = vmul.f32 1.0, %v1074
    %v1076 = vrcp.pop %v1053
    %v1077 = vmul.f32 1.0, %v1076
    %v1078 = vrcp.pop %v1054
    %v1079 = vmul.f32 1.0, %v1078
    %v1080 = vrcp.pop %v1055
    %v1081 = vmul.f32 1.0, %v1080
    %v1082 = vrcp.pop %v1056
    %v1083 = vmul.f32 1.0, %v1082
    %v1084 = vrcp.pop %v1057
    %v1085 = vmul.f32 1.0, %v1084
    %v1086 = vrcp.pop %v1058
    %v1087 = vmul.f32 1.0, %v1086
    %v1088 = vrcp.pop %v1059
    %v1089 = vmul.f32 1.0, %v1088
    %v1090 = vrcp.pop %v1060
    %v1091 = vmul.f32 1.0, %v1090
    %v1092 = vrcp.pop %v1061
    %v1093 = vmul.f32 1.0, %v1092
    %v1094 = vmul.f32 %v982, %v1063
    %v1095 = vmul.f32 %v983, %v1065
    %v1096 = vmul.f32 %v984, %v1067
    %v1097 = vmul.f32 %v985, %v1069
    %v1098 = vmul.f32 %v986, %v1071
    %v1099 = vmul.f32 %v987, %v1073
    %v1100 = vmul.f32 %v988, %v1075
    %v1101 = vmul.f32 %v989, %v1077
    %v1102 = vmul.f32 %v990, %v1079
    %v1103 = vmul.f32 %v991, %v1081
    %v1104 = vmul.f32 %v992, %v1083
    %v1105 = vmul.f32 %v993, %v1085
    %v1106 = vmul.f32 %v994, %v1087
    %v1107 = vmul.f32 %v995, %v1089
    %v1108 = vmul.f32 %v996, %v1091
    %v1109 = vmul.f32 %v997, %v1093
    %v1110 = vlaneseq
    %v1111 = vshrl.u32 %v1110, 7
    %v1112 = vsub.s32 0, %v1111
    %v1113 = vrot.slane %v454, %v1112
    %v1115 = vsel %vm622, %v1094, 0
    %v1118 = vsel %vm622, %v1095, 0
    %v1121 = vsel %vm622, %v1096, 0
    %v1124 = vsel %vm622, %v1097, 0
    %v1127 = vsel %vm622, %v1098, 0
    %v1130 = vsel %vm622, %v1099, 0
    %v1133 = vsel %vm622, %v1100, 0
    %v1136 = vsel %vm622, %v1101, 0
    %v1139 = vsel %vm622, %v1102, 0
    %v1142 = vsel %vm622, %v1103, 0
    %v1145 = vsel %vm622, %v1104, 0
    %v1148 = vsel %vm622, %v1105, 0
    %v1151 = vsel %vm622, %v1106, 0
    %v1154 = vsel %vm622, %v1107, 0
    %v1157 = vsel %vm622, %v1108, 0
    %v1160 = vsel %vm622, %v1109, 0
    %1162 = vmatprep.subr.mxu0 0.0
    %1163 = vmatpush1.msra.mxu0 %v431
    %1164 = vmatprep.subr.mxu0 0.0
    %1165 = vmatpush1.msra.mxu0 %v432
    %1166 = vmatprep.subr.mxu0 0.0
    %1167 = vmatpush1.msra.mxu0 %v433
    %1168 = vmatprep.subr.mxu0 0.0
    %1169 = vmatpush1.msra.mxu0 %v434
    %1170 = vmatprep.subr.mxu0 0.0
    %1171 = vmatpush1.msra.mxu0 0.0
    %1172 = vmatprep.subr.mxu0 0.0
    %1173 = vmatpush1.msra.mxu0 0.0
    %1174 = vmatprep.subr.mxu0 0.0
    %1175 = vmatpush1.msra.mxu0 0.0
    %1176 = vmatprep.subr.mxu0 0.0
    %1177 = vmatpush1.msra.mxu0 0.0
    %1178 = vmatprep.subr.mxu0 0.0
    %1179 = vmatpush1.msra.mxu0 0.0
    %1180 = vmatprep.subr.mxu0 0.0
    %1181 = vmatpush1.msra.mxu0 0.0
    %1182 = vmatprep.subr.mxu0 0.0
    %1183 = vmatpush1.msra.mxu0 0.0
    %1184 = vmatprep.subr.mxu0 0.0
    %1185 = vmatpush1.msra.mxu0 0.0
    %1186 = vmatprep.subr.mxu0 0.0
    %1187 = vmatpush1.msra.mxu0 0.0
    %1188 = vmatprep.subr.mxu0 0.0
    %1189 = vmatpush1.msra.mxu0 0.0
    %1190 = vmatprep.subr.mxu0 0.0
    %1191 = vmatpush1.msra.mxu0 0.0
    %1192 = vmatprep.subr.mxu0 0.0
    %1193 = vmatpush1.msra.mxu0 0.0
    %1194 = vmatprep.subr.mxu0 0.0
    %1195 = vmatpush1.msra.mxu0 0.0
    %1196 = vmatprep.subr.mxu0 0.0
    %1197 = vmatpush1.msra.mxu0 0.0
    %1198 = vmatprep.subr.mxu0 0.0
    %1199 = vmatpush1.msra.mxu0 0.0
    %1200 = vmatprep.subr.mxu0 0.0
    %1201 = vmatpush1.msra.mxu0 0.0
    %1202 = vmatprep.subr.mxu0 0.0
    %1203 = vmatpush1.msra.mxu0 0.0
    %1204 = vmatprep.subr.mxu0 0.0
    %1205 = vmatpush1.msra.mxu0 0.0
    %1206 = vmatprep.subr.mxu0 0.0
    %1207 = vmatpush1.msra.mxu0 0.0
    %1208 = vmatprep.subr.mxu0 0.0
    %1209 = vmatpush1.msra.mxu0 0.0
    %1210 = vmatprep.subr.mxu0 0.0
    %1211 = vmatpush1.msra.mxu0 0.0
    %1212 = vmatprep.subr.mxu0 0.0
    %1213 = vmatpush1.msra.mxu0 0.0
    %1214 = vmatprep.subr.mxu0 0.0
    %1215 = vmatpush1.msra.mxu0 0.0
    %1216 = vmatprep.subr.mxu0 0.0
    %1217 = vmatpush1.msra.mxu0 0.0
    %1218 = vmatprep.subr.mxu0 0.0
    %1219 = vmatpush1.msra.mxu0 0.0
    %1220 = vmatprep.subr.mxu0 0.0
    %1221 = vmatpush1.msra.mxu0 0.0
    %1222 = vmatprep.subr.mxu0 0.0
    %1223 = vmatpush1.msra.mxu0 0.0
    %1224 = vmatprep.subr.mxu0 0.0
    %1225 = vmatpush1.msra.mxu0 0.0
    %1226 = vmatprep.mubr.f32.mxu0 0.0
    %1227 = vmatmul.mubr.f32.gmra.mrb[0].mxu0 %v1115
    %v1228 = vpop.f32.mrb[0].mxu0
    %v1229 = vadd.f32 %v1113, %v1228
    %v1230 = vpop.f32.mrb[0].mxu0
    %1231 = vmatprep.mubr.f32.mxu0 0.0
    %1232 = vmatmul.mubr.f32.gmra.mrb[0].mxu0 %v1118
    %v1233 = vpop.f32.mrb[0].mxu0
    %v1234 = vadd.f32 %v1113, %v1233
    %v1235 = vpop.f32.mrb[0].mxu0
    %1236 = vmatprep.mubr.f32.mxu0 0.0
    %1237 = vmatmul.mubr.f32.gmra.mrb[0].mxu0 %v1121
    %v1238 = vpop.f32.mrb[0].mxu0
    %v1239 = vadd.f32 %v1113, %v1238
    %v1240 = vpop.f32.mrb[0].mxu0
    %1241 = vmatprep.mubr.f32.mxu0 0.0
    %1242 = vmatmul.mubr.f32.gmra.mrb[0].mxu0 %v1124
    %v1243 = vpop.f32.mrb[0].mxu0
    %v1244 = vadd.f32 %v1113, %v1243
    %v1245 = vpop.f32.mrb[0].mxu0
    %1246 = vmatprep.mubr.f32.mxu0 0.0
    %1247 = vmatmul.mubr.f32.gmra.mrb[0].mxu0 %v1127
    %v1248 = vpop.f32.mrb[0].mxu0
    %v1249 = vadd.f32 %v1113, %v1248
    %v1250 = vpop.f32.mrb[0].mxu0
    %1251 = vmatprep.mubr.f32.mxu0 0.0
    %1252 = vmatmul.mubr.f32.gmra.mrb[0].mxu0 %v1130
    %v1253 = vpop.f32.mrb[0].mxu0
    %v1254 = vadd.f32 %v1113, %v1253
    %v1255 = vpop.f32.mrb[0].mxu0
    %1256 = vmatprep.mubr.f32.mxu0 0.0
    %1257 = vmatmul.mubr.f32.gmra.mrb[0].mxu0 %v1133
    %v1258 = vpop.f32.mrb[0].mxu0
    %v1259 = vadd.f32 %v1113, %v1258
    %v1260 = vpop.f32.mrb[0].mxu0
    %1261 = vmatprep.mubr.f32.mxu0 0.0
    %1262 = vmatmul.mubr.f32.gmra.mrb[0].mxu0 %v1136
    %v1263 = vpop.f32.mrb[0].mxu0
    %v1264 = vadd.f32 %v1113, %v1263
    %v1265 = vpop.f32.mrb[0].mxu0
    %1266 = vmatprep.mubr.f32.mxu0 0.0
    %1267 = vmatmul.mubr.f32.gmra.mrb[0].mxu0 %v1139
    %v1268 = vpop.f32.mrb[0].mxu0
    %v1269 = vadd.f32 %v1113, %v1268
    %v1270 = vpop.f32.mrb[0].mxu0
    %1271 = vmatprep.mubr.f32.mxu0 0.0
    %1272 = vmatmul.mubr.f32.gmra.mrb[0].mxu0 %v1142
    %v1273 = vpop.f32.mrb[0].mxu0
    %v1274 = vadd.f32 %v1113, %v1273
    %v1275 = vpop.f32.mrb[0].mxu0
    %1276 = vmatprep.mubr.f32.mxu0 0.0
    %1277 = vmatmul.mubr.f32.gmra.mrb[0].mxu0 %v1145
    %v1278 = vpop.f32.mrb[0].mxu0
    %v1279 = vadd.f32 %v1113, %v1278
    %v1280 = vpop.f32.mrb[0].mxu0
    %1281 = vmatprep.mubr.f32.mxu0 0.0
    %1282 = vmatmul.mubr.f32.gmra.mrb[0].mxu0 %v1148
    %v1283 = vpop.f32.mrb[0].mxu0
    %v1284 = vadd.f32 %v1113, %v1283
    %v1285 = vpop.f32.mrb[0].mxu0
    %1286 = vmatprep.mubr.f32.mxu0 0.0
    %1287 = vmatmul.mubr.f32.gmra.mrb[0].mxu0 %v1151
    %v1288 = vpop.f32.mrb[0].mxu0
    %v1289 = vadd.f32 %v1113, %v1288
    %v1290 = vpop.f32.mrb[0].mxu0
    %1291 = vmatprep.mubr.f32.mxu0 0.0
    %1292 = vmatmul.mubr.f32.gmra.mrb[0].mxu0 %v1154
    %v1293 = vpop.f32.mrb[0].mxu0
    %v1294 = vadd.f32 %v1113, %v1293
    %v1295 = vpop.f32.mrb[0].mxu0
    %1296 = vmatprep.mubr.f32.mxu0 0.0
    %1297 = vmatmul.mubr.f32.gmra.mrb[0].mxu0 %v1157
    %v1298 = vpop.f32.mrb[0].mxu0
    %v1299 = vadd.f32 %v1113, %v1298
    %v1300 = vpop.f32.mrb[0].mxu0
    %1301 = vmatprep.mubr.f32.mxu0 0.0
    %1302 = vmatmul.mubr.f32.gmra.mrb[0].mxu0 %v1160
    %v1303 = vpop.f32.mrb[0].mxu0
    %v1304 = vadd.f32 %v1113, %v1303
    %v1305 = vpop.f32.mrb[0].mxu0
    %1306 = vdwg.mxu0
    %v1307 = vxor.u32 %v1229, 2147483648
    %v1308 = vxor.u32 %v1234, 2147483648
    %v1309 = vxor.u32 %v1239, 2147483648
    %v1310 = vxor.u32 %v1244, 2147483648
    %v1311 = vxor.u32 %v1249, 2147483648
    %v1312 = vxor.u32 %v1254, 2147483648
    %v1313 = vxor.u32 %v1259, 2147483648
    %v1314 = vxor.u32 %v1264, 2147483648
    %v1315 = vxor.u32 %v1269, 2147483648
    %v1316 = vxor.u32 %v1274, 2147483648
    %v1317 = vxor.u32 %v1279, 2147483648
    %v1318 = vxor.u32 %v1284, 2147483648
    %v1319 = vxor.u32 %v1289, 2147483648
    %v1320 = vxor.u32 %v1294, 2147483648
    %v1321 = vxor.u32 %v1299, 2147483648
    %v1322 = vxor.u32 %v1304, 2147483648
    %v1323 = vmul.f32 %v1307, 1.442695
    %v1324 = vpow.pop %v1323
    %v1325 = vmul.f32 %v1308, 1.442695
    %v1326 = vpow.pop %v1325
    %v1327 = vmul.f32 %v1309, 1.442695
    %v1328 = vpow.pop %v1327
    %v1329 = vmul.f32 %v1310, 1.442695
    %v1330 = vpow.pop %v1329
    %v1331 = vmul.f32 %v1311, 1.442695
    %v1332 = vpow.pop %v1331
    %v1333 = vmul.f32 %v1312, 1.442695
    %v1334 = vpow.pop %v1333
    %v1335 = vmul.f32 %v1313, 1.442695
    %v1336 = vpow.pop %v1335
    %v1337 = vmul.f32 %v1314, 1.442695
    %v1338 = vpow.pop %v1337
    %v1339 = vmul.f32 %v1315, 1.442695
    %v1340 = vpow.pop %v1339
    %v1341 = vmul.f32 %v1316, 1.442695
    %v1342 = vpow.pop %v1341
    %v1343 = vmul.f32 %v1317, 1.442695
    %v1344 = vpow.pop %v1343
    %v1345 = vmul.f32 %v1318, 1.442695
    %v1346 = vpow.pop %v1345
    %v1347 = vmul.f32 %v1319, 1.442695
    %v1348 = vpow.pop %v1347
    %v1349 = vmul.f32 %v1320, 1.442695
    %v1350 = vpow.pop %v1349
    %v1351 = vmul.f32 %v1321, 1.442695
    %v1352 = vpow.pop %v1351
    %v1353 = vmul.f32 %v1322, 1.442695
    %v1354 = vpow.pop %v1353
    %v1355 = vadd.f32 %v1324, 1.0
    %v1356 = vadd.f32 %v1326, 1.0
    %v1357 = vadd.f32 %v1328, 1.0
    %v1358 = vadd.f32 %v1330, 1.0
    %v1359 = vadd.f32 %v1332, 1.0
    %v1360 = vadd.f32 %v1334, 1.0
    %v1361 = vadd.f32 %v1336, 1.0
    %v1362 = vadd.f32 %v1338, 1.0
    %v1363 = vadd.f32 %v1340, 1.0
    %v1364 = vadd.f32 %v1342, 1.0
    %v1365 = vadd.f32 %v1344, 1.0
    %v1366 = vadd.f32 %v1346, 1.0
    %v1367 = vadd.f32 %v1348, 1.0
    %v1368 = vadd.f32 %v1350, 1.0
    %v1369 = vadd.f32 %v1352, 1.0
    %v1370 = vadd.f32 %v1354, 1.0
    %v1371 = vrcp.pop %v1355
    %v1372 = vmul.f32 1.0, %v1371
    %v1373 = vrcp.pop %v1356
    %v1374 = vmul.f32 1.0, %v1373
    %v1375 = vrcp.pop %v1357
    %v1376 = vmul.f32 1.0, %v1375
    %v1377 = vrcp.pop %v1358
    %v1378 = vmul.f32 1.0, %v1377
    %v1379 = vrcp.pop %v1359
    %v1380 = vmul.f32 1.0, %v1379
    %v1381 = vrcp.pop %v1360
    %v1382 = vmul.f32 1.0, %v1381
    %v1383 = vrcp.pop %v1361
    %v1384 = vmul.f32 1.0, %v1383
    %v1385 = vrcp.pop %v1362
    %v1386 = vmul.f32 1.0, %v1385
    %v1387 = vrcp.pop %v1363
    %v1388 = vmul.f32 1.0, %v1387
    %v1389 = vrcp.pop %v1364
    %v1390 = vmul.f32 1.0, %v1389
    %v1391 = vrcp.pop %v1365
    %v1392 = vmul.f32 1.0, %v1391
    %v1393 = vrcp.pop %v1366
    %v1394 = vmul.f32 1.0, %v1393
    %v1395 = vrcp.pop %v1367
    %v1396 = vmul.f32 1.0, %v1395
    %v1397 = vrcp.pop %v1368
    %v1398 = vmul.f32 1.0, %v1397
    %v1399 = vrcp.pop %v1369
    %v1400 = vmul.f32 1.0, %v1399
    %v1401 = vrcp.pop %v1370
    %v1402 = vmul.f32 1.0, %v1401
    %v1403 = vmul.f32 %v1229, %v1372
    %v1404 = vmul.f32 %v1234, %v1374
    %v1405 = vmul.f32 %v1239, %v1376
    %v1406 = vmul.f32 %v1244, %v1378
    %v1407 = vmul.f32 %v1249, %v1380
    %v1408 = vmul.f32 %v1254, %v1382
    %v1409 = vmul.f32 %v1259, %v1384
    %v1410 = vmul.f32 %v1264, %v1386
    %v1411 = vmul.f32 %v1269, %v1388
    %v1412 = vmul.f32 %v1274, %v1390
    %v1413 = vmul.f32 %v1279, %v1392
    %v1414 = vmul.f32 %v1284, %v1394
    %v1415 = vmul.f32 %v1289, %v1396
    %v1416 = vmul.f32 %v1294, %v1398
    %v1417 = vmul.f32 %v1299, %v1400
    %v1418 = vmul.f32 %v1304, %v1402
    %1420 = vset.pattern.permute.xlu0 0
    %1421 = vperm.xlu0 %1420, %v48
    %v1422 = vpop.permute.xlu0 %1421
    %1425 = vset.pattern.permute.xlu0 0
    %1426 = vperm.xlu0 %1425, %v49
    %v1427 = vpop.permute.xlu0 %1426
    %1430 = vset.pattern.permute.xlu0 0
    %1431 = vperm.xlu0 %1430, %v50
    %v1432 = vpop.permute.xlu0 %1431
    %1435 = vset.pattern.permute.xlu0 0
    %1436 = vperm.xlu0 %1435, %v51
    %v1437 = vpop.permute.xlu0 %1436
    %1440 = vset.pattern.permute.xlu0 0
    %1441 = vperm.xlu0 %1440, %v52
    %v1442 = vpop.permute.xlu0 %1441
    %1445 = vset.pattern.permute.xlu0 0
    %1446 = vperm.xlu0 %1445, %v53
    %v1447 = vpop.permute.xlu0 %1446
    %1450 = vset.pattern.permute.xlu0 0
    %1451 = vperm.xlu0 %1450, %v54
    %v1452 = vpop.permute.xlu0 %1451
    %1455 = vset.pattern.permute.xlu0 0
    %1456 = vperm.xlu0 %1455, %v55
    %v1457 = vpop.permute.xlu0 %1456
    %1460 = vset.pattern.permute.xlu0 0
    %1461 = vperm.xlu0 %1460, %v56
    %v1462 = vpop.permute.xlu0 %1461
    %1465 = vset.pattern.permute.xlu0 0
    %1466 = vperm.xlu0 %1465, %v57
    %v1467 = vpop.permute.xlu0 %1466
    %1470 = vset.pattern.permute.xlu0 0
    %1471 = vperm.xlu0 %1470, %v58
    %v1472 = vpop.permute.xlu0 %1471
    %1475 = vset.pattern.permute.xlu0 0
    %1476 = vperm.xlu0 %1475, %v59
    %v1477 = vpop.permute.xlu0 %1476
    %1480 = vset.pattern.permute.xlu0 0
    %1481 = vperm.xlu0 %1480, %v60
    %v1482 = vpop.permute.xlu0 %1481
    %1485 = vset.pattern.permute.xlu0 0
    %1486 = vperm.xlu0 %1485, %v61
    %v1487 = vpop.permute.xlu0 %1486
    %1490 = vset.pattern.permute.xlu0 0
    %1491 = vperm.xlu0 %1490, %v62
    %v1492 = vpop.permute.xlu0 %1491
    %1495 = vset.pattern.permute.xlu0 0
    %1496 = vperm.xlu0 %1495, %v63
    %v1497 = vpop.permute.xlu0 %1496
    %v1499 = vmul.f32 %v1403, %v1422
    %v1500 = vmul.f32 %v1404, %v1427
    %v1501 = vmul.f32 %v1405, %v1432
    %v1502 = vmul.f32 %v1406, %v1437
    %v1503 = vmul.f32 %v1407, %v1442
    %v1504 = vmul.f32 %v1408, %v1447
    %v1505 = vmul.f32 %v1409, %v1452
    %v1506 = vmul.f32 %v1410, %v1457
    %v1507 = vmul.f32 %v1411, %v1462
    %v1508 = vmul.f32 %v1412, %v1467
    %v1509 = vmul.f32 %v1413, %v1472
    %v1510 = vmul.f32 %v1414, %v1477
    %v1511 = vmul.f32 %v1415, %v1482
    %v1512 = vmul.f32 %v1416, %v1487
    %v1513 = vmul.f32 %v1417, %v1492
    %v1514 = vmul.f32 %v1418, %v1497
    %v1515 = vlaneseq
    %v1516 = vshrl.u32 %v1515, 7
    %v1517 = vsub.s32 0, %v1516
    %v1518 = vrot.slane %v455, %v1517
    %v1520 = vsel %vm622, %v1499, 0
    %v1523 = vsel %vm622, %v1500, 0
    %v1526 = vsel %vm622, %v1501, 0
    %v1529 = vsel %vm622, %v1502, 0
    %v1532 = vsel %vm622, %v1503, 0
    %v1535 = vsel %vm622, %v1504, 0
    %v1538 = vsel %vm622, %v1505, 0
    %v1541 = vsel %vm622, %v1506, 0
    %v1544 = vsel %vm622, %v1507, 0
    %v1547 = vsel %vm622, %v1508, 0
    %v1550 = vsel %vm622, %v1509, 0
    %v1553 = vsel %vm622, %v1510, 0
    %v1556 = vsel %vm622, %v1511, 0
    %v1559 = vsel %vm622, %v1512, 0
    %v1562 = vsel %vm622, %v1513, 0
    %v1565 = vsel %vm622, %v1514, 0
    %1567 = vmatprep.subr.mxu0 0.0
    %1568 = vmatpush1.msra.mxu0 %v436
    %1569 = vmatprep.subr.mxu0 0.0
    %1570 = vmatpush1.msra.mxu0 %v437
    %1571 = vmatprep.subr.mxu0 0.0
    %1572 = vmatpush1.msra.mxu0 %v438
    %1573 = vmatprep.subr.mxu0 0.0
    %1574 = vmatpush1.msra.mxu0 %v439
    %1575 = vmatprep.subr.mxu0 0.0
    %1576 = vmatpush1.msra.mxu0 0.0
    %1577 = vmatprep.subr.mxu0 0.0
    %1578 = vmatpush1.msra.mxu0 0.0
    %1579 = vmatprep.subr.mxu0 0.0
    %1580 = vmatpush1.msra.mxu0 0.0
    %1581 = vmatprep.subr.mxu0 0.0
    %1582 = vmatpush1.msra.mxu0 0.0
    %1583 = vmatprep.subr.mxu0 0.0
    %1584 = vmatpush1.msra.mxu0 0.0
    %1585 = vmatprep.subr.mxu0 0.0
    %1586 = vmatpush1.msra.mxu0 0.0
    %1587 = vmatprep.subr.mxu0 0.0
    %1588 = vmatpush1.msra.mxu0 0.0
    %1589 = vmatprep.subr.mxu0 0.0
    %1590 = vmatpush1.msra.mxu0 0.0
    %1591 = vmatprep.subr.mxu0 0.0
    %1592 = vmatpush1.msra.mxu0 0.0
    %1593 = vmatprep.subr.mxu0 0.0
    %1594 = vmatpush1.msra.mxu0 0.0
    %1595 = vmatprep.subr.mxu0 0.0
    %1596 = vmatpush1.msra.mxu0 0.0
    %1597 = vmatprep.subr.mxu0 0.0
    %1598 = vmatpush1.msra.mxu0 0.0
    %1599 = vmatprep.subr.mxu0 0.0
    %1600 = vmatpush1.msra.mxu0 0.0
    %1601 = vmatprep.subr.mxu0 0.0
    %1602 = vmatpush1.msra.mxu0 0.0
    %1603 = vmatprep.subr.mxu0 0.0
    %1604 = vmatpush1.msra.mxu0 0.0
    %1605 = vmatprep.subr.mxu0 0.0
    %1606 = vmatpush1.msra.mxu0 0.0
    %1607 = vmatprep.subr.mxu0 0.0
    %1608 = vmatpush1.msra.mxu0 0.0
    %1609 = vmatprep.subr.mxu0 0.0
    %1610 = vmatpush1.msra.mxu0 0.0
    %1611 = vmatprep.subr.mxu0 0.0
    %1612 = vmatpush1.msra.mxu0 0.0
    %1613 = vmatprep.subr.mxu0 0.0
    %1614 = vmatpush1.msra.mxu0 0.0
    %1615 = vmatprep.subr.mxu0 0.0
    %1616 = vmatpush1.msra.mxu0 0.0
    %1617 = vmatprep.subr.mxu0 0.0
    %1618 = vmatpush1.msra.mxu0 0.0
    %1619 = vmatprep.subr.mxu0 0.0
    %1620 = vmatpush1.msra.mxu0 0.0
    %1621 = vmatprep.subr.mxu0 0.0
    %1622 = vmatpush1.msra.mxu0 0.0
    %1623 = vmatprep.subr.mxu0 0.0
    %1624 = vmatpush1.msra.mxu0 0.0
    %1625 = vmatprep.subr.mxu0 0.0
    %1626 = vmatpush1.msra.mxu0 0.0
    %1627 = vmatprep.subr.mxu0 0.0
    %1628 = vmatpush1.msra.mxu0 0.0
    %1629 = vmatprep.subr.mxu0 0.0
    %1630 = vmatpush1.msra.mxu0 0.0
    %1631 = vmatprep.mubr.f32.mxu0 0.0
    %1632 = vmatmul.mubr.f32.gmra.mrb[0].mxu0 %v1520
    %v1633 = vpop.f32.mrb[0].mxu0
    %v1634 = vadd.f32 %v1518, %v1633
    %v1635 = vpop.f32.mrb[0].mxu0
    %1636 = vmatprep.mubr.f32.mxu0 0.0
    %1637 = vmatmul.mubr.f32.gmra.mrb[0].mxu0 %v1523
    %v1638 = vpop.f32.mrb[0].mxu0
    %v1639 = vadd.f32 %v1518, %v1638
    %v1640 = vpop.f32.mrb[0].mxu0
    %1641 = vmatprep.mubr.f32.mxu0 0.0
    %1642 = vmatmul.mubr.f32.gmra.mrb[0].mxu0 %v1526
    %v1643 = vpop.f32.mrb[0].mxu0
    %v1644 = vadd.f32 %v1518, %v1643
    %v1645 = vpop.f32.mrb[0].mxu0
    %1646 = vmatprep.mubr.f32.mxu0 0.0
    %1647 = vmatmul.mubr.f32.gmra.mrb[0].mxu0 %v1529
    %v1648 = vpop.f32.mrb[0].mxu0
    %v1649 = vadd.f32 %v1518, %v1648
    %v1650 = vpop.f32.mrb[0].mxu0
    %1651 = vmatprep.mubr.f32.mxu0 0.0
    %1652 = vmatmul.mubr.f32.gmra.mrb[0].mxu0 %v1532
    %v1653 = vpop.f32.mrb[0].mxu0
    %v1654 = vadd.f32 %v1518, %v1653
    %v1655 = vpop.f32.mrb[0].mxu0
    %1656 = vmatprep.mubr.f32.mxu0 0.0
    %1657 = vmatmul.mubr.f32.gmra.mrb[0].mxu0 %v1535
    %v1658 = vpop.f32.mrb[0].mxu0
    %v1659 = vadd.f32 %v1518, %v1658
    %v1660 = vpop.f32.mrb[0].mxu0
    %1661 = vmatprep.mubr.f32.mxu0 0.0
    %1662 = vmatmul.mubr.f32.gmra.mrb[0].mxu0 %v1538
    %v1663 = vpop.f32.mrb[0].mxu0
    %v1664 = vadd.f32 %v1518, %v1663
    %v1665 = vpop.f32.mrb[0].mxu0
    %1666 = vmatprep.mubr.f32.mxu0 0.0
    %1667 = vmatmul.mubr.f32.gmra.mrb[0].mxu0 %v1541
    %v1668 = vpop.f32.mrb[0].mxu0
    %v1669 = vadd.f32 %v1518, %v1668
    %v1670 = vpop.f32.mrb[0].mxu0
    %1671 = vmatprep.mubr.f32.mxu0 0.0
    %1672 = vmatmul.mubr.f32.gmra.mrb[0].mxu0 %v1544
    %v1673 = vpop.f32.mrb[0].mxu0
    %v1674 = vadd.f32 %v1518, %v1673
    %v1675 = vpop.f32.mrb[0].mxu0
    %1676 = vmatprep.mubr.f32.mxu0 0.0
    %1677 = vmatmul.mubr.f32.gmra.mrb[0].mxu0 %v1547
    %v1678 = vpop.f32.mrb[0].mxu0
    %v1679 = vadd.f32 %v1518, %v1678
    %v1680 = vpop.f32.mrb[0].mxu0
    %1681 = vmatprep.mubr.f32.mxu0 0.0
    %1682 = vmatmul.mubr.f32.gmra.mrb[0].mxu0 %v1550
    %v1683 = vpop.f32.mrb[0].mxu0
    %v1684 = vadd.f32 %v1518, %v1683
    %v1685 = vpop.f32.mrb[0].mxu0
    %1686 = vmatprep.mubr.f32.mxu0 0.0
    %1687 = vmatmul.mubr.f32.gmra.mrb[0].mxu0 %v1553
    %v1688 = vpop.f32.mrb[0].mxu0
    %v1689 = vadd.f32 %v1518, %v1688
    %v1690 = vpop.f32.mrb[0].mxu0
    %1691 = vmatprep.mubr.f32.mxu0 0.0
    %1692 = vmatmul.mubr.f32.gmra.mrb[0].mxu0 %v1556
    %v1693 = vpop.f32.mrb[0].mxu0
    %v1694 = vadd.f32 %v1518, %v1693
    %v1695 = vpop.f32.mrb[0].mxu0
    %1696 = vmatprep.mubr.f32.mxu0 0.0
    %1697 = vmatmul.mubr.f32.gmra.mrb[0].mxu0 %v1559
    %v1698 = vpop.f32.mrb[0].mxu0
    %v1699 = vadd.f32 %v1518, %v1698
    %v1700 = vpop.f32.mrb[0].mxu0
    %1701 = vmatprep.mubr.f32.mxu0 0.0
    %1702 = vmatmul.mubr.f32.gmra.mrb[0].mxu0 %v1562
    %v1703 = vpop.f32.mrb[0].mxu0
    %v1704 = vadd.f32 %v1518, %v1703
    %v1705 = vpop.f32.mrb[0].mxu0
    %1706 = vmatprep.mubr.f32.mxu0 0.0
    %1707 = vmatmul.mubr.f32.gmra.mrb[0].mxu0 %v1565
    %v1708 = vpop.f32.mrb[0].mxu0
    %v1709 = vadd.f32 %v1518, %v1708
    %v1710 = vpop.f32.mrb[0].mxu0
    %1711 = vdwg.mxu0
    %v1712 = vxor.u32 %v1634, 2147483648
    %v1713 = vxor.u32 %v1639, 2147483648
    %v1714 = vxor.u32 %v1644, 2147483648
    %v1715 = vxor.u32 %v1649, 2147483648
    %v1716 = vxor.u32 %v1654, 2147483648
    %v1717 = vxor.u32 %v1659, 2147483648
    %v1718 = vxor.u32 %v1664, 2147483648
    %v1719 = vxor.u32 %v1669, 2147483648
    %v1720 = vxor.u32 %v1674, 2147483648
    %v1721 = vxor.u32 %v1679, 2147483648
    %v1722 = vxor.u32 %v1684, 2147483648
    %v1723 = vxor.u32 %v1689, 2147483648
    %v1724 = vxor.u32 %v1694, 2147483648
    %v1725 = vxor.u32 %v1699, 2147483648
    %v1726 = vxor.u32 %v1704, 2147483648
    %v1727 = vxor.u32 %v1709, 2147483648
    %v1728 = vmul.f32 %v1712, 1.442695
    %v1729 = vpow.pop %v1728
    %v1730 = vmul.f32 %v1713, 1.442695
    %v1731 = vpow.pop %v1730
    %v1732 = vmul.f32 %v1714, 1.442695
    %v1733 = vpow.pop %v1732
    %v1734 = vmul.f32 %v1715, 1.442695
    %v1735 = vpow.pop %v1734
    %v1736 = vmul.f32 %v1716, 1.442695
    %v1737 = vpow.pop %v1736
    %v1738 = vmul.f32 %v1717, 1.442695
    %v1739 = vpow.pop %v1738
    %v1740 = vmul.f32 %v1718, 1.442695
    %v1741 = vpow.pop %v1740
    %v1742 = vmul.f32 %v1719, 1.442695
    %v1743 = vpow.pop %v1742
    %v1744 = vmul.f32 %v1720, 1.442695
    %v1745 = vpow.pop %v1744
    %v1746 = vmul.f32 %v1721, 1.442695
    %v1747 = vpow.pop %v1746
    %v1748 = vmul.f32 %v1722, 1.442695
    %v1749 = vpow.pop %v1748
    %v1750 = vmul.f32 %v1723, 1.442695
    %v1751 = vpow.pop %v1750
    %v1752 = vmul.f32 %v1724, 1.442695
    %v1753 = vpow.pop %v1752
    %v1754 = vmul.f32 %v1725, 1.442695
    %v1755 = vpow.pop %v1754
    %v1756 = vmul.f32 %v1726, 1.442695
    %v1757 = vpow.pop %v1756
    %v1758 = vmul.f32 %v1727, 1.442695
    %v1759 = vpow.pop %v1758
    %v1760 = vadd.f32 %v1729, 1.0
    %v1761 = vadd.f32 %v1731, 1.0
    %v1762 = vadd.f32 %v1733, 1.0
    %v1763 = vadd.f32 %v1735, 1.0
    %v1764 = vadd.f32 %v1737, 1.0
    %v1765 = vadd.f32 %v1739, 1.0
    %v1766 = vadd.f32 %v1741, 1.0
    %v1767 = vadd.f32 %v1743, 1.0
    %v1768 = vadd.f32 %v1745, 1.0
    %v1769 = vadd.f32 %v1747, 1.0
    %v1770 = vadd.f32 %v1749, 1.0
    %v1771 = vadd.f32 %v1751, 1.0
    %v1772 = vadd.f32 %v1753, 1.0
    %v1773 = vadd.f32 %v1755, 1.0
    %v1774 = vadd.f32 %v1757, 1.0
    %v1775 = vadd.f32 %v1759, 1.0
    %v1776 = vrcp.pop %v1760
    %v1777 = vmul.f32 1.0, %v1776
    %v1778 = vrcp.pop %v1761
    %v1779 = vmul.f32 1.0, %v1778
    %v1780 = vrcp.pop %v1762
    %v1781 = vmul.f32 1.0, %v1780
    %v1782 = vrcp.pop %v1763
    %v1783 = vmul.f32 1.0, %v1782
    %v1784 = vrcp.pop %v1764
    %v1785 = vmul.f32 1.0, %v1784
    %v1786 = vrcp.pop %v1765
    %v1787 = vmul.f32 1.0, %v1786
    %v1788 = vrcp.pop %v1766
    %v1789 = vmul.f32 1.0, %v1788
    %v1790 = vrcp.pop %v1767
    %v1791 = vmul.f32 1.0, %v1790
    %v1792 = vrcp.pop %v1768
    %v1793 = vmul.f32 1.0, %v1792
    %v1794 = vrcp.pop %v1769
    %v1795 = vmul.f32 1.0, %v1794
    %v1796 = vrcp.pop %v1770
    %v1797 = vmul.f32 1.0, %v1796
    %v1798 = vrcp.pop %v1771
    %v1799 = vmul.f32 1.0, %v1798
    %v1800 = vrcp.pop %v1772
    %v1801 = vmul.f32 1.0, %v1800
    %v1802 = vrcp.pop %v1773
    %v1803 = vmul.f32 1.0, %v1802
    %v1804 = vrcp.pop %v1774
    %v1805 = vmul.f32 1.0, %v1804
    %v1806 = vrcp.pop %v1775
    %v1807 = vmul.f32 1.0, %v1806
    %v1808 = vmul.f32 %v1634, %v1777
    %v1809 = vmul.f32 %v1639, %v1779
    %v1810 = vmul.f32 %v1644, %v1781
    %v1811 = vmul.f32 %v1649, %v1783
    %v1812 = vmul.f32 %v1654, %v1785
    %v1813 = vmul.f32 %v1659, %v1787
    %v1814 = vmul.f32 %v1664, %v1789
    %v1815 = vmul.f32 %v1669, %v1791
    %v1816 = vmul.f32 %v1674, %v1793
    %v1817 = vmul.f32 %v1679, %v1795
    %v1818 = vmul.f32 %v1684, %v1797
    %v1819 = vmul.f32 %v1689, %v1799
    %v1820 = vmul.f32 %v1694, %v1801
    %v1821 = vmul.f32 %v1699, %v1803
    %v1822 = vmul.f32 %v1704, %v1805
    %v1823 = vmul.f32 %v1709, %v1807
    %v1824 = vlaneseq
    %v1825 = vshrl.u32 %v1824, 7
    %v1826 = vsub.s32 0, %v1825
    %v1827 = vrot.slane %v452, %v1826
    %v1828 = vmul.f32 %v1808, %v1827
    %v1829 = vmul.f32 %v1809, %v1827
    %v1830 = vmul.f32 %v1810, %v1827
    %v1831 = vmul.f32 %v1811, %v1827
    %v1832 = vmul.f32 %v1812, %v1827
    %v1833 = vmul.f32 %v1813, %v1827
    %v1834 = vmul.f32 %v1814, %v1827
    %v1835 = vmul.f32 %v1815, %v1827
    %v1836 = vmul.f32 %v1816, %v1827
    %v1837 = vmul.f32 %v1817, %v1827
    %v1838 = vmul.f32 %v1818, %v1827
    %v1839 = vmul.f32 %v1819, %v1827
    %v1840 = vmul.f32 %v1820, %v1827
    %v1841 = vmul.f32 %v1821, %v1827
    %v1842 = vmul.f32 %v1822, %v1827
    %v1843 = vmul.f32 %v1823, %v1827
    %v1844 = vsel %vm622, %v1828, 0.0
    %1845 = vadd.xlane.f32.xlu0 %v1844
    %v1846 = vpop.xlane.xlu0 %1845
    %v1847 = vsel %vm622, %v1829, 0.0
    %1848 = vadd.xlane.f32.xlu0 %v1847
    %v1849 = vpop.xlane.xlu0 %1848
    %v1850 = vsel %vm622, %v1830, 0.0
    %1851 = vadd.xlane.f32.xlu0 %v1850
    %v1852 = vpop.xlane.xlu0 %1851
    %v1853 = vsel %vm622, %v1831, 0.0
    %1854 = vadd.xlane.f32.xlu0 %v1853
    %v1855 = vpop.xlane.xlu0 %1854
    %v1856 = vsel %vm622, %v1832, 0.0
    %1857 = vadd.xlane.f32.xlu0 %v1856
    %v1858 = vpop.xlane.xlu0 %1857
    %v1859 = vsel %vm622, %v1833, 0.0
    %1860 = vadd.xlane.f32.xlu0 %v1859
    %v1861 = vpop.xlane.xlu0 %1860
    %v1862 = vsel %vm622, %v1834, 0.0
    %1863 = vadd.xlane.f32.xlu0 %v1862
    %v1864 = vpop.xlane.xlu0 %1863
    %v1865 = vsel %vm622, %v1835, 0.0
    %1866 = vadd.xlane.f32.xlu0 %v1865
    %v1867 = vpop.xlane.xlu0 %1866
    %v1868 = vsel %vm622, %v1836, 0.0
    %1869 = vadd.xlane.f32.xlu0 %v1868
    %v1870 = vpop.xlane.xlu0 %1869
    %v1871 = vsel %vm622, %v1837, 0.0
    %1872 = vadd.xlane.f32.xlu0 %v1871
    %v1873 = vpop.xlane.xlu0 %1872
    %v1874 = vsel %vm622, %v1838, 0.0
    %1875 = vadd.xlane.f32.xlu0 %v1874
    %v1876 = vpop.xlane.xlu0 %1875
    %v1877 = vsel %vm622, %v1839, 0.0
    %1878 = vadd.xlane.f32.xlu0 %v1877
    %v1879 = vpop.xlane.xlu0 %1878
    %v1880 = vsel %vm622, %v1840, 0.0
    %1881 = vadd.xlane.f32.xlu0 %v1880
    %v1882 = vpop.xlane.xlu0 %1881
    %v1883 = vsel %vm622, %v1841, 0.0
    %1884 = vadd.xlane.f32.xlu0 %v1883
    %v1885 = vpop.xlane.xlu0 %1884
    %v1886 = vsel %vm622, %v1842, 0.0
    %1887 = vadd.xlane.f32.xlu0 %v1886
    %v1888 = vpop.xlane.xlu0 %1887
    %v1889 = vsel %vm622, %v1843, 0.0
    %1890 = vadd.xlane.f32.xlu0 %v1889
    %v1891 = vpop.xlane.xlu0 %1890
    %v1892 = vmul.f32 %v1846, %v48
    %v1893 = vmul.f32 %v1849, %v49
    %v1894 = vmul.f32 %v1852, %v50
    %v1895 = vmul.f32 %v1855, %v51
    %v1896 = vmul.f32 %v1858, %v52
    %v1897 = vmul.f32 %v1861, %v53
    %v1898 = vmul.f32 %v1864, %v54
    %v1899 = vmul.f32 %v1867, %v55
    %v1900 = vmul.f32 %v1870, %v56
    %v1901 = vmul.f32 %v1873, %v57
    %v1902 = vmul.f32 %v1876, %v58
    %v1903 = vmul.f32 %v1879, %v59
    %v1904 = vmul.f32 %v1882, %v60
    %v1905 = vmul.f32 %v1885, %v61
    %v1906 = vmul.f32 %v1888, %v62
    %v1907 = vmul.f32 %v1891, %v63
    %1909 = vset.pattern.permute.xlu0 0
    %1910 = vperm.xlu0 %1909, %v1892
    %v1911 = vpop.permute.xlu0 %1910
    %1914 = vset.pattern.permute.xlu0 0
    %1915 = vperm.xlu0 %1914, %v1893
    %v1916 = vpop.permute.xlu0 %1915
    %1919 = vset.pattern.permute.xlu0 0
    %1920 = vperm.xlu0 %1919, %v1894
    %v1921 = vpop.permute.xlu0 %1920
    %1924 = vset.pattern.permute.xlu0 0
    %1925 = vperm.xlu0 %1924, %v1895
    %v1926 = vpop.permute.xlu0 %1925
    %1929 = vset.pattern.permute.xlu0 0
    %1930 = vperm.xlu0 %1929, %v1896
    %v1931 = vpop.permute.xlu0 %1930
    %1934 = vset.pattern.permute.xlu0 0
    %1935 = vperm.xlu0 %1934, %v1897
    %v1936 = vpop.permute.xlu0 %1935
    %1939 = vset.pattern.permute.xlu0 0
    %1940 = vperm.xlu0 %1939, %v1898
    %v1941 = vpop.permute.xlu0 %1940
    %1944 = vset.pattern.permute.xlu0 0
    %1945 = vperm.xlu0 %1944, %v1899
    %v1946 = vpop.permute.xlu0 %1945
    %1949 = vset.pattern.permute.xlu0 0
    %1950 = vperm.xlu0 %1949, %v1900
    %v1951 = vpop.permute.xlu0 %1950
    %1954 = vset.pattern.permute.xlu0 0
    %1955 = vperm.xlu0 %1954, %v1901
    %v1956 = vpop.permute.xlu0 %1955
    %1959 = vset.pattern.permute.xlu0 0
    %1960 = vperm.xlu0 %1959, %v1902
    %v1961 = vpop.permute.xlu0 %1960
    %1964 = vset.pattern.permute.xlu0 0
    %1965 = vperm.xlu0 %1964, %v1903
    %v1966 = vpop.permute.xlu0 %1965
    %1969 = vset.pattern.permute.xlu0 0
    %1970 = vperm.xlu0 %1969, %v1904
    %v1971 = vpop.permute.xlu0 %1970
    %1974 = vset.pattern.permute.xlu0 0
    %1975 = vperm.xlu0 %1974, %v1905
    %v1976 = vpop.permute.xlu0 %1975
    %1979 = vset.pattern.permute.xlu0 0
    %1980 = vperm.xlu0 %1979, %v1906
    %v1981 = vpop.permute.xlu0 %1980
    %1984 = vset.pattern.permute.xlu0 0
    %1985 = vperm.xlu0 %1984, %v1907
    %v1986 = vpop.permute.xlu0 %1985
    %v1988 = vmul.f32 %v602, %v1911
    %v1989 = vmul.f32 %v603, %v1916
    %v1990 = vmul.f32 %v604, %v1921
    %v1991 = vmul.f32 %v605, %v1926
    %v1992 = vmul.f32 %v606, %v1931
    %v1993 = vmul.f32 %v607, %v1936
    %v1994 = vmul.f32 %v608, %v1941
    %v1995 = vmul.f32 %v609, %v1946
    %v1996 = vmul.f32 %v610, %v1951
    %v1997 = vmul.f32 %v611, %v1956
    %v1998 = vmul.f32 %v612, %v1961
    %v1999 = vmul.f32 %v613, %v1966
    %v2000 = vmul.f32 %v614, %v1971
    %v2001 = vmul.f32 %v615, %v1976
    %v2002 = vmul.f32 %v616, %v1981
    %v2003 = vmul.f32 %v617, %v1986
    %v2004 = vsel %vm382, %v1988, 0.0
    %v2005 = vrot.slane %v2004, 4
    %v2006 = vadd.f32 %v2004, %v2005
    %v2007 = vrot.slane %v2006, 2
    %v2008 = vadd.f32 %v2006, %v2007
    %v2009 = vrot.slane %v2008, 1
    %v2010 = vadd.f32 %v2008, %v2009
    %v2011 = vsel %vm382, %v1989, 0.0
    %v2012 = vrot.slane %v2011, 4
    %v2013 = vadd.f32 %v2011, %v2012
    %v2014 = vrot.slane %v2013, 2
    %v2015 = vadd.f32 %v2013, %v2014
    %v2016 = vrot.slane %v2015, 1
    %v2017 = vadd.f32 %v2015, %v2016
    %v2018 = vsel %vm382, %v1990, 0.0
    %v2019 = vrot.slane %v2018, 4
    %v2020 = vadd.f32 %v2018, %v2019
    %v2021 = vrot.slane %v2020, 2
    %v2022 = vadd.f32 %v2020, %v2021
    %v2023 = vrot.slane %v2022, 1
    %v2024 = vadd.f32 %v2022, %v2023
    %v2025 = vsel %vm382, %v1991, 0.0
    %v2026 = vrot.slane %v2025, 4
    %v2027 = vadd.f32 %v2025, %v2026
    %v2028 = vrot.slane %v2027, 2
    %v2029 = vadd.f32 %v2027, %v2028
    %v2030 = vrot.slane %v2029, 1
    %v2031 = vadd.f32 %v2029, %v2030
    %v2032 = vsel %vm382, %v1992, 0.0
    %v2033 = vrot.slane %v2032, 4
    %v2034 = vadd.f32 %v2032, %v2033
    %v2035 = vrot.slane %v2034, 2
    %v2036 = vadd.f32 %v2034, %v2035
    %v2037 = vrot.slane %v2036, 1
    %v2038 = vadd.f32 %v2036, %v2037
    %v2039 = vsel %vm382, %v1993, 0.0
    %v2040 = vrot.slane %v2039, 4
    %v2041 = vadd.f32 %v2039, %v2040
    %v2042 = vrot.slane %v2041, 2
    %v2043 = vadd.f32 %v2041, %v2042
    %v2044 = vrot.slane %v2043, 1
    %v2045 = vadd.f32 %v2043, %v2044
    %v2046 = vsel %vm382, %v1994, 0.0
    %v2047 = vrot.slane %v2046, 4
    %v2048 = vadd.f32 %v2046, %v2047
    %v2049 = vrot.slane %v2048, 2
    %v2050 = vadd.f32 %v2048, %v2049
    %v2051 = vrot.slane %v2050, 1
    %v2052 = vadd.f32 %v2050, %v2051
    %v2053 = vsel %vm382, %v1995, 0.0
    %v2054 = vrot.slane %v2053, 4
    %v2055 = vadd.f32 %v2053, %v2054
    %v2056 = vrot.slane %v2055, 2
    %v2057 = vadd.f32 %v2055, %v2056
    %v2058 = vrot.slane %v2057, 1
    %v2059 = vadd.f32 %v2057, %v2058
    %v2060 = vsel %vm382, %v1996, 0.0
    %v2061 = vrot.slane %v2060, 4
    %v2062 = vadd.f32 %v2060, %v2061
    %v2063 = vrot.slane %v2062, 2
    %v2064 = vadd.f32 %v2062, %v2063
    %v2065 = vrot.slane %v2064, 1
    %v2066 = vadd.f32 %v2064, %v2065
    %v2067 = vsel %vm382, %v1997, 0.0
    %v2068 = vrot.slane %v2067, 4
    %v2069 = vadd.f32 %v2067, %v2068
    %v2070 = vrot.slane %v2069, 2
    %v2071 = vadd.f32 %v2069, %v2070
    %v2072 = vrot.slane %v2071, 1
    %v2073 = vadd.f32 %v2071, %v2072
    %v2074 = vsel %vm382, %v1998, 0.0
    %v2075 = vrot.slane %v2074, 4
    %v2076 = vadd.f32 %v2074, %v2075
    %v2077 = vrot.slane %v2076, 2
    %v2078 = vadd.f32 %v2076, %v2077
    %v2079 = vrot.slane %v2078, 1
    %v2080 = vadd.f32 %v2078, %v2079
    %v2081 = vsel %vm382, %v1999, 0.0
    %v2082 = vrot.slane %v2081, 4
    %v2083 = vadd.f32 %v2081, %v2082
    %v2084 = vrot.slane %v2083, 2
    %v2085 = vadd.f32 %v2083, %v2084
    %v2086 = vrot.slane %v2085, 1
    %v2087 = vadd.f32 %v2085, %v2086
    %v2088 = vsel %vm382, %v2000, 0.0
    %v2089 = vrot.slane %v2088, 4
    %v2090 = vadd.f32 %v2088, %v2089
    %v2091 = vrot.slane %v2090, 2
    %v2092 = vadd.f32 %v2090, %v2091
    %v2093 = vrot.slane %v2092, 1
    %v2094 = vadd.f32 %v2092, %v2093
    %v2095 = vsel %vm382, %v2001, 0.0
    %v2096 = vrot.slane %v2095, 4
    %v2097 = vadd.f32 %v2095, %v2096
    %v2098 = vrot.slane %v2097, 2
    %v2099 = vadd.f32 %v2097, %v2098
    %v2100 = vrot.slane %v2099, 1
    %v2101 = vadd.f32 %v2099, %v2100
    %v2102 = vsel %vm382, %v2002, 0.0
    %v2103 = vrot.slane %v2102, 4
    %v2104 = vadd.f32 %v2102, %v2103
    %v2105 = vrot.slane %v2104, 2
    %v2106 = vadd.f32 %v2104, %v2105
    %v2107 = vrot.slane %v2106, 1
    %v2108 = vadd.f32 %v2106, %v2107
    %v2109 = vsel %vm382, %v2003, 0.0
    %v2110 = vrot.slane %v2109, 4
    %v2111 = vadd.f32 %v2109, %v2110
    %v2112 = vrot.slane %v2111, 2
    %v2113 = vadd.f32 %v2111, %v2112
    %v2114 = vrot.slane %v2113, 1
    %v2115 = vadd.f32 %v2113, %v2114
    %vm2132 = vcmask 1041409
    %v2133 = vsel %vm2132, %v2017, %v2010
    %vm2134 = vcmask 1042434
    %v2135 = vsel %vm2134, %v2024, %v2133
    %vm2136 = vcmask 1043459
    %v2137 = vsel %vm2136, %v2031, %v2135
    %vm2138 = vcmask 1044484
    %v2139 = vsel %vm2138, %v2038, %v2137
    %vm2140 = vcmask 1045509
    %v2141 = vsel %vm2140, %v2045, %v2139
    %vm2142 = vcmask 1046534
    %v2143 = vsel %vm2142, %v2052, %v2141
    %vm2144 = vcmask 1047559
    %v2145 = vsel %vm2144, %v2059, %v2143
    %v2146 = vsel %vm2132, %v2073, %v2066
    %v2147 = vsel %vm2134, %v2080, %v2146
    %v2148 = vsel %vm2136, %v2087, %v2147
    %v2149 = vsel %vm2138, %v2094, %v2148
    %v2150 = vsel %vm2140, %v2101, %v2149
    %v2151 = vsel %vm2142, %v2108, %v2150
    %v2152 = vsel %vm2144, %v2115, %v2151
    %v2155 = vadd.f32 %v76, %v2145
    %v2156 = vadd.f32 %v77, %v2152
    %v2157 = vmul.f32 %v2155, %v69
    %v2158 = vmul.f32 %v2156, %v74
    %v2159 = vsel %vm622, %v1499, 0.0
    %v2160 = vrot.slane %v2159, 4
    %v2161 = vadd.f32 %v2159, %v2160
    %v2162 = vrot.slane %v2161, 2
    %v2163 = vadd.f32 %v2161, %v2162
    %v2164 = vrot.slane %v2163, 1
    %v2165 = vadd.f32 %v2163, %v2164
    %v2166 = vsel %vm622, %v1500, 0.0
    %v2167 = vrot.slane %v2166, 4
    %v2168 = vadd.f32 %v2166, %v2167
    %v2169 = vrot.slane %v2168, 2
    %v2170 = vadd.f32 %v2168, %v2169
    %v2171 = vrot.slane %v2170, 1
    %v2172 = vadd.f32 %v2170, %v2171
    %v2173 = vsel %vm622, %v1501, 0.0
    %v2174 = vrot.slane %v2173, 4
    %v2175 = vadd.f32 %v2173, %v2174
    %v2176 = vrot.slane %v2175, 2
    %v2177 = vadd.f32 %v2175, %v2176
    %v2178 = vrot.slane %v2177, 1
    %v2179 = vadd.f32 %v2177, %v2178
    %v2180 = vsel %vm622, %v1502, 0.0
    %v2181 = vrot.slane %v2180, 4
    %v2182 = vadd.f32 %v2180, %v2181
    %v2183 = vrot.slane %v2182, 2
    %v2184 = vadd.f32 %v2182, %v2183
    %v2185 = vrot.slane %v2184, 1
    %v2186 = vadd.f32 %v2184, %v2185
    %v2187 = vsel %vm622, %v1503, 0.0
    %v2188 = vrot.slane %v2187, 4
    %v2189 = vadd.f32 %v2187, %v2188
    %v2190 = vrot.slane %v2189, 2
    %v2191 = vadd.f32 %v2189, %v2190
    %v2192 = vrot.slane %v2191, 1
    %v2193 = vadd.f32 %v2191, %v2192
    %v2194 = vsel %vm622, %v1504, 0.0
    %v2195 = vrot.slane %v2194, 4
    %v2196 = vadd.f32 %v2194, %v2195
    %v2197 = vrot.slane %v2196, 2
    %v2198 = vadd.f32 %v2196, %v2197
    %v2199 = vrot.slane %v2198, 1
    %v2200 = vadd.f32 %v2198, %v2199
    %v2201 = vsel %vm622, %v1505, 0.0
    %v2202 = vrot.slane %v2201, 4
    %v2203 = vadd.f32 %v2201, %v2202
    %v2204 = vrot.slane %v2203, 2
    %v2205 = vadd.f32 %v2203, %v2204
    %v2206 = vrot.slane %v2205, 1
    %v2207 = vadd.f32 %v2205, %v2206
    %v2208 = vsel %vm622, %v1506, 0.0
    %v2209 = vrot.slane %v2208, 4
    %v2210 = vadd.f32 %v2208, %v2209
    %v2211 = vrot.slane %v2210, 2
    %v2212 = vadd.f32 %v2210, %v2211
    %v2213 = vrot.slane %v2212, 1
    %v2214 = vadd.f32 %v2212, %v2213
    %v2215 = vsel %vm622, %v1507, 0.0
    %v2216 = vrot.slane %v2215, 4
    %v2217 = vadd.f32 %v2215, %v2216
    %v2218 = vrot.slane %v2217, 2
    %v2219 = vadd.f32 %v2217, %v2218
    %v2220 = vrot.slane %v2219, 1
    %v2221 = vadd.f32 %v2219, %v2220
    %v2222 = vsel %vm622, %v1508, 0.0
    %v2223 = vrot.slane %v2222, 4
    %v2224 = vadd.f32 %v2222, %v2223
    %v2225 = vrot.slane %v2224, 2
    %v2226 = vadd.f32 %v2224, %v2225
    %v2227 = vrot.slane %v2226, 1
    %v2228 = vadd.f32 %v2226, %v2227
    %v2229 = vsel %vm622, %v1509, 0.0
    %v2230 = vrot.slane %v2229, 4
    %v2231 = vadd.f32 %v2229, %v2230
    %v2232 = vrot.slane %v2231, 2
    %v2233 = vadd.f32 %v2231, %v2232
    %v2234 = vrot.slane %v2233, 1
    %v2235 = vadd.f32 %v2233, %v2234
    %v2236 = vsel %vm622, %v1510, 0.0
    %v2237 = vrot.slane %v2236, 4
    %v2238 = vadd.f32 %v2236, %v2237
    %v2239 = vrot.slane %v2238, 2
    %v2240 = vadd.f32 %v2238, %v2239
    %v2241 = vrot.slane %v2240, 1
    %v2242 = vadd.f32 %v2240, %v2241
    %v2243 = vsel %vm622, %v1511, 0.0
    %v2244 = vrot.slane %v2243, 4
    %v2245 = vadd.f32 %v2243, %v2244
    %v2246 = vrot.slane %v2245, 2
    %v2247 = vadd.f32 %v2245, %v2246
    %v2248 = vrot.slane %v2247, 1
    %v2249 = vadd.f32 %v2247, %v2248
    %v2250 = vsel %vm622, %v1512, 0.0
    %v2251 = vrot.slane %v2250, 4
    %v2252 = vadd.f32 %v2250, %v2251
    %v2253 = vrot.slane %v2252, 2
    %v2254 = vadd.f32 %v2252, %v2253
    %v2255 = vrot.slane %v2254, 1
    %v2256 = vadd.f32 %v2254, %v2255
    %v2257 = vsel %vm622, %v1513, 0.0
    %v2258 = vrot.slane %v2257, 4
    %v2259 = vadd.f32 %v2257, %v2258
    %v2260 = vrot.slane %v2259, 2
    %v2261 = vadd.f32 %v2259, %v2260
    %v2262 = vrot.slane %v2261, 1
    %v2263 = vadd.f32 %v2261, %v2262
    %v2264 = vsel %vm622, %v1514, 0.0
    %v2265 = vrot.slane %v2264, 4
    %v2266 = vadd.f32 %v2264, %v2265
    %v2267 = vrot.slane %v2266, 2
    %v2268 = vadd.f32 %v2266, %v2267
    %v2269 = vrot.slane %v2268, 1
    %v2270 = vadd.f32 %v2268, %v2269
    %v2287 = vsel %vm2132, %v2172, %v2165
    %v2288 = vsel %vm2134, %v2179, %v2287
    %v2289 = vsel %vm2136, %v2186, %v2288
    %v2290 = vsel %vm2138, %v2193, %v2289
    %v2291 = vsel %vm2140, %v2200, %v2290
    %v2292 = vsel %vm2142, %v2207, %v2291
    %v2293 = vsel %vm2144, %v2214, %v2292
    %v2294 = vsel %vm2132, %v2228, %v2221
    %v2295 = vsel %vm2134, %v2235, %v2294
    %v2296 = vsel %vm2136, %v2242, %v2295
    %v2297 = vsel %vm2138, %v2249, %v2296
    %v2298 = vsel %vm2140, %v2256, %v2297
    %v2299 = vsel %vm2142, %v2263, %v2298
    %v2300 = vsel %vm2144, %v2270, %v2299
    %v2301 = vsel %vm622, %v2293, 0
    %v2303 = vsel %vm622, %v2300, 0
    %2305 = vmatprep.subr.mxu0 0.0
    %2306 = vmatpush1.msra.mxu0 %v441
    %2307 = vmatprep.subr.mxu0 0.0
    %2308 = vmatpush1.msra.mxu0 %v442
    %2309 = vmatprep.subr.mxu0 0.0
    %2310 = vmatpush1.msra.mxu0 %v443
    %2311 = vmatprep.subr.mxu0 0.0
    %2312 = vmatpush1.msra.mxu0 %v444
    %2313 = vmatprep.subr.mxu0 0.0
    %2314 = vmatpush1.msra.mxu0 0.0
    %2315 = vmatprep.subr.mxu0 0.0
    %2316 = vmatpush1.msra.mxu0 0.0
    %2317 = vmatprep.subr.mxu0 0.0
    %2318 = vmatpush1.msra.mxu0 0.0
    %2319 = vmatprep.subr.mxu0 0.0
    %2320 = vmatpush1.msra.mxu0 0.0
    %2321 = vmatprep.subr.mxu0 0.0
    %2322 = vmatpush1.msra.mxu0 0.0
    %2323 = vmatprep.subr.mxu0 0.0
    %2324 = vmatpush1.msra.mxu0 0.0
    %2325 = vmatprep.subr.mxu0 0.0
    %2326 = vmatpush1.msra.mxu0 0.0
    %2327 = vmatprep.subr.mxu0 0.0
    %2328 = vmatpush1.msra.mxu0 0.0
    %2329 = vmatprep.subr.mxu0 0.0
    %2330 = vmatpush1.msra.mxu0 0.0
    %2331 = vmatprep.subr.mxu0 0.0
    %2332 = vmatpush1.msra.mxu0 0.0
    %2333 = vmatprep.subr.mxu0 0.0
    %2334 = vmatpush1.msra.mxu0 0.0
    %2335 = vmatprep.subr.mxu0 0.0
    %2336 = vmatpush1.msra.mxu0 0.0
    %2337 = vmatprep.subr.mxu0 0.0
    %2338 = vmatpush1.msra.mxu0 0.0
    %2339 = vmatprep.subr.mxu0 0.0
    %2340 = vmatpush1.msra.mxu0 0.0
    %2341 = vmatprep.subr.mxu0 0.0
    %2342 = vmatpush1.msra.mxu0 0.0
    %2343 = vmatprep.subr.mxu0 0.0
    %2344 = vmatpush1.msra.mxu0 0.0
    %2345 = vmatprep.subr.mxu0 0.0
    %2346 = vmatpush1.msra.mxu0 0.0
    %2347 = vmatprep.subr.mxu0 0.0
    %2348 = vmatpush1.msra.mxu0 0.0
    %2349 = vmatprep.subr.mxu0 0.0
    %2350 = vmatpush1.msra.mxu0 0.0
    %2351 = vmatprep.subr.mxu0 0.0
    %2352 = vmatpush1.msra.mxu0 0.0
    %2353 = vmatprep.subr.mxu0 0.0
    %2354 = vmatpush1.msra.mxu0 0.0
    %2355 = vmatprep.subr.mxu0 0.0
    %2356 = vmatpush1.msra.mxu0 0.0
    %2357 = vmatprep.subr.mxu0 0.0
    %2358 = vmatpush1.msra.mxu0 0.0
    %2359 = vmatprep.subr.mxu0 0.0
    %2360 = vmatpush1.msra.mxu0 0.0
    %2361 = vmatprep.subr.mxu0 0.0
    %2362 = vmatpush1.msra.mxu0 0.0
    %2363 = vmatprep.subr.mxu0 0.0
    %2364 = vmatpush1.msra.mxu0 0.0
    %2365 = vmatprep.subr.mxu0 0.0
    %2366 = vmatpush1.msra.mxu0 0.0
    %2367 = vmatprep.subr.mxu0 0.0
    %2368 = vmatpush1.msra.mxu0 0.0
    %2369 = vmatprep.mubr.f32.mxu0 0.0
    %2370 = vmatmul.mubr.f32.gmra.mrb[0].mxu0 %v2301
    %v2371 = vpop.f32.mrb[0].mxu0
    %v2372 = vadd.f32 0.0, %v2371
    %v2373 = vpop.f32.mrb[0].mxu0
    %2374 = vmatprep.mubr.f32.mxu0 0.0
    %2375 = vmatmul.mubr.f32.gmra.mrb[0].mxu0 %v2303
    %v2376 = vpop.f32.mrb[0].mxu0
    %v2377 = vadd.f32 0.0, %v2376
    %v2378 = vpop.f32.mrb[0].mxu0
    %2379 = vdwg.mxu0
    %2382 = vrot.lane.b32.xlu0 %v2372, 64
    %v2383 = vpop.permute.xlu0 %2382
    %2384 = vrot.lane.b32.xlu0 %v2377, 64
    %v2385 = vpop.permute.xlu0 %2384
    %v2388 = vadd.f32 %v696, %v2383
    %v2389 = vadd.f32 %v701, %v2385
    %v2390 = vlaneseq
    %v2391 = vshrl.u32 %v2390, 7
    %v2392 = vsub.s32 0, %v2391
    %v2393 = vrot.slane %v456, %v2392
    %2395 = vrot.lane.b32.xlu0 %v2393, 64
    %v2396 = vpop.permute.xlu0 %2395
    %v2398 = vadd.f32 %v2388, %v2396
    %v2399 = vadd.f32 %v2389, %v2396
    %v2400 = vxor.u32 %v2398, 2147483648
    %v2401 = vxor.u32 %v2399, 2147483648
    %v2402 = vmul.f32 %v2400, 1.442695
    %v2403 = vpow.pop %v2402
    %v2404 = vmul.f32 %v2401, 1.442695
    %v2405 = vpow.pop %v2404
    %v2406 = vadd.f32 %v2403, 1.0
    %v2407 = vadd.f32 %v2405, 1.0
    %v2408 = vrcp.pop %v2406
    %v2409 = vmul.f32 1.0, %v2408
    %v2410 = vrcp.pop %v2407
    %v2411 = vmul.f32 1.0, %v2410
    %v2412 = vmul.f32 %v2398, %v2409
    %v2413 = vmul.f32 %v2399, %v2411
    %2416 = vrot.lane.b32.xlu0 %v2412, 64
    %v2417 = vpop.permute.xlu0 %2416
    %2418 = vrot.lane.b32.xlu0 %v2413, 64
    %v2419 = vpop.permute.xlu0 %2418
    %v2420 = vsel %vm622, %v2417, 0
    %v2422 = vsel %vm622, %v2419, 0
    %2424 = vmatprep.subr.mxu0 0.0
    %2425 = vmatpush1.msra.mxu0 %v446
    %2426 = vmatprep.subr.mxu0 0.0
    %2427 = vmatpush1.msra.mxu0 %v447
    %2428 = vmatprep.subr.mxu0 0.0
    %2429 = vmatpush1.msra.mxu0 %v448
    %2430 = vmatprep.subr.mxu0 0.0
    %2431 = vmatpush1.msra.mxu0 %v449
    %2432 = vmatprep.subr.mxu0 0.0
    %2433 = vmatpush1.msra.mxu0 0.0
    %2434 = vmatprep.subr.mxu0 0.0
    %2435 = vmatpush1.msra.mxu0 0.0
    %2436 = vmatprep.subr.mxu0 0.0
    %2437 = vmatpush1.msra.mxu0 0.0
    %2438 = vmatprep.subr.mxu0 0.0
    %2439 = vmatpush1.msra.mxu0 0.0
    %2440 = vmatprep.subr.mxu0 0.0
    %2441 = vmatpush1.msra.mxu0 0.0
    %2442 = vmatprep.subr.mxu0 0.0
    %2443 = vmatpush1.msra.mxu0 0.0
    %2444 = vmatprep.subr.mxu0 0.0
    %2445 = vmatpush1.msra.mxu0 0.0
    %2446 = vmatprep.subr.mxu0 0.0
    %2447 = vmatpush1.msra.mxu0 0.0
    %2448 = vmatprep.subr.mxu0 0.0
    %2449 = vmatpush1.msra.mxu0 0.0
    %2450 = vmatprep.subr.mxu0 0.0
    %2451 = vmatpush1.msra.mxu0 0.0
    %2452 = vmatprep.subr.mxu0 0.0
    %2453 = vmatpush1.msra.mxu0 0.0
    %2454 = vmatprep.subr.mxu0 0.0
    %2455 = vmatpush1.msra.mxu0 0.0
    %2456 = vmatprep.subr.mxu0 0.0
    %2457 = vmatpush1.msra.mxu0 0.0
    %2458 = vmatprep.subr.mxu0 0.0
    %2459 = vmatpush1.msra.mxu0 0.0
    %2460 = vmatprep.subr.mxu0 0.0
    %2461 = vmatpush1.msra.mxu0 0.0
    %2462 = vmatprep.subr.mxu0 0.0
    %2463 = vmatpush1.msra.mxu0 0.0
    %2464 = vmatprep.subr.mxu0 0.0
    %2465 = vmatpush1.msra.mxu0 0.0
    %2466 = vmatprep.subr.mxu0 0.0
    %2467 = vmatpush1.msra.mxu0 0.0
    %2468 = vmatprep.subr.mxu0 0.0
    %2469 = vmatpush1.msra.mxu0 0.0
    %2470 = vmatprep.subr.mxu0 0.0
    %2471 = vmatpush1.msra.mxu0 0.0
    %2472 = vmatprep.subr.mxu0 0.0
    %2473 = vmatpush1.msra.mxu0 0.0
    %2474 = vmatprep.subr.mxu0 0.0
    %2475 = vmatpush1.msra.mxu0 0.0
    %2476 = vmatprep.subr.mxu0 0.0
    %2477 = vmatpush1.msra.mxu0 0.0
    %2478 = vmatprep.subr.mxu0 0.0
    %2479 = vmatpush1.msra.mxu0 0.0
    %2480 = vmatprep.subr.mxu0 0.0
    %2481 = vmatpush1.msra.mxu0 0.0
    %2482 = vmatprep.subr.mxu0 0.0
    %2483 = vmatpush1.msra.mxu0 0.0
    %2484 = vmatprep.subr.mxu0 0.0
    %2485 = vmatpush1.msra.mxu0 0.0
    %2486 = vmatprep.subr.mxu0 0.0
    %2487 = vmatpush1.msra.mxu0 0.0
    %2488 = vmatprep.mubr.f32.mxu0 0.0
    %2489 = vmatmul.mubr.f32.gmra.mrb[0].mxu0 %v2420
    %v2490 = vpop.f32.mrb[0].mxu0
    %v2491 = vadd.f32 0.0, %v2490
    %v2492 = vpop.f32.mrb[0].mxu0
    %2493 = vmatprep.mubr.f32.mxu0 0.0
    %2494 = vmatmul.mubr.f32.gmra.mrb[0].mxu0 %v2422
    %v2495 = vpop.f32.mrb[0].mxu0
    %v2496 = vadd.f32 0.0, %v2495
    %v2497 = vpop.f32.mrb[0].mxu0
    %2498 = vdwg.mxu0
    %v2499 = vadd.f32 %v162, %v2491
    %v2500 = vadd.f32 %v167, %v2496
    %v2501 = vlaneseq
    %v2502 = vshrl.u32 %v2501, 7
    %v2503 = vsub.s32 0, %v2502
    %v2504 = vrot.slane %v457, %v2503
    %v2505 = vadd.f32 %v2499, %v2504
    %v2506 = vadd.f32 %v2500, %v2504
    %v2507 = vmul.f32 %v2505, %v69
    %v2508 = vmul.f32 %v2506, %v74
    %s2509 = scalar_lea.vmem [#allocation2], 128
    %v2510 = vld [vmem:[%s2509] sm:$0xff]
    %v2511 = vld [vmem:[%s2509 + $0x8] sm:$0xff]
    %v2512 = vld [vmem:[%s2509 + $0x10] sm:$0xff]
    %v2513 = vld [vmem:[%s2509 + $0x18] sm:$0xff]
    %s2514 = scalar_lea.vmem [#allocation2], 160
    %v2515 = vld [vmem:[%s2514] sm:$0xff]
    %v2516 = vld [vmem:[%s2514 + $0x8] sm:$0xff]
    %v2517 = vld [vmem:[%s2514 + $0x10] sm:$0xff]
    %v2518 = vld [vmem:[%s2514 + $0x18] sm:$0xff]
    %s2519 = scalar_lea.vmem [#allocation2], 192
    %v2520 = vld [vmem:[%s2519] sm:$0xff]
    %v2521 = vld [vmem:[%s2519 + $0x8] sm:$0xff]
    %v2522 = vld [vmem:[%s2519 + $0x10] sm:$0xff]
    %v2523 = vld [vmem:[%s2519 + $0x18] sm:$0xff]
    %s2524 = scalar_lea.vmem [#allocation2], 224
    %v2525 = vld [vmem:[%s2524] sm:$0xff]
    %v2526 = vld [vmem:[%s2524 + $0x8] sm:$0xff]
    %v2527 = vld [vmem:[%s2524 + $0x10] sm:$0xff]
    %v2528 = vld [vmem:[%s2524 + $0x18] sm:$0xff]
    %s2529 = scalar_lea.vmem %s8, 8
    %v2530 = vld [vmem:[%s2529] sm:$0x1]
    %v2531 = vld [vmem:[%s2529 + $0x1] sm:$0x1]
    %v2532 = vld [vmem:[%s2529 + $0x2] sm:$0x1]
    %v2533 = vld [vmem:[%s2529 + $0x3] sm:$0x1]
    %v2534 = vld [vmem:[%s2529 + $0x4] sm:$0x1]
    %v2535 = vld [vmem:[%s2529 + $0x5] sm:$0x1]
    %v2536 = vld [vmem:[%s2529 + $0x6] sm:$0x1]
    %v2537 = vld [vmem:[%s2529 + $0x7] sm:$0x1]
    %v2540 = vcombine.high %v2157, %v2157
    %v2542 = vunpack.c.l.s4 1966171168
    %v2543 = vunpack.c.0.s8 %v2542
    %v2544 = vlaneseq
    %v2545 = vshrl.u32 %v2544, 7
    %v2546 = vsub.s32 %v2543, %v2545
    %v2547 = vrot.slane %v2157, %v2546
    %v2549 = vunpack.c.l.s4 1966171168
    %v2550 = vunpack.c.0.s8 %v2549
    %v2551 = vlaneseq
    %v2552 = vshrl.u32 %v2551, 7
    %v2553 = vsub.s32 %v2550, %v2552
    %v2554 = vrot.slane %v2540, %v2553
    %v2555 = vcombine.high %v2547, %v2547
    %v2556 = vcombine.high %v2554, %v2554
    %v2558 = vunpack.c.l.s4 1966171168
    %v2559 = vunpack.c.0.s8 %v2558
    %v2560 = vlaneseq
    %v2561 = vshrl.u32 %v2560, 7
    %v2562 = vsub.s32 %v2559, %v2561
    %v2563 = vrot.slane %v2547, %v2562
    %v2565 = vunpack.c.l.s4 1966171168
    %v2566 = vunpack.c.0.s8 %v2565
    %v2567 = vlaneseq
    %v2568 = vshrl.u32 %v2567, 7
    %v2569 = vsub.s32 %v2566, %v2568
    %v2570 = vrot.slane %v2554, %v2569
    %v2572 = vunpack.c.l.s4 1966171168
    %v2573 = vunpack.c.0.s8 %v2572
    %v2574 = vlaneseq
    %v2575 = vshrl.u32 %v2574, 7
    %v2576 = vsub.s32 %v2573, %v2575
    %v2577 = vrot.slane %v2555, %v2576
    %v2579 = vunpack.c.l.s4 1966171168
    %v2580 = vunpack.c.0.s8 %v2579
    %v2581 = vlaneseq
    %v2582 = vshrl.u32 %v2581, 7
    %v2583 = vsub.s32 %v2580, %v2582
    %v2584 = vrot.slane %v2556, %v2583
    %v2585 = vcombine.high %v2563, %v2563
    %v2586 = vcombine.high %v2570, %v2570
    %v2587 = vcombine.high %v2577, %v2577
    %v2588 = vcombine.high %v2584, %v2584
    %v2589 = vcombine.high %v2158, %v2158
    %v2591 = vunpack.c.l.s4 1966171168
    %v2592 = vunpack.c.0.s8 %v2591
    %v2593 = vlaneseq
    %v2594 = vshrl.u32 %v2593, 7
    %v2595 = vsub.s32 %v2592, %v2594
    %v2596 = vrot.slane %v2158, %v2595
    %v2598 = vunpack.c.l.s4 1966171168
    %v2599 = vunpack.c.0.s8 %v2598
    %v2600 = vlaneseq
    %v2601 = vshrl.u32 %v2600, 7
    %v2602 = vsub.s32 %v2599, %v2601
    %v2603 = vrot.slane %v2589, %v2602
    %v2604 = vcombine.high %v2596, %v2596
    %v2605 = vcombine.high %v2603, %v2603
    %v2607 = vunpack.c.l.s4 1966171168
    %v2608 = vunpack.c.0.s8 %v2607
    %v2609 = vlaneseq
    %v2610 = vshrl.u32 %v2609, 7
    %v2611 = vsub.s32 %v2608, %v2610
    %v2612 = vrot.slane %v2596, %v2611
    %v2614 = vunpack.c.l.s4 1966171168
    %v2615 = vunpack.c.0.s8 %v2614
    %v2616 = vlaneseq
    %v2617 = vshrl.u32 %v2616, 7
    %v2618 = vsub.s32 %v2615, %v2617
    %v2619 = vrot.slane %v2603, %v2618
    %v2621 = vunpack.c.l.s4 1966171168
    %v2622 = vunpack.c.0.s8 %v2621
    %v2623 = vlaneseq
    %v2624 = vshrl.u32 %v2623, 7
    %v2625 = vsub.s32 %v2622, %v2624
    %v2626 = vrot.slane %v2604, %v2625
    %v2628 = vunpack.c.l.s4 1966171168
    %v2629 = vunpack.c.0.s8 %v2628
    %v2630 = vlaneseq
    %v2631 = vshrl.u32 %v2630, 7
    %v2632 = vsub.s32 %v2629, %v2631
    %v2633 = vrot.slane %v2605, %v2632
    %v2634 = vcombine.high %v2612, %v2612
    %v2635 = vcombine.high %v2619, %v2619
    %v2636 = vcombine.high %v2626, %v2626
    %v2637 = vcombine.high %v2633, %v2633
    %v2638 = vlaneseq
    %v2639 = vshrl.u32 %v2638, 7
    %v2640 = vsub.s32 0, %v2639
    %v2641 = vrot.slane %v2563, %v2640
    %v2642 = vlaneseq
    %v2643 = vshrl.u32 %v2642, 7
    %v2644 = vsub.s32 0, %v2643
    %v2645 = vrot.slane %v2577, %v2644
    %v2646 = vlaneseq
    %v2647 = vshrl.u32 %v2646, 7
    %v2648 = vsub.s32 0, %v2647
    %v2649 = vrot.slane %v2585, %v2648
    %v2650 = vlaneseq
    %v2651 = vshrl.u32 %v2650, 7
    %v2652 = vsub.s32 0, %v2651
    %v2653 = vrot.slane %v2587, %v2652
    %v2654 = vlaneseq
    %v2655 = vshrl.u32 %v2654, 7
    %v2656 = vsub.s32 0, %v2655
    %v2657 = vrot.slane %v2570, %v2656
    %v2658 = vlaneseq
    %v2659 = vshrl.u32 %v2658, 7
    %v2660 = vsub.s32 0, %v2659
    %v2661 = vrot.slane %v2584, %v2660
    %v2662 = vlaneseq
    %v2663 = vshrl.u32 %v2662, 7
    %v2664 = vsub.s32 0, %v2663
    %v2665 = vrot.slane %v2586, %v2664
    %v2666 = vlaneseq
    %v2667 = vshrl.u32 %v2666, 7
    %v2668 = vsub.s32 0, %v2667
    %v2669 = vrot.slane %v2588, %v2668
    %v2670 = vlaneseq
    %v2671 = vshrl.u32 %v2670, 7
    %v2672 = vsub.s32 0, %v2671
    %v2673 = vrot.slane %v2612, %v2672
    %v2674 = vlaneseq
    %v2675 = vshrl.u32 %v2674, 7
    %v2676 = vsub.s32 0, %v2675
    %v2677 = vrot.slane %v2626, %v2676
    %v2678 = vlaneseq
    %v2679 = vshrl.u32 %v2678, 7
    %v2680 = vsub.s32 0, %v2679
    %v2681 = vrot.slane %v2634, %v2680
    %v2682 = vlaneseq
    %v2683 = vshrl.u32 %v2682, 7
    %v2684 = vsub.s32 0, %v2683
    %v2685 = vrot.slane %v2636, %v2684
    %v2686 = vlaneseq
    %v2687 = vshrl.u32 %v2686, 7
    %v2688 = vsub.s32 0, %v2687
    %v2689 = vrot.slane %v2619, %v2688
    %v2690 = vlaneseq
    %v2691 = vshrl.u32 %v2690, 7
    %v2692 = vsub.s32 0, %v2691
    %v2693 = vrot.slane %v2633, %v2692
    %v2694 = vlaneseq
    %v2695 = vshrl.u32 %v2694, 7
    %v2696 = vsub.s32 0, %v2695
    %v2697 = vrot.slane %v2635, %v2696
    %v2698 = vlaneseq
    %v2699 = vshrl.u32 %v2698, 7
    %v2700 = vsub.s32 0, %v2699
    %v2701 = vrot.slane %v2637, %v2700
    %v2718 = vsub.f32 %v2641, %v2157
    %v2719 = vsub.f32 %v2645, %v2157
    %v2720 = vsub.f32 %v2649, %v2157
    %v2721 = vsub.f32 %v2653, %v2157
    %v2722 = vsub.f32 %v2657, %v2157
    %v2723 = vsub.f32 %v2661, %v2157
    %v2724 = vsub.f32 %v2665, %v2157
    %v2725 = vsub.f32 %v2669, %v2157
    %v2726 = vsub.f32 %v2673, %v2158
    %v2727 = vsub.f32 %v2677, %v2158
    %v2728 = vsub.f32 %v2681, %v2158
    %v2729 = vsub.f32 %v2685, %v2158
    %v2730 = vsub.f32 %v2689, %v2158
    %v2731 = vsub.f32 %v2693, %v2158
    %v2732 = vsub.f32 %v2697, %v2158
    %v2733 = vsub.f32 %v2701, %v2158
    %v2734 = vmul.f32 %v2718, %v2718
    %v2735 = vmul.f32 %v2719, %v2719
    %v2736 = vmul.f32 %v2720, %v2720
    %v2737 = vmul.f32 %v2721, %v2721
    %v2738 = vmul.f32 %v2722, %v2722
    %v2739 = vmul.f32 %v2723, %v2723
    %v2740 = vmul.f32 %v2724, %v2724
    %v2741 = vmul.f32 %v2725, %v2725
    %v2742 = vmul.f32 %v2726, %v2726
    %v2743 = vmul.f32 %v2727, %v2727
    %v2744 = vmul.f32 %v2728, %v2728
    %v2745 = vmul.f32 %v2729, %v2729
    %v2746 = vmul.f32 %v2730, %v2730
    %v2747 = vmul.f32 %v2731, %v2731
    %v2748 = vmul.f32 %v2732, %v2732
    %v2749 = vmul.f32 %v2733, %v2733
    %v2750 = vsel %vm382, %v2734, 0.0
    %2751 = vadd.xlane.f32.xlu0 %v2750
    %v2752 = vpop.xlane.xlu0 %2751
    %v2753 = vsel %vm382, %v2735, 0.0
    %2754 = vadd.xlane.f32.xlu0 %v2753
    %v2755 = vpop.xlane.xlu0 %2754
    %v2756 = vsel %vm382, %v2736, 0.0
    %2757 = vadd.xlane.f32.xlu0 %v2756
    %v2758 = vpop.xlane.xlu0 %2757
    %v2759 = vsel %vm382, %v2737, 0.0
    %2760 = vadd.xlane.f32.xlu0 %v2759
    %v2761 = vpop.xlane.xlu0 %2760
    %v2762 = vsel %vm382, %v2738, 0.0
    %2763 = vadd.xlane.f32.xlu0 %v2762
    %v2764 = vpop.xlane.xlu0 %2763
    %v2765 = vsel %vm382, %v2739, 0.0
    %2766 = vadd.xlane.f32.xlu0 %v2765
    %v2767 = vpop.xlane.xlu0 %2766
    %v2768 = vsel %vm382, %v2740, 0.0
    %2769 = vadd.xlane.f32.xlu0 %v2768
    %v2770 = vpop.xlane.xlu0 %2769
    %v2771 = vsel %vm382, %v2741, 0.0
    %2772 = vadd.xlane.f32.xlu0 %v2771
    %v2773 = vpop.xlane.xlu0 %2772
    %v2774 = vsel %vm382, %v2742, 0.0
    %2775 = vadd.xlane.f32.xlu0 %v2774
    %v2776 = vpop.xlane.xlu0 %2775
    %v2777 = vsel %vm382, %v2743, 0.0
    %2778 = vadd.xlane.f32.xlu0 %v2777
    %v2779 = vpop.xlane.xlu0 %2778
    %v2780 = vsel %vm382, %v2744, 0.0
    %2781 = vadd.xlane.f32.xlu0 %v2780
    %v2782 = vpop.xlane.xlu0 %2781
    %v2783 = vsel %vm382, %v2745, 0.0
    %2784 = vadd.xlane.f32.xlu0 %v2783
    %v2785 = vpop.xlane.xlu0 %2784
    %v2786 = vsel %vm382, %v2746, 0.0
    %2787 = vadd.xlane.f32.xlu0 %v2786
    %v2788 = vpop.xlane.xlu0 %2787
    %v2789 = vsel %vm382, %v2747, 0.0
    %2790 = vadd.xlane.f32.xlu0 %v2789
    %v2791 = vpop.xlane.xlu0 %2790
    %v2792 = vsel %vm382, %v2748, 0.0
    %2793 = vadd.xlane.f32.xlu0 %v2792
    %v2794 = vpop.xlane.xlu0 %2793
    %v2795 = vsel %vm382, %v2749, 0.0
    %2796 = vadd.xlane.f32.xlu0 %v2795
    %v2797 = vpop.xlane.xlu0 %2796
    %v2798 = vrsqrt.pop %v2752
    %v2799 = vmul.f32 %v2752, %v2798
    %vm2800 = vcmp.eq.f32.partialorder %v2752, inf
    %v2801 = vsel %vm2800, %v2752, %v2799
    %vm2802 = vcmp.eq.f32.partialorder %v2752, 0.0
    %v2803 = vand.u32 %v2752, 2147483648
    %v2804 = vsel %vm2802, %v2803, %v2801
    %v2805 = vrsqrt.pop %v2755
    %v2806 = vmul.f32 %v2755, %v2805
    %vm2807 = vcmp.eq.f32.partialorder %v2755, inf
    %v2808 = vsel %vm2807, %v2755, %v2806
    %vm2809 = vcmp.eq.f32.partialorder %v2755, 0.0
    %v2810 = vand.u32 %v2755, 2147483648
    %v2811 = vsel %vm2809, %v2810, %v2808
    %v2812 = vrsqrt.pop %v2758
    %v2813 = vmul.f32 %v2758, %v2812
    %vm2814 = vcmp.eq.f32.partialorder %v2758, inf
    %v2815 = vsel %vm2814, %v2758, %v2813
    %vm2816 = vcmp.eq.f32.partialorder %v2758, 0.0
    %v2817 = vand.u32 %v2758, 2147483648
    %v2818 = vsel %vm2816, %v2817, %v2815
    %v2819 = vrsqrt.pop %v2761
    %v2820 = vmul.f32 %v2761, %v2819
    %vm2821 = vcmp.eq.f32.partialorder %v2761, inf
    %v2822 = vsel %vm2821, %v2761, %v2820
    %vm2823 = vcmp.eq.f32.partialorder %v2761, 0.0
    %v2824 = vand.u32 %v2761, 2147483648
    %v2825 = vsel %vm2823, %v2824, %v2822
    %v2826 = vrsqrt.pop %v2764
    %v2827 = vmul.f32 %v2764, %v2826
    %vm2828 = vcmp.eq.f32.partialorder %v2764, inf
    %v2829 = vsel %vm2828, %v2764, %v2827
    %vm2830 = vcmp.eq.f32.partialorder %v2764, 0.0
    %v2831 = vand.u32 %v2764, 2147483648
    %v2832 = vsel %vm2830, %v2831, %v2829
    %v2833 = vrsqrt.pop %v2767
    %v2834 = vmul.f32 %v2767, %v2833
    %vm2835 = vcmp.eq.f32.partialorder %v2767, inf
    %v2836 = vsel %vm2835, %v2767, %v2834
    %vm2837 = vcmp.eq.f32.partialorder %v2767, 0.0
    %v2838 = vand.u32 %v2767, 2147483648
    %v2839 = vsel %vm2837, %v2838, %v2836
    %v2840 = vrsqrt.pop %v2770
    %v2841 = vmul.f32 %v2770, %v2840
    %vm2842 = vcmp.eq.f32.partialorder %v2770, inf
    %v2843 = vsel %vm2842, %v2770, %v2841
    %vm2844 = vcmp.eq.f32.partialorder %v2770, 0.0
    %v2845 = vand.u32 %v2770, 2147483648
    %v2846 = vsel %vm2844, %v2845, %v2843
    %v2847 = vrsqrt.pop %v2773
    %v2848 = vmul.f32 %v2773, %v2847
    %vm2849 = vcmp.eq.f32.partialorder %v2773, inf
    %v2850 = vsel %vm2849, %v2773, %v2848
    %vm2851 = vcmp.eq.f32.partialorder %v2773, 0.0
    %v2852 = vand.u32 %v2773, 2147483648
    %v2853 = vsel %vm2851, %v2852, %v2850
    %v2854 = vrsqrt.pop %v2776
    %v2855 = vmul.f32 %v2776, %v2854
    %vm2856 = vcmp.eq.f32.partialorder %v2776, inf
    %v2857 = vsel %vm2856, %v2776, %v2855
    %vm2858 = vcmp.eq.f32.partialorder %v2776, 0.0
    %v2859 = vand.u32 %v2776, 2147483648
    %v2860 = vsel %vm2858, %v2859, %v2857
    %v2861 = vrsqrt.pop %v2779
    %v2862 = vmul.f32 %v2779, %v2861
    %vm2863 = vcmp.eq.f32.partialorder %v2779, inf
    %v2864 = vsel %vm2863, %v2779, %v2862
    %vm2865 = vcmp.eq.f32.partialorder %v2779, 0.0
    %v2866 = vand.u32 %v2779, 2147483648
    %v2867 = vsel %vm2865, %v2866, %v2864
    %v2868 = vrsqrt.pop %v2782
    %v2869 = vmul.f32 %v2782, %v2868
    %vm2870 = vcmp.eq.f32.partialorder %v2782, inf
    %v2871 = vsel %vm2870, %v2782, %v2869
    %vm2872 = vcmp.eq.f32.partialorder %v2782, 0.0
    %v2873 = vand.u32 %v2782, 2147483648
    %v2874 = vsel %vm2872, %v2873, %v2871
    %v2875 = vrsqrt.pop %v2785
    %v2876 = vmul.f32 %v2785, %v2875
    %vm2877 = vcmp.eq.f32.partialorder %v2785, inf
    %v2878 = vsel %vm2877, %v2785, %v2876
    %vm2879 = vcmp.eq.f32.partialorder %v2785, 0.0
    %v2880 = vand.u32 %v2785, 2147483648
    %v2881 = vsel %vm2879, %v2880, %v2878
    %v2882 = vrsqrt.pop %v2788
    %v2883 = vmul.f32 %v2788, %v2882
    %vm2884 = vcmp.eq.f32.partialorder %v2788, inf
    %v2885 = vsel %vm2884, %v2788, %v2883
    %vm2886 = vcmp.eq.f32.partialorder %v2788, 0.0
    %v2887 = vand.u32 %v2788, 2147483648
    %v2888 = vsel %vm2886, %v2887, %v2885
    %v2889 = vrsqrt.pop %v2791
    %v2890 = vmul.f32 %v2791, %v2889
    %vm2891 = vcmp.eq.f32.partialorder %v2791, inf
    %v2892 = vsel %vm2891, %v2791, %v2890
    %vm2893 = vcmp.eq.f32.partialorder %v2791, 0.0
    %v2894 = vand.u32 %v2791, 2147483648
    %v2895 = vsel %vm2893, %v2894, %v2892
    %v2896 = vrsqrt.pop %v2794
    %v2897 = vmul.f32 %v2794, %v2896
    %vm2898 = vcmp.eq.f32.partialorder %v2794, inf
    %v2899 = vsel %vm2898, %v2794, %v2897
    %vm2900 = vcmp.eq.f32.partialorder %v2794, 0.0
    %v2901 = vand.u32 %v2794, 2147483648
    %v2902 = vsel %vm2900, %v2901, %v2899
    %v2903 = vrsqrt.pop %v2797
    %v2904 = vmul.f32 %v2797, %v2903
    %vm2905 = vcmp.eq.f32.partialorder %v2797, inf
    %v2906 = vsel %vm2905, %v2797, %v2904
    %vm2907 = vcmp.eq.f32.partialorder %v2797, 0.0
    %v2908 = vand.u32 %v2797, 2147483648
    %v2909 = vsel %vm2907, %v2908, %v2906
    %v2910 = vadd.f32 %v2804, 1.0
    %v2911 = vadd.f32 %v2811, 1.0
    %v2912 = vadd.f32 %v2818, 1.0
    %v2913 = vadd.f32 %v2825, 1.0
    %v2914 = vadd.f32 %v2832, 1.0
    %v2915 = vadd.f32 %v2839, 1.0
    %v2916 = vadd.f32 %v2846, 1.0
    %v2917 = vadd.f32 %v2853, 1.0
    %v2918 = vadd.f32 %v2860, 1.0
    %v2919 = vadd.f32 %v2867, 1.0
    %v2920 = vadd.f32 %v2874, 1.0
    %v2921 = vadd.f32 %v2881, 1.0
    %v2922 = vadd.f32 %v2888, 1.0
    %v2923 = vadd.f32 %v2895, 1.0
    %v2924 = vadd.f32 %v2902, 1.0
    %v2925 = vadd.f32 %v2909, 1.0
    %v2926 = vrcp.pop %v2910
    %v2927 = vrcp.pop %v2911
    %v2928 = vrcp.pop %v2912
    %v2929 = vrcp.pop %v2913
    %v2930 = vrcp.pop %v2914
    %v2931 = vrcp.pop %v2915
    %v2932 = vrcp.pop %v2916
    %v2933 = vrcp.pop %v2917
    %v2934 = vrcp.pop %v2918
    %v2935 = vrcp.pop %v2919
    %v2936 = vrcp.pop %v2920
    %v2937 = vrcp.pop %v2921
    %v2938 = vrcp.pop %v2922
    %v2939 = vrcp.pop %v2923
    %v2940 = vrcp.pop %v2924
    %v2941 = vrcp.pop %v2925
    %v2942 = vmul.f32 %v2718, %v2926
    %v2943 = vmul.f32 %v2719, %v2927
    %v2944 = vmul.f32 %v2720, %v2928
    %v2945 = vmul.f32 %v2721, %v2929
    %v2946 = vmul.f32 %v2722, %v2930
    %v2947 = vmul.f32 %v2723, %v2931
    %v2948 = vmul.f32 %v2724, %v2932
    %v2949 = vmul.f32 %v2725, %v2933
    %v2950 = vmul.f32 %v2726, %v2934
    %v2951 = vmul.f32 %v2727, %v2935
    %v2952 = vmul.f32 %v2728, %v2936
    %v2953 = vmul.f32 %v2729, %v2937
    %v2954 = vmul.f32 %v2730, %v2938
    %v2955 = vmul.f32 %v2731, %v2939
    %v2956 = vmul.f32 %v2732, %v2940
    %v2957 = vmul.f32 %v2733, %v2941
    %s2958 = scalar_lea.vmem %s6, 32
    %v2959 = vld [vmem:[%s2958] sm:$0xff]
    %v2960 = vld [vmem:[%s2958 + $0x8] sm:$0xff]
    %v2961 = vld [vmem:[%s2958 + $0x10] sm:$0xff]
    %v2962 = vld [vmem:[%s2958 + $0x18] sm:$0xff]
    %v2964 = vsel %vm622, %v2507, 0
    %v2967 = vsel %vm622, %v2508, 0
    %2969 = vmatprep.subr.mxu0 0.0
    %2970 = vmatpush1.msra.mxu0 %v2959
    %2971 = vmatprep.subr.mxu0 0.0
    %2972 = vmatpush1.msra.mxu0 %v2960
    %2973 = vmatprep.subr.mxu0 0.0
    %2974 = vmatpush1.msra.mxu0 %v2961
    %2975 = vmatprep.subr.mxu0 0.0
    %2976 = vmatpush1.msra.mxu0 %v2962
    %2977 = vmatprep.subr.mxu0 0.0
    %2978 = vmatpush1.msra.mxu0 0.0
    %2979 = vmatprep.subr.mxu0 0.0
    %2980 = vmatpush1.msra.mxu0 0.0
    %2981 = vmatprep.subr.mxu0 0.0
    %2982 = vmatpush1.msra.mxu0 0.0
    %2983 = vmatprep.subr.mxu0 0.0
    %2984 = vmatpush1.msra.mxu0 0.0
    %2985 = vmatprep.subr.mxu0 0.0
    %2986 = vmatpush1.msra.mxu0 0.0
    %2987 = vmatprep.subr.mxu0 0.0
    %2988 = vmatpush1.msra.mxu0 0.0
    %2989 = vmatprep.subr.mxu0 0.0
    %2990 = vmatpush1.msra.mxu0 0.0
    %2991 = vmatprep.subr.mxu0 0.0
    %2992 = vmatpush1.msra.mxu0 0.0
    %2993 = vmatprep.subr.mxu0 0.0
    %2994 = vmatpush1.msra.mxu0 0.0
    %2995 = vmatprep.subr.mxu0 0.0
    %2996 = vmatpush1.msra.mxu0 0.0
    %2997 = vmatprep.subr.mxu0 0.0
    %2998 = vmatpush1.msra.mxu0 0.0
    %2999 = vmatprep.subr.mxu0 0.0
    %3000 = vmatpush1.msra.mxu0 0.0
    %3001 = vmatprep.subr.mxu0 0.0
    %3002 = vmatpush1.msra.mxu0 0.0
    %3003 = vmatprep.subr.mxu0 0.0
    %3004 = vmatpush1.msra.mxu0 0.0
    %3005 = vmatprep.subr.mxu0 0.0
    %3006 = vmatpush1.msra.mxu0 0.0
    %3007 = vmatprep.subr.mxu0 0.0
    %3008 = vmatpush1.msra.mxu0 0.0
    %3009 = vmatprep.subr.mxu0 0.0
    %3010 = vmatpush1.msra.mxu0 0.0
    %3011 = vmatprep.subr.mxu0 0.0
    %3012 = vmatpush1.msra.mxu0 0.0
    %3013 = vmatprep.subr.mxu0 0.0
    %3014 = vmatpush1.msra.mxu0 0.0
    %3015 = vmatprep.subr.mxu0 0.0
    %3016 = vmatpush1.msra.mxu0 0.0
    %3017 = vmatprep.subr.mxu0 0.0
    %3018 = vmatpush1.msra.mxu0 0.0
    %3019 = vmatprep.subr.mxu0 0.0
    %3020 = vmatpush1.msra.mxu0 0.0
    %3021 = vmatprep.subr.mxu0 0.0
    %3022 = vmatpush1.msra.mxu0 0.0
    %3023 = vmatprep.subr.mxu0 0.0
    %3024 = vmatpush1.msra.mxu0 0.0
    %3025 = vmatprep.subr.mxu0 0.0
    %3026 = vmatpush1.msra.mxu0 0.0
    %3027 = vmatprep.subr.mxu0 0.0
    %3028 = vmatpush1.msra.mxu0 0.0
    %3029 = vmatprep.subr.mxu0 0.0
    %3030 = vmatpush1.msra.mxu0 0.0
    %3031 = vmatprep.subr.mxu0 0.0
    %3032 = vmatpush1.msra.mxu0 0.0
    %3033 = vmatprep.mubr.f32.mxu0 0.0
    %3034 = vmatmul.mubr.f32.gmra.mrb[0].mxu0 %v2964
    %v3035 = vpop.f32.mrb[0].mxu0
    %v3036 = vadd.f32 0.0, %v3035
    %v3037 = vpop.f32.mrb[0].mxu0
    %3038 = vmatprep.mubr.f32.mxu0 0.0
    %3039 = vmatmul.mubr.f32.gmra.mrb[0].mxu0 %v2967
    %v3040 = vpop.f32.mrb[0].mxu0
    %v3041 = vadd.f32 0.0, %v3040
    %v3042 = vpop.f32.mrb[0].mxu0
    %3043 = vdwg.mxu0
    %v3046 = vcombine.high %v3036, %v3036
    %v3048 = vunpack.c.l.s4 1966171168
    %v3049 = vunpack.c.0.s8 %v3048
    %v3050 = vlaneseq
    %v3051 = vshrl.u32 %v3050, 7
    %v3052 = vsub.s32 %v3049, %v3051
    %v3053 = vrot.slane %v3036, %v3052
    %v3055 = vunpack.c.l.s4 1966171168
    %v3056 = vunpack.c.0.s8 %v3055
    %v3057 = vlaneseq
    %v3058 = vshrl.u32 %v3057, 7
    %v3059 = vsub.s32 %v3056, %v3058
    %v3060 = vrot.slane %v3046, %v3059
    %v3061 = vcombine.high %v3053, %v3053
    %v3062 = vcombine.high %v3060, %v3060
    %v3064 = vunpack.c.l.s4 1966171168
    %v3065 = vunpack.c.0.s8 %v3064
    %v3066 = vlaneseq
    %v3067 = vshrl.u32 %v3066, 7
    %v3068 = vsub.s32 %v3065, %v3067
    %v3069 = vrot.slane %v3053, %v3068
    %v3071 = vunpack.c.l.s4 1966171168
    %v3072 = vunpack.c.0.s8 %v3071
    %v3073 = vlaneseq
    %v3074 = vshrl.u32 %v3073, 7
    %v3075 = vsub.s32 %v3072, %v3074
    %v3076 = vrot.slane %v3060, %v3075
    %v3078 = vunpack.c.l.s4 1966171168
    %v3079 = vunpack.c.0.s8 %v3078
    %v3080 = vlaneseq
    %v3081 = vshrl.u32 %v3080, 7
    %v3082 = vsub.s32 %v3079, %v3081
    %v3083 = vrot.slane %v3061, %v3082
    %v3085 = vunpack.c.l.s4 1966171168
    %v3086 = vunpack.c.0.s8 %v3085
    %v3087 = vlaneseq
    %v3088 = vshrl.u32 %v3087, 7
    %v3089 = vsub.s32 %v3086, %v3088
    %v3090 = vrot.slane %v3062, %v3089
    %v3091 = vcombine.high %v3069, %v3069
    %v3092 = vcombine.high %v3076, %v3076
    %v3093 = vcombine.high %v3083, %v3083
    %v3094 = vcombine.high %v3090, %v3090
    %v3095 = vcombine.high %v3041, %v3041
    %v3097 = vunpack.c.l.s4 1966171168
    %v3098 = vunpack.c.0.s8 %v3097
    %v3099 = vlaneseq
    %v3100 = vshrl.u32 %v3099, 7
    %v3101 = vsub.s32 %v3098, %v3100
    %v3102 = vrot.slane %v3041, %v3101
    %v3104 = vunpack.c.l.s4 1966171168
    %v3105 = vunpack.c.0.s8 %v3104
    %v3106 = vlaneseq
    %v3107 = vshrl.u32 %v3106, 7
    %v3108 = vsub.s32 %v3105, %v3107
    %v3109 = vrot.slane %v3095, %v3108
    %v3110 = vcombine.high %v3102, %v3102
    %v3111 = vcombine.high %v3109, %v3109
    %v3113 = vunpack.c.l.s4 1966171168
    %v3114 = vunpack.c.0.s8 %v3113
    %v3115 = vlaneseq
    %v3116 = vshrl.u32 %v3115, 7
    %v3117 = vsub.s32 %v3114, %v3116
    %v3118 = vrot.slane %v3102, %v3117
    %v3120 = vunpack.c.l.s4 1966171168
    %v3121 = vunpack.c.0.s8 %v3120
    %v3122 = vlaneseq
    %v3123 = vshrl.u32 %v3122, 7
    %v3124 = vsub.s32 %v3121, %v3123
    %v3125 = vrot.slane %v3109, %v3124
    %v3127 = vunpack.c.l.s4 1966171168
    %v3128 = vunpack.c.0.s8 %v3127
    %v3129 = vlaneseq
    %v3130 = vshrl.u32 %v3129, 7
    %v3131 = vsub.s32 %v3128, %v3130
    %v3132 = vrot.slane %v3110, %v3131
    %v3134 = vunpack.c.l.s4 1966171168
    %v3135 = vunpack.c.0.s8 %v3134
    %v3136 = vlaneseq
    %v3137 = vshrl.u32 %v3136, 7
    %v3138 = vsub.s32 %v3135, %v3137
    %v3139 = vrot.slane %v3111, %v3138
    %v3140 = vcombine.high %v3118, %v3118
    %v3141 = vcombine.high %v3125, %v3125
    %v3142 = vcombine.high %v3132, %v3132
    %v3143 = vcombine.high %v3139, %v3139
    %v3144 = vlaneseq
    %v3145 = vshrl.u32 %v3144, 7
    %v3146 = vsub.s32 0, %v3145
    %v3147 = vrot.slane %v3069, %v3146
    %v3148 = vlaneseq
    %v3149 = vshrl.u32 %v3148, 7
    %v3150 = vsub.s32 0, %v3149
    %v3151 = vrot.slane %v3083, %v3150
    %v3152 = vlaneseq
    %v3153 = vshrl.u32 %v3152, 7
    %v3154 = vsub.s32 0, %v3153
    %v3155 = vrot.slane %v3091, %v3154
    %v3156 = vlaneseq
    %v3157 = vshrl.u32 %v3156, 7
    %v3158 = vsub.s32 0, %v3157
    %v3159 = vrot.slane %v3093, %v3158
    %v3160 = vlaneseq
    %v3161 = vshrl.u32 %v3160, 7
    %v3162 = vsub.s32 0, %v3161
    %v3163 = vrot.slane %v3076, %v3162
    %v3164 = vlaneseq
    %v3165 = vshrl.u32 %v3164, 7
    %v3166 = vsub.s32 0, %v3165
    %v3167 = vrot.slane %v3090, %v3166
    %v3168 = vlaneseq
    %v3169 = vshrl.u32 %v3168, 7
    %v3170 = vsub.s32 0, %v3169
    %v3171 = vrot.slane %v3092, %v3170
    %v3172 = vlaneseq
    %v3173 = vshrl.u32 %v3172, 7
    %v3174 = vsub.s32 0, %v3173
    %v3175 = vrot.slane %v3094, %v3174
    %v3176 = vlaneseq
    %v3177 = vshrl.u32 %v3176, 7
    %v3178 = vsub.s32 0, %v3177
    %v3179 = vrot.slane %v3118, %v3178
    %v3180 = vlaneseq
    %v3181 = vshrl.u32 %v3180, 7
    %v3182 = vsub.s32 0, %v3181
    %v3183 = vrot.slane %v3132, %v3182
    %v3184 = vlaneseq
    %v3185 = vshrl.u32 %v3184, 7
    %v3186 = vsub.s32 0, %v3185
    %v3187 = vrot.slane %v3140, %v3186
    %v3188 = vlaneseq
    %v3189 = vshrl.u32 %v3188, 7
    %v3190 = vsub.s32 0, %v3189
    %v3191 = vrot.slane %v3142, %v3190
    %v3192 = vlaneseq
    %v3193 = vshrl.u32 %v3192, 7
    %v3194 = vsub.s32 0, %v3193
    %v3195 = vrot.slane %v3125, %v3194
    %v3196 = vlaneseq
    %v3197 = vshrl.u32 %v3196, 7
    %v3198 = vsub.s32 0, %v3197
    %v3199 = vrot.slane %v3139, %v3198
    %v3200 = vlaneseq
    %v3201 = vshrl.u32 %v3200, 7
    %v3202 = vsub.s32 0, %v3201
    %v3203 = vrot.slane %v3141, %v3202
    %v3204 = vlaneseq
    %v3205 = vshrl.u32 %v3204, 7
    %v3206 = vsub.s32 0, %v3205
    %v3207 = vrot.slane %v3143, %v3206
    %3224 = vrot.lane.b32.xlu0 %v3036, 96
    %v3225 = vpop.permute.xlu0 %3224
    %3226 = vrot.lane.b32.xlu0 %v3041, 96
    %v3227 = vpop.permute.xlu0 %3226
    %v3230 = vadd.f32 %v3147, %v3225
    %v3231 = vadd.f32 %v3151, %v3225
    %v3232 = vadd.f32 %v3155, %v3225
    %v3233 = vadd.f32 %v3159, %v3225
    %v3234 = vadd.f32 %v3163, %v3225
    %v3235 = vadd.f32 %v3167, %v3225
    %v3236 = vadd.f32 %v3171, %v3225
    %v3237 = vadd.f32 %v3175, %v3225
    %v3238 = vadd.f32 %v3179, %v3227
    %v3239 = vadd.f32 %v3183, %v3227
    %v3240 = vadd.f32 %v3187, %v3227
    %v3241 = vadd.f32 %v3191, %v3227
    %v3242 = vadd.f32 %v3195, %v3227
    %v3243 = vadd.f32 %v3199, %v3227
    %v3244 = vadd.f32 %v3203, %v3227
    %v3245 = vadd.f32 %v3207, %v3227
    %v3246 = vlaneseq
    %v3247 = vshrl.u32 %v3246, 7
    %v3248 = vsub.s32 0, %v3247
    %v3249 = vrot.slane %v2530, %v3248
    %v3250 = vmul.f32 %v2752, %v3249
    %v3251 = vmul.f32 %v2755, %v3249
    %v3252 = vmul.f32 %v2758, %v3249
    %v3253 = vmul.f32 %v2761, %v3249
    %v3254 = vmul.f32 %v2764, %v3249
    %v3255 = vmul.f32 %v2767, %v3249
    %v3256 = vmul.f32 %v2770, %v3249
    %v3257 = vmul.f32 %v2773, %v3249
    %v3258 = vmul.f32 %v2776, %v3249
    %v3259 = vmul.f32 %v2779, %v3249
    %v3260 = vmul.f32 %v2782, %v3249
    %v3261 = vmul.f32 %v2785, %v3249
    %v3262 = vmul.f32 %v2788, %v3249
    %v3263 = vmul.f32 %v2791, %v3249
    %v3264 = vmul.f32 %v2794, %v3249
    %v3265 = vmul.f32 %v2797, %v3249
    %v3266 = vadd.f32 %v3230, %v3250
    %v3267 = vadd.f32 %v3231, %v3251
    %v3268 = vadd.f32 %v3232, %v3252
    %v3269 = vadd.f32 %v3233, %v3253
    %v3270 = vadd.f32 %v3234, %v3254
    %v3271 = vadd.f32 %v3235, %v3255
    %v3272 = vadd.f32 %v3236, %v3256
    %v3273 = vadd.f32 %v3237, %v3257
    %v3274 = vadd.f32 %v3238, %v3258
    %v3275 = vadd.f32 %v3239, %v3259
    %v3276 = vadd.f32 %v3240, %v3260
    %v3277 = vadd.f32 %v3241, %v3261
    %v3278 = vadd.f32 %v3242, %v3262
    %v3279 = vadd.f32 %v3243, %v3263
    %v3280 = vadd.f32 %v3244, %v3264
    %v3281 = vadd.f32 %v3245, %v3265
    %v3282 = vlaneseq
    %v3283 = vshrl.u32 %v3282, 7
    %v3284 = vsub.s32 0, %v3283
    %v3285 = vrot.slane %v2531, %v3284
    %v3286 = vmul.f32 %v385, %v3285
    %v3287 = vmul.f32 %v388, %v3285
    %v3288 = vmul.f32 %v391, %v3285
    %v3289 = vmul.f32 %v394, %v3285
    %v3290 = vmul.f32 %v397, %v3285
    %v3291 = vmul.f32 %v400, %v3285
    %v3292 = vmul.f32 %v403, %v3285
    %v3293 = vmul.f32 %v406, %v3285
    %v3294 = vmul.f32 %v409, %v3285
    %v3295 = vmul.f32 %v412, %v3285
    %v3296 = vmul.f32 %v415, %v3285
    %v3297 = vmul.f32 %v418, %v3285
    %v3298 = vmul.f32 %v421, %v3285
    %v3299 = vmul.f32 %v424, %v3285
    %v3300 = vmul.f32 %v427, %v3285
    %v3301 = vmul.f32 %v430, %v3285
    %v3302 = vadd.f32 %v3266, %v3286
    %v3303 = vadd.f32 %v3267, %v3287
    %v3304 = vadd.f32 %v3268, %v3288
    %v3305 = vadd.f32 %v3269, %v3289
    %v3306 = vadd.f32 %v3270, %v3290
    %v3307 = vadd.f32 %v3271, %v3291
    %v3308 = vadd.f32 %v3272, %v3292
    %v3309 = vadd.f32 %v3273, %v3293
    %v3310 = vadd.f32 %v3274, %v3294
    %v3311 = vadd.f32 %v3275, %v3295
    %v3312 = vadd.f32 %v3276, %v3296
    %v3313 = vadd.f32 %v3277, %v3297
    %v3314 = vadd.f32 %v3278, %v3298
    %v3315 = vadd.f32 %v3279, %v3299
    %v3316 = vadd.f32 %v3280, %v3300
    %v3317 = vadd.f32 %v3281, %v3301
    %v3318 = vlaneseq
    %v3319 = vshrl.u32 %v3318, 7
    %v3320 = vsub.s32 0, %v3319
    %v3321 = vrot.slane %v2533, %v3320
    %v3322 = vadd.f32 %v3302, %v3321
    %v3323 = vadd.f32 %v3303, %v3321
    %v3324 = vadd.f32 %v3304, %v3321
    %v3325 = vadd.f32 %v3305, %v3321
    %v3326 = vadd.f32 %v3306, %v3321
    %v3327 = vadd.f32 %v3307, %v3321
    %v3328 = vadd.f32 %v3308, %v3321
    %v3329 = vadd.f32 %v3309, %v3321
    %v3330 = vadd.f32 %v3310, %v3321
    %v3331 = vadd.f32 %v3311, %v3321
    %v3332 = vadd.f32 %v3312, %v3321
    %v3333 = vadd.f32 %v3313, %v3321
    %v3334 = vadd.f32 %v3314, %v3321
    %v3335 = vadd.f32 %v3315, %v3321
    %v3336 = vadd.f32 %v3316, %v3321
    %v3337 = vadd.f32 %v3317, %v3321
    %v3338 = vxor.u32 %v3322, 2147483648
    %v3339 = vxor.u32 %v3323, 2147483648
    %v3340 = vxor.u32 %v3324, 2147483648
    %v3341 = vxor.u32 %v3325, 2147483648
    %v3342 = vxor.u32 %v3326, 2147483648
    %v3343 = vxor.u32 %v3327, 2147483648
    %v3344 = vxor.u32 %v3328, 2147483648
    %v3345 = vxor.u32 %v3329, 2147483648
    %v3346 = vxor.u32 %v3330, 2147483648
    %v3347 = vxor.u32 %v3331, 2147483648
    %v3348 = vxor.u32 %v3332, 2147483648
    %v3349 = vxor.u32 %v3333, 2147483648
    %v3350 = vxor.u32 %v3334, 2147483648
    %v3351 = vxor.u32 %v3335, 2147483648
    %v3352 = vxor.u32 %v3336, 2147483648
    %v3353 = vxor.u32 %v3337, 2147483648
    %v3354 = vmul.f32 %v3338, 1.442695
    %v3355 = vpow.pop %v3354
    %v3356 = vmul.f32 %v3339, 1.442695
    %v3357 = vpow.pop %v3356
    %v3358 = vmul.f32 %v3340, 1.442695
    %v3359 = vpow.pop %v3358
    %v3360 = vmul.f32 %v3341, 1.442695
    %v3361 = vpow.pop %v3360
    %v3362 = vmul.f32 %v3342, 1.442695
    %v3363 = vpow.pop %v3362
    %v3364 = vmul.f32 %v3343, 1.442695
    %v3365 = vpow.pop %v3364
    %v3366 = vmul.f32 %v3344, 1.442695
    %v3367 = vpow.pop %v3366
    %v3368 = vmul.f32 %v3345, 1.442695
    %v3369 = vpow.pop %v3368
    %v3370 = vmul.f32 %v3346, 1.442695
    %v3371 = vpow.pop %v3370
    %v3372 = vmul.f32 %v3347, 1.442695
    %v3373 = vpow.pop %v3372
    %v3374 = vmul.f32 %v3348, 1.442695
    %v3375 = vpow.pop %v3374
    %v3376 = vmul.f32 %v3349, 1.442695
    %v3377 = vpow.pop %v3376
    %v3378 = vmul.f32 %v3350, 1.442695
    %v3379 = vpow.pop %v3378
    %v3380 = vmul.f32 %v3351, 1.442695
    %v3381 = vpow.pop %v3380
    %v3382 = vmul.f32 %v3352, 1.442695
    %v3383 = vpow.pop %v3382
    %v3384 = vmul.f32 %v3353, 1.442695
    %v3385 = vpow.pop %v3384
    %v3386 = vadd.f32 %v3355, 1.0
    %v3387 = vadd.f32 %v3357, 1.0
    %v3388 = vadd.f32 %v3359, 1.0
    %v3389 = vadd.f32 %v3361, 1.0
    %v3390 = vadd.f32 %v3363, 1.0
    %v3391 = vadd.f32 %v3365, 1.0
    %v3392 = vadd.f32 %v3367, 1.0
    %v3393 = vadd.f32 %v3369, 1.0
    %v3394 = vadd.f32 %v3371, 1.0
    %v3395 = vadd.f32 %v3373, 1.0
    %v3396 = vadd.f32 %v3375, 1.0
    %v3397 = vadd.f32 %v3377, 1.0
    %v3398 = vadd.f32 %v3379, 1.0
    %v3399 = vadd.f32 %v3381, 1.0
    %v3400 = vadd.f32 %v3383, 1.0
    %v3401 = vadd.f32 %v3385, 1.0
    %v3402 = vrcp.pop %v3386
    %v3403 = vmul.f32 1.0, %v3402
    %v3404 = vrcp.pop %v3387
    %v3405 = vmul.f32 1.0, %v3404
    %v3406 = vrcp.pop %v3388
    %v3407 = vmul.f32 1.0, %v3406
    %v3408 = vrcp.pop %v3389
    %v3409 = vmul.f32 1.0, %v3408
    %v3410 = vrcp.pop %v3390
    %v3411 = vmul.f32 1.0, %v3410
    %v3412 = vrcp.pop %v3391
    %v3413 = vmul.f32 1.0, %v3412
    %v3414 = vrcp.pop %v3392
    %v3415 = vmul.f32 1.0, %v3414
    %v3416 = vrcp.pop %v3393
    %v3417 = vmul.f32 1.0, %v3416
    %v3418 = vrcp.pop %v3394
    %v3419 = vmul.f32 1.0, %v3418
    %v3420 = vrcp.pop %v3395
    %v3421 = vmul.f32 1.0, %v3420
    %v3422 = vrcp.pop %v3396
    %v3423 = vmul.f32 1.0, %v3422
    %v3424 = vrcp.pop %v3397
    %v3425 = vmul.f32 1.0, %v3424
    %v3426 = vrcp.pop %v3398
    %v3427 = vmul.f32 1.0, %v3426
    %v3428 = vrcp.pop %v3399
    %v3429 = vmul.f32 1.0, %v3428
    %v3430 = vrcp.pop %v3400
    %v3431 = vmul.f32 1.0, %v3430
    %v3432 = vrcp.pop %v3401
    %v3433 = vmul.f32 1.0, %v3432
    %v3434 = vmul.f32 %v3322, %v3403
    %v3435 = vmul.f32 %v3323, %v3405
    %v3436 = vmul.f32 %v3324, %v3407
    %v3437 = vmul.f32 %v3325, %v3409
    %v3438 = vmul.f32 %v3326, %v3411
    %v3439 = vmul.f32 %v3327, %v3413
    %v3440 = vmul.f32 %v3328, %v3415
    %v3441 = vmul.f32 %v3329, %v3417
    %v3442 = vmul.f32 %v3330, %v3419
    %v3443 = vmul.f32 %v3331, %v3421
    %v3444 = vmul.f32 %v3332, %v3423
    %v3445 = vmul.f32 %v3333, %v3425
    %v3446 = vmul.f32 %v3334, %v3427
    %v3447 = vmul.f32 %v3335, %v3429
    %v3448 = vmul.f32 %v3336, %v3431
    %v3449 = vmul.f32 %v3337, %v3433
    %v3450 = vlaneseq
    %v3451 = vshrl.u32 %v3450, 7
    %v3452 = vsub.s32 0, %v3451
    %v3453 = vrot.slane %v2534, %v3452
    %v3455 = vsel %vm622, %v3434, 0
    %v3458 = vsel %vm622, %v3435, 0
    %v3461 = vsel %vm622, %v3436, 0
    %v3464 = vsel %vm622, %v3437, 0
    %v3467 = vsel %vm622, %v3438, 0
    %v3470 = vsel %vm622, %v3439, 0
    %v3473 = vsel %vm622, %v3440, 0
    %v3476 = vsel %vm622, %v3441, 0
    %v3479 = vsel %vm622, %v3442, 0
    %v3482 = vsel %vm622, %v3443, 0
    %v3485 = vsel %vm622, %v3444, 0
    %v3488 = vsel %vm622, %v3445, 0
    %v3491 = vsel %vm622, %v3446, 0
    %v3494 = vsel %vm622, %v3447, 0
    %v3497 = vsel %vm622, %v3448, 0
    %v3500 = vsel %vm622, %v3449, 0
    %3502 = vmatprep.subr.mxu0 0.0
    %3503 = vmatpush1.msra.mxu0 %v2510
    %3504 = vmatprep.subr.mxu0 0.0
    %3505 = vmatpush1.msra.mxu0 %v2511
    %3506 = vmatprep.subr.mxu0 0.0
    %3507 = vmatpush1.msra.mxu0 %v2512
    %3508 = vmatprep.subr.mxu0 0.0
    %3509 = vmatpush1.msra.mxu0 %v2513
    %3510 = vmatprep.subr.mxu0 0.0
    %3511 = vmatpush1.msra.mxu0 0.0
    %3512 = vmatprep.subr.mxu0 0.0
    %3513 = vmatpush1.msra.mxu0 0.0
    %3514 = vmatprep.subr.mxu0 0.0
    %3515 = vmatpush1.msra.mxu0 0.0
    %3516 = vmatprep.subr.mxu0 0.0
    %3517 = vmatpush1.msra.mxu0 0.0
    %3518 = vmatprep.subr.mxu0 0.0
    %3519 = vmatpush1.msra.mxu0 0.0
    %3520 = vmatprep.subr.mxu0 0.0
    %3521 = vmatpush1.msra.mxu0 0.0
    %3522 = vmatprep.subr.mxu0 0.0
    %3523 = vmatpush1.msra.mxu0 0.0
    %3524 = vmatprep.subr.mxu0 0.0
    %3525 = vmatpush1.msra.mxu0 0.0
    %3526 = vmatprep.subr.mxu0 0.0
    %3527 = vmatpush1.msra.mxu0 0.0
    %3528 = vmatprep.subr.mxu0 0.0
    %3529 = vmatpush1.msra.mxu0 0.0
    %3530 = vmatprep.subr.mxu0 0.0
    %3531 = vmatpush1.msra.mxu0 0.0
    %3532 = vmatprep.subr.mxu0 0.0
    %3533 = vmatpush1.msra.mxu0 0.0
    %3534 = vmatprep.subr.mxu0 0.0
    %3535 = vmatpush1.msra.mxu0 0.0
    %3536 = vmatprep.subr.mxu0 0.0
    %3537 = vmatpush1.msra.mxu0 0.0
    %3538 = vmatprep.subr.mxu0 0.0
    %3539 = vmatpush1.msra.mxu0 0.0
    %3540 = vmatprep.subr.mxu0 0.0
    %3541 = vmatpush1.msra.mxu0 0.0
    %3542 = vmatprep.subr.mxu0 0.0
    %3543 = vmatpush1.msra.mxu0 0.0
    %3544 = vmatprep.subr.mxu0 0.0
    %3545 = vmatpush1.msra.mxu0 0.0
    %3546 = vmatprep.subr.mxu0 0.0
    %3547 = vmatpush1.msra.mxu0 0.0
    %3548 = vmatprep.subr.mxu0 0.0
    %3549 = vmatpush1.msra.mxu0 0.0
    %3550 = vmatprep.subr.mxu0 0.0
    %3551 = vmatpush1.msra.mxu0 0.0
    %3552 = vmatprep.subr.mxu0 0.0
    %3553 = vmatpush1.msra.mxu0 0.0
    %3554 = vmatprep.subr.mxu0 0.0
    %3555 = vmatpush1.msra.mxu0 0.0
    %3556 = vmatprep.subr.mxu0 0.0
    %3557 = vmatpush1.msra.mxu0 0.0
    %3558 = vmatprep.subr.mxu0 0.0
    %3559 = vmatpush1.msra.mxu0 0.0
    %3560 = vmatprep.subr.mxu0 0.0
    %3561 = vmatpush1.msra.mxu0 0.0
    %3562 = vmatprep.subr.mxu0 0.0
    %3563 = vmatpush1.msra.mxu0 0.0
    %3564 = vmatprep.subr.mxu0 0.0
    %3565 = vmatpush1.msra.mxu0 0.0
    %3566 = vmatprep.mubr.f32.mxu0 0.0
    %3567 = vmatmul.mubr.f32.gmra.mrb[0].mxu0 %v3455
    %v3568 = vpop.f32.mrb[0].mxu0
    %v3569 = vadd.f32 %v3453, %v3568
    %v3570 = vpop.f32.mrb[0].mxu0
    %3571 = vmatprep.mubr.f32.mxu0 0.0
    %3572 = vmatmul.mubr.f32.gmra.mrb[0].mxu0 %v3458
    %v3573 = vpop.f32.mrb[0].mxu0
    %v3574 = vadd.f32 %v3453, %v3573
    %v3575 = vpop.f32.mrb[0].mxu0
    %3576 = vmatprep.mubr.f32.mxu0 0.0
    %3577 = vmatmul.mubr.f32.gmra.mrb[0].mxu0 %v3461
    %v3578 = vpop.f32.mrb[0].mxu0
    %v3579 = vadd.f32 %v3453, %v3578
    %v3580 = vpop.f32.mrb[0].mxu0
    %3581 = vmatprep.mubr.f32.mxu0 0.0
    %3582 = vmatmul.mubr.f32.gmra.mrb[0].mxu0 %v3464
    %v3583 = vpop.f32.mrb[0].mxu0
    %v3584 = vadd.f32 %v3453, %v3583
    %v3585 = vpop.f32.mrb[0].mxu0
    %3586 = vmatprep.mubr.f32.mxu0 0.0
    %3587 = vmatmul.mubr.f32.gmra.mrb[0].mxu0 %v3467
    %v3588 = vpop.f32.mrb[0].mxu0
    %v3589 = vadd.f32 %v3453, %v3588
    %v3590 = vpop.f32.mrb[0].mxu0
    %3591 = vmatprep.mubr.f32.mxu0 0.0
    %3592 = vmatmul.mubr.f32.gmra.mrb[0].mxu0 %v3470
    %v3593 = vpop.f32.mrb[0].mxu0
    %v3594 = vadd.f32 %v3453, %v3593
    %v3595 = vpop.f32.mrb[0].mxu0
    %3596 = vmatprep.mubr.f32.mxu0 0.0
    %3597 = vmatmul.mubr.f32.gmra.mrb[0].mxu0 %v3473
    %v3598 = vpop.f32.mrb[0].mxu0
    %v3599 = vadd.f32 %v3453, %v3598
    %v3600 = vpop.f32.mrb[0].mxu0
    %3601 = vmatprep.mubr.f32.mxu0 0.0
    %3602 = vmatmul.mubr.f32.gmra.mrb[0].mxu0 %v3476
    %v3603 = vpop.f32.mrb[0].mxu0
    %v3604 = vadd.f32 %v3453, %v3603
    %v3605 = vpop.f32.mrb[0].mxu0
    %3606 = vmatprep.mubr.f32.mxu0 0.0
    %3607 = vmatmul.mubr.f32.gmra.mrb[0].mxu0 %v3479
    %v3608 = vpop.f32.mrb[0].mxu0
    %v3609 = vadd.f32 %v3453, %v3608
    %v3610 = vpop.f32.mrb[0].mxu0
    %3611 = vmatprep.mubr.f32.mxu0 0.0
    %3612 = vmatmul.mubr.f32.gmra.mrb[0].mxu0 %v3482
    %v3613 = vpop.f32.mrb[0].mxu0
    %v3614 = vadd.f32 %v3453, %v3613
    %v3615 = vpop.f32.mrb[0].mxu0
    %3616 = vmatprep.mubr.f32.mxu0 0.0
    %3617 = vmatmul.mubr.f32.gmra.mrb[0].mxu0 %v3485
    %v3618 = vpop.f32.mrb[0].mxu0
    %v3619 = vadd.f32 %v3453, %v3618
    %v3620 = vpop.f32.mrb[0].mxu0
    %3621 = vmatprep.mubr.f32.mxu0 0.0
    %3622 = vmatmul.mubr.f32.gmra.mrb[0].mxu0 %v3488
    %v3623 = vpop.f32.mrb[0].mxu0
    %v3624 = vadd.f32 %v3453, %v3623
    %v3625 = vpop.f32.mrb[0].mxu0
    %3626 = vmatprep.mubr.f32.mxu0 0.0
    %3627 = vmatmul.mubr.f32.gmra.mrb[0].mxu0 %v3491
    %v3628 = vpop.f32.mrb[0].mxu0
    %v3629 = vadd.f32 %v3453, %v3628
    %v3630 = vpop.f32.mrb[0].mxu0
    %3631 = vmatprep.mubr.f32.mxu0 0.0
    %3632 = vmatmul.mubr.f32.gmra.mrb[0].mxu0 %v3494
    %v3633 = vpop.f32.mrb[0].mxu0
    %v3634 = vadd.f32 %v3453, %v3633
    %v3635 = vpop.f32.mrb[0].mxu0
    %3636 = vmatprep.mubr.f32.mxu0 0.0
    %3637 = vmatmul.mubr.f32.gmra.mrb[0].mxu0 %v3497
    %v3638 = vpop.f32.mrb[0].mxu0
    %v3639 = vadd.f32 %v3453, %v3638
    %v3640 = vpop.f32.mrb[0].mxu0
    %3641 = vmatprep.mubr.f32.mxu0 0.0
    %3642 = vmatmul.mubr.f32.gmra.mrb[0].mxu0 %v3500
    %v3643 = vpop.f32.mrb[0].mxu0
    %v3644 = vadd.f32 %v3453, %v3643
    %v3645 = vpop.f32.mrb[0].mxu0
    %3646 = vdwg.mxu0
    %v3647 = vxor.u32 %v3569, 2147483648
    %v3648 = vxor.u32 %v3574, 2147483648
    %v3649 = vxor.u32 %v3579, 2147483648
    %v3650 = vxor.u32 %v3584, 2147483648
    %v3651 = vxor.u32 %v3589, 2147483648
    %v3652 = vxor.u32 %v3594, 2147483648
    %v3653 = vxor.u32 %v3599, 2147483648
    %v3654 = vxor.u32 %v3604, 2147483648
    %v3655 = vxor.u32 %v3609, 2147483648
    %v3656 = vxor.u32 %v3614, 2147483648
    %v3657 = vxor.u32 %v3619, 2147483648
    %v3658 = vxor.u32 %v3624, 2147483648
    %v3659 = vxor.u32 %v3629, 2147483648
    %v3660 = vxor.u32 %v3634, 2147483648
    %v3661 = vxor.u32 %v3639, 2147483648
    %v3662 = vxor.u32 %v3644, 2147483648
    %v3663 = vmul.f32 %v3647, 1.442695
    %v3664 = vpow.pop %v3663
    %v3665 = vmul.f32 %v3648, 1.442695
    %v3666 = vpow.pop %v3665
    %v3667 = vmul.f32 %v3649, 1.442695
    %v3668 = vpow.pop %v3667
    %v3669 = vmul.f32 %v3650, 1.442695
    %v3670 = vpow.pop %v3669
    %v3671 = vmul.f32 %v3651, 1.442695
    %v3672 = vpow.pop %v3671
    %v3673 = vmul.f32 %v3652, 1.442695
    %v3674 = vpow.pop %v3673
    %v3675 = vmul.f32 %v3653, 1.442695
    %v3676 = vpow.pop %v3675
    %v3677 = vmul.f32 %v3654, 1.442695
    %v3678 = vpow.pop %v3677
    %v3679 = vmul.f32 %v3655, 1.442695
    %v3680 = vpow.pop %v3679
    %v3681 = vmul.f32 %v3656, 1.442695
    %v3682 = vpow.pop %v3681
    %v3683 = vmul.f32 %v3657, 1.442695
    %v3684 = vpow.pop %v3683
    %v3685 = vmul.f32 %v3658, 1.442695
    %v3686 = vpow.pop %v3685
    %v3687 = vmul.f32 %v3659, 1.442695
    %v3688 = vpow.pop %v3687
    %v3689 = vmul.f32 %v3660, 1.442695
    %v3690 = vpow.pop %v3689
    %v3691 = vmul.f32 %v3661, 1.442695
    %v3692 = vpow.pop %v3691
    %v3693 = vmul.f32 %v3662, 1.442695
    %v3694 = vpow.pop %v3693
    %v3695 = vadd.f32 %v3664, 1.0
    %v3696 = vadd.f32 %v3666, 1.0
    %v3697 = vadd.f32 %v3668, 1.0
    %v3698 = vadd.f32 %v3670, 1.0
    %v3699 = vadd.f32 %v3672, 1.0
    %v3700 = vadd.f32 %v3674, 1.0
    %v3701 = vadd.f32 %v3676, 1.0
    %v3702 = vadd.f32 %v3678, 1.0
    %v3703 = vadd.f32 %v3680, 1.0
    %v3704 = vadd.f32 %v3682, 1.0
    %v3705 = vadd.f32 %v3684, 1.0
    %v3706 = vadd.f32 %v3686, 1.0
    %v3707 = vadd.f32 %v3688, 1.0
    %v3708 = vadd.f32 %v3690, 1.0
    %v3709 = vadd.f32 %v3692, 1.0
    %v3710 = vadd.f32 %v3694, 1.0
    %v3711 = vrcp.pop %v3695
    %v3712 = vmul.f32 1.0, %v3711
    %v3713 = vrcp.pop %v3696
    %v3714 = vmul.f32 1.0, %v3713
    %v3715 = vrcp.pop %v3697
    %v3716 = vmul.f32 1.0, %v3715
    %v3717 = vrcp.pop %v3698
    %v3718 = vmul.f32 1.0, %v3717
    %v3719 = vrcp.pop %v3699
    %v3720 = vmul.f32 1.0, %v3719
    %v3721 = vrcp.pop %v3700
    %v3722 = vmul.f32 1.0, %v3721
    %v3723 = vrcp.pop %v3701
    %v3724 = vmul.f32 1.0, %v3723
    %v3725 = vrcp.pop %v3702
    %v3726 = vmul.f32 1.0, %v3725
    %v3727 = vrcp.pop %v3703
    %v3728 = vmul.f32 1.0, %v3727
    %v3729 = vrcp.pop %v3704
    %v3730 = vmul.f32 1.0, %v3729
    %v3731 = vrcp.pop %v3705
    %v3732 = vmul.f32 1.0, %v3731
    %v3733 = vrcp.pop %v3706
    %v3734 = vmul.f32 1.0, %v3733
    %v3735 = vrcp.pop %v3707
    %v3736 = vmul.f32 1.0, %v3735
    %v3737 = vrcp.pop %v3708
    %v3738 = vmul.f32 1.0, %v3737
    %v3739 = vrcp.pop %v3709
    %v3740 = vmul.f32 1.0, %v3739
    %v3741 = vrcp.pop %v3710
    %v3742 = vmul.f32 1.0, %v3741
    %v3743 = vmul.f32 %v3569, %v3712
    %v3744 = vmul.f32 %v3574, %v3714
    %v3745 = vmul.f32 %v3579, %v3716
    %v3746 = vmul.f32 %v3584, %v3718
    %v3747 = vmul.f32 %v3589, %v3720
    %v3748 = vmul.f32 %v3594, %v3722
    %v3749 = vmul.f32 %v3599, %v3724
    %v3750 = vmul.f32 %v3604, %v3726
    %v3751 = vmul.f32 %v3609, %v3728
    %v3752 = vmul.f32 %v3614, %v3730
    %v3753 = vmul.f32 %v3619, %v3732
    %v3754 = vmul.f32 %v3624, %v3734
    %v3755 = vmul.f32 %v3629, %v3736
    %v3756 = vmul.f32 %v3634, %v3738
    %v3757 = vmul.f32 %v3639, %v3740
    %v3758 = vmul.f32 %v3644, %v3742
    %v3759 = vmul.f32 %v3743, %v1422
    %v3760 = vmul.f32 %v3744, %v1427
    %v3761 = vmul.f32 %v3745, %v1432
    %v3762 = vmul.f32 %v3746, %v1437
    %v3763 = vmul.f32 %v3747, %v1442
    %v3764 = vmul.f32 %v3748, %v1447
    %v3765 = vmul.f32 %v3749, %v1452
    %v3766 = vmul.f32 %v3750, %v1457
    %v3767 = vmul.f32 %v3751, %v1462
    %v3768 = vmul.f32 %v3752, %v1467
    %v3769 = vmul.f32 %v3753, %v1472
    %v3770 = vmul.f32 %v3754, %v1477
    %v3771 = vmul.f32 %v3755, %v1482
    %v3772 = vmul.f32 %v3756, %v1487
    %v3773 = vmul.f32 %v3757, %v1492
    %v3774 = vmul.f32 %v3758, %v1497
    %v3775 = vlaneseq
    %v3776 = vshrl.u32 %v3775, 7
    %v3777 = vsub.s32 0, %v3776
    %v3778 = vrot.slane %v2535, %v3777
    %v3780 = vsel %vm622, %v3759, 0
    %v3783 = vsel %vm622, %v3760, 0
    %v3786 = vsel %vm622, %v3761, 0
    %v3789 = vsel %vm622, %v3762, 0
    %v3792 = vsel %vm622, %v3763, 0
    %v3795 = vsel %vm622, %v3764, 0
    %v3798 = vsel %vm622, %v3765, 0
    %v3801 = vsel %vm622, %v3766, 0
    %v3804 = vsel %vm622, %v3767, 0
    %v3807 = vsel %vm622, %v3768, 0
    %v3810 = vsel %vm622, %v3769, 0
    %v3813 = vsel %vm622, %v3770, 0
    %v3816 = vsel %vm622, %v3771, 0
    %v3819 = vsel %vm622, %v3772, 0
    %v3822 = vsel %vm622, %v3773, 0
    %v3825 = vsel %vm622, %v3774, 0
    %3827 = vmatprep.subr.mxu0 0.0
    %3828 = vmatpush1.msra.mxu0 %v2515
    %3829 = vmatprep.subr.mxu0 0.0
    %3830 = vmatpush1.msra.mxu0 %v2516
    %3831 = vmatprep.subr.mxu0 0.0
    %3832 = vmatpush1.msra.mxu0 %v2517
    %3833 = vmatprep.subr.mxu0 0.0
    %3834 = vmatpush1.msra.mxu0 %v2518
    %3835 = vmatprep.subr.mxu0 0.0
    %3836 = vmatpush1.msra.mxu0 0.0
    %3837 = vmatprep.subr.mxu0 0.0
    %3838 = vmatpush1.msra.mxu0 0.0
    %3839 = vmatprep.subr.mxu0 0.0
    %3840 = vmatpush1.msra.mxu0 0.0
    %3841 = vmatprep.subr.mxu0 0.0
    %3842 = vmatpush1.msra.mxu0 0.0
    %3843 = vmatprep.subr.mxu0 0.0
    %3844 = vmatpush1.msra.mxu0 0.0
    %3845 = vmatprep.subr.mxu0 0.0
    %3846 = vmatpush1.msra.mxu0 0.0
    %3847 = vmatprep.subr.mxu0 0.0
    %3848 = vmatpush1.msra.mxu0 0.0
    %3849 = vmatprep.subr.mxu0 0.0
    %3850 = vmatpush1.msra.mxu0 0.0
    %3851 = vmatprep.subr.mxu0 0.0
    %3852 = vmatpush1.msra.mxu0 0.0
    %3853 = vmatprep.subr.mxu0 0.0
    %3854 = vmatpush1.msra.mxu0 0.0
    %3855 = vmatprep.subr.mxu0 0.0
    %3856 = vmatpush1.msra.mxu0 0.0
    %3857 = vmatprep.subr.mxu0 0.0
    %3858 = vmatpush1.msra.mxu0 0.0
    %3859 = vmatprep.subr.mxu0 0.0
    %3860 = vmatpush1.msra.mxu0 0.0
    %3861 = vmatprep.subr.mxu0 0.0
    %3862 = vmatpush1.msra.mxu0 0.0
    %3863 = vmatprep.subr.mxu0 0.0
    %3864 = vmatpush1.msra.mxu0 0.0
    %3865 = vmatprep.subr.mxu0 0.0
    %3866 = vmatpush1.msra.mxu0 0.0
    %3867 = vmatprep.subr.mxu0 0.0
    %3868 = vmatpush1.msra.mxu0 0.0
    %3869 = vmatprep.subr.mxu0 0.0
    %3870 = vmatpush1.msra.mxu0 0.0
    %3871 = vmatprep.subr.mxu0 0.0
    %3872 = vmatpush1.msra.mxu0 0.0
    %3873 = vmatprep.subr.mxu0 0.0
    %3874 = vmatpush1.msra.mxu0 0.0
    %3875 = vmatprep.subr.mxu0 0.0
    %3876 = vmatpush1.msra.mxu0 0.0
    %3877 = vmatprep.subr.mxu0 0.0
    %3878 = vmatpush1.msra.mxu0 0.0
    %3879 = vmatprep.subr.mxu0 0.0
    %3880 = vmatpush1.msra.mxu0 0.0
    %3881 = vmatprep.subr.mxu0 0.0
    %3882 = vmatpush1.msra.mxu0 0.0
    %3883 = vmatprep.subr.mxu0 0.0
    %3884 = vmatpush1.msra.mxu0 0.0
    %3885 = vmatprep.subr.mxu0 0.0
    %3886 = vmatpush1.msra.mxu0 0.0
    %3887 = vmatprep.subr.mxu0 0.0
    %3888 = vmatpush1.msra.mxu0 0.0
    %3889 = vmatprep.subr.mxu0 0.0
    %3890 = vmatpush1.msra.mxu0 0.0
    %3891 = vmatprep.mubr.f32.mxu0 0.0
    %3892 = vmatmul.mubr.f32.gmra.mrb[0].mxu0 %v3780
    %v3893 = vpop.f32.mrb[0].mxu0
    %v3894 = vadd.f32 %v3778, %v3893
    %v3895 = vpop.f32.mrb[0].mxu0
    %3896 = vmatprep.mubr.f32.mxu0 0.0
    %3897 = vmatmul.mubr.f32.gmra.mrb[0].mxu0 %v3783
    %v3898 = vpop.f32.mrb[0].mxu0
    %v3899 = vadd.f32 %v3778, %v3898
    %v3900 = vpop.f32.mrb[0].mxu0
    %3901 = vmatprep.mubr.f32.mxu0 0.0
    %3902 = vmatmul.mubr.f32.gmra.mrb[0].mxu0 %v3786
    %v3903 = vpop.f32.mrb[0].mxu0
    %v3904 = vadd.f32 %v3778, %v3903
    %v3905 = vpop.f32.mrb[0].mxu0
    %3906 = vmatprep.mubr.f32.mxu0 0.0
    %3907 = vmatmul.mubr.f32.gmra.mrb[0].mxu0 %v3789
    %v3908 = vpop.f32.mrb[0].mxu0
    %v3909 = vadd.f32 %v3778, %v3908
    %v3910 = vpop.f32.mrb[0].mxu0
    %3911 = vmatprep.mubr.f32.mxu0 0.0
    %3912 = vmatmul.mubr.f32.gmra.mrb[0].mxu0 %v3792
    %v3913 = vpop.f32.mrb[0].mxu0
    %v3914 = vadd.f32 %v3778, %v3913
    %v3915 = vpop.f32.mrb[0].mxu0
    %3916 = vmatprep.mubr.f32.mxu0 0.0
    %3917 = vmatmul.mubr.f32.gmra.mrb[0].mxu0 %v3795
    %v3918 = vpop.f32.mrb[0].mxu0
    %v3919 = vadd.f32 %v3778, %v3918
    %v3920 = vpop.f32.mrb[0].mxu0
    %3921 = vmatprep.mubr.f32.mxu0 0.0
    %3922 = vmatmul.mubr.f32.gmra.mrb[0].mxu0 %v3798
    %v3923 = vpop.f32.mrb[0].mxu0
    %v3924 = vadd.f32 %v3778, %v3923
    %v3925 = vpop.f32.mrb[0].mxu0
    %3926 = vmatprep.mubr.f32.mxu0 0.0
    %3927 = vmatmul.mubr.f32.gmra.mrb[0].mxu0 %v3801
    %v3928 = vpop.f32.mrb[0].mxu0
    %v3929 = vadd.f32 %v3778, %v3928
    %v3930 = vpop.f32.mrb[0].mxu0
    %3931 = vmatprep.mubr.f32.mxu0 0.0
    %3932 = vmatmul.mubr.f32.gmra.mrb[0].mxu0 %v3804
    %v3933 = vpop.f32.mrb[0].mxu0
    %v3934 = vadd.f32 %v3778, %v3933
    %v3935 = vpop.f32.mrb[0].mxu0
    %3936 = vmatprep.mubr.f32.mxu0 0.0
    %3937 = vmatmul.mubr.f32.gmra.mrb[0].mxu0 %v3807
    %v3938 = vpop.f32.mrb[0].mxu0
    %v3939 = vadd.f32 %v3778, %v3938
    %v3940 = vpop.f32.mrb[0].mxu0
    %3941 = vmatprep.mubr.f32.mxu0 0.0
    %3942 = vmatmul.mubr.f32.gmra.mrb[0].mxu0 %v3810
    %v3943 = vpop.f32.mrb[0].mxu0
    %v3944 = vadd.f32 %v3778, %v3943
    %v3945 = vpop.f32.mrb[0].mxu0
    %3946 = vmatprep.mubr.f32.mxu0 0.0
    %3947 = vmatmul.mubr.f32.gmra.mrb[0].mxu0 %v3813
    %v3948 = vpop.f32.mrb[0].mxu0
    %v3949 = vadd.f32 %v3778, %v3948
    %v3950 = vpop.f32.mrb[0].mxu0
    %3951 = vmatprep.mubr.f32.mxu0 0.0
    %3952 = vmatmul.mubr.f32.gmra.mrb[0].mxu0 %v3816
    %v3953 = vpop.f32.mrb[0].mxu0
    %v3954 = vadd.f32 %v3778, %v3953
    %v3955 = vpop.f32.mrb[0].mxu0
    %3956 = vmatprep.mubr.f32.mxu0 0.0
    %3957 = vmatmul.mubr.f32.gmra.mrb[0].mxu0 %v3819
    %v3958 = vpop.f32.mrb[0].mxu0
    %v3959 = vadd.f32 %v3778, %v3958
    %v3960 = vpop.f32.mrb[0].mxu0
    %3961 = vmatprep.mubr.f32.mxu0 0.0
    %3962 = vmatmul.mubr.f32.gmra.mrb[0].mxu0 %v3822
    %v3963 = vpop.f32.mrb[0].mxu0
    %v3964 = vadd.f32 %v3778, %v3963
    %v3965 = vpop.f32.mrb[0].mxu0
    %3966 = vmatprep.mubr.f32.mxu0 0.0
    %3967 = vmatmul.mubr.f32.gmra.mrb[0].mxu0 %v3825
    %v3968 = vpop.f32.mrb[0].mxu0
    %v3969 = vadd.f32 %v3778, %v3968
    %v3970 = vpop.f32.mrb[0].mxu0
    %3971 = vdwg.mxu0
    %v3972 = vxor.u32 %v3894, 2147483648
    %v3973 = vxor.u32 %v3899, 2147483648
    %v3974 = vxor.u32 %v3904, 2147483648
    %v3975 = vxor.u32 %v3909, 2147483648
    %v3976 = vxor.u32 %v3914, 2147483648
    %v3977 = vxor.u32 %v3919, 2147483648
    %v3978 = vxor.u32 %v3924, 2147483648
    %v3979 = vxor.u32 %v3929, 2147483648
    %v3980 = vxor.u32 %v3934, 2147483648
    %v3981 = vxor.u32 %v3939, 2147483648
    %v3982 = vxor.u32 %v3944, 2147483648
    %v3983 = vxor.u32 %v3949, 2147483648
    %v3984 = vxor.u32 %v3954, 2147483648
    %v3985 = vxor.u32 %v3959, 2147483648
    %v3986 = vxor.u32 %v3964, 2147483648
    %v3987 = vxor.u32 %v3969, 2147483648
    %v3988 = vmul.f32 %v3972, 1.442695
    %v3989 = vpow.pop %v3988
    %v3990 = vmul.f32 %v3973, 1.442695
    %v3991 = vpow.pop %v3990
    %v3992 = vmul.f32 %v3974, 1.442695
    %v3993 = vpow.pop %v3992
    %v3994 = vmul.f32 %v3975, 1.442695
    %v3995 = vpow.pop %v3994
    %v3996 = vmul.f32 %v3976, 1.442695
    %v3997 = vpow.pop %v3996
    %v3998 = vmul.f32 %v3977, 1.442695
    %v3999 = vpow.pop %v3998
    %v4000 = vmul.f32 %v3978, 1.442695
    %v4001 = vpow.pop %v4000
    %v4002 = vmul.f32 %v3979, 1.442695
    %v4003 = vpow.pop %v4002
    %v4004 = vmul.f32 %v3980, 1.442695
    %v4005 = vpow.pop %v4004
    %v4006 = vmul.f32 %v3981, 1.442695
    %v4007 = vpow.pop %v4006
    %v4008 = vmul.f32 %v3982, 1.442695
    %v4009 = vpow.pop %v4008
    %v4010 = vmul.f32 %v3983, 1.442695
    %v4011 = vpow.pop %v4010
    %v4012 = vmul.f32 %v3984, 1.442695
    %v4013 = vpow.pop %v4012
    %v4014 = vmul.f32 %v3985, 1.442695
    %v4015 = vpow.pop %v4014
    %v4016 = vmul.f32 %v3986, 1.442695
    %v4017 = vpow.pop %v4016
    %v4018 = vmul.f32 %v3987, 1.442695
    %v4019 = vpow.pop %v4018
    %v4020 = vadd.f32 %v3989, 1.0
    %v4021 = vadd.f32 %v3991, 1.0
    %v4022 = vadd.f32 %v3993, 1.0
    %v4023 = vadd.f32 %v3995, 1.0
    %v4024 = vadd.f32 %v3997, 1.0
    %v4025 = vadd.f32 %v3999, 1.0
    %v4026 = vadd.f32 %v4001, 1.0
    %v4027 = vadd.f32 %v4003, 1.0
    %v4028 = vadd.f32 %v4005, 1.0
    %v4029 = vadd.f32 %v4007, 1.0
    %v4030 = vadd.f32 %v4009, 1.0
    %v4031 = vadd.f32 %v4011, 1.0
    %v4032 = vadd.f32 %v4013, 1.0
    %v4033 = vadd.f32 %v4015, 1.0
    %v4034 = vadd.f32 %v4017, 1.0
    %v4035 = vadd.f32 %v4019, 1.0
    %v4036 = vrcp.pop %v4020
    %v4037 = vmul.f32 1.0, %v4036
    %v4038 = vrcp.pop %v4021
    %v4039 = vmul.f32 1.0, %v4038
    %v4040 = vrcp.pop %v4022
    %v4041 = vmul.f32 1.0, %v4040
    %v4042 = vrcp.pop %v4023
    %v4043 = vmul.f32 1.0, %v4042
    %v4044 = vrcp.pop %v4024
    %v4045 = vmul.f32 1.0, %v4044
    %v4046 = vrcp.pop %v4025
    %v4047 = vmul.f32 1.0, %v4046
    %v4048 = vrcp.pop %v4026
    %v4049 = vmul.f32 1.0, %v4048
    %v4050 = vrcp.pop %v4027
    %v4051 = vmul.f32 1.0, %v4050
    %v4052 = vrcp.pop %v4028
    %v4053 = vmul.f32 1.0, %v4052
    %v4054 = vrcp.pop %v4029
    %v4055 = vmul.f32 1.0, %v4054
    %v4056 = vrcp.pop %v4030
    %v4057 = vmul.f32 1.0, %v4056
    %v4058 = vrcp.pop %v4031
    %v4059 = vmul.f32 1.0, %v4058
    %v4060 = vrcp.pop %v4032
    %v4061 = vmul.f32 1.0, %v4060
    %v4062 = vrcp.pop %v4033
    %v4063 = vmul.f32 1.0, %v4062
    %v4064 = vrcp.pop %v4034
    %v4065 = vmul.f32 1.0, %v4064
    %v4066 = vrcp.pop %v4035
    %v4067 = vmul.f32 1.0, %v4066
    %v4068 = vmul.f32 %v3894, %v4037
    %v4069 = vmul.f32 %v3899, %v4039
    %v4070 = vmul.f32 %v3904, %v4041
    %v4071 = vmul.f32 %v3909, %v4043
    %v4072 = vmul.f32 %v3914, %v4045
    %v4073 = vmul.f32 %v3919, %v4047
    %v4074 = vmul.f32 %v3924, %v4049
    %v4075 = vmul.f32 %v3929, %v4051
    %v4076 = vmul.f32 %v3934, %v4053
    %v4077 = vmul.f32 %v3939, %v4055
    %v4078 = vmul.f32 %v3944, %v4057
    %v4079 = vmul.f32 %v3949, %v4059
    %v4080 = vmul.f32 %v3954, %v4061
    %v4081 = vmul.f32 %v3959, %v4063
    %v4082 = vmul.f32 %v3964, %v4065
    %v4083 = vmul.f32 %v3969, %v4067
    %v4084 = vlaneseq
    %v4085 = vshrl.u32 %v4084, 7
    %v4086 = vsub.s32 0, %v4085
    %v4087 = vrot.slane %v2532, %v4086
    %v4088 = vmul.f32 %v4068, %v4087
    %v4089 = vmul.f32 %v4069, %v4087
    %v4090 = vmul.f32 %v4070, %v4087
    %v4091 = vmul.f32 %v4071, %v4087
    %v4092 = vmul.f32 %v4072, %v4087
    %v4093 = vmul.f32 %v4073, %v4087
    %v4094 = vmul.f32 %v4074, %v4087
    %v4095 = vmul.f32 %v4075, %v4087
    %v4096 = vmul.f32 %v4076, %v4087
    %v4097 = vmul.f32 %v4077, %v4087
    %v4098 = vmul.f32 %v4078, %v4087
    %v4099 = vmul.f32 %v4079, %v4087
    %v4100 = vmul.f32 %v4080, %v4087
    %v4101 = vmul.f32 %v4081, %v4087
    %v4102 = vmul.f32 %v4082, %v4087
    %v4103 = vmul.f32 %v4083, %v4087
    %v4104 = vsel %vm622, %v4088, 0.0
    %4105 = vadd.xlane.f32.xlu0 %v4104
    %v4106 = vpop.xlane.xlu0 %4105
    %v4107 = vsel %vm622, %v4089, 0.0
    %4108 = vadd.xlane.f32.xlu0 %v4107
    %v4109 = vpop.xlane.xlu0 %4108
    %v4110 = vsel %vm622, %v4090, 0.0
    %4111 = vadd.xlane.f32.xlu0 %v4110
    %v4112 = vpop.xlane.xlu0 %4111
    %v4113 = vsel %vm622, %v4091, 0.0
    %4114 = vadd.xlane.f32.xlu0 %v4113
    %v4115 = vpop.xlane.xlu0 %4114
    %v4116 = vsel %vm622, %v4092, 0.0
    %4117 = vadd.xlane.f32.xlu0 %v4116
    %v4118 = vpop.xlane.xlu0 %4117
    %v4119 = vsel %vm622, %v4093, 0.0
    %4120 = vadd.xlane.f32.xlu0 %v4119
    %v4121 = vpop.xlane.xlu0 %4120
    %v4122 = vsel %vm622, %v4094, 0.0
    %4123 = vadd.xlane.f32.xlu0 %v4122
    %v4124 = vpop.xlane.xlu0 %4123
    %v4125 = vsel %vm622, %v4095, 0.0
    %4126 = vadd.xlane.f32.xlu0 %v4125
    %v4127 = vpop.xlane.xlu0 %4126
    %v4128 = vsel %vm622, %v4096, 0.0
    %4129 = vadd.xlane.f32.xlu0 %v4128
    %v4130 = vpop.xlane.xlu0 %4129
    %v4131 = vsel %vm622, %v4097, 0.0
    %4132 = vadd.xlane.f32.xlu0 %v4131
    %v4133 = vpop.xlane.xlu0 %4132
    %v4134 = vsel %vm622, %v4098, 0.0
    %4135 = vadd.xlane.f32.xlu0 %v4134
    %v4136 = vpop.xlane.xlu0 %4135
    %v4137 = vsel %vm622, %v4099, 0.0
    %4138 = vadd.xlane.f32.xlu0 %v4137
    %v4139 = vpop.xlane.xlu0 %4138
    %v4140 = vsel %vm622, %v4100, 0.0
    %4141 = vadd.xlane.f32.xlu0 %v4140
    %v4142 = vpop.xlane.xlu0 %4141
    %v4143 = vsel %vm622, %v4101, 0.0
    %4144 = vadd.xlane.f32.xlu0 %v4143
    %v4145 = vpop.xlane.xlu0 %4144
    %v4146 = vsel %vm622, %v4102, 0.0
    %4147 = vadd.xlane.f32.xlu0 %v4146
    %v4148 = vpop.xlane.xlu0 %4147
    %v4149 = vsel %vm622, %v4103, 0.0
    %4150 = vadd.xlane.f32.xlu0 %v4149
    %v4151 = vpop.xlane.xlu0 %4150
    %v4152 = vmul.f32 %v4106, %v48
    %v4153 = vmul.f32 %v4109, %v49
    %v4154 = vmul.f32 %v4112, %v50
    %v4155 = vmul.f32 %v4115, %v51
    %v4156 = vmul.f32 %v4118, %v52
    %v4157 = vmul.f32 %v4121, %v53
    %v4158 = vmul.f32 %v4124, %v54
    %v4159 = vmul.f32 %v4127, %v55
    %v4160 = vmul.f32 %v4130, %v56
    %v4161 = vmul.f32 %v4133, %v57
    %v4162 = vmul.f32 %v4136, %v58
    %v4163 = vmul.f32 %v4139, %v59
    %v4164 = vmul.f32 %v4142, %v60
    %v4165 = vmul.f32 %v4145, %v61
    %v4166 = vmul.f32 %v4148, %v62
    %v4167 = vmul.f32 %v4151, %v63
    %4169 = vset.pattern.permute.xlu0 0
    %4170 = vperm.xlu0 %4169, %v4152
    %v4171 = vpop.permute.xlu0 %4170
    %4174 = vset.pattern.permute.xlu0 0
    %4175 = vperm.xlu0 %4174, %v4153
    %v4176 = vpop.permute.xlu0 %4175
    %4179 = vset.pattern.permute.xlu0 0
    %4180 = vperm.xlu0 %4179, %v4154
    %v4181 = vpop.permute.xlu0 %4180
    %4184 = vset.pattern.permute.xlu0 0
    %4185 = vperm.xlu0 %4184, %v4155
    %v4186 = vpop.permute.xlu0 %4185
    %4189 = vset.pattern.permute.xlu0 0
    %4190 = vperm.xlu0 %4189, %v4156
    %v4191 = vpop.permute.xlu0 %4190
    %4194 = vset.pattern.permute.xlu0 0
    %4195 = vperm.xlu0 %4194, %v4157
    %v4196 = vpop.permute.xlu0 %4195
    %4199 = vset.pattern.permute.xlu0 0
    %4200 = vperm.xlu0 %4199, %v4158
    %v4201 = vpop.permute.xlu0 %4200
    %4204 = vset.pattern.permute.xlu0 0
    %4205 = vperm.xlu0 %4204, %v4159
    %v4206 = vpop.permute.xlu0 %4205
    %4209 = vset.pattern.permute.xlu0 0
    %4210 = vperm.xlu0 %4209, %v4160
    %v4211 = vpop.permute.xlu0 %4210
    %4214 = vset.pattern.permute.xlu0 0
    %4215 = vperm.xlu0 %4214, %v4161
    %v4216 = vpop.permute.xlu0 %4215
    %4219 = vset.pattern.permute.xlu0 0
    %4220 = vperm.xlu0 %4219, %v4162
    %v4221 = vpop.permute.xlu0 %4220
    %4224 = vset.pattern.permute.xlu0 0
    %4225 = vperm.xlu0 %4224, %v4163
    %v4226 = vpop.permute.xlu0 %4225
    %4229 = vset.pattern.permute.xlu0 0
    %4230 = vperm.xlu0 %4229, %v4164
    %v4231 = vpop.permute.xlu0 %4230
    %4234 = vset.pattern.permute.xlu0 0
    %4235 = vperm.xlu0 %4234, %v4165
    %v4236 = vpop.permute.xlu0 %4235
    %4239 = vset.pattern.permute.xlu0 0
    %4240 = vperm.xlu0 %4239, %v4166
    %v4241 = vpop.permute.xlu0 %4240
    %4244 = vset.pattern.permute.xlu0 0
    %4245 = vperm.xlu0 %4244, %v4167
    %v4246 = vpop.permute.xlu0 %4245
    %v4248 = vmul.f32 %v2942, %v4171
    %v4249 = vmul.f32 %v2943, %v4176
    %v4250 = vmul.f32 %v2944, %v4181
    %v4251 = vmul.f32 %v2945, %v4186
    %v4252 = vmul.f32 %v2946, %v4191
    %v4253 = vmul.f32 %v2947, %v4196
    %v4254 = vmul.f32 %v2948, %v4201
    %v4255 = vmul.f32 %v2949, %v4206
    %v4256 = vmul.f32 %v2950, %v4211
    %v4257 = vmul.f32 %v2951, %v4216
    %v4258 = vmul.f32 %v2952, %v4221
    %v4259 = vmul.f32 %v2953, %v4226
    %v4260 = vmul.f32 %v2954, %v4231
    %v4261 = vmul.f32 %v2955, %v4236
    %v4262 = vmul.f32 %v2956, %v4241
    %v4263 = vmul.f32 %v2957, %v4246
    %v4264 = vsel %vm382, %v4248, 0.0
    %v4265 = vrot.slane %v4264, 4
    %v4266 = vadd.f32 %v4264, %v4265
    %v4267 = vrot.slane %v4266, 2
    %v4268 = vadd.f32 %v4266, %v4267
    %v4269 = vrot.slane %v4268, 1
    %v4270 = vadd.f32 %v4268, %v4269
    %v4271 = vsel %vm382, %v4249, 0.0
    %v4272 = vrot.slane %v4271, 4
    %v4273 = vadd.f32 %v4271, %v4272
    %v4274 = vrot.slane %v4273, 2
    %v4275 = vadd.f32 %v4273, %v4274
    %v4276 = vrot.slane %v4275, 1
    %v4277 = vadd.f32 %v4275, %v4276
    %v4278 = vsel %vm382, %v4250, 0.0
    %v4279 = vrot.slane %v4278, 4
    %v4280 = vadd.f32 %v4278, %v4279
    %v4281 = vrot.slane %v4280, 2
    %v4282 = vadd.f32 %v4280, %v4281
    %v4283 = vrot.slane %v4282, 1
    %v4284 = vadd.f32 %v4282, %v4283
    %v4285 = vsel %vm382, %v4251, 0.0
    %v4286 = vrot.slane %v4285, 4
    %v4287 = vadd.f32 %v4285, %v4286
    %v4288 = vrot.slane %v4287, 2
    %v4289 = vadd.f32 %v4287, %v4288
    %v4290 = vrot.slane %v4289, 1
    %v4291 = vadd.f32 %v4289, %v4290
    %v4292 = vsel %vm382, %v4252, 0.0
    %v4293 = vrot.slane %v4292, 4
    %v4294 = vadd.f32 %v4292, %v4293
    %v4295 = vrot.slane %v4294, 2
    %v4296 = vadd.f32 %v4294, %v4295
    %v4297 = vrot.slane %v4296, 1
    %v4298 = vadd.f32 %v4296, %v4297
    %v4299 = vsel %vm382, %v4253, 0.0
    %v4300 = vrot.slane %v4299, 4
    %v4301 = vadd.f32 %v4299, %v4300
    %v4302 = vrot.slane %v4301, 2
    %v4303 = vadd.f32 %v4301, %v4302
    %v4304 = vrot.slane %v4303, 1
    %v4305 = vadd.f32 %v4303, %v4304
    %v4306 = vsel %vm382, %v4254, 0.0
    %v4307 = vrot.slane %v4306, 4
    %v4308 = vadd.f32 %v4306, %v4307
    %v4309 = vrot.slane %v4308, 2
    %v4310 = vadd.f32 %v4308, %v4309
    %v4311 = vrot.slane %v4310, 1
    %v4312 = vadd.f32 %v4310, %v4311
    %v4313 = vsel %vm382, %v4255, 0.0
    %v4314 = vrot.slane %v4313, 4
    %v4315 = vadd.f32 %v4313, %v4314
    %v4316 = vrot.slane %v4315, 2
    %v4317 = vadd.f32 %v4315, %v4316
    %v4318 = vrot.slane %v4317, 1
    %v4319 = vadd.f32 %v4317, %v4318
    %v4320 = vsel %vm382, %v4256, 0.0
    %v4321 = vrot.slane %v4320, 4
    %v4322 = vadd.f32 %v4320, %v4321
    %v4323 = vrot.slane %v4322, 2
    %v4324 = vadd.f32 %v4322, %v4323
    %v4325 = vrot.slane %v4324, 1
    %v4326 = vadd.f32 %v4324, %v4325
    %v4327 = vsel %vm382, %v4257, 0.0
    %v4328 = vrot.slane %v4327, 4
    %v4329 = vadd.f32 %v4327, %v4328
    %v4330 = vrot.slane %v4329, 2
    %v4331 = vadd.f32 %v4329, %v4330
    %v4332 = vrot.slane %v4331, 1
    %v4333 = vadd.f32 %v4331, %v4332
    %v4334 = vsel %vm382, %v4258, 0.0
    %v4335 = vrot.slane %v4334, 4
    %v4336 = vadd.f32 %v4334, %v4335
    %v4337 = vrot.slane %v4336, 2
    %v4338 = vadd.f32 %v4336, %v4337
    %v4339 = vrot.slane %v4338, 1
    %v4340 = vadd.f32 %v4338, %v4339
    %v4341 = vsel %vm382, %v4259, 0.0
    %v4342 = vrot.slane %v4341, 4
    %v4343 = vadd.f32 %v4341, %v4342
    %v4344 = vrot.slane %v4343, 2
    %v4345 = vadd.f32 %v4343, %v4344
    %v4346 = vrot.slane %v4345, 1
    %v4347 = vadd.f32 %v4345, %v4346
    %v4348 = vsel %vm382, %v4260, 0.0
    %v4349 = vrot.slane %v4348, 4
    %v4350 = vadd.f32 %v4348, %v4349
    %v4351 = vrot.slane %v4350, 2
    %v4352 = vadd.f32 %v4350, %v4351
    %v4353 = vrot.slane %v4352, 1
    %v4354 = vadd.f32 %v4352, %v4353
    %v4355 = vsel %vm382, %v4261, 0.0
    %v4356 = vrot.slane %v4355, 4
    %v4357 = vadd.f32 %v4355, %v4356
    %v4358 = vrot.slane %v4357, 2
    %v4359 = vadd.f32 %v4357, %v4358
    %v4360 = vrot.slane %v4359, 1
    %v4361 = vadd.f32 %v4359, %v4360
    %v4362 = vsel %vm382, %v4262, 0.0
    %v4363 = vrot.slane %v4362, 4
    %v4364 = vadd.f32 %v4362, %v4363
    %v4365 = vrot.slane %v4364, 2
    %v4366 = vadd.f32 %v4364, %v4365
    %v4367 = vrot.slane %v4366, 1
    %v4368 = vadd.f32 %v4366, %v4367
    %v4369 = vsel %vm382, %v4263, 0.0
    %v4370 = vrot.slane %v4369, 4
    %v4371 = vadd.f32 %v4369, %v4370
    %v4372 = vrot.slane %v4371, 2
    %v4373 = vadd.f32 %v4371, %v4372
    %v4374 = vrot.slane %v4373, 1
    %v4375 = vadd.f32 %v4373, %v4374
    %v4392 = vsel %vm2132, %v4277, %v4270
    %v4393 = vsel %vm2134, %v4284, %v4392
    %v4394 = vsel %vm2136, %v4291, %v4393
    %v4395 = vsel %vm2138, %v4298, %v4394
    %v4396 = vsel %vm2140, %v4305, %v4395
    %v4397 = vsel %vm2142, %v4312, %v4396
    %v4398 = vsel %vm2144, %v4319, %v4397
    %v4399 = vsel %vm2132, %v4333, %v4326
    %v4400 = vsel %vm2134, %v4340, %v4399
    %v4401 = vsel %vm2136, %v4347, %v4400
    %v4402 = vsel %vm2138, %v4354, %v4401
    %v4403 = vsel %vm2140, %v4361, %v4402
    %v4404 = vsel %vm2142, %v4368, %v4403
    %v4405 = vsel %vm2144, %v4375, %v4404
    %v4408 = vadd.f32 %v2157, %v4398
    %v4409 = vadd.f32 %v2158, %v4405
    %v4410 = vmul.f32 %v4408, %v69
    %v4411 = vmul.f32 %v4409, %v74
    %v4412 = vsel %vm622, %v3759, 0.0
    %v4413 = vrot.slane %v4412, 4
    %v4414 = vadd.f32 %v4412, %v4413
    %v4415 = vrot.slane %v4414, 2
    %v4416 = vadd.f32 %v4414, %v4415
    %v4417 = vrot.slane %v4416, 1
    %v4418 = vadd.f32 %v4416, %v4417
    %v4419 = vsel %vm622, %v3760, 0.0
    %v4420 = vrot.slane %v4419, 4
    %v4421 = vadd.f32 %v4419, %v4420
    %v4422 = vrot.slane %v4421, 2
    %v4423 = vadd.f32 %v4421, %v4422
    %v4424 = vrot.slane %v4423, 1
    %v4425 = vadd.f32 %v4423, %v4424
    %v4426 = vsel %vm622, %v3761, 0.0
    %v4427 = vrot.slane %v4426, 4
    %v4428 = vadd.f32 %v4426, %v4427
    %v4429 = vrot.slane %v4428, 2
    %v4430 = vadd.f32 %v4428, %v4429
    %v4431 = vrot.slane %v4430, 1
    %v4432 = vadd.f32 %v4430, %v4431
    %v4433 = vsel %vm622, %v3762, 0.0
    %v4434 = vrot.slane %v4433, 4
    %v4435 = vadd.f32 %v4433, %v4434
    %v4436 = vrot.slane %v4435, 2
    %v4437 = vadd.f32 %v4435, %v4436
    %v4438 = vrot.slane %v4437, 1
    %v4439 = vadd.f32 %v4437, %v4438
    %v4440 = vsel %vm622, %v3763, 0.0
    %v4441 = vrot.slane %v4440, 4
    %v4442 = vadd.f32 %v4440, %v4441
    %v4443 = vrot.slane %v4442, 2
    %v4444 = vadd.f32 %v4442, %v4443
    %v4445 = vrot.slane %v4444, 1
    %v4446 = vadd.f32 %v4444, %v4445
    %v4447 = vsel %vm622, %v3764, 0.0
    %v4448 = vrot.slane %v4447, 4
    %v4449 = vadd.f32 %v4447, %v4448
    %v4450 = vrot.slane %v4449, 2
    %v4451 = vadd.f32 %v4449, %v4450
    %v4452 = vrot.slane %v4451, 1
    %v4453 = vadd.f32 %v4451, %v4452
    %v4454 = vsel %vm622, %v3765, 0.0
    %v4455 = vrot.slane %v4454, 4
    %v4456 = vadd.f32 %v4454, %v4455
    %v4457 = vrot.slane %v4456, 2
    %v4458 = vadd.f32 %v4456, %v4457
    %v4459 = vrot.slane %v4458, 1
    %v4460 = vadd.f32 %v4458, %v4459
    %v4461 = vsel %vm622, %v3766, 0.0
    %v4462 = vrot.slane %v4461, 4
    %v4463 = vadd.f32 %v4461, %v4462
    %v4464 = vrot.slane %v4463, 2
    %v4465 = vadd.f32 %v4463, %v4464
    %v4466 = vrot.slane %v4465, 1
    %v4467 = vadd.f32 %v4465, %v4466
    %v4468 = vsel %vm622, %v3767, 0.0
    %v4469 = vrot.slane %v4468, 4
    %v4470 = vadd.f32 %v4468, %v4469
    %v4471 = vrot.slane %v4470, 2
    %v4472 = vadd.f32 %v4470, %v4471
    %v4473 = vrot.slane %v4472, 1
    %v4474 = vadd.f32 %v4472, %v4473
    %v4475 = vsel %vm622, %v3768, 0.0
    %v4476 = vrot.slane %v4475, 4
    %v4477 = vadd.f32 %v4475, %v4476
    %v4478 = vrot.slane %v4477, 2
    %v4479 = vadd.f32 %v4477, %v4478
    %v4480 = vrot.slane %v4479, 1
    %v4481 = vadd.f32 %v4479, %v4480
    %v4482 = vsel %vm622, %v3769, 0.0
    %v4483 = vrot.slane %v4482, 4
    %v4484 = vadd.f32 %v4482, %v4483
    %v4485 = vrot.slane %v4484, 2
    %v4486 = vadd.f32 %v4484, %v4485
    %v4487 = vrot.slane %v4486, 1
    %v4488 = vadd.f32 %v4486, %v4487
    %v4489 = vsel %vm622, %v3770, 0.0
    %v4490 = vrot.slane %v4489, 4
    %v4491 = vadd.f32 %v4489, %v4490
    %v4492 = vrot.slane %v4491, 2
    %v4493 = vadd.f32 %v4491, %v4492
    %v4494 = vrot.slane %v4493, 1
    %v4495 = vadd.f32 %v4493, %v4494
    %v4496 = vsel %vm622, %v3771, 0.0
    %v4497 = vrot.slane %v4496, 4
    %v4498 = vadd.f32 %v4496, %v4497
    %v4499 = vrot.slane %v4498, 2
    %v4500 = vadd.f32 %v4498, %v4499
    %v4501 = vrot.slane %v4500, 1
    %v4502 = vadd.f32 %v4500, %v4501
    %v4503 = vsel %vm622, %v3772, 0.0
    %v4504 = vrot.slane %v4503, 4
    %v4505 = vadd.f32 %v4503, %v4504
    %v4506 = vrot.slane %v4505, 2
    %v4507 = vadd.f32 %v4505, %v4506
    %v4508 = vrot.slane %v4507, 1
    %v4509 = vadd.f32 %v4507, %v4508
    %v4510 = vsel %vm622, %v3773, 0.0
    %v4511 = vrot.slane %v4510, 4
    %v4512 = vadd.f32 %v4510, %v4511
    %v4513 = vrot.slane %v4512, 2
    %v4514 = vadd.f32 %v4512, %v4513
    %v4515 = vrot.slane %v4514, 1
    %v4516 = vadd.f32 %v4514, %v4515
    %v4517 = vsel %vm622, %v3774, 0.0
    %v4518 = vrot.slane %v4517, 4
    %v4519 = vadd.f32 %v4517, %v4518
    %v4520 = vrot.slane %v4519, 2
    %v4521 = vadd.f32 %v4519, %v4520
    %v4522 = vrot.slane %v4521, 1
    %v4523 = vadd.f32 %v4521, %v4522
    %v4540 = vsel %vm2132, %v4425, %v4418
    %v4541 = vsel %vm2134, %v4432, %v4540
    %v4542 = vsel %vm2136, %v4439, %v4541
    %v4543 = vsel %vm2138, %v4446, %v4542
    %v4544 = vsel %vm2140, %v4453, %v4543
    %v4545 = vsel %vm2142, %v4460, %v4544
    %v4546 = vsel %vm2144, %v4467, %v4545
    %v4547 = vsel %vm2132, %v4481, %v4474
    %v4548 = vsel %vm2134, %v4488, %v4547
    %v4549 = vsel %vm2136, %v4495, %v4548
    %v4550 = vsel %vm2138, %v4502, %v4549
    %v4551 = vsel %vm2140, %v4509, %v4550
    %v4552 = vsel %vm2142, %v4516, %v4551
    %v4553 = vsel %vm2144, %v4523, %v4552
    %v4554 = vsel %vm622, %v4546, 0
    %v4556 = vsel %vm622, %v4553, 0
    %4558 = vmatprep.subr.mxu0 0.0
    %4559 = vmatpush1.msra.mxu0 %v2520
    %4560 = vmatprep.subr.mxu0 0.0
    %4561 = vmatpush1.msra.mxu0 %v2521
    %4562 = vmatprep.subr.mxu0 0.0
    %4563 = vmatpush1.msra.mxu0 %v2522
    %4564 = vmatprep.subr.mxu0 0.0
    %4565 = vmatpush1.msra.mxu0 %v2523
    %4566 = vmatprep.subr.mxu0 0.0
    %4567 = vmatpush1.msra.mxu0 0.0
    %4568 = vmatprep.subr.mxu0 0.0
    %4569 = vmatpush1.msra.mxu0 0.0
    %4570 = vmatprep.subr.mxu0 0.0
    %4571 = vmatpush1.msra.mxu0 0.0
    %4572 = vmatprep.subr.mxu0 0.0
    %4573 = vmatpush1.msra.mxu0 0.0
    %4574 = vmatprep.subr.mxu0 0.0
    %4575 = vmatpush1.msra.mxu0 0.0
    %4576 = vmatprep.subr.mxu0 0.0
    %4577 = vmatpush1.msra.mxu0 0.0
    %4578 = vmatprep.subr.mxu0 0.0
    %4579 = vmatpush1.msra.mxu0 0.0
    %4580 = vmatprep.subr.mxu0 0.0
    %4581 = vmatpush1.msra.mxu0 0.0
    %4582 = vmatprep.subr.mxu0 0.0
    %4583 = vmatpush1.msra.mxu0 0.0
    %4584 = vmatprep.subr.mxu0 0.0
    %4585 = vmatpush1.msra.mxu0 0.0
    %4586 = vmatprep.subr.mxu0 0.0
    %4587 = vmatpush1.msra.mxu0 0.0
    %4588 = vmatprep.subr.mxu0 0.0
    %4589 = vmatpush1.msra.mxu0 0.0
    %4590 = vmatprep.subr.mxu0 0.0
    %4591 = vmatpush1.msra.mxu0 0.0
    %4592 = vmatprep.subr.mxu0 0.0
    %4593 = vmatpush1.msra.mxu0 0.0
    %4594 = vmatprep.subr.mxu0 0.0
    %4595 = vmatpush1.msra.mxu0 0.0
    %4596 = vmatprep.subr.mxu0 0.0
    %4597 = vmatpush1.msra.mxu0 0.0
    %4598 = vmatprep.subr.mxu0 0.0
    %4599 = vmatpush1.msra.mxu0 0.0
    %4600 = vmatprep.subr.mxu0 0.0
    %4601 = vmatpush1.msra.mxu0 0.0
    %4602 = vmatprep.subr.mxu0 0.0
    %4603 = vmatpush1.msra.mxu0 0.0
    %4604 = vmatprep.subr.mxu0 0.0
    %4605 = vmatpush1.msra.mxu0 0.0
    %4606 = vmatprep.subr.mxu0 0.0
    %4607 = vmatpush1.msra.mxu0 0.0
    %4608 = vmatprep.subr.mxu0 0.0
    %4609 = vmatpush1.msra.mxu0 0.0
    %4610 = vmatprep.subr.mxu0 0.0
    %4611 = vmatpush1.msra.mxu0 0.0
    %4612 = vmatprep.subr.mxu0 0.0
    %4613 = vmatpush1.msra.mxu0 0.0
    %4614 = vmatprep.subr.mxu0 0.0
    %4615 = vmatpush1.msra.mxu0 0.0
    %4616 = vmatprep.subr.mxu0 0.0
    %4617 = vmatpush1.msra.mxu0 0.0
    %4618 = vmatprep.subr.mxu0 0.0
    %4619 = vmatpush1.msra.mxu0 0.0
    %4620 = vmatprep.subr.mxu0 0.0
    %4621 = vmatpush1.msra.mxu0 0.0
    %4622 = vmatprep.mubr.f32.mxu0 0.0
    %4623 = vmatmul.mubr.f32.gmra.mrb[0].mxu0 %v4554
    %v4624 = vpop.f32.mrb[0].mxu0
    %v4625 = vadd.f32 0.0, %v4624
    %v4626 = vpop.f32.mrb[0].mxu0
    %4627 = vmatprep.mubr.f32.mxu0 0.0
    %4628 = vmatmul.mubr.f32.gmra.mrb[0].mxu0 %v4556
    %v4629 = vpop.f32.mrb[0].mxu0
    %v4630 = vadd.f32 0.0, %v4629
    %v4631 = vpop.f32.mrb[0].mxu0
    %4632 = vdwg.mxu0
    %4635 = vrot.lane.b32.xlu0 %v4625, 64
    %v4636 = vpop.permute.xlu0 %4635
    %4637 = vrot.lane.b32.xlu0 %v4630, 64
    %v4638 = vpop.permute.xlu0 %4637
    %v4641 = vadd.f32 %v3036, %v4636
    %v4642 = vadd.f32 %v3041, %v4638
    %v4643 = vlaneseq
    %v4644 = vshrl.u32 %v4643, 7
    %v4645 = vsub.s32 0, %v4644
    %v4646 = vrot.slane %v2536, %v4645
    %4648 = vrot.lane.b32.xlu0 %v4646, 64
    %v4649 = vpop.permute.xlu0 %4648
    %v4651 = vadd.f32 %v4641, %v4649
    %v4652 = vadd.f32 %v4642, %v4649
    %v4653 = vxor.u32 %v4651, 2147483648
    %v4654 = vxor.u32 %v4652, 2147483648
    %v4655 = vmul.f32 %v4653, 1.442695
    %v4656 = vpow.pop %v4655
    %v4657 = vmul.f32 %v4654, 1.442695
    %v4658 = vpow.pop %v4657
    %v4659 = vadd.f32 %v4656, 1.0
    %v4660 = vadd.f32 %v4658, 1.0
    %v4661 = vrcp.pop %v4659
    %v4662 = vmul.f32 1.0, %v4661
    %v4663 = vrcp.pop %v4660
    %v4664 = vmul.f32 1.0, %v4663
    %v4665 = vmul.f32 %v4651, %v4662
    %v4666 = vmul.f32 %v4652, %v4664
    %4669 = vrot.lane.b32.xlu0 %v4665, 64
    %v4670 = vpop.permute.xlu0 %4669
    %4671 = vrot.lane.b32.xlu0 %v4666, 64
    %v4672 = vpop.permute.xlu0 %4671
    %v4673 = vsel %vm622, %v4670, 0
    %v4675 = vsel %vm622, %v4672, 0
    %4677 = vmatprep.subr.mxu0 0.0
    %4678 = vmatpush1.msra.mxu0 %v2525
    %4679 = vmatprep.subr.mxu0 0.0
    %4680 = vmatpush1.msra.mxu0 %v2526
    %4681 = vmatprep.subr.mxu0 0.0
    %4682 = vmatpush1.msra.mxu0 %v2527
    %4683 = vmatprep.subr.mxu0 0.0
    %4684 = vmatpush1.msra.mxu0 %v2528
    %4685 = vmatprep.subr.mxu0 0.0
    %4686 = vmatpush1.msra.mxu0 0.0
    %4687 = vmatprep.subr.mxu0 0.0
    %4688 = vmatpush1.msra.mxu0 0.0
    %4689 = vmatprep.subr.mxu0 0.0
    %4690 = vmatpush1.msra.mxu0 0.0
    %4691 = vmatprep.subr.mxu0 0.0
    %4692 = vmatpush1.msra.mxu0 0.0
    %4693 = vmatprep.subr.mxu0 0.0
    %4694 = vmatpush1.msra.mxu0 0.0
    %4695 = vmatprep.subr.mxu0 0.0
    %4696 = vmatpush1.msra.mxu0 0.0
    %4697 = vmatprep.subr.mxu0 0.0
    %4698 = vmatpush1.msra.mxu0 0.0
    %4699 = vmatprep.subr.mxu0 0.0
    %4700 = vmatpush1.msra.mxu0 0.0
    %4701 = vmatprep.subr.mxu0 0.0
    %4702 = vmatpush1.msra.mxu0 0.0
    %4703 = vmatprep.subr.mxu0 0.0
    %4704 = vmatpush1.msra.mxu0 0.0
    %4705 = vmatprep.subr.mxu0 0.0
    %4706 = vmatpush1.msra.mxu0 0.0
    %4707 = vmatprep.subr.mxu0 0.0
    %4708 = vmatpush1.msra.mxu0 0.0
    %4709 = vmatprep.subr.mxu0 0.0
    %4710 = vmatpush1.msra.mxu0 0.0
    %4711 = vmatprep.subr.mxu0 0.0
    %4712 = vmatpush1.msra.mxu0 0.0
    %4713 = vmatprep.subr.mxu0 0.0
    %4714 = vmatpush1.msra.mxu0 0.0
    %4715 = vmatprep.subr.mxu0 0.0
    %4716 = vmatpush1.msra.mxu0 0.0
    %4717 = vmatprep.subr.mxu0 0.0
    %4718 = vmatpush1.msra.mxu0 0.0
    %4719 = vmatprep.subr.mxu0 0.0
    %4720 = vmatpush1.msra.mxu0 0.0
    %4721 = vmatprep.subr.mxu0 0.0
    %4722 = vmatpush1.msra.mxu0 0.0
    %4723 = vmatprep.subr.mxu0 0.0
    %4724 = vmatpush1.msra.mxu0 0.0
    %4725 = vmatprep.subr.mxu0 0.0
    %4726 = vmatpush1.msra.mxu0 0.0
    %4727 = vmatprep.subr.mxu0 0.0
    %4728 = vmatpush1.msra.mxu0 0.0
    %4729 = vmatprep.subr.mxu0 0.0
    %4730 = vmatpush1.msra.mxu0 0.0
    %4731 = vmatprep.subr.mxu0 0.0
    %4732 = vmatpush1.msra.mxu0 0.0
    %4733 = vmatprep.subr.mxu0 0.0
    %4734 = vmatpush1.msra.mxu0 0.0
    %4735 = vmatprep.subr.mxu0 0.0
    %4736 = vmatpush1.msra.mxu0 0.0
    %4737 = vmatprep.subr.mxu0 0.0
    %4738 = vmatpush1.msra.mxu0 0.0
    %4739 = vmatprep.subr.mxu0 0.0
    %4740 = vmatpush1.msra.mxu0 0.0
    %4741 = vmatprep.mubr.f32.mxu0 0.0
    %4742 = vmatmul.mubr.f32.gmra.mrb[0].mxu0 %v4673
    %v4743 = vpop.f32.mrb[0].mxu0
    %v4744 = vadd.f32 0.0, %v4743
    %v4745 = vpop.f32.mrb[0].mxu0
    %4746 = vmatprep.mubr.f32.mxu0 0.0
    %4747 = vmatmul.mubr.f32.gmra.mrb[0].mxu0 %v4675
    %v4748 = vpop.f32.mrb[0].mxu0
    %v4749 = vadd.f32 0.0, %v4748
    %v4750 = vpop.f32.mrb[0].mxu0
    %4751 = vdwg.mxu0
    %v4752 = vadd.f32 %v2507, %v4744
    %v4753 = vadd.f32 %v2508, %v4749
    %v4754 = vlaneseq
    %v4755 = vshrl.u32 %v4754, 7
    %v4756 = vsub.s32 0, %v4755
    %v4757 = vrot.slane %v2537, %v4756
    %v4758 = vadd.f32 %v4752, %v4757
    %v4759 = vadd.f32 %v4753, %v4757
    %v4760 = vmul.f32 %v4758, %v69
    %v4761 = vmul.f32 %v4759, %v74
    %s4762 = scalar_lea.vmem [#allocation2], 256
    %v4763 = vld [vmem:[%s4762] sm:$0xff]
    %v4764 = vld [vmem:[%s4762 + $0x8] sm:$0xff]
    %v4765 = vld [vmem:[%s4762 + $0x10] sm:$0xff]
    %v4766 = vld [vmem:[%s4762 + $0x18] sm:$0xff]
    %s4767 = scalar_lea.vmem [#allocation2], 288
    %v4768 = vld [vmem:[%s4767] sm:$0xff]
    %v4769 = vld [vmem:[%s4767 + $0x8] sm:$0xff]
    %v4770 = vld [vmem:[%s4767 + $0x10] sm:$0xff]
    %v4771 = vld [vmem:[%s4767 + $0x18] sm:$0xff]
    %s4772 = scalar_lea.vmem [#allocation2], 320
    %v4773 = vld [vmem:[%s4772] sm:$0xff]
    %v4774 = vld [vmem:[%s4772 + $0x8] sm:$0xff]
    %v4775 = vld [vmem:[%s4772 + $0x10] sm:$0xff]
    %v4776 = vld [vmem:[%s4772 + $0x18] sm:$0xff]
    %s4777 = scalar_lea.vmem [#allocation2], 352
    %v4778 = vld [vmem:[%s4777] sm:$0xff]
    %v4779 = vld [vmem:[%s4777 + $0x8] sm:$0xff]
    %v4780 = vld [vmem:[%s4777 + $0x10] sm:$0xff]
    %v4781 = vld [vmem:[%s4777 + $0x18] sm:$0xff]
    %s4782 = scalar_lea.vmem %s8, 16
    %v4783 = vld [vmem:[%s4782] sm:$0x1]
    %v4784 = vld [vmem:[%s4782 + $0x1] sm:$0x1]
    %v4785 = vld [vmem:[%s4782 + $0x2] sm:$0x1]
    %v4786 = vld [vmem:[%s4782 + $0x3] sm:$0x1]
    %v4787 = vld [vmem:[%s4782 + $0x4] sm:$0x1]
    %v4788 = vld [vmem:[%s4782 + $0x5] sm:$0x1]
    %v4789 = vld [vmem:[%s4782 + $0x6] sm:$0x1]
    %v4790 = vld [vmem:[%s4782 + $0x7] sm:$0x1]
    %v4793 = vcombine.high %v4410, %v4410
    %v4795 = vunpack.c.l.s4 1966171168
    %v4796 = vunpack.c.0.s8 %v4795
    %v4797 = vlaneseq
    %v4798 = vshrl.u32 %v4797, 7
    %v4799 = vsub.s32 %v4796, %v4798
    %v4800 = vrot.slane %v4410, %v4799
    %v4802 = vunpack.c.l.s4 1966171168
    %v4803 = vunpack.c.0.s8 %v4802
    %v4804 = vlaneseq
    %v4805 = vshrl.u32 %v4804, 7
    %v4806 = vsub.s32 %v4803, %v4805
    %v4807 = vrot.slane %v4793, %v4806
    %v4808 = vcombine.high %v4800, %v4800
    %v4809 = vcombine.high %v4807, %v4807
    %v4811 = vunpack.c.l.s4 1966171168
    %v4812 = vunpack.c.0.s8 %v4811
    %v4813 = vlaneseq
    %v4814 = vshrl.u32 %v4813, 7
    %v4815 = vsub.s32 %v4812, %v4814
    %v4816 = vrot.slane %v4800, %v4815
    %v4818 = vunpack.c.l.s4 1966171168
    %v4819 = vunpack.c.0.s8 %v4818
    %v4820 = vlaneseq
    %v4821 = vshrl.u32 %v4820, 7
    %v4822 = vsub.s32 %v4819, %v4821
    %v4823 = vrot.slane %v4807, %v4822
    %v4825 = vunpack.c.l.s4 1966171168
    %v4826 = vunpack.c.0.s8 %v4825
    %v4827 = vlaneseq
    %v4828 = vshrl.u32 %v4827, 7
    %v4829 = vsub.s32 %v4826, %v4828
    %v4830 = vrot.slane %v4808, %v4829
    %v4832 = vunpack.c.l.s4 1966171168
    %v4833 = vunpack.c.0.s8 %v4832
    %v4834 = vlaneseq
    %v4835 = vshrl.u32 %v4834, 7
    %v4836 = vsub.s32 %v4833, %v4835
    %v4837 = vrot.slane %v4809, %v4836
    %v4838 = vcombine.high %v4816, %v4816
    %v4839 = vcombine.high %v4823, %v4823
    %v4840 = vcombine.high %v4830, %v4830
    %v4841 = vcombine.high %v4837, %v4837
    %v4842 = vcombine.high %v4411, %v4411
    %v4844 = vunpack.c.l.s4 1966171168
    %v4845 = vunpack.c.0.s8 %v4844
    %v4846 = vlaneseq
    %v4847 = vshrl.u32 %v4846, 7
    %v4848 = vsub.s32 %v4845, %v4847
    %v4849 = vrot.slane %v4411, %v4848
    %v4851 = vunpack.c.l.s4 1966171168
    %v4852 = vunpack.c.0.s8 %v4851
    %v4853 = vlaneseq
    %v4854 = vshrl.u32 %v4853, 7
    %v4855 = vsub.s32 %v4852, %v4854
    %v4856 = vrot.slane %v4842, %v4855
    %v4857 = vcombine.high %v4849, %v4849
    %v4858 = vcombine.high %v4856, %v4856
    %v4860 = vunpack.c.l.s4 1966171168
    %v4861 = vunpack.c.0.s8 %v4860
    %v4862 = vlaneseq
    %v4863 = vshrl.u32 %v4862, 7
    %v4864 = vsub.s32 %v4861, %v4863
    %v4865 = vrot.slane %v4849, %v4864
    %v4867 = vunpack.c.l.s4 1966171168
    %v4868 = vunpack.c.0.s8 %v4867
    %v4869 = vlaneseq
    %v4870 = vshrl.u32 %v4869, 7
    %v4871 = vsub.s32 %v4868, %v4870
    %v4872 = vrot.slane %v4856, %v4871
    %v4874 = vunpack.c.l.s4 1966171168
    %v4875 = vunpack.c.0.s8 %v4874
    %v4876 = vlaneseq
    %v4877 = vshrl.u32 %v4876, 7
    %v4878 = vsub.s32 %v4875, %v4877
    %v4879 = vrot.slane %v4857, %v4878
    %v4881 = vunpack.c.l.s4 1966171168
    %v4882 = vunpack.c.0.s8 %v4881
    %v4883 = vlaneseq
    %v4884 = vshrl.u32 %v4883, 7
    %v4885 = vsub.s32 %v4882, %v4884
    %v4886 = vrot.slane %v4858, %v4885
    %v4887 = vcombine.high %v4865, %v4865
    %v4888 = vcombine.high %v4872, %v4872
    %v4889 = vcombine.high %v4879, %v4879
    %v4890 = vcombine.high %v4886, %v4886
    %v4891 = vlaneseq
    %v4892 = vshrl.u32 %v4891, 7
    %v4893 = vsub.s32 0, %v4892
    %v4894 = vrot.slane %v4816, %v4893
    %v4895 = vlaneseq
    %v4896 = vshrl.u32 %v4895, 7
    %v4897 = vsub.s32 0, %v4896
    %v4898 = vrot.slane %v4830, %v4897
    %v4899 = vlaneseq
    %v4900 = vshrl.u32 %v4899, 7
    %v4901 = vsub.s32 0, %v4900
    %v4902 = vrot.slane %v4838, %v4901
    %v4903 = vlaneseq
    %v4904 = vshrl.u32 %v4903, 7
    %v4905 = vsub.s32 0, %v4904
    %v4906 = vrot.slane %v4840, %v4905
    %v4907 = vlaneseq
    %v4908 = vshrl.u32 %v4907, 7
    %v4909 = vsub.s32 0, %v4908
    %v4910 = vrot.slane %v4823, %v4909
    %v4911 = vlaneseq
    %v4912 = vshrl.u32 %v4911, 7
    %v4913 = vsub.s32 0, %v4912
    %v4914 = vrot.slane %v4837, %v4913
    %v4915 = vlaneseq
    %v4916 = vshrl.u32 %v4915, 7
    %v4917 = vsub.s32 0, %v4916
    %v4918 = vrot.slane %v4839, %v4917
    %v4919 = vlaneseq
    %v4920 = vshrl.u32 %v4919, 7
    %v4921 = vsub.s32 0, %v4920
    %v4922 = vrot.slane %v4841, %v4921
    %v4923 = vlaneseq
    %v4924 = vshrl.u32 %v4923, 7
    %v4925 = vsub.s32 0, %v4924
    %v4926 = vrot.slane %v4865, %v4925
    %v4927 = vlaneseq
    %v4928 = vshrl.u32 %v4927, 7
    %v4929 = vsub.s32 0, %v4928
    %v4930 = vrot.slane %v4879, %v4929
    %v4931 = vlaneseq
    %v4932 = vshrl.u32 %v4931, 7
    %v4933 = vsub.s32 0, %v4932
    %v4934 = vrot.slane %v4887, %v4933
    %v4935 = vlaneseq
    %v4936 = vshrl.u32 %v4935, 7
    %v4937 = vsub.s32 0, %v4936
    %v4938 = vrot.slane %v4889, %v4937
    %v4939 = vlaneseq
    %v4940 = vshrl.u32 %v4939, 7
    %v4941 = vsub.s32 0, %v4940
    %v4942 = vrot.slane %v4872, %v4941
    %v4943 = vlaneseq
    %v4944 = vshrl.u32 %v4943, 7
    %v4945 = vsub.s32 0, %v4944
    %v4946 = vrot.slane %v4886, %v4945
    %v4947 = vlaneseq
    %v4948 = vshrl.u32 %v4947, 7
    %v4949 = vsub.s32 0, %v4948
    %v4950 = vrot.slane %v4888, %v4949
    %v4951 = vlaneseq
    %v4952 = vshrl.u32 %v4951, 7
    %v4953 = vsub.s32 0, %v4952
    %v4954 = vrot.slane %v4890, %v4953
    %v4971 = vsub.f32 %v4894, %v4410
    %v4972 = vsub.f32 %v4898, %v4410
    %v4973 = vsub.f32 %v4902, %v4410
    %v4974 = vsub.f32 %v4906, %v4410
    %v4975 = vsub.f32 %v4910, %v4410
    %v4976 = vsub.f32 %v4914, %v4410
    %v4977 = vsub.f32 %v4918, %v4410
    %v4978 = vsub.f32 %v4922, %v4410
    %v4979 = vsub.f32 %v4926, %v4411
    %v4980 = vsub.f32 %v4930, %v4411
    %v4981 = vsub.f32 %v4934, %v4411
    %v4982 = vsub.f32 %v4938, %v4411
    %v4983 = vsub.f32 %v4942, %v4411
    %v4984 = vsub.f32 %v4946, %v4411
    %v4985 = vsub.f32 %v4950, %v4411
    %v4986 = vsub.f32 %v4954, %v4411
    %v4987 = vmul.f32 %v4971, %v4971
    %v4988 = vmul.f32 %v4972, %v4972
    %v4989 = vmul.f32 %v4973, %v4973
    %v4990 = vmul.f32 %v4974, %v4974
    %v4991 = vmul.f32 %v4975, %v4975
    %v4992 = vmul.f32 %v4976, %v4976
    %v4993 = vmul.f32 %v4977, %v4977
    %v4994 = vmul.f32 %v4978, %v4978
    %v4995 = vmul.f32 %v4979, %v4979
    %v4996 = vmul.f32 %v4980, %v4980
    %v4997 = vmul.f32 %v4981, %v4981
    %v4998 = vmul.f32 %v4982, %v4982
    %v4999 = vmul.f32 %v4983, %v4983
    %v5000 = vmul.f32 %v4984, %v4984
    %v5001 = vmul.f32 %v4985, %v4985
    %v5002 = vmul.f32 %v4986, %v4986
    %v5003 = vsel %vm382, %v4987, 0.0
    %5004 = vadd.xlane.f32.xlu0 %v5003
    %v5005 = vpop.xlane.xlu0 %5004
    %v5006 = vsel %vm382, %v4988, 0.0
    %5007 = vadd.xlane.f32.xlu0 %v5006
    %v5008 = vpop.xlane.xlu0 %5007
    %v5009 = vsel %vm382, %v4989, 0.0
    %5010 = vadd.xlane.f32.xlu0 %v5009
    %v5011 = vpop.xlane.xlu0 %5010
    %v5012 = vsel %vm382, %v4990, 0.0
    %5013 = vadd.xlane.f32.xlu0 %v5012
    %v5014 = vpop.xlane.xlu0 %5013
    %v5015 = vsel %vm382, %v4991, 0.0
    %5016 = vadd.xlane.f32.xlu0 %v5015
    %v5017 = vpop.xlane.xlu0 %5016
    %v5018 = vsel %vm382, %v4992, 0.0
    %5019 = vadd.xlane.f32.xlu0 %v5018
    %v5020 = vpop.xlane.xlu0 %5019
    %v5021 = vsel %vm382, %v4993, 0.0
    %5022 = vadd.xlane.f32.xlu0 %v5021
    %v5023 = vpop.xlane.xlu0 %5022
    %v5024 = vsel %vm382, %v4994, 0.0
    %5025 = vadd.xlane.f32.xlu0 %v5024
    %v5026 = vpop.xlane.xlu0 %5025
    %v5027 = vsel %vm382, %v4995, 0.0
    %5028 = vadd.xlane.f32.xlu0 %v5027
    %v5029 = vpop.xlane.xlu0 %5028
    %v5030 = vsel %vm382, %v4996, 0.0
    %5031 = vadd.xlane.f32.xlu0 %v5030
    %v5032 = vpop.xlane.xlu0 %5031
    %v5033 = vsel %vm382, %v4997, 0.0
    %5034 = vadd.xlane.f32.xlu0 %v5033
    %v5035 = vpop.xlane.xlu0 %5034
    %v5036 = vsel %vm382, %v4998, 0.0
    %5037 = vadd.xlane.f32.xlu0 %v5036
    %v5038 = vpop.xlane.xlu0 %5037
    %v5039 = vsel %vm382, %v4999, 0.0
    %5040 = vadd.xlane.f32.xlu0 %v5039
    %v5041 = vpop.xlane.xlu0 %5040
    %v5042 = vsel %vm382, %v5000, 0.0
    %5043 = vadd.xlane.f32.xlu0 %v5042
    %v5044 = vpop.xlane.xlu0 %5043
    %v5045 = vsel %vm382, %v5001, 0.0
    %5046 = vadd.xlane.f32.xlu0 %v5045
    %v5047 = vpop.xlane.xlu0 %5046
    %v5048 = vsel %vm382, %v5002, 0.0
    %5049 = vadd.xlane.f32.xlu0 %v5048
    %v5050 = vpop.xlane.xlu0 %5049
    %v5051 = vrsqrt.pop %v5005
    %v5052 = vmul.f32 %v5005, %v5051
    %vm5053 = vcmp.eq.f32.partialorder %v5005, inf
    %v5054 = vsel %vm5053, %v5005, %v5052
    %vm5055 = vcmp.eq.f32.partialorder %v5005, 0.0
    %v5056 = vand.u32 %v5005, 2147483648
    %v5057 = vsel %vm5055, %v5056, %v5054
    %v5058 = vrsqrt.pop %v5008
    %v5059 = vmul.f32 %v5008, %v5058
    %vm5060 = vcmp.eq.f32.partialorder %v5008, inf
    %v5061 = vsel %vm5060, %v5008, %v5059
    %vm5062 = vcmp.eq.f32.partialorder %v5008, 0.0
    %v5063 = vand.u32 %v5008, 2147483648
    %v5064 = vsel %vm5062, %v5063, %v5061
    %v5065 = vrsqrt.pop %v5011
    %v5066 = vmul.f32 %v5011, %v5065
    %vm5067 = vcmp.eq.f32.partialorder %v5011, inf
    %v5068 = vsel %vm5067, %v5011, %v5066
    %vm5069 = vcmp.eq.f32.partialorder %v5011, 0.0
    %v5070 = vand.u32 %v5011, 2147483648
    %v5071 = vsel %vm5069, %v5070, %v5068
    %v5072 = vrsqrt.pop %v5014
    %v5073 = vmul.f32 %v5014, %v5072
    %vm5074 = vcmp.eq.f32.partialorder %v5014, inf
    %v5075 = vsel %vm5074, %v5014, %v5073
    %vm5076 = vcmp.eq.f32.partialorder %v5014, 0.0
    %v5077 = vand.u32 %v5014, 2147483648
    %v5078 = vsel %vm5076, %v5077, %v5075
    %v5079 = vrsqrt.pop %v5017
    %v5080 = vmul.f32 %v5017, %v5079
    %vm5081 = vcmp.eq.f32.partialorder %v5017, inf
    %v5082 = vsel %vm5081, %v5017, %v5080
    %vm5083 = vcmp.eq.f32.partialorder %v5017, 0.0
    %v5084 = vand.u32 %v5017, 2147483648
    %v5085 = vsel %vm5083, %v5084, %v5082
    %v5086 = vrsqrt.pop %v5020
    %v5087 = vmul.f32 %v5020, %v5086
    %vm5088 = vcmp.eq.f32.partialorder %v5020, inf
    %v5089 = vsel %vm5088, %v5020, %v5087
    %vm5090 = vcmp.eq.f32.partialorder %v5020, 0.0
    %v5091 = vand.u32 %v5020, 2147483648
    %v5092 = vsel %vm5090, %v5091, %v5089
    %v5093 = vrsqrt.pop %v5023
    %v5094 = vmul.f32 %v5023, %v5093
    %vm5095 = vcmp.eq.f32.partialorder %v5023, inf
    %v5096 = vsel %vm5095, %v5023, %v5094
    %vm5097 = vcmp.eq.f32.partialorder %v5023, 0.0
    %v5098 = vand.u32 %v5023, 2147483648
    %v5099 = vsel %vm5097, %v5098, %v5096
    %v5100 = vrsqrt.pop %v5026
    %v5101 = vmul.f32 %v5026, %v5100
    %vm5102 = vcmp.eq.f32.partialorder %v5026, inf
    %v5103 = vsel %vm5102, %v5026, %v5101
    %vm5104 = vcmp.eq.f32.partialorder %v5026, 0.0
    %v5105 = vand.u32 %v5026, 2147483648
    %v5106 = vsel %vm5104, %v5105, %v5103
    %v5107 = vrsqrt.pop %v5029
    %v5108 = vmul.f32 %v5029, %v5107
    %vm5109 = vcmp.eq.f32.partialorder %v5029, inf
    %v5110 = vsel %vm5109, %v5029, %v5108
    %vm5111 = vcmp.eq.f32.partialorder %v5029, 0.0
    %v5112 = vand.u32 %v5029, 2147483648
    %v5113 = vsel %vm5111, %v5112, %v5110
    %v5114 = vrsqrt.pop %v5032
    %v5115 = vmul.f32 %v5032, %v5114
    %vm5116 = vcmp.eq.f32.partialorder %v5032, inf
    %v5117 = vsel %vm5116, %v5032, %v5115
    %vm5118 = vcmp.eq.f32.partialorder %v5032, 0.0
    %v5119 = vand.u32 %v5032, 2147483648
    %v5120 = vsel %vm5118, %v5119, %v5117
    %v5121 = vrsqrt.pop %v5035
    %v5122 = vmul.f32 %v5035, %v5121
    %vm5123 = vcmp.eq.f32.partialorder %v5035, inf
    %v5124 = vsel %vm5123, %v5035, %v5122
    %vm5125 = vcmp.eq.f32.partialorder %v5035, 0.0
    %v5126 = vand.u32 %v5035, 2147483648
    %v5127 = vsel %vm5125, %v5126, %v5124
    %v5128 = vrsqrt.pop %v5038
    %v5129 = vmul.f32 %v5038, %v5128
    %vm5130 = vcmp.eq.f32.partialorder %v5038, inf
    %v5131 = vsel %vm5130, %v5038, %v5129
    %vm5132 = vcmp.eq.f32.partialorder %v5038, 0.0
    %v5133 = vand.u32 %v5038, 2147483648
    %v5134 = vsel %vm5132, %v5133, %v5131
    %v5135 = vrsqrt.pop %v5041
    %v5136 = vmul.f32 %v5041, %v5135
    %vm5137 = vcmp.eq.f32.partialorder %v5041, inf
    %v5138 = vsel %vm5137, %v5041, %v5136
    %vm5139 = vcmp.eq.f32.partialorder %v5041, 0.0
    %v5140 = vand.u32 %v5041, 2147483648
    %v5141 = vsel %vm5139, %v5140, %v5138
    %v5142 = vrsqrt.pop %v5044
    %v5143 = vmul.f32 %v5044, %v5142
    %vm5144 = vcmp.eq.f32.partialorder %v5044, inf
    %v5145 = vsel %vm5144, %v5044, %v5143
    %vm5146 = vcmp.eq.f32.partialorder %v5044, 0.0
    %v5147 = vand.u32 %v5044, 2147483648
    %v5148 = vsel %vm5146, %v5147, %v5145
    %v5149 = vrsqrt.pop %v5047
    %v5150 = vmul.f32 %v5047, %v5149
    %vm5151 = vcmp.eq.f32.partialorder %v5047, inf
    %v5152 = vsel %vm5151, %v5047, %v5150
    %vm5153 = vcmp.eq.f32.partialorder %v5047, 0.0
    %v5154 = vand.u32 %v5047, 2147483648
    %v5155 = vsel %vm5153, %v5154, %v5152
    %v5156 = vrsqrt.pop %v5050
    %v5157 = vmul.f32 %v5050, %v5156
    %vm5158 = vcmp.eq.f32.partialorder %v5050, inf
    %v5159 = vsel %vm5158, %v5050, %v5157
    %vm5160 = vcmp.eq.f32.partialorder %v5050, 0.0
    %v5161 = vand.u32 %v5050, 2147483648
    %v5162 = vsel %vm5160, %v5161, %v5159
    %v5163 = vadd.f32 %v5057, 1.0
    %v5164 = vadd.f32 %v5064, 1.0
    %v5165 = vadd.f32 %v5071, 1.0
    %v5166 = vadd.f32 %v5078, 1.0
    %v5167 = vadd.f32 %v5085, 1.0
    %v5168 = vadd.f32 %v5092, 1.0
    %v5169 = vadd.f32 %v5099, 1.0
    %v5170 = vadd.f32 %v5106, 1.0
    %v5171 = vadd.f32 %v5113, 1.0
    %v5172 = vadd.f32 %v5120, 1.0
    %v5173 = vadd.f32 %v5127, 1.0
    %v5174 = vadd.f32 %v5134, 1.0
    %v5175 = vadd.f32 %v5141, 1.0
    %v5176 = vadd.f32 %v5148, 1.0
    %v5177 = vadd.f32 %v5155, 1.0
    %v5178 = vadd.f32 %v5162, 1.0
    %v5179 = vrcp.pop %v5163
    %v5180 = vrcp.pop %v5164
    %v5181 = vrcp.pop %v5165
    %v5182 = vrcp.pop %v5166
    %v5183 = vrcp.pop %v5167
    %v5184 = vrcp.pop %v5168
    %v5185 = vrcp.pop %v5169
    %v5186 = vrcp.pop %v5170
    %v5187 = vrcp.pop %v5171
    %v5188 = vrcp.pop %v5172
    %v5189 = vrcp.pop %v5173
    %v5190 = vrcp.pop %v5174
    %v5191 = vrcp.pop %v5175
    %v5192 = vrcp.pop %v5176
    %v5193 = vrcp.pop %v5177
    %v5194 = vrcp.pop %v5178
    %v5195 = vmul.f32 %v4971, %v5179
    %v5196 = vmul.f32 %v4972, %v5180
    %v5197 = vmul.f32 %v4973, %v5181
    %v5198 = vmul.f32 %v4974, %v5182
    %v5199 = vmul.f32 %v4975, %v5183
    %v5200 = vmul.f32 %v4976, %v5184
    %v5201 = vmul.f32 %v4977, %v5185
    %v5202 = vmul.f32 %v4978, %v5186
    %v5203 = vmul.f32 %v4979, %v5187
    %v5204 = vmul.f32 %v4980, %v5188
    %v5205 = vmul.f32 %v4981, %v5189
    %v5206 = vmul.f32 %v4982, %v5190
    %v5207 = vmul.f32 %v4983, %v5191
    %v5208 = vmul.f32 %v4984, %v5192
    %v5209 = vmul.f32 %v4985, %v5193
    %v5210 = vmul.f32 %v4986, %v5194
    %s5211 = scalar_lea.vmem %s6, 64
    %v5212 = vld [vmem:[%s5211] sm:$0xff]
    %v5213 = vld [vmem:[%s5211 + $0x8] sm:$0xff]
    %v5214 = vld [vmem:[%s5211 + $0x10] sm:$0xff]
    %v5215 = vld [vmem:[%s5211 + $0x18] sm:$0xff]
    %v5217 = vsel %vm622, %v4760, 0
    %v5220 = vsel %vm622, %v4761, 0
    %5222 = vmatprep.subr.mxu0 0.0
    %5223 = vmatpush1.msra.mxu0 %v5212
    %5224 = vmatprep.subr.mxu0 0.0
    %5225 = vmatpush1.msra.mxu0 %v5213
    %5226 = vmatprep.subr.mxu0 0.0
    %5227 = vmatpush1.msra.mxu0 %v5214
    %5228 = vmatprep.subr.mxu0 0.0
    %5229 = vmatpush1.msra.mxu0 %v5215
    %5230 = vmatprep.subr.mxu0 0.0
    %5231 = vmatpush1.msra.mxu0 0.0
    %5232 = vmatprep.subr.mxu0 0.0
    %5233 = vmatpush1.msra.mxu0 0.0
    %5234 = vmatprep.subr.mxu0 0.0
    %5235 = vmatpush1.msra.mxu0 0.0
    %5236 = vmatprep.subr.mxu0 0.0
    %5237 = vmatpush1.msra.mxu0 0.0
    %5238 = vmatprep.subr.mxu0 0.0
    %5239 = vmatpush1.msra.mxu0 0.0
    %5240 = vmatprep.subr.mxu0 0.0
    %5241 = vmatpush1.msra.mxu0 0.0
    %5242 = vmatprep.subr.mxu0 0.0
    %5243 = vmatpush1.msra.mxu0 0.0
    %5244 = vmatprep.subr.mxu0 0.0
    %5245 = vmatpush1.msra.mxu0 0.0
    %5246 = vmatprep.subr.mxu0 0.0
    %5247 = vmatpush1.msra.mxu0 0.0
    %5248 = vmatprep.subr.mxu0 0.0
    %5249 = vmatpush1.msra.mxu0 0.0
    %5250 = vmatprep.subr.mxu0 0.0
    %5251 = vmatpush1.msra.mxu0 0.0
    %5252 = vmatprep.subr.mxu0 0.0
    %5253 = vmatpush1.msra.mxu0 0.0
    %5254 = vmatprep.subr.mxu0 0.0
    %5255 = vmatpush1.msra.mxu0 0.0
    %5256 = vmatprep.subr.mxu0 0.0
    %5257 = vmatpush1.msra.mxu0 0.0
    %5258 = vmatprep.subr.mxu0 0.0
    %5259 = vmatpush1.msra.mxu0 0.0
    %5260 = vmatprep.subr.mxu0 0.0
    %5261 = vmatpush1.msra.mxu0 0.0
    %5262 = vmatprep.subr.mxu0 0.0
    %5263 = vmatpush1.msra.mxu0 0.0
    %5264 = vmatprep.subr.mxu0 0.0
    %5265 = vmatpush1.msra.mxu0 0.0
    %5266 = vmatprep.subr.mxu0 0.0
    %5267 = vmatpush1.msra.mxu0 0.0
    %5268 = vmatprep.subr.mxu0 0.0
    %5269 = vmatpush1.msra.mxu0 0.0
    %5270 = vmatprep.subr.mxu0 0.0
    %5271 = vmatpush1.msra.mxu0 0.0
    %5272 = vmatprep.subr.mxu0 0.0
    %5273 = vmatpush1.msra.mxu0 0.0
    %5274 = vmatprep.subr.mxu0 0.0
    %5275 = vmatpush1.msra.mxu0 0.0
    %5276 = vmatprep.subr.mxu0 0.0
    %5277 = vmatpush1.msra.mxu0 0.0
    %5278 = vmatprep.subr.mxu0 0.0
    %5279 = vmatpush1.msra.mxu0 0.0
    %5280 = vmatprep.subr.mxu0 0.0
    %5281 = vmatpush1.msra.mxu0 0.0
    %5282 = vmatprep.subr.mxu0 0.0
    %5283 = vmatpush1.msra.mxu0 0.0
    %5284 = vmatprep.subr.mxu0 0.0
    %5285 = vmatpush1.msra.mxu0 0.0
    %5286 = vmatprep.mubr.f32.mxu0 0.0
    %5287 = vmatmul.mubr.f32.gmra.mrb[0].mxu0 %v5217
    %v5288 = vpop.f32.mrb[0].mxu0
    %v5289 = vadd.f32 0.0, %v5288
    %v5290 = vpop.f32.mrb[0].mxu0
    %5291 = vmatprep.mubr.f32.mxu0 0.0
    %5292 = vmatmul.mubr.f32.gmra.mrb[0].mxu0 %v5220
    %v5293 = vpop.f32.mrb[0].mxu0
    %v5294 = vadd.f32 0.0, %v5293
    %v5295 = vpop.f32.mrb[0].mxu0
    %5296 = vdwg.mxu0
    %v5299 = vcombine.high %v5289, %v5289
    %v5301 = vunpack.c.l.s4 1966171168
    %v5302 = vunpack.c.0.s8 %v5301
    %v5303 = vlaneseq
    %v5304 = vshrl.u32 %v5303, 7
    %v5305 = vsub.s32 %v5302, %v5304
    %v5306 = vrot.slane %v5289, %v5305
    %v5308 = vunpack.c.l.s4 1966171168
    %v5309 = vunpack.c.0.s8 %v5308
    %v5310 = vlaneseq
    %v5311 = vshrl.u32 %v5310, 7
    %v5312 = vsub.s32 %v5309, %v5311
    %v5313 = vrot.slane %v5299, %v5312
    %v5314 = vcombine.high %v5306, %v5306
    %v5315 = vcombine.high %v5313, %v5313
    %v5317 = vunpack.c.l.s4 1966171168
    %v5318 = vunpack.c.0.s8 %v5317
    %v5319 = vlaneseq
    %v5320 = vshrl.u32 %v5319, 7
    %v5321 = vsub.s32 %v5318, %v5320
    %v5322 = vrot.slane %v5306, %v5321
    %v5324 = vunpack.c.l.s4 1966171168
    %v5325 = vunpack.c.0.s8 %v5324
    %v5326 = vlaneseq
    %v5327 = vshrl.u32 %v5326, 7
    %v5328 = vsub.s32 %v5325, %v5327
    %v5329 = vrot.slane %v5313, %v5328
    %v5331 = vunpack.c.l.s4 1966171168
    %v5332 = vunpack.c.0.s8 %v5331
    %v5333 = vlaneseq
    %v5334 = vshrl.u32 %v5333, 7
    %v5335 = vsub.s32 %v5332, %v5334
    %v5336 = vrot.slane %v5314, %v5335
    %v5338 = vunpack.c.l.s4 1966171168
    %v5339 = vunpack.c.0.s8 %v5338
    %v5340 = vlaneseq
    %v5341 = vshrl.u32 %v5340, 7
    %v5342 = vsub.s32 %v5339, %v5341
    %v5343 = vrot.slane %v5315, %v5342
    %v5344 = vcombine.high %v5322, %v5322
    %v5345 = vcombine.high %v5329, %v5329
    %v5346 = vcombine.high %v5336, %v5336
    %v5347 = vcombine.high %v5343, %v5343
    %v5348 = vcombine.high %v5294, %v5294
    %v5350 = vunpack.c.l.s4 1966171168
    %v5351 = vunpack.c.0.s8 %v5350
    %v5352 = vlaneseq
    %v5353 = vshrl.u32 %v5352, 7
    %v5354 = vsub.s32 %v5351, %v5353
    %v5355 = vrot.slane %v5294, %v5354
    %v5357 = vunpack.c.l.s4 1966171168
    %v5358 = vunpack.c.0.s8 %v5357
    %v5359 = vlaneseq
    %v5360 = vshrl.u32 %v5359, 7
    %v5361 = vsub.s32 %v5358, %v5360
    %v5362 = vrot.slane %v5348, %v5361
    %v5363 = vcombine.high %v5355, %v5355
    %v5364 = vcombine.high %v5362, %v5362
    %v5366 = vunpack.c.l.s4 1966171168
    %v5367 = vunpack.c.0.s8 %v5366
    %v5368 = vlaneseq
    %v5369 = vshrl.u32 %v5368, 7
    %v5370 = vsub.s32 %v5367, %v5369
    %v5371 = vrot.slane %v5355, %v5370
    %v5373 = vunpack.c.l.s4 1966171168
    %v5374 = vunpack.c.0.s8 %v5373
    %v5375 = vlaneseq
    %v5376 = vshrl.u32 %v5375, 7
    %v5377 = vsub.s32 %v5374, %v5376
    %v5378 = vrot.slane %v5362, %v5377
    %v5380 = vunpack.c.l.s4 1966171168
    %v5381 = vunpack.c.0.s8 %v5380
    %v5382 = vlaneseq
    %v5383 = vshrl.u32 %v5382, 7
    %v5384 = vsub.s32 %v5381, %v5383
    %v5385 = vrot.slane %v5363, %v5384
    %v5387 = vunpack.c.l.s4 1966171168
    %v5388 = vunpack.c.0.s8 %v5387
    %v5389 = vlaneseq
    %v5390 = vshrl.u32 %v5389, 7
    %v5391 = vsub.s32 %v5388, %v5390
    %v5392 = vrot.slane %v5364, %v5391
    %v5393 = vcombine.high %v5371, %v5371
    %v5394 = vcombine.high %v5378, %v5378
    %v5395 = vcombine.high %v5385, %v5385
    %v5396 = vcombine.high %v5392, %v5392
    %v5397 = vlaneseq
    %v5398 = vshrl.u32 %v5397, 7
    %v5399 = vsub.s32 0, %v5398
    %v5400 = vrot.slane %v5322, %v5399
    %v5401 = vlaneseq
    %v5402 = vshrl.u32 %v5401, 7
    %v5403 = vsub.s32 0, %v5402
    %v5404 = vrot.slane %v5336, %v5403
    %v5405 = vlaneseq
    %v5406 = vshrl.u32 %v5405, 7
    %v5407 = vsub.s32 0, %v5406
    %v5408 = vrot.slane %v5344, %v5407
    %v5409 = vlaneseq
    %v5410 = vshrl.u32 %v5409, 7
    %v5411 = vsub.s32 0, %v5410
    %v5412 = vrot.slane %v5346, %v5411
    %v5413 = vlaneseq
    %v5414 = vshrl.u32 %v5413, 7
    %v5415 = vsub.s32 0, %v5414
    %v5416 = vrot.slane %v5329, %v5415
    %v5417 = vlaneseq
    %v5418 = vshrl.u32 %v5417, 7
    %v5419 = vsub.s32 0, %v5418
    %v5420 = vrot.slane %v5343, %v5419
    %v5421 = vlaneseq
    %v5422 = vshrl.u32 %v5421, 7
    %v5423 = vsub.s32 0, %v5422
    %v5424 = vrot.slane %v5345, %v5423
    %v5425 = vlaneseq
    %v5426 = vshrl.u32 %v5425, 7
    %v5427 = vsub.s32 0, %v5426
    %v5428 = vrot.slane %v5347, %v5427
    %v5429 = vlaneseq
    %v5430 = vshrl.u32 %v5429, 7
    %v5431 = vsub.s32 0, %v5430
    %v5432 = vrot.slane %v5371, %v5431
    %v5433 = vlaneseq
    %v5434 = vshrl.u32 %v5433, 7
    %v5435 = vsub.s32 0, %v5434
    %v5436 = vrot.slane %v5385, %v5435
    %v5437 = vlaneseq
    %v5438 = vshrl.u32 %v5437, 7
    %v5439 = vsub.s32 0, %v5438
    %v5440 = vrot.slane %v5393, %v5439
    %v5441 = vlaneseq
    %v5442 = vshrl.u32 %v5441, 7
    %v5443 = vsub.s32 0, %v5442
    %v5444 = vrot.slane %v5395, %v5443
    %v5445 = vlaneseq
    %v5446 = vshrl.u32 %v5445, 7
    %v5447 = vsub.s32 0, %v5446
    %v5448 = vrot.slane %v5378, %v5447
    %v5449 = vlaneseq
    %v5450 = vshrl.u32 %v5449, 7
    %v5451 = vsub.s32 0, %v5450
    %v5452 = vrot.slane %v5392, %v5451
    %v5453 = vlaneseq
    %v5454 = vshrl.u32 %v5453, 7
    %v5455 = vsub.s32 0, %v5454
    %v5456 = vrot.slane %v5394, %v5455
    %v5457 = vlaneseq
    %v5458 = vshrl.u32 %v5457, 7
    %v5459 = vsub.s32 0, %v5458
    %v5460 = vrot.slane %v5396, %v5459
    %5477 = vrot.lane.b32.xlu0 %v5289, 96
    %v5478 = vpop.permute.xlu0 %5477
    %5479 = vrot.lane.b32.xlu0 %v5294, 96
    %v5480 = vpop.permute.xlu0 %5479
    %v5483 = vadd.f32 %v5400, %v5478
    %v5484 = vadd.f32 %v5404, %v5478
    %v5485 = vadd.f32 %v5408, %v5478
    %v5486 = vadd.f32 %v5412, %v5478
    %v5487 = vadd.f32 %v5416, %v5478
    %v5488 = vadd.f32 %v5420, %v5478
    %v5489 = vadd.f32 %v5424, %v5478
    %v5490 = vadd.f32 %v5428, %v5478
    %v5491 = vadd.f32 %v5432, %v5480
    %v5492 = vadd.f32 %v5436, %v5480
    %v5493 = vadd.f32 %v5440, %v5480
    %v5494 = vadd.f32 %v5444, %v5480
    %v5495 = vadd.f32 %v5448, %v5480
    %v5496 = vadd.f32 %v5452, %v5480
    %v5497 = vadd.f32 %v5456, %v5480
    %v5498 = vadd.f32 %v5460, %v5480
    %v5499 = vlaneseq
    %v5500 = vshrl.u32 %v5499, 7
    %v5501 = vsub.s32 0, %v5500
    %v5502 = vrot.slane %v4783, %v5501
    %v5503 = vmul.f32 %v5005, %v5502
    %v5504 = vmul.f32 %v5008, %v5502
    %v5505 = vmul.f32 %v5011, %v5502
    %v5506 = vmul.f32 %v5014, %v5502
    %v5507 = vmul.f32 %v5017, %v5502
    %v5508 = vmul.f32 %v5020, %v5502
    %v5509 = vmul.f32 %v5023, %v5502
    %v5510 = vmul.f32 %v5026, %v5502
    %v5511 = vmul.f32 %v5029, %v5502
    %v5512 = vmul.f32 %v5032, %v5502
    %v5513 = vmul.f32 %v5035, %v5502
    %v5514 = vmul.f32 %v5038, %v5502
    %v5515 = vmul.f32 %v5041, %v5502
    %v5516 = vmul.f32 %v5044, %v5502
    %v5517 = vmul.f32 %v5047, %v5502
    %v5518 = vmul.f32 %v5050, %v5502
    %v5519 = vadd.f32 %v5483, %v5503
    %v5520 = vadd.f32 %v5484, %v5504
    %v5521 = vadd.f32 %v5485, %v5505
    %v5522 = vadd.f32 %v5486, %v5506
    %v5523 = vadd.f32 %v5487, %v5507
    %v5524 = vadd.f32 %v5488, %v5508
    %v5525 = vadd.f32 %v5489, %v5509
    %v5526 = vadd.f32 %v5490, %v5510
    %v5527 = vadd.f32 %v5491, %v5511
    %v5528 = vadd.f32 %v5492, %v5512
    %v5529 = vadd.f32 %v5493, %v5513
    %v5530 = vadd.f32 %v5494, %v5514
    %v5531 = vadd.f32 %v5495, %v5515
    %v5532 = vadd.f32 %v5496, %v5516
    %v5533 = vadd.f32 %v5497, %v5517
    %v5534 = vadd.f32 %v5498, %v5518
    %v5535 = vlaneseq
    %v5536 = vshrl.u32 %v5535, 7
    %v5537 = vsub.s32 0, %v5536
    %v5538 = vrot.slane %v4784, %v5537
    %v5539 = vmul.f32 %v385, %v5538
    %v5540 = vmul.f32 %v388, %v5538
    %v5541 = vmul.f32 %v391, %v5538
    %v5542 = vmul.f32 %v394, %v5538
    %v5543 = vmul.f32 %v397, %v5538
    %v5544 = vmul.f32 %v400, %v5538
    %v5545 = vmul.f32 %v403, %v5538
    %v5546 = vmul.f32 %v406, %v5538
    %v5547 = vmul.f32 %v409, %v5538
    %v5548 = vmul.f32 %v412, %v5538
    %v5549 = vmul.f32 %v415, %v5538
    %v5550 = vmul.f32 %v418, %v5538
    %v5551 = vmul.f32 %v421, %v5538
    %v5552 = vmul.f32 %v424, %v5538
    %v5553 = vmul.f32 %v427, %v5538
    %v5554 = vmul.f32 %v430, %v5538
    %v5555 = vadd.f32 %v5519, %v5539
    %v5556 = vadd.f32 %v5520, %v5540
    %v5557 = vadd.f32 %v5521, %v5541
    %v5558 = vadd.f32 %v5522, %v5542
    %v5559 = vadd.f32 %v5523, %v5543
    %v5560 = vadd.f32 %v5524, %v5544
    %v5561 = vadd.f32 %v5525, %v5545
    %v5562 = vadd.f32 %v5526, %v5546
    %v5563 = vadd.f32 %v5527, %v5547
    %v5564 = vadd.f32 %v5528, %v5548
    %v5565 = vadd.f32 %v5529, %v5549
    %v5566 = vadd.f32 %v5530, %v5550
    %v5567 = vadd.f32 %v5531, %v5551
    %v5568 = vadd.f32 %v5532, %v5552
    %v5569 = vadd.f32 %v5533, %v5553
    %v5570 = vadd.f32 %v5534, %v5554
    %v5571 = vlaneseq
    %v5572 = vshrl.u32 %v5571, 7
    %v5573 = vsub.s32 0, %v5572
    %v5574 = vrot.slane %v4786, %v5573
    %v5575 = vadd.f32 %v5555, %v5574
    %v5576 = vadd.f32 %v5556, %v5574
    %v5577 = vadd.f32 %v5557, %v5574
    %v5578 = vadd.f32 %v5558, %v5574
    %v5579 = vadd.f32 %v5559, %v5574
    %v5580 = vadd.f32 %v5560, %v5574
    %v5581 = vadd.f32 %v5561, %v5574
    %v5582 = vadd.f32 %v5562, %v5574
    %v5583 = vadd.f32 %v5563, %v5574
    %v5584 = vadd.f32 %v5564, %v5574
    %v5585 = vadd.f32 %v5565, %v5574
    %v5586 = vadd.f32 %v5566, %v5574
    %v5587 = vadd.f32 %v5567, %v5574
    %v5588 = vadd.f32 %v5568, %v5574
    %v5589 = vadd.f32 %v5569, %v5574
    %v5590 = vadd.f32 %v5570, %v5574
    %v5591 = vxor.u32 %v5575, 2147483648
    %v5592 = vxor.u32 %v5576, 2147483648
    %v5593 = vxor.u32 %v5577, 2147483648
    %v5594 = vxor.u32 %v5578, 2147483648
    %v5595 = vxor.u32 %v5579, 2147483648
    %v5596 = vxor.u32 %v5580, 2147483648
    %v5597 = vxor.u32 %v5581, 2147483648
    %v5598 = vxor.u32 %v5582, 2147483648
    %v5599 = vxor.u32 %v5583, 2147483648
    %v5600 = vxor.u32 %v5584, 2147483648
    %v5601 = vxor.u32 %v5585, 2147483648
    %v5602 = vxor.u32 %v5586, 2147483648
    %v5603 = vxor.u32 %v5587, 2147483648
    %v5604 = vxor.u32 %v5588, 2147483648
    %v5605 = vxor.u32 %v5589, 2147483648
    %v5606 = vxor.u32 %v5590, 2147483648
    %v5607 = vmul.f32 %v5591, 1.442695
    %v5608 = vpow.pop %v5607
    %v5609 = vmul.f32 %v5592, 1.442695
    %v5610 = vpow.pop %v5609
    %v5611 = vmul.f32 %v5593, 1.442695
    %v5612 = vpow.pop %v5611
    %v5613 = vmul.f32 %v5594, 1.442695
    %v5614 = vpow.pop %v5613
    %v5615 = vmul.f32 %v5595, 1.442695
    %v5616 = vpow.pop %v5615
    %v5617 = vmul.f32 %v5596, 1.442695
    %v5618 = vpow.pop %v5617
    %v5619 = vmul.f32 %v5597, 1.442695
    %v5620 = vpow.pop %v5619
    %v5621 = vmul.f32 %v5598, 1.442695
    %v5622 = vpow.pop %v5621
    %v5623 = vmul.f32 %v5599, 1.442695
    %v5624 = vpow.pop %v5623
    %v5625 = vmul.f32 %v5600, 1.442695
    %v5626 = vpow.pop %v5625
    %v5627 = vmul.f32 %v5601, 1.442695
    %v5628 = vpow.pop %v5627
    %v5629 = vmul.f32 %v5602, 1.442695
    %v5630 = vpow.pop %v5629
    %v5631 = vmul.f32 %v5603, 1.442695
    %v5632 = vpow.pop %v5631
    %v5633 = vmul.f32 %v5604, 1.442695
    %v5634 = vpow.pop %v5633
    %v5635 = vmul.f32 %v5605, 1.442695
    %v5636 = vpow.pop %v5635
    %v5637 = vmul.f32 %v5606, 1.442695
    %v5638 = vpow.pop %v5637
    %v5639 = vadd.f32 %v5608, 1.0
    %v5640 = vadd.f32 %v5610, 1.0
    %v5641 = vadd.f32 %v5612, 1.0
    %v5642 = vadd.f32 %v5614, 1.0
    %v5643 = vadd.f32 %v5616, 1.0
    %v5644 = vadd.f32 %v5618, 1.0
    %v5645 = vadd.f32 %v5620, 1.0
    %v5646 = vadd.f32 %v5622, 1.0
    %v5647 = vadd.f32 %v5624, 1.0
    %v5648 = vadd.f32 %v5626, 1.0
    %v5649 = vadd.f32 %v5628, 1.0
    %v5650 = vadd.f32 %v5630, 1.0
    %v5651 = vadd.f32 %v5632, 1.0
    %v5652 = vadd.f32 %v5634, 1.0
    %v5653 = vadd.f32 %v5636, 1.0
    %v5654 = vadd.f32 %v5638, 1.0
    %v5655 = vrcp.pop %v5639
    %v5656 = vmul.f32 1.0, %v5655
    %v5657 = vrcp.pop %v5640
    %v5658 = vmul.f32 1.0, %v5657
    %v5659 = vrcp.pop %v5641
    %v5660 = vmul.f32 1.0, %v5659
    %v5661 = vrcp.pop %v5642
    %v5662 = vmul.f32 1.0, %v5661
    %v5663 = vrcp.pop %v5643
    %v5664 = vmul.f32 1.0, %v5663
    %v5665 = vrcp.pop %v5644
    %v5666 = vmul.f32 1.0, %v5665
    %v5667 = vrcp.pop %v5645
    %v5668 = vmul.f32 1.0, %v5667
    %v5669 = vrcp.pop %v5646
    %v5670 = vmul.f32 1.0, %v5669
    %v5671 = vrcp.pop %v5647
    %v5672 = vmul.f32 1.0, %v5671
    %v5673 = vrcp.pop %v5648
    %v5674 = vmul.f32 1.0, %v5673
    %v5675 = vrcp.pop %v5649
    %v5676 = vmul.f32 1.0, %v5675
    %v5677 = vrcp.pop %v5650
    %v5678 = vmul.f32 1.0, %v5677
    %v5679 = vrcp.pop %v5651
    %v5680 = vmul.f32 1.0, %v5679
    %v5681 = vrcp.pop %v5652
    %v5682 = vmul.f32 1.0, %v5681
    %v5683 = vrcp.pop %v5653
    %v5684 = vmul.f32 1.0, %v5683
    %v5685 = vrcp.pop %v5654
    %v5686 = vmul.f32 1.0, %v5685
    %v5687 = vmul.f32 %v5575, %v5656
    %v5688 = vmul.f32 %v5576, %v5658
    %v5689 = vmul.f32 %v5577, %v5660
    %v5690 = vmul.f32 %v5578, %v5662
    %v5691 = vmul.f32 %v5579, %v5664
    %v5692 = vmul.f32 %v5580, %v5666
    %v5693 = vmul.f32 %v5581, %v5668
    %v5694 = vmul.f32 %v5582, %v5670
    %v5695 = vmul.f32 %v5583, %v5672
    %v5696 = vmul.f32 %v5584, %v5674
    %v5697 = vmul.f32 %v5585, %v5676
    %v5698 = vmul.f32 %v5586, %v5678
    %v5699 = vmul.f32 %v5587, %v5680
    %v5700 = vmul.f32 %v5588, %v5682
    %v5701 = vmul.f32 %v5589, %v5684
    %v5702 = vmul.f32 %v5590, %v5686
    %v5703 = vlaneseq
    %v5704 = vshrl.u32 %v5703, 7
    %v5705 = vsub.s32 0, %v5704
    %v5706 = vrot.slane %v4787, %v5705
    %v5708 = vsel %vm622, %v5687, 0
    %v5711 = vsel %vm622, %v5688, 0
    %v5714 = vsel %vm622, %v5689, 0
    %v5717 = vsel %vm622, %v5690, 0
    %v5720 = vsel %vm622, %v5691, 0
    %v5723 = vsel %vm622, %v5692, 0
    %v5726 = vsel %vm622, %v5693, 0
    %v5729 = vsel %vm622, %v5694, 0
    %v5732 = vsel %vm622, %v5695, 0
    %v5735 = vsel %vm622, %v5696, 0
    %v5738 = vsel %vm622, %v5697, 0
    %v5741 = vsel %vm622, %v5698, 0
    %v5744 = vsel %vm622, %v5699, 0
    %v5747 = vsel %vm622, %v5700, 0
    %v5750 = vsel %vm622, %v5701, 0
    %v5753 = vsel %vm622, %v5702, 0
    %5755 = vmatprep.subr.mxu0 0.0
    %5756 = vmatpush1.msra.mxu0 %v4763
    %5757 = vmatprep.subr.mxu0 0.0
    %5758 = vmatpush1.msra.mxu0 %v4764
    %5759 = vmatprep.subr.mxu0 0.0
    %5760 = vmatpush1.msra.mxu0 %v4765
    %5761 = vmatprep.subr.mxu0 0.0
    %5762 = vmatpush1.msra.mxu0 %v4766
    %5763 = vmatprep.subr.mxu0 0.0
    %5764 = vmatpush1.msra.mxu0 0.0
    %5765 = vmatprep.subr.mxu0 0.0
    %5766 = vmatpush1.msra.mxu0 0.0
    %5767 = vmatprep.subr.mxu0 0.0
    %5768 = vmatpush1.msra.mxu0 0.0
    %5769 = vmatprep.subr.mxu0 0.0
    %5770 = vmatpush1.msra.mxu0 0.0
    %5771 = vmatprep.subr.mxu0 0.0
    %5772 = vmatpush1.msra.mxu0 0.0
    %5773 = vmatprep.subr.mxu0 0.0
    %5774 = vmatpush1.msra.mxu0 0.0
    %5775 = vmatprep.subr.mxu0 0.0
    %5776 = vmatpush1.msra.mxu0 0.0
    %5777 = vmatprep.subr.mxu0 0.0
    %5778 = vmatpush1.msra.mxu0 0.0
    %5779 = vmatprep.subr.mxu0 0.0
    %5780 = vmatpush1.msra.mxu0 0.0
    %5781 = vmatprep.subr.mxu0 0.0
    %5782 = vmatpush1.msra.mxu0 0.0
    %5783 = vmatprep.subr.mxu0 0.0
    %5784 = vmatpush1.msra.mxu0 0.0
    %5785 = vmatprep.subr.mxu0 0.0
    %5786 = vmatpush1.msra.mxu0 0.0
    %5787 = vmatprep.subr.mxu0 0.0
    %5788 = vmatpush1.msra.mxu0 0.0
    %5789 = vmatprep.subr.mxu0 0.0
    %5790 = vmatpush1.msra.mxu0 0.0
    %5791 = vmatprep.subr.mxu0 0.0
    %5792 = vmatpush1.msra.mxu0 0.0
    %5793 = vmatprep.subr.mxu0 0.0
    %5794 = vmatpush1.msra.mxu0 0.0
    %5795 = vmatprep.subr.mxu0 0.0
    %5796 = vmatpush1.msra.mxu0 0.0
    %5797 = vmatprep.subr.mxu0 0.0
    %5798 = vmatpush1.msra.mxu0 0.0
    %5799 = vmatprep.subr.mxu0 0.0
    %5800 = vmatpush1.msra.mxu0 0.0
    %5801 = vmatprep.subr.mxu0 0.0
    %5802 = vmatpush1.msra.mxu0 0.0
    %5803 = vmatprep.subr.mxu0 0.0
    %5804 = vmatpush1.msra.mxu0 0.0
    %5805 = vmatprep.subr.mxu0 0.0
    %5806 = vmatpush1.msra.mxu0 0.0
    %5807 = vmatprep.subr.mxu0 0.0
    %5808 = vmatpush1.msra.mxu0 0.0
    %5809 = vmatprep.subr.mxu0 0.0
    %5810 = vmatpush1.msra.mxu0 0.0
    %5811 = vmatprep.subr.mxu0 0.0
    %5812 = vmatpush1.msra.mxu0 0.0
    %5813 = vmatprep.subr.mxu0 0.0
    %5814 = vmatpush1.msra.mxu0 0.0
    %5815 = vmatprep.subr.mxu0 0.0
    %5816 = vmatpush1.msra.mxu0 0.0
    %5817 = vmatprep.subr.mxu0 0.0
    %5818 = vmatpush1.msra.mxu0 0.0
    %5819 = vmatprep.mubr.f32.mxu0 0.0
    %5820 = vmatmul.mubr.f32.gmra.mrb[0].mxu0 %v5708
    %v5821 = vpop.f32.mrb[0].mxu0
    %v5822 = vadd.f32 %v5706, %v5821
    %v5823 = vpop.f32.mrb[0].mxu0
    %5824 = vmatprep.mubr.f32.mxu0 0.0
    %5825 = vmatmul.mubr.f32.gmra.mrb[0].mxu0 %v5711
    %v5826 = vpop.f32.mrb[0].mxu0
    %v5827 = vadd.f32 %v5706, %v5826
    %v5828 = vpop.f32.mrb[0].mxu0
    %5829 = vmatprep.mubr.f32.mxu0 0.0
    %5830 = vmatmul.mubr.f32.gmra.mrb[0].mxu0 %v5714
    %v5831 = vpop.f32.mrb[0].mxu0
    %v5832 = vadd.f32 %v5706, %v5831
    %v5833 = vpop.f32.mrb[0].mxu0
    %5834 = vmatprep.mubr.f32.mxu0 0.0
    %5835 = vmatmul.mubr.f32.gmra.mrb[0].mxu0 %v5717
    %v5836 = vpop.f32.mrb[0].mxu0
    %v5837 = vadd.f32 %v5706, %v5836
    %v5838 = vpop.f32.mrb[0].mxu0
    %5839 = vmatprep.mubr.f32.mxu0 0.0
    %5840 = vmatmul.mubr.f32.gmra.mrb[0].mxu0 %v5720
    %v5841 = vpop.f32.mrb[0].mxu0
    %v5842 = vadd.f32 %v5706, %v5841
    %v5843 = vpop.f32.mrb[0].mxu0
    %5844 = vmatprep.mubr.f32.mxu0 0.0
    %5845 = vmatmul.mubr.f32.gmra.mrb[0].mxu0 %v5723
    %v5846 = vpop.f32.mrb[0].mxu0
    %v5847 = vadd.f32 %v5706, %v5846
    %v5848 = vpop.f32.mrb[0].mxu0
    %5849 = vmatprep.mubr.f32.mxu0 0.0
    %5850 = vmatmul.mubr.f32.gmra.mrb[0].mxu0 %v5726
    %v5851 = vpop.f32.mrb[0].mxu0
    %v5852 = vadd.f32 %v5706, %v5851
    %v5853 = vpop.f32.mrb[0].mxu0
    %5854 = vmatprep.mubr.f32.mxu0 0.0
    %5855 = vmatmul.mubr.f32.gmra.mrb[0].mxu0 %v5729
    %v5856 = vpop.f32.mrb[0].mxu0
    %v5857 = vadd.f32 %v5706, %v5856
    %v5858 = vpop.f32.mrb[0].mxu0
    %5859 = vmatprep.mubr.f32.mxu0 0.0
    %5860 = vmatmul.mubr.f32.gmra.mrb[0].mxu0 %v5732
    %v5861 = vpop.f32.mrb[0].mxu0
    %v5862 = vadd.f32 %v5706, %v5861
    %v5863 = vpop.f32.mrb[0].mxu0
    %5864 = vmatprep.mubr.f32.mxu0 0.0
    %5865 = vmatmul.mubr.f32.gmra.mrb[0].mxu0 %v5735
    %v5866 = vpop.f32.mrb[0].mxu0
    %v5867 = vadd.f32 %v5706, %v5866
    %v5868 = vpop.f32.mrb[0].mxu0
    %5869 = vmatprep.mubr.f32.mxu0 0.0
    %5870 = vmatmul.mubr.f32.gmra.mrb[0].mxu0 %v5738
    %v5871 = vpop.f32.mrb[0].mxu0
    %v5872 = vadd.f32 %v5706, %v5871
    %v5873 = vpop.f32.mrb[0].mxu0
    %5874 = vmatprep.mubr.f32.mxu0 0.0
    %5875 = vmatmul.mubr.f32.gmra.mrb[0].mxu0 %v5741
    %v5876 = vpop.f32.mrb[0].mxu0
    %v5877 = vadd.f32 %v5706, %v5876
    %v5878 = vpop.f32.mrb[0].mxu0
    %5879 = vmatprep.mubr.f32.mxu0 0.0
    %5880 = vmatmul.mubr.f32.gmra.mrb[0].mxu0 %v5744
    %v5881 = vpop.f32.mrb[0].mxu0
    %v5882 = vadd.f32 %v5706, %v5881
    %v5883 = vpop.f32.mrb[0].mxu0
    %5884 = vmatprep.mubr.f32.mxu0 0.0
    %5885 = vmatmul.mubr.f32.gmra.mrb[0].mxu0 %v5747
    %v5886 = vpop.f32.mrb[0].mxu0
    %v5887 = vadd.f32 %v5706, %v5886
    %v5888 = vpop.f32.mrb[0].mxu0
    %5889 = vmatprep.mubr.f32.mxu0 0.0
    %5890 = vmatmul.mubr.f32.gmra.mrb[0].mxu0 %v5750
    %v5891 = vpop.f32.mrb[0].mxu0
    %v5892 = vadd.f32 %v5706, %v5891
    %v5893 = vpop.f32.mrb[0].mxu0
    %5894 = vmatprep.mubr.f32.mxu0 0.0
    %5895 = vmatmul.mubr.f32.gmra.mrb[0].mxu0 %v5753
    %v5896 = vpop.f32.mrb[0].mxu0
    %v5897 = vadd.f32 %v5706, %v5896
    %v5898 = vpop.f32.mrb[0].mxu0
    %5899 = vdwg.mxu0
    %v5900 = vxor.u32 %v5822, 2147483648
    %v5901 = vxor.u32 %v5827, 2147483648
    %v5902 = vxor.u32 %v5832, 2147483648
    %v5903 = vxor.u32 %v5837, 2147483648
    %v5904 = vxor.u32 %v5842, 2147483648
    %v5905 = vxor.u32 %v5847, 2147483648
    %v5906 = vxor.u32 %v5852, 2147483648
    %v5907 = vxor.u32 %v5857, 2147483648
    %v5908 = vxor.u32 %v5862, 2147483648
    %v5909 = vxor.u32 %v5867, 2147483648
    %v5910 = vxor.u32 %v5872, 2147483648
    %v5911 = vxor.u32 %v5877, 2147483648
    %v5912 = vxor.u32 %v5882, 2147483648
    %v5913 = vxor.u32 %v5887, 2147483648
    %v5914 = vxor.u32 %v5892, 2147483648
    %v5915 = vxor.u32 %v5897, 2147483648
    %v5916 = vmul.f32 %v5900, 1.442695
    %v5917 = vpow.pop %v5916
    %v5918 = vmul.f32 %v5901, 1.442695
    %v5919 = vpow.pop %v5918
    %v5920 = vmul.f32 %v5902, 1.442695
    %v5921 = vpow.pop %v5920
    %v5922 = vmul.f32 %v5903, 1.442695
    %v5923 = vpow.pop %v5922
    %v5924 = vmul.f32 %v5904, 1.442695
    %v5925 = vpow.pop %v5924
    %v5926 = vmul.f32 %v5905, 1.442695
    %v5927 = vpow.pop %v5926
    %v5928 = vmul.f32 %v5906, 1.442695
    %v5929 = vpow.pop %v5928
    %v5930 = vmul.f32 %v5907, 1.442695
    %v5931 = vpow.pop %v5930
    %v5932 = vmul.f32 %v5908, 1.442695
    %v5933 = vpow.pop %v5932
    %v5934 = vmul.f32 %v5909, 1.442695
    %v5935 = vpow.pop %v5934
    %v5936 = vmul.f32 %v5910, 1.442695
    %v5937 = vpow.pop %v5936
    %v5938 = vmul.f32 %v5911, 1.442695
    %v5939 = vpow.pop %v5938
    %v5940 = vmul.f32 %v5912, 1.442695
    %v5941 = vpow.pop %v5940
    %v5942 = vmul.f32 %v5913, 1.442695
    %v5943 = vpow.pop %v5942
    %v5944 = vmul.f32 %v5914, 1.442695
    %v5945 = vpow.pop %v5944
    %v5946 = vmul.f32 %v5915, 1.442695
    %v5947 = vpow.pop %v5946
    %v5948 = vadd.f32 %v5917, 1.0
    %v5949 = vadd.f32 %v5919, 1.0
    %v5950 = vadd.f32 %v5921, 1.0
    %v5951 = vadd.f32 %v5923, 1.0
    %v5952 = vadd.f32 %v5925, 1.0
    %v5953 = vadd.f32 %v5927, 1.0
    %v5954 = vadd.f32 %v5929, 1.0
    %v5955 = vadd.f32 %v5931, 1.0
    %v5956 = vadd.f32 %v5933, 1.0
    %v5957 = vadd.f32 %v5935, 1.0
    %v5958 = vadd.f32 %v5937, 1.0
    %v5959 = vadd.f32 %v5939, 1.0
    %v5960 = vadd.f32 %v5941, 1.0
    %v5961 = vadd.f32 %v5943, 1.0
    %v5962 = vadd.f32 %v5945, 1.0
    %v5963 = vadd.f32 %v5947, 1.0
    %v5964 = vrcp.pop %v5948
    %v5965 = vmul.f32 1.0, %v5964
    %v5966 = vrcp.pop %v5949
    %v5967 = vmul.f32 1.0, %v5966
    %v5968 = vrcp.pop %v5950
    %v5969 = vmul.f32 1.0, %v5968
    %v5970 = vrcp.pop %v5951
    %v5971 = vmul.f32 1.0, %v5970
    %v5972 = vrcp.pop %v5952
    %v5973 = vmul.f32 1.0, %v5972
    %v5974 = vrcp.pop %v5953
    %v5975 = vmul.f32 1.0, %v5974
    %v5976 = vrcp.pop %v5954
    %v5977 = vmul.f32 1.0, %v5976
    %v5978 = vrcp.pop %v5955
    %v5979 = vmul.f32 1.0, %v5978
    %v5980 = vrcp.pop %v5956
    %v5981 = vmul.f32 1.0, %v5980
    %v5982 = vrcp.pop %v5957
    %v5983 = vmul.f32 1.0, %v5982
    %v5984 = vrcp.pop %v5958
    %v5985 = vmul.f32 1.0, %v5984
    %v5986 = vrcp.pop %v5959
    %v5987 = vmul.f32 1.0, %v5986
    %v5988 = vrcp.pop %v5960
    %v5989 = vmul.f32 1.0, %v5988
    %v5990 = vrcp.pop %v5961
    %v5991 = vmul.f32 1.0, %v5990
    %v5992 = vrcp.pop %v5962
    %v5993 = vmul.f32 1.0, %v5992
    %v5994 = vrcp.pop %v5963
    %v5995 = vmul.f32 1.0, %v5994
    %v5996 = vmul.f32 %v5822, %v5965
    %v5997 = vmul.f32 %v5827, %v5967
    %v5998 = vmul.f32 %v5832, %v5969
    %v5999 = vmul.f32 %v5837, %v5971
    %v6000 = vmul.f32 %v5842, %v5973
    %v6001 = vmul.f32 %v5847, %v5975
    %v6002 = vmul.f32 %v5852, %v5977
    %v6003 = vmul.f32 %v5857, %v5979
    %v6004 = vmul.f32 %v5862, %v5981
    %v6005 = vmul.f32 %v5867, %v5983
    %v6006 = vmul.f32 %v5872, %v5985
    %v6007 = vmul.f32 %v5877, %v5987
    %v6008 = vmul.f32 %v5882, %v5989
    %v6009 = vmul.f32 %v5887, %v5991
    %v6010 = vmul.f32 %v5892, %v5993
    %v6011 = vmul.f32 %v5897, %v5995
    %v6012 = vmul.f32 %v5996, %v1422
    %v6013 = vmul.f32 %v5997, %v1427
    %v6014 = vmul.f32 %v5998, %v1432
    %v6015 = vmul.f32 %v5999, %v1437
    %v6016 = vmul.f32 %v6000, %v1442
    %v6017 = vmul.f32 %v6001, %v1447
    %v6018 = vmul.f32 %v6002, %v1452
    %v6019 = vmul.f32 %v6003, %v1457
    %v6020 = vmul.f32 %v6004, %v1462
    %v6021 = vmul.f32 %v6005, %v1467
    %v6022 = vmul.f32 %v6006, %v1472
    %v6023 = vmul.f32 %v6007, %v1477
    %v6024 = vmul.f32 %v6008, %v1482
    %v6025 = vmul.f32 %v6009, %v1487
    %v6026 = vmul.f32 %v6010, %v1492
    %v6027 = vmul.f32 %v6011, %v1497
    %v6028 = vlaneseq
    %v6029 = vshrl.u32 %v6028, 7
    %v6030 = vsub.s32 0, %v6029
    %v6031 = vrot.slane %v4788, %v6030
    %v6033 = vsel %vm622, %v6012, 0
    %v6036 = vsel %vm622, %v6013, 0
    %v6039 = vsel %vm622, %v6014, 0
    %v6042 = vsel %vm622, %v6015, 0
    %v6045 = vsel %vm622, %v6016, 0
    %v6048 = vsel %vm622, %v6017, 0
    %v6051 = vsel %vm622, %v6018, 0
    %v6054 = vsel %vm622, %v6019, 0
    %v6057 = vsel %vm622, %v6020, 0
    %v6060 = vsel %vm622, %v6021, 0
    %v6063 = vsel %vm622, %v6022, 0
    %v6066 = vsel %vm622, %v6023, 0
    %v6069 = vsel %vm622, %v6024, 0
    %v6072 = vsel %vm622, %v6025, 0
    %v6075 = vsel %vm622, %v6026, 0
    %v6078 = vsel %vm622, %v6027, 0
    %6080 = vmatprep.subr.mxu0 0.0
    %6081 = vmatpush1.msra.mxu0 %v4768
    %6082 = vmatprep.subr.mxu0 0.0
    %6083 = vmatpush1.msra.mxu0 %v4769
    %6084 = vmatprep.subr.mxu0 0.0
    %6085 = vmatpush1.msra.mxu0 %v4770
    %6086 = vmatprep.subr.mxu0 0.0
    %6087 = vmatpush1.msra.mxu0 %v4771
    %6088 = vmatprep.subr.mxu0 0.0
    %6089 = vmatpush1.msra.mxu0 0.0
    %6090 = vmatprep.subr.mxu0 0.0
    %6091 = vmatpush1.msra.mxu0 0.0
    %6092 = vmatprep.subr.mxu0 0.0
    %6093 = vmatpush1.msra.mxu0 0.0
    %6094 = vmatprep.subr.mxu0 0.0
    %6095 = vmatpush1.msra.mxu0 0.0
    %6096 = vmatprep.subr.mxu0 0.0
    %6097 = vmatpush1.msra.mxu0 0.0
    %6098 = vmatprep.subr.mxu0 0.0
    %6099 = vmatpush1.msra.mxu0 0.0
    %6100 = vmatprep.subr.mxu0 0.0
    %6101 = vmatpush1.msra.mxu0 0.0
    %6102 = vmatprep.subr.mxu0 0.0
    %6103 = vmatpush1.msra.mxu0 0.0
    %6104 = vmatprep.subr.mxu0 0.0
    %6105 = vmatpush1.msra.mxu0 0.0
    %6106 = vmatprep.subr.mxu0 0.0
    %6107 = vmatpush1.msra.mxu0 0.0
    %6108 = vmatprep.subr.mxu0 0.0
    %6109 = vmatpush1.msra.mxu0 0.0
    %6110 = vmatprep.subr.mxu0 0.0
    %6111 = vmatpush1.msra.mxu0 0.0
    %6112 = vmatprep.subr.mxu0 0.0
    %6113 = vmatpush1.msra.mxu0 0.0
    %6114 = vmatprep.subr.mxu0 0.0
    %6115 = vmatpush1.msra.mxu0 0.0
    %6116 = vmatprep.subr.mxu0 0.0
    %6117 = vmatpush1.msra.mxu0 0.0
    %6118 = vmatprep.subr.mxu0 0.0
    %6119 = vmatpush1.msra.mxu0 0.0
    %6120 = vmatprep.subr.mxu0 0.0
    %6121 = vmatpush1.msra.mxu0 0.0
    %6122 = vmatprep.subr.mxu0 0.0
    %6123 = vmatpush1.msra.mxu0 0.0
    %6124 = vmatprep.subr.mxu0 0.0
    %6125 = vmatpush1.msra.mxu0 0.0
    %6126 = vmatprep.subr.mxu0 0.0
    %6127 = vmatpush1.msra.mxu0 0.0
    %6128 = vmatprep.subr.mxu0 0.0
    %6129 = vmatpush1.msra.mxu0 0.0
    %6130 = vmatprep.subr.mxu0 0.0
    %6131 = vmatpush1.msra.mxu0 0.0
    %6132 = vmatprep.subr.mxu0 0.0
    %6133 = vmatpush1.msra.mxu0 0.0
    %6134 = vmatprep.subr.mxu0 0.0
    %6135 = vmatpush1.msra.mxu0 0.0
    %6136 = vmatprep.subr.mxu0 0.0
    %6137 = vmatpush1.msra.mxu0 0.0
    %6138 = vmatprep.subr.mxu0 0.0
    %6139 = vmatpush1.msra.mxu0 0.0
    %6140 = vmatprep.subr.mxu0 0.0
    %6141 = vmatpush1.msra.mxu0 0.0
    %6142 = vmatprep.subr.mxu0 0.0
    %6143 = vmatpush1.msra.mxu0 0.0
    %6144 = vmatprep.mubr.f32.mxu0 0.0
    %6145 = vmatmul.mubr.f32.gmra.mrb[0].mxu0 %v6033
    %v6146 = vpop.f32.mrb[0].mxu0
    %v6147 = vadd.f32 %v6031, %v6146
    %v6148 = vpop.f32.mrb[0].mxu0
    %6149 = vmatprep.mubr.f32.mxu0 0.0
    %6150 = vmatmul.mubr.f32.gmra.mrb[0].mxu0 %v6036
    %v6151 = vpop.f32.mrb[0].mxu0
    %v6152 = vadd.f32 %v6031, %v6151
    %v6153 = vpop.f32.mrb[0].mxu0
    %6154 = vmatprep.mubr.f32.mxu0 0.0
    %6155 = vmatmul.mubr.f32.gmra.mrb[0].mxu0 %v6039
    %v6156 = vpop.f32.mrb[0].mxu0
    %v6157 = vadd.f32 %v6031, %v6156
    %v6158 = vpop.f32.mrb[0].mxu0
    %6159 = vmatprep.mubr.f32.mxu0 0.0
    %6160 = vmatmul.mubr.f32.gmra.mrb[0].mxu0 %v6042
    %v6161 = vpop.f32.mrb[0].mxu0
    %v6162 = vadd.f32 %v6031, %v6161
    %v6163 = vpop.f32.mrb[0].mxu0
    %6164 = vmatprep.mubr.f32.mxu0 0.0
    %6165 = vmatmul.mubr.f32.gmra.mrb[0].mxu0 %v6045
    %v6166 = vpop.f32.mrb[0].mxu0
    %v6167 = vadd.f32 %v6031, %v6166
    %v6168 = vpop.f32.mrb[0].mxu0
    %6169 = vmatprep.mubr.f32.mxu0 0.0
    %6170 = vmatmul.mubr.f32.gmra.mrb[0].mxu0 %v6048
    %v6171 = vpop.f32.mrb[0].mxu0
    %v6172 = vadd.f32 %v6031, %v6171
    %v6173 = vpop.f32.mrb[0].mxu0
    %6174 = vmatprep.mubr.f32.mxu0 0.0
    %6175 = vmatmul.mubr.f32.gmra.mrb[0].mxu0 %v6051
    %v6176 = vpop.f32.mrb[0].mxu0
    %v6177 = vadd.f32 %v6031, %v6176
    %v6178 = vpop.f32.mrb[0].mxu0
    %6179 = vmatprep.mubr.f32.mxu0 0.0
    %6180 = vmatmul.mubr.f32.gmra.mrb[0].mxu0 %v6054
    %v6181 = vpop.f32.mrb[0].mxu0
    %v6182 = vadd.f32 %v6031, %v6181
    %v6183 = vpop.f32.mrb[0].mxu0
    %6184 = vmatprep.mubr.f32.mxu0 0.0
    %6185 = vmatmul.mubr.f32.gmra.mrb[0].mxu0 %v6057
    %v6186 = vpop.f32.mrb[0].mxu0
    %v6187 = vadd.f32 %v6031, %v6186
    %v6188 = vpop.f32.mrb[0].mxu0
    %6189 = vmatprep.mubr.f32.mxu0 0.0
    %6190 = vmatmul.mubr.f32.gmra.mrb[0].mxu0 %v6060
    %v6191 = vpop.f32.mrb[0].mxu0
    %v6192 = vadd.f32 %v6031, %v6191
    %v6193 = vpop.f32.mrb[0].mxu0
    %6194 = vmatprep.mubr.f32.mxu0 0.0
    %6195 = vmatmul.mubr.f32.gmra.mrb[0].mxu0 %v6063
    %v6196 = vpop.f32.mrb[0].mxu0
    %v6197 = vadd.f32 %v6031, %v6196
    %v6198 = vpop.f32.mrb[0].mxu0
    %6199 = vmatprep.mubr.f32.mxu0 0.0
    %6200 = vmatmul.mubr.f32.gmra.mrb[0].mxu0 %v6066
    %v6201 = vpop.f32.mrb[0].mxu0
    %v6202 = vadd.f32 %v6031, %v6201
    %v6203 = vpop.f32.mrb[0].mxu0
    %6204 = vmatprep.mubr.f32.mxu0 0.0
    %6205 = vmatmul.mubr.f32.gmra.mrb[0].mxu0 %v6069
    %v6206 = vpop.f32.mrb[0].mxu0
    %v6207 = vadd.f32 %v6031, %v6206
    %v6208 = vpop.f32.mrb[0].mxu0
    %6209 = vmatprep.mubr.f32.mxu0 0.0
    %6210 = vmatmul.mubr.f32.gmra.mrb[0].mxu0 %v6072
    %v6211 = vpop.f32.mrb[0].mxu0
    %v6212 = vadd.f32 %v6031, %v6211
    %v6213 = vpop.f32.mrb[0].mxu0
    %6214 = vmatprep.mubr.f32.mxu0 0.0
    %6215 = vmatmul.mubr.f32.gmra.mrb[0].mxu0 %v6075
    %v6216 = vpop.f32.mrb[0].mxu0
    %v6217 = vadd.f32 %v6031, %v6216
    %v6218 = vpop.f32.mrb[0].mxu0
    %6219 = vmatprep.mubr.f32.mxu0 0.0
    %6220 = vmatmul.mubr.f32.gmra.mrb[0].mxu0 %v6078
    %v6221 = vpop.f32.mrb[0].mxu0
    %v6222 = vadd.f32 %v6031, %v6221
    %v6223 = vpop.f32.mrb[0].mxu0
    %6224 = vdwg.mxu0
    %v6225 = vxor.u32 %v6147, 2147483648
    %v6226 = vxor.u32 %v6152, 2147483648
    %v6227 = vxor.u32 %v6157, 2147483648
    %v6228 = vxor.u32 %v6162, 2147483648
    %v6229 = vxor.u32 %v6167, 2147483648
    %v6230 = vxor.u32 %v6172, 2147483648
    %v6231 = vxor.u32 %v6177, 2147483648
    %v6232 = vxor.u32 %v6182, 2147483648
    %v6233 = vxor.u32 %v6187, 2147483648
    %v6234 = vxor.u32 %v6192, 2147483648
    %v6235 = vxor.u32 %v6197, 2147483648
    %v6236 = vxor.u32 %v6202, 2147483648
    %v6237 = vxor.u32 %v6207, 2147483648
    %v6238 = vxor.u32 %v6212, 2147483648
    %v6239 = vxor.u32 %v6217, 2147483648
    %v6240 = vxor.u32 %v6222, 2147483648
    %v6241 = vmul.f32 %v6225, 1.442695
    %v6242 = vpow.pop %v6241
    %v6243 = vmul.f32 %v6226, 1.442695
    %v6244 = vpow.pop %v6243
    %v6245 = vmul.f32 %v6227, 1.442695
    %v6246 = vpow.pop %v6245
    %v6247 = vmul.f32 %v6228, 1.442695
    %v6248 = vpow.pop %v6247
    %v6249 = vmul.f32 %v6229, 1.442695
    %v6250 = vpow.pop %v6249
    %v6251 = vmul.f32 %v6230, 1.442695
    %v6252 = vpow.pop %v6251
    %v6253 = vmul.f32 %v6231, 1.442695
    %v6254 = vpow.pop %v6253
    %v6255 = vmul.f32 %v6232, 1.442695
    %v6256 = vpow.pop %v6255
    %v6257 = vmul.f32 %v6233, 1.442695
    %v6258 = vpow.pop %v6257
    %v6259 = vmul.f32 %v6234, 1.442695
    %v6260 = vpow.pop %v6259
    %v6261 = vmul.f32 %v6235, 1.442695
    %v6262 = vpow.pop %v6261
    %v6263 = vmul.f32 %v6236, 1.442695
    %v6264 = vpow.pop %v6263
    %v6265 = vmul.f32 %v6237, 1.442695
    %v6266 = vpow.pop %v6265
    %v6267 = vmul.f32 %v6238, 1.442695
    %v6268 = vpow.pop %v6267
    %v6269 = vmul.f32 %v6239, 1.442695
    %v6270 = vpow.pop %v6269
    %v6271 = vmul.f32 %v6240, 1.442695
    %v6272 = vpow.pop %v6271
    %v6273 = vadd.f32 %v6242, 1.0
    %v6274 = vadd.f32 %v6244, 1.0
    %v6275 = vadd.f32 %v6246, 1.0
    %v6276 = vadd.f32 %v6248, 1.0
    %v6277 = vadd.f32 %v6250, 1.0
    %v6278 = vadd.f32 %v6252, 1.0
    %v6279 = vadd.f32 %v6254, 1.0
    %v6280 = vadd.f32 %v6256, 1.0
    %v6281 = vadd.f32 %v6258, 1.0
    %v6282 = vadd.f32 %v6260, 1.0
    %v6283 = vadd.f32 %v6262, 1.0
    %v6284 = vadd.f32 %v6264, 1.0
    %v6285 = vadd.f32 %v6266, 1.0
    %v6286 = vadd.f32 %v6268, 1.0
    %v6287 = vadd.f32 %v6270, 1.0
    %v6288 = vadd.f32 %v6272, 1.0
    %v6289 = vrcp.pop %v6273
    %v6290 = vmul.f32 1.0, %v6289
    %v6291 = vrcp.pop %v6274
    %v6292 = vmul.f32 1.0, %v6291
    %v6293 = vrcp.pop %v6275
    %v6294 = vmul.f32 1.0, %v6293
    %v6295 = vrcp.pop %v6276
    %v6296 = vmul.f32 1.0, %v6295
    %v6297 = vrcp.pop %v6277
    %v6298 = vmul.f32 1.0, %v6297
    %v6299 = vrcp.pop %v6278
    %v6300 = vmul.f32 1.0, %v6299
    %v6301 = vrcp.pop %v6279
    %v6302 = vmul.f32 1.0, %v6301
    %v6303 = vrcp.pop %v6280
    %v6304 = vmul.f32 1.0, %v6303
    %v6305 = vrcp.pop %v6281
    %v6306 = vmul.f32 1.0, %v6305
    %v6307 = vrcp.pop %v6282
    %v6308 = vmul.f32 1.0, %v6307
    %v6309 = vrcp.pop %v6283
    %v6310 = vmul.f32 1.0, %v6309
    %v6311 = vrcp.pop %v6284
    %v6312 = vmul.f32 1.0, %v6311
    %v6313 = vrcp.pop %v6285
    %v6314 = vmul.f32 1.0, %v6313
    %v6315 = vrcp.pop %v6286
    %v6316 = vmul.f32 1.0, %v6315
    %v6317 = vrcp.pop %v6287
    %v6318 = vmul.f32 1.0, %v6317
    %v6319 = vrcp.pop %v6288
    %v6320 = vmul.f32 1.0, %v6319
    %v6321 = vmul.f32 %v6147, %v6290
    %v6322 = vmul.f32 %v6152, %v6292
    %v6323 = vmul.f32 %v6157, %v6294
    %v6324 = vmul.f32 %v6162, %v6296
    %v6325 = vmul.f32 %v6167, %v6298
    %v6326 = vmul.f32 %v6172, %v6300
    %v6327 = vmul.f32 %v6177, %v6302
    %v6328 = vmul.f32 %v6182, %v6304
    %v6329 = vmul.f32 %v6187, %v6306
    %v6330 = vmul.f32 %v6192, %v6308
    %v6331 = vmul.f32 %v6197, %v6310
    %v6332 = vmul.f32 %v6202, %v6312
    %v6333 = vmul.f32 %v6207, %v6314
    %v6334 = vmul.f32 %v6212, %v6316
    %v6335 = vmul.f32 %v6217, %v6318
    %v6336 = vmul.f32 %v6222, %v6320
    %v6337 = vlaneseq
    %v6338 = vshrl.u32 %v6337, 7
    %v6339 = vsub.s32 0, %v6338
    %v6340 = vrot.slane %v4785, %v6339
    %v6341 = vmul.f32 %v6321, %v6340
    %v6342 = vmul.f32 %v6322, %v6340
    %v6343 = vmul.f32 %v6323, %v6340
    %v6344 = vmul.f32 %v6324, %v6340
    %v6345 = vmul.f32 %v6325, %v6340
    %v6346 = vmul.f32 %v6326, %v6340
    %v6347 = vmul.f32 %v6327, %v6340
    %v6348 = vmul.f32 %v6328, %v6340
    %v6349 = vmul.f32 %v6329, %v6340
    %v6350 = vmul.f32 %v6330, %v6340
    %v6351 = vmul.f32 %v6331, %v6340
    %v6352 = vmul.f32 %v6332, %v6340
    %v6353 = vmul.f32 %v6333, %v6340
    %v6354 = vmul.f32 %v6334, %v6340
    %v6355 = vmul.f32 %v6335, %v6340
    %v6356 = vmul.f32 %v6336, %v6340
    %v6357 = vsel %vm622, %v6341, 0.0
    %6358 = vadd.xlane.f32.xlu0 %v6357
    %v6359 = vpop.xlane.xlu0 %6358
    %v6360 = vsel %vm622, %v6342, 0.0
    %6361 = vadd.xlane.f32.xlu0 %v6360
    %v6362 = vpop.xlane.xlu0 %6361
    %v6363 = vsel %vm622, %v6343, 0.0
    %6364 = vadd.xlane.f32.xlu0 %v6363
    %v6365 = vpop.xlane.xlu0 %6364
    %v6366 = vsel %vm622, %v6344, 0.0
    %6367 = vadd.xlane.f32.xlu0 %v6366
    %v6368 = vpop.xlane.xlu0 %6367
    %v6369 = vsel %vm622, %v6345, 0.0
    %6370 = vadd.xlane.f32.xlu0 %v6369
    %v6371 = vpop.xlane.xlu0 %6370
    %v6372 = vsel %vm622, %v6346, 0.0
    %6373 = vadd.xlane.f32.xlu0 %v6372
    %v6374 = vpop.xlane.xlu0 %6373
    %v6375 = vsel %vm622, %v6347, 0.0
    %6376 = vadd.xlane.f32.xlu0 %v6375
    %v6377 = vpop.xlane.xlu0 %6376
    %v6378 = vsel %vm622, %v6348, 0.0
    %6379 = vadd.xlane.f32.xlu0 %v6378
    %v6380 = vpop.xlane.xlu0 %6379
    %v6381 = vsel %vm622, %v6349, 0.0
    %6382 = vadd.xlane.f32.xlu0 %v6381
    %v6383 = vpop.xlane.xlu0 %6382
    %v6384 = vsel %vm622, %v6350, 0.0
    %6385 = vadd.xlane.f32.xlu0 %v6384
    %v6386 = vpop.xlane.xlu0 %6385
    %v6387 = vsel %vm622, %v6351, 0.0
    %6388 = vadd.xlane.f32.xlu0 %v6387
    %v6389 = vpop.xlane.xlu0 %6388
    %v6390 = vsel %vm622, %v6352, 0.0
    %6391 = vadd.xlane.f32.xlu0 %v6390
    %v6392 = vpop.xlane.xlu0 %6391
    %v6393 = vsel %vm622, %v6353, 0.0
    %6394 = vadd.xlane.f32.xlu0 %v6393
    %v6395 = vpop.xlane.xlu0 %6394
    %v6396 = vsel %vm622, %v6354, 0.0
    %6397 = vadd.xlane.f32.xlu0 %v6396
    %v6398 = vpop.xlane.xlu0 %6397
    %v6399 = vsel %vm622, %v6355, 0.0
    %6400 = vadd.xlane.f32.xlu0 %v6399
    %v6401 = vpop.xlane.xlu0 %6400
    %v6402 = vsel %vm622, %v6356, 0.0
    %6403 = vadd.xlane.f32.xlu0 %v6402
    %v6404 = vpop.xlane.xlu0 %6403
    %v6405 = vmul.f32 %v6359, %v48
    %v6406 = vmul.f32 %v6362, %v49
    %v6407 = vmul.f32 %v6365, %v50
    %v6408 = vmul.f32 %v6368, %v51
    %v6409 = vmul.f32 %v6371, %v52
    %v6410 = vmul.f32 %v6374, %v53
    %v6411 = vmul.f32 %v6377, %v54
    %v6412 = vmul.f32 %v6380, %v55
    %v6413 = vmul.f32 %v6383, %v56
    %v6414 = vmul.f32 %v6386, %v57
    %v6415 = vmul.f32 %v6389, %v58
    %v6416 = vmul.f32 %v6392, %v59
    %v6417 = vmul.f32 %v6395, %v60
    %v6418 = vmul.f32 %v6398, %v61
    %v6419 = vmul.f32 %v6401, %v62
    %v6420 = vmul.f32 %v6404, %v63
    %6422 = vset.pattern.permute.xlu0 0
    %6423 = vperm.xlu0 %6422, %v6405
    %v6424 = vpop.permute.xlu0 %6423
    %6427 = vset.pattern.permute.xlu0 0
    %6428 = vperm.xlu0 %6427, %v6406
    %v6429 = vpop.permute.xlu0 %6428
    %6432 = vset.pattern.permute.xlu0 0
    %6433 = vperm.xlu0 %6432, %v6407
    %v6434 = vpop.permute.xlu0 %6433
    %6437 = vset.pattern.permute.xlu0 0
    %6438 = vperm.xlu0 %6437, %v6408
    %v6439 = vpop.permute.xlu0 %6438
    %6442 = vset.pattern.permute.xlu0 0
    %6443 = vperm.xlu0 %6442, %v6409
    %v6444 = vpop.permute.xlu0 %6443
    %6447 = vset.pattern.permute.xlu0 0
    %6448 = vperm.xlu0 %6447, %v6410
    %v6449 = vpop.permute.xlu0 %6448
    %6452 = vset.pattern.permute.xlu0 0
    %6453 = vperm.xlu0 %6452, %v6411
    %v6454 = vpop.permute.xlu0 %6453
    %6457 = vset.pattern.permute.xlu0 0
    %6458 = vperm.xlu0 %6457, %v6412
    %v6459 = vpop.permute.xlu0 %6458
    %6462 = vset.pattern.permute.xlu0 0
    %6463 = vperm.xlu0 %6462, %v6413
    %v6464 = vpop.permute.xlu0 %6463
    %6467 = vset.pattern.permute.xlu0 0
    %6468 = vperm.xlu0 %6467, %v6414
    %v6469 = vpop.permute.xlu0 %6468
    %6472 = vset.pattern.permute.xlu0 0
    %6473 = vperm.xlu0 %6472, %v6415
    %v6474 = vpop.permute.xlu0 %6473
    %6477 = vset.pattern.permute.xlu0 0
    %6478 = vperm.xlu0 %6477, %v6416
    %v6479 = vpop.permute.xlu0 %6478
    %6482 = vset.pattern.permute.xlu0 0
    %6483 = vperm.xlu0 %6482, %v6417
    %v6484 = vpop.permute.xlu0 %6483
    %6487 = vset.pattern.permute.xlu0 0
    %6488 = vperm.xlu0 %6487, %v6418
    %v6489 = vpop.permute.xlu0 %6488
    %6492 = vset.pattern.permute.xlu0 0
    %6493 = vperm.xlu0 %6492, %v6419
    %v6494 = vpop.permute.xlu0 %6493
    %6497 = vset.pattern.permute.xlu0 0
    %6498 = vperm.xlu0 %6497, %v6420
    %v6499 = vpop.permute.xlu0 %6498
    %v6501 = vmul.f32 %v5195, %v6424
    %v6502 = vmul.f32 %v5196, %v6429
    %v6503 = vmul.f32 %v5197, %v6434
    %v6504 = vmul.f32 %v5198, %v6439
    %v6505 = vmul.f32 %v5199, %v6444
    %v6506 = vmul.f32 %v5200, %v6449
    %v6507 = vmul.f32 %v5201, %v6454
    %v6508 = vmul.f32 %v5202, %v6459
    %v6509 = vmul.f32 %v5203, %v6464
    %v6510 = vmul.f32 %v5204, %v6469
    %v6511 = vmul.f32 %v5205, %v6474
    %v6512 = vmul.f32 %v5206, %v6479
    %v6513 = vmul.f32 %v5207, %v6484
    %v6514 = vmul.f32 %v5208, %v6489
    %v6515 = vmul.f32 %v5209, %v6494
    %v6516 = vmul.f32 %v5210, %v6499
    %v6517 = vsel %vm382, %v6501, 0.0
    %v6518 = vrot.slane %v6517, 4
    %v6519 = vadd.f32 %v6517, %v6518
    %v6520 = vrot.slane %v6519, 2
    %v6521 = vadd.f32 %v6519, %v6520
    %v6522 = vrot.slane %v6521, 1
    %v6523 = vadd.f32 %v6521, %v6522
    %v6524 = vsel %vm382, %v6502, 0.0
    %v6525 = vrot.slane %v6524, 4
    %v6526 = vadd.f32 %v6524, %v6525
    %v6527 = vrot.slane %v6526, 2
    %v6528 = vadd.f32 %v6526, %v6527
    %v6529 = vrot.slane %v6528, 1
    %v6530 = vadd.f32 %v6528, %v6529
    %v6531 = vsel %vm382, %v6503, 0.0
    %v6532 = vrot.slane %v6531, 4
    %v6533 = vadd.f32 %v6531, %v6532
    %v6534 = vrot.slane %v6533, 2
    %v6535 = vadd.f32 %v6533, %v6534
    %v6536 = vrot.slane %v6535, 1
    %v6537 = vadd.f32 %v6535, %v6536
    %v6538 = vsel %vm382, %v6504, 0.0
    %v6539 = vrot.slane %v6538, 4
    %v6540 = vadd.f32 %v6538, %v6539
    %v6541 = vrot.slane %v6540, 2
    %v6542 = vadd.f32 %v6540, %v6541
    %v6543 = vrot.slane %v6542, 1
    %v6544 = vadd.f32 %v6542, %v6543
    %v6545 = vsel %vm382, %v6505, 0.0
    %v6546 = vrot.slane %v6545, 4
    %v6547 = vadd.f32 %v6545, %v6546
    %v6548 = vrot.slane %v6547, 2
    %v6549 = vadd.f32 %v6547, %v6548
    %v6550 = vrot.slane %v6549, 1
    %v6551 = vadd.f32 %v6549, %v6550
    %v6552 = vsel %vm382, %v6506, 0.0
    %v6553 = vrot.slane %v6552, 4
    %v6554 = vadd.f32 %v6552, %v6553
    %v6555 = vrot.slane %v6554, 2
    %v6556 = vadd.f32 %v6554, %v6555
    %v6557 = vrot.slane %v6556, 1
    %v6558 = vadd.f32 %v6556, %v6557
    %v6559 = vsel %vm382, %v6507, 0.0
    %v6560 = vrot.slane %v6559, 4
    %v6561 = vadd.f32 %v6559, %v6560
    %v6562 = vrot.slane %v6561, 2
    %v6563 = vadd.f32 %v6561, %v6562
    %v6564 = vrot.slane %v6563, 1
    %v6565 = vadd.f32 %v6563, %v6564
    %v6566 = vsel %vm382, %v6508, 0.0
    %v6567 = vrot.slane %v6566, 4
    %v6568 = vadd.f32 %v6566, %v6567
    %v6569 = vrot.slane %v6568, 2
    %v6570 = vadd.f32 %v6568, %v6569
    %v6571 = vrot.slane %v6570, 1
    %v6572 = vadd.f32 %v6570, %v6571
    %v6573 = vsel %vm382, %v6509, 0.0
    %v6574 = vrot.slane %v6573, 4
    %v6575 = vadd.f32 %v6573, %v6574
    %v6576 = vrot.slane %v6575, 2
    %v6577 = vadd.f32 %v6575, %v6576
    %v6578 = vrot.slane %v6577, 1
    %v6579 = vadd.f32 %v6577, %v6578
    %v6580 = vsel %vm382, %v6510, 0.0
    %v6581 = vrot.slane %v6580, 4
    %v6582 = vadd.f32 %v6580, %v6581
    %v6583 = vrot.slane %v6582, 2
    %v6584 = vadd.f32 %v6582, %v6583
    %v6585 = vrot.slane %v6584, 1
    %v6586 = vadd.f32 %v6584, %v6585
    %v6587 = vsel %vm382, %v6511, 0.0
    %v6588 = vrot.slane %v6587, 4
    %v6589 = vadd.f32 %v6587, %v6588
    %v6590 = vrot.slane %v6589, 2
    %v6591 = vadd.f32 %v6589, %v6590
    %v6592 = vrot.slane %v6591, 1
    %v6593 = vadd.f32 %v6591, %v6592
    %v6594 = vsel %vm382, %v6512, 0.0
    %v6595 = vrot.slane %v6594, 4
    %v6596 = vadd.f32 %v6594, %v6595
    %v6597 = vrot.slane %v6596, 2
    %v6598 = vadd.f32 %v6596, %v6597
    %v6599 = vrot.slane %v6598, 1
    %v6600 = vadd.f32 %v6598, %v6599
    %v6601 = vsel %vm382, %v6513, 0.0
    %v6602 = vrot.slane %v6601, 4
    %v6603 = vadd.f32 %v6601, %v6602
    %v6604 = vrot.slane %v6603, 2
    %v6605 = vadd.f32 %v6603, %v6604
    %v6606 = vrot.slane %v6605, 1
    %v6607 = vadd.f32 %v6605, %v6606
    %v6608 = vsel %vm382, %v6514, 0.0
    %v6609 = vrot.slane %v6608, 4
    %v6610 = vadd.f32 %v6608, %v6609
    %v6611 = vrot.slane %v6610, 2
    %v6612 = vadd.f32 %v6610, %v6611
    %v6613 = vrot.slane %v6612, 1
    %v6614 = vadd.f32 %v6612, %v6613
    %v6615 = vsel %vm382, %v6515, 0.0
    %v6616 = vrot.slane %v6615, 4
    %v6617 = vadd.f32 %v6615, %v6616
    %v6618 = vrot.slane %v6617, 2
    %v6619 = vadd.f32 %v6617, %v6618
    %v6620 = vrot.slane %v6619, 1
    %v6621 = vadd.f32 %v6619, %v6620
    %v6622 = vsel %vm382, %v6516, 0.0
    %v6623 = vrot.slane %v6622, 4
    %v6624 = vadd.f32 %v6622, %v6623
    %v6625 = vrot.slane %v6624, 2
    %v6626 = vadd.f32 %v6624, %v6625
    %v6627 = vrot.slane %v6626, 1
    %v6628 = vadd.f32 %v6626, %v6627
    %v6645 = vsel %vm2132, %v6530, %v6523
    %v6646 = vsel %vm2134, %v6537, %v6645
    %v6647 = vsel %vm2136, %v6544, %v6646
    %v6648 = vsel %vm2138, %v6551, %v6647
    %v6649 = vsel %vm2140, %v6558, %v6648
    %v6650 = vsel %vm2142, %v6565, %v6649
    %v6651 = vsel %vm2144, %v6572, %v6650
    %v6652 = vsel %vm2132, %v6586, %v6579
    %v6653 = vsel %vm2134, %v6593, %v6652
    %v6654 = vsel %vm2136, %v6600, %v6653
    %v6655 = vsel %vm2138, %v6607, %v6654
    %v6656 = vsel %vm2140, %v6614, %v6655
    %v6657 = vsel %vm2142, %v6621, %v6656
    %v6658 = vsel %vm2144, %v6628, %v6657
    %v6661 = vadd.f32 %v4410, %v6651
    %v6662 = vadd.f32 %v4411, %v6658
    %v6663 = vmul.f32 %v6661, %v69
    %v6664 = vmul.f32 %v6662, %v74
    %v6665 = vsel %vm622, %v6012, 0.0
    %v6666 = vrot.slane %v6665, 4
    %v6667 = vadd.f32 %v6665, %v6666
    %v6668 = vrot.slane %v6667, 2
    %v6669 = vadd.f32 %v6667, %v6668
    %v6670 = vrot.slane %v6669, 1
    %v6671 = vadd.f32 %v6669, %v6670
    %v6672 = vsel %vm622, %v6013, 0.0
    %v6673 = vrot.slane %v6672, 4
    %v6674 = vadd.f32 %v6672, %v6673
    %v6675 = vrot.slane %v6674, 2
    %v6676 = vadd.f32 %v6674, %v6675
    %v6677 = vrot.slane %v6676, 1
    %v6678 = vadd.f32 %v6676, %v6677
    %v6679 = vsel %vm622, %v6014, 0.0
    %v6680 = vrot.slane %v6679, 4
    %v6681 = vadd.f32 %v6679, %v6680
    %v6682 = vrot.slane %v6681, 2
    %v6683 = vadd.f32 %v6681, %v6682
    %v6684 = vrot.slane %v6683, 1
    %v6685 = vadd.f32 %v6683, %v6684
    %v6686 = vsel %vm622, %v6015, 0.0
    %v6687 = vrot.slane %v6686, 4
    %v6688 = vadd.f32 %v6686, %v6687
    %v6689 = vrot.slane %v6688, 2
    %v6690 = vadd.f32 %v6688, %v6689
    %v6691 = vrot.slane %v6690, 1
    %v6692 = vadd.f32 %v6690, %v6691
    %v6693 = vsel %vm622, %v6016, 0.0
    %v6694 = vrot.slane %v6693, 4
    %v6695 = vadd.f32 %v6693, %v6694
    %v6696 = vrot.slane %v6695, 2
    %v6697 = vadd.f32 %v6695, %v6696
    %v6698 = vrot.slane %v6697, 1
    %v6699 = vadd.f32 %v6697, %v6698
    %v6700 = vsel %vm622, %v6017, 0.0
    %v6701 = vrot.slane %v6700, 4
    %v6702 = vadd.f32 %v6700, %v6701
    %v6703 = vrot.slane %v6702, 2
    %v6704 = vadd.f32 %v6702, %v6703
    %v6705 = vrot.slane %v6704, 1
    %v6706 = vadd.f32 %v6704, %v6705
    %v6707 = vsel %vm622, %v6018, 0.0
    %v6708 = vrot.slane %v6707, 4
    %v6709 = vadd.f32 %v6707, %v6708
    %v6710 = vrot.slane %v6709, 2
    %v6711 = vadd.f32 %v6709, %v6710
    %v6712 = vrot.slane %v6711, 1
    %v6713 = vadd.f32 %v6711, %v6712
    %v6714 = vsel %vm622, %v6019, 0.0
    %v6715 = vrot.slane %v6714, 4
    %v6716 = vadd.f32 %v6714, %v6715
    %v6717 = vrot.slane %v6716, 2
    %v6718 = vadd.f32 %v6716, %v6717
    %v6719 = vrot.slane %v6718, 1
    %v6720 = vadd.f32 %v6718, %v6719
    %v6721 = vsel %vm622, %v6020, 0.0
    %v6722 = vrot.slane %v6721, 4
    %v6723 = vadd.f32 %v6721, %v6722
    %v6724 = vrot.slane %v6723, 2
    %v6725 = vadd.f32 %v6723, %v6724
    %v6726 = vrot.slane %v6725, 1
    %v6727 = vadd.f32 %v6725, %v6726
    %v6728 = vsel %vm622, %v6021, 0.0
    %v6729 = vrot.slane %v6728, 4
    %v6730 = vadd.f32 %v6728, %v6729
    %v6731 = vrot.slane %v6730, 2
    %v6732 = vadd.f32 %v6730, %v6731
    %v6733 = vrot.slane %v6732, 1
    %v6734 = vadd.f32 %v6732, %v6733
    %v6735 = vsel %vm622, %v6022, 0.0
    %v6736 = vrot.slane %v6735, 4
    %v6737 = vadd.f32 %v6735, %v6736
    %v6738 = vrot.slane %v6737, 2
    %v6739 = vadd.f32 %v6737, %v6738
    %v6740 = vrot.slane %v6739, 1
    %v6741 = vadd.f32 %v6739, %v6740
    %v6742 = vsel %vm622, %v6023, 0.0
    %v6743 = vrot.slane %v6742, 4
    %v6744 = vadd.f32 %v6742, %v6743
    %v6745 = vrot.slane %v6744, 2
    %v6746 = vadd.f32 %v6744, %v6745
    %v6747 = vrot.slane %v6746, 1
    %v6748 = vadd.f32 %v6746, %v6747
    %v6749 = vsel %vm622, %v6024, 0.0
    %v6750 = vrot.slane %v6749, 4
    %v6751 = vadd.f32 %v6749, %v6750
    %v6752 = vrot.slane %v6751, 2
    %v6753 = vadd.f32 %v6751, %v6752
    %v6754 = vrot.slane %v6753, 1
    %v6755 = vadd.f32 %v6753, %v6754
    %v6756 = vsel %vm622, %v6025, 0.0
    %v6757 = vrot.slane %v6756, 4
    %v6758 = vadd.f32 %v6756, %v6757
    %v6759 = vrot.slane %v6758, 2
    %v6760 = vadd.f32 %v6758, %v6759
    %v6761 = vrot.slane %v6760, 1
    %v6762 = vadd.f32 %v6760, %v6761
    %v6763 = vsel %vm622, %v6026, 0.0
    %v6764 = vrot.slane %v6763, 4
    %v6765 = vadd.f32 %v6763, %v6764
    %v6766 = vrot.slane %v6765, 2
    %v6767 = vadd.f32 %v6765, %v6766
    %v6768 = vrot.slane %v6767, 1
    %v6769 = vadd.f32 %v6767, %v6768
    %v6770 = vsel %vm622, %v6027, 0.0
    %v6771 = vrot.slane %v6770, 4
    %v6772 = vadd.f32 %v6770, %v6771
    %v6773 = vrot.slane %v6772, 2
    %v6774 = vadd.f32 %v6772, %v6773
    %v6775 = vrot.slane %v6774, 1
    %v6776 = vadd.f32 %v6774, %v6775
    %v6793 = vsel %vm2132, %v6678, %v6671
    %v6794 = vsel %vm2134, %v6685, %v6793
    %v6795 = vsel %vm2136, %v6692, %v6794
    %v6796 = vsel %vm2138, %v6699, %v6795
    %v6797 = vsel %vm2140, %v6706, %v6796
    %v6798 = vsel %vm2142, %v6713, %v6797
    %v6799 = vsel %vm2144, %v6720, %v6798
    %v6800 = vsel %vm2132, %v6734, %v6727
    %v6801 = vsel %vm2134, %v6741, %v6800
    %v6802 = vsel %vm2136, %v6748, %v6801
    %v6803 = vsel %vm2138, %v6755, %v6802
    %v6804 = vsel %vm2140, %v6762, %v6803
    %v6805 = vsel %vm2142, %v6769, %v6804
    %v6806 = vsel %vm2144, %v6776, %v6805
    %v6807 = vsel %vm622, %v6799, 0
    %v6809 = vsel %vm622, %v6806, 0
    %6811 = vmatprep.subr.mxu0 0.0
    %6812 = vmatpush1.msra.mxu0 %v4773
    %6813 = vmatprep.subr.mxu0 0.0
    %6814 = vmatpush1.msra.mxu0 %v4774
    %6815 = vmatprep.subr.mxu0 0.0
    %6816 = vmatpush1.msra.mxu0 %v4775
    %6817 = vmatprep.subr.mxu0 0.0
    %6818 = vmatpush1.msra.mxu0 %v4776
    %6819 = vmatprep.subr.mxu0 0.0
    %6820 = vmatpush1.msra.mxu0 0.0
    %6821 = vmatprep.subr.mxu0 0.0
    %6822 = vmatpush1.msra.mxu0 0.0
    %6823 = vmatprep.subr.mxu0 0.0
    %6824 = vmatpush1.msra.mxu0 0.0
    %6825 = vmatprep.subr.mxu0 0.0
    %6826 = vmatpush1.msra.mxu0 0.0
    %6827 = vmatprep.subr.mxu0 0.0
    %6828 = vmatpush1.msra.mxu0 0.0
    %6829 = vmatprep.subr.mxu0 0.0
    %6830 = vmatpush1.msra.mxu0 0.0
    %6831 = vmatprep.subr.mxu0 0.0
    %6832 = vmatpush1.msra.mxu0 0.0
    %6833 = vmatprep.subr.mxu0 0.0
    %6834 = vmatpush1.msra.mxu0 0.0
    %6835 = vmatprep.subr.mxu0 0.0
    %6836 = vmatpush1.msra.mxu0 0.0
    %6837 = vmatprep.subr.mxu0 0.0
    %6838 = vmatpush1.msra.mxu0 0.0
    %6839 = vmatprep.subr.mxu0 0.0
    %6840 = vmatpush1.msra.mxu0 0.0
    %6841 = vmatprep.subr.mxu0 0.0
    %6842 = vmatpush1.msra.mxu0 0.0
    %6843 = vmatprep.subr.mxu0 0.0
    %6844 = vmatpush1.msra.mxu0 0.0
    %6845 = vmatprep.subr.mxu0 0.0
    %6846 = vmatpush1.msra.mxu0 0.0
    %6847 = vmatprep.subr.mxu0 0.0
    %6848 = vmatpush1.msra.mxu0 0.0
    %6849 = vmatprep.subr.mxu0 0.0
    %6850 = vmatpush1.msra.mxu0 0.0
    %6851 = vmatprep.subr.mxu0 0.0
    %6852 = vmatpush1.msra.mxu0 0.0
    %6853 = vmatprep.subr.mxu0 0.0
    %6854 = vmatpush1.msra.mxu0 0.0
    %6855 = vmatprep.subr.mxu0 0.0
    %6856 = vmatpush1.msra.mxu0 0.0
    %6857 = vmatprep.subr.mxu0 0.0
    %6858 = vmatpush1.msra.mxu0 0.0
    %6859 = vmatprep.subr.mxu0 0.0
    %6860 = vmatpush1.msra.mxu0 0.0
    %6861 = vmatprep.subr.mxu0 0.0
    %6862 = vmatpush1.msra.mxu0 0.0
    %6863 = vmatprep.subr.mxu0 0.0
    %6864 = vmatpush1.msra.mxu0 0.0
    %6865 = vmatprep.subr.mxu0 0.0
    %6866 = vmatpush1.msra.mxu0 0.0
    %6867 = vmatprep.subr.mxu0 0.0
    %6868 = vmatpush1.msra.mxu0 0.0
    %6869 = vmatprep.subr.mxu0 0.0
    %6870 = vmatpush1.msra.mxu0 0.0
    %6871 = vmatprep.subr.mxu0 0.0
    %6872 = vmatpush1.msra.mxu0 0.0
    %6873 = vmatprep.subr.mxu0 0.0
    %6874 = vmatpush1.msra.mxu0 0.0
    %6875 = vmatprep.mubr.f32.mxu0 0.0
    %6876 = vmatmul.mubr.f32.gmra.mrb[0].mxu0 %v6807
    %v6877 = vpop.f32.mrb[0].mxu0
    %v6878 = vadd.f32 0.0, %v6877
    %v6879 = vpop.f32.mrb[0].mxu0
    %6880 = vmatprep.mubr.f32.mxu0 0.0
    %6881 = vmatmul.mubr.f32.gmra.mrb[0].mxu0 %v6809
    %v6882 = vpop.f32.mrb[0].mxu0
    %v6883 = vadd.f32 0.0, %v6882
    %v6884 = vpop.f32.mrb[0].mxu0
    %6885 = vdwg.mxu0
    %6888 = vrot.lane.b32.xlu0 %v6878, 64
    %v6889 = vpop.permute.xlu0 %6888
    %6890 = vrot.lane.b32.xlu0 %v6883, 64
    %v6891 = vpop.permute.xlu0 %6890
    %v6894 = vadd.f32 %v5289, %v6889
    %v6895 = vadd.f32 %v5294, %v6891
    %v6896 = vlaneseq
    %v6897 = vshrl.u32 %v6896, 7
    %v6898 = vsub.s32 0, %v6897
    %v6899 = vrot.slane %v4789, %v6898
    %6901 = vrot.lane.b32.xlu0 %v6899, 64
    %v6902 = vpop.permute.xlu0 %6901
    %v6904 = vadd.f32 %v6894, %v6902
    %v6905 = vadd.f32 %v6895, %v6902
    %v6906 = vxor.u32 %v6904, 2147483648
    %v6907 = vxor.u32 %v6905, 2147483648
    %v6908 = vmul.f32 %v6906, 1.442695
    %v6909 = vpow.pop %v6908
    %v6910 = vmul.f32 %v6907, 1.442695
    %v6911 = vpow.pop %v6910
    %v6912 = vadd.f32 %v6909, 1.0
    %v6913 = vadd.f32 %v6911, 1.0
    %v6914 = vrcp.pop %v6912
    %v6915 = vmul.f32 1.0, %v6914
    %v6916 = vrcp.pop %v6913
    %v6917 = vmul.f32 1.0, %v6916
    %v6918 = vmul.f32 %v6904, %v6915
    %v6919 = vmul.f32 %v6905, %v6917
    %6922 = vrot.lane.b32.xlu0 %v6918, 64
    %v6923 = vpop.permute.xlu0 %6922
    %6924 = vrot.lane.b32.xlu0 %v6919, 64
    %v6925 = vpop.permute.xlu0 %6924
    %v6926 = vsel %vm622, %v6923, 0
    %v6928 = vsel %vm622, %v6925, 0
    %6930 = vmatprep.subr.mxu0 0.0
    %6931 = vmatpush1.msra.mxu0 %v4778
    %6932 = vmatprep.subr.mxu0 0.0
    %6933 = vmatpush1.msra.mxu0 %v4779
    %6934 = vmatprep.subr.mxu0 0.0
    %6935 = vmatpush1.msra.mxu0 %v4780
    %6936 = vmatprep.subr.mxu0 0.0
    %6937 = vmatpush1.msra.mxu0 %v4781
    %6938 = vmatprep.subr.mxu0 0.0
    %6939 = vmatpush1.msra.mxu0 0.0
    %6940 = vmatprep.subr.mxu0 0.0
    %6941 = vmatpush1.msra.mxu0 0.0
    %6942 = vmatprep.subr.mxu0 0.0
    %6943 = vmatpush1.msra.mxu0 0.0
    %6944 = vmatprep.subr.mxu0 0.0
    %6945 = vmatpush1.msra.mxu0 0.0
    %6946 = vmatprep.subr.mxu0 0.0
    %6947 = vmatpush1.msra.mxu0 0.0
    %6948 = vmatprep.subr.mxu0 0.0
    %6949 = vmatpush1.msra.mxu0 0.0
    %6950 = vmatprep.subr.mxu0 0.0
    %6951 = vmatpush1.msra.mxu0 0.0
    %6952 = vmatprep.subr.mxu0 0.0
    %6953 = vmatpush1.msra.mxu0 0.0
    %6954 = vmatprep.subr.mxu0 0.0
    %6955 = vmatpush1.msra.mxu0 0.0
    %6956 = vmatprep.subr.mxu0 0.0
    %6957 = vmatpush1.msra.mxu0 0.0
    %6958 = vmatprep.subr.mxu0 0.0
    %6959 = vmatpush1.msra.mxu0 0.0
    %6960 = vmatprep.subr.mxu0 0.0
    %6961 = vmatpush1.msra.mxu0 0.0
    %6962 = vmatprep.subr.mxu0 0.0
    %6963 = vmatpush1.msra.mxu0 0.0
    %6964 = vmatprep.subr.mxu0 0.0
    %6965 = vmatpush1.msra.mxu0 0.0
    %6966 = vmatprep.subr.mxu0 0.0
    %6967 = vmatpush1.msra.mxu0 0.0
    %6968 = vmatprep.subr.mxu0 0.0
    %6969 = vmatpush1.msra.mxu0 0.0
    %6970 = vmatprep.subr.mxu0 0.0
    %6971 = vmatpush1.msra.mxu0 0.0
    %6972 = vmatprep.subr.mxu0 0.0
    %6973 = vmatpush1.msra.mxu0 0.0
    %6974 = vmatprep.subr.mxu0 0.0
    %6975 = vmatpush1.msra.mxu0 0.0
    %6976 = vmatprep.subr.mxu0 0.0
    %6977 = vmatpush1.msra.mxu0 0.0
    %6978 = vmatprep.subr.mxu0 0.0
    %6979 = vmatpush1.msra.mxu0 0.0
    %6980 = vmatprep.subr.mxu0 0.0
    %6981 = vmatpush1.msra.mxu0 0.0
    %6982 = vmatprep.subr.mxu0 0.0
    %6983 = vmatpush1.msra.mxu0 0.0
    %6984 = vmatprep.subr.mxu0 0.0
    %6985 = vmatpush1.msra.mxu0 0.0
    %6986 = vmatprep.subr.mxu0 0.0
    %6987 = vmatpush1.msra.mxu0 0.0
    %6988 = vmatprep.subr.mxu0 0.0
    %6989 = vmatpush1.msra.mxu0 0.0
    %6990 = vmatprep.subr.mxu0 0.0
    %6991 = vmatpush1.msra.mxu0 0.0
    %6992 = vmatprep.subr.mxu0 0.0
    %6993 = vmatpush1.msra.mxu0 0.0
    %6994 = vmatprep.mubr.f32.mxu0 0.0
    %6995 = vmatmul.mubr.f32.gmra.mrb[0].mxu0 %v6926
    %v6996 = vpop.f32.mrb[0].mxu0
    %v6997 = vadd.f32 0.0, %v6996
    %v6998 = vpop.f32.mrb[0].mxu0
    %6999 = vmatprep.mubr.f32.mxu0 0.0
    %7000 = vmatmul.mubr.f32.gmra.mrb[0].mxu0 %v6928
    %v7001 = vpop.f32.mrb[0].mxu0
    %v7002 = vadd.f32 0.0, %v7001
    %v7003 = vpop.f32.mrb[0].mxu0
    %7004 = vdwg.mxu0
    %v7005 = vadd.f32 %v4760, %v6997
    %v7006 = vadd.f32 %v4761, %v7002
    %v7007 = vlaneseq
    %v7008 = vshrl.u32 %v7007, 7
    %v7009 = vsub.s32 0, %v7008
    %v7010 = vrot.slane %v4790, %v7009
    %v7011 = vadd.f32 %v7005, %v7010
    %v7012 = vadd.f32 %v7006, %v7010
    %v7013 = vmul.f32 %v7011, %v69
    %v7014 = vmul.f32 %v7012, %v74
    %s7015 = scalar_lea.vmem [#allocation2], 384
    %v7016 = vld [vmem:[%s7015] sm:$0xff]
    %v7017 = vld [vmem:[%s7015 + $0x8] sm:$0xff]
    %v7018 = vld [vmem:[%s7015 + $0x10] sm:$0xff]
    %v7019 = vld [vmem:[%s7015 + $0x18] sm:$0xff]
    %s7020 = scalar_lea.vmem [#allocation2], 416
    %v7021 = vld [vmem:[%s7020] sm:$0xff]
    %v7022 = vld [vmem:[%s7020 + $0x8] sm:$0xff]
    %v7023 = vld [vmem:[%s7020 + $0x10] sm:$0xff]
    %v7024 = vld [vmem:[%s7020 + $0x18] sm:$0xff]
    %s7025 = scalar_lea.vmem %s8, 24
    %v7026 = vld [vmem:[%s7025] sm:$0x1]
    %v7027 = vld [vmem:[%s7025 + $0x1] sm:$0x1]
    %v7028 = vld [vmem:[%s7025 + $0x2] sm:$0x1]
    %v7029 = vld [vmem:[%s7025 + $0x3] sm:$0x1]
    %v7030 = vld [vmem:[%s7025 + $0x4] sm:$0x1]
    %v7031 = vld [vmem:[%s7025 + $0x5] sm:$0x1]
    %v7034 = vcombine.high %v6663, %v6663
    %v7036 = vunpack.c.l.s4 1966171168
    %v7037 = vunpack.c.0.s8 %v7036
    %v7038 = vlaneseq
    %v7039 = vshrl.u32 %v7038, 7
    %v7040 = vsub.s32 %v7037, %v7039
    %v7041 = vrot.slane %v6663, %v7040
    %v7043 = vunpack.c.l.s4 1966171168
    %v7044 = vunpack.c.0.s8 %v7043
    %v7045 = vlaneseq
    %v7046 = vshrl.u32 %v7045, 7
    %v7047 = vsub.s32 %v7044, %v7046
    %v7048 = vrot.slane %v7034, %v7047
    %v7049 = vcombine.high %v7041, %v7041
    %v7050 = vcombine.high %v7048, %v7048
    %v7052 = vunpack.c.l.s4 1966171168
    %v7053 = vunpack.c.0.s8 %v7052
    %v7054 = vlaneseq
    %v7055 = vshrl.u32 %v7054, 7
    %v7056 = vsub.s32 %v7053, %v7055
    %v7057 = vrot.slane %v7041, %v7056
    %v7059 = vunpack.c.l.s4 1966171168
    %v7060 = vunpack.c.0.s8 %v7059
    %v7061 = vlaneseq
    %v7062 = vshrl.u32 %v7061, 7
    %v7063 = vsub.s32 %v7060, %v7062
    %v7064 = vrot.slane %v7048, %v7063
    %v7066 = vunpack.c.l.s4 1966171168
    %v7067 = vunpack.c.0.s8 %v7066
    %v7068 = vlaneseq
    %v7069 = vshrl.u32 %v7068, 7
    %v7070 = vsub.s32 %v7067, %v7069
    %v7071 = vrot.slane %v7049, %v7070
    %v7073 = vunpack.c.l.s4 1966171168
    %v7074 = vunpack.c.0.s8 %v7073
    %v7075 = vlaneseq
    %v7076 = vshrl.u32 %v7075, 7
    %v7077 = vsub.s32 %v7074, %v7076
    %v7078 = vrot.slane %v7050, %v7077
    %v7079 = vcombine.high %v7057, %v7057
    %v7080 = vcombine.high %v7064, %v7064
    %v7081 = vcombine.high %v7071, %v7071
    %v7082 = vcombine.high %v7078, %v7078
    %v7083 = vcombine.high %v6664, %v6664
    %v7085 = vunpack.c.l.s4 1966171168
    %v7086 = vunpack.c.0.s8 %v7085
    %v7087 = vlaneseq
    %v7088 = vshrl.u32 %v7087, 7
    %v7089 = vsub.s32 %v7086, %v7088
    %v7090 = vrot.slane %v6664, %v7089
    %v7092 = vunpack.c.l.s4 1966171168
    %v7093 = vunpack.c.0.s8 %v7092
    %v7094 = vlaneseq
    %v7095 = vshrl.u32 %v7094, 7
    %v7096 = vsub.s32 %v7093, %v7095
    %v7097 = vrot.slane %v7083, %v7096
    %v7098 = vcombine.high %v7090, %v7090
    %v7099 = vcombine.high %v7097, %v7097
    %v7101 = vunpack.c.l.s4 1966171168
    %v7102 = vunpack.c.0.s8 %v7101
    %v7103 = vlaneseq
    %v7104 = vshrl.u32 %v7103, 7
    %v7105 = vsub.s32 %v7102, %v7104
    %v7106 = vrot.slane %v7090, %v7105
    %v7108 = vunpack.c.l.s4 1966171168
    %v7109 = vunpack.c.0.s8 %v7108
    %v7110 = vlaneseq
    %v7111 = vshrl.u32 %v7110, 7
    %v7112 = vsub.s32 %v7109, %v7111
    %v7113 = vrot.slane %v7097, %v7112
    %v7115 = vunpack.c.l.s4 1966171168
    %v7116 = vunpack.c.0.s8 %v7115
    %v7117 = vlaneseq
    %v7118 = vshrl.u32 %v7117, 7
    %v7119 = vsub.s32 %v7116, %v7118
    %v7120 = vrot.slane %v7098, %v7119
    %v7122 = vunpack.c.l.s4 1966171168
    %v7123 = vunpack.c.0.s8 %v7122
    %v7124 = vlaneseq
    %v7125 = vshrl.u32 %v7124, 7
    %v7126 = vsub.s32 %v7123, %v7125
    %v7127 = vrot.slane %v7099, %v7126
    %v7128 = vcombine.high %v7106, %v7106
    %v7129 = vcombine.high %v7113, %v7113
    %v7130 = vcombine.high %v7120, %v7120
    %v7131 = vcombine.high %v7127, %v7127
    %v7132 = vlaneseq
    %v7133 = vshrl.u32 %v7132, 7
    %v7134 = vsub.s32 0, %v7133
    %v7135 = vrot.slane %v7057, %v7134
    %v7136 = vlaneseq
    %v7137 = vshrl.u32 %v7136, 7
    %v7138 = vsub.s32 0, %v7137
    %v7139 = vrot.slane %v7071, %v7138
    %v7140 = vlaneseq
    %v7141 = vshrl.u32 %v7140, 7
    %v7142 = vsub.s32 0, %v7141
    %v7143 = vrot.slane %v7079, %v7142
    %v7144 = vlaneseq
    %v7145 = vshrl.u32 %v7144, 7
    %v7146 = vsub.s32 0, %v7145
    %v7147 = vrot.slane %v7081, %v7146
    %v7148 = vlaneseq
    %v7149 = vshrl.u32 %v7148, 7
    %v7150 = vsub.s32 0, %v7149
    %v7151 = vrot.slane %v7064, %v7150
    %v7152 = vlaneseq
    %v7153 = vshrl.u32 %v7152, 7
    %v7154 = vsub.s32 0, %v7153
    %v7155 = vrot.slane %v7078, %v7154
    %v7156 = vlaneseq
    %v7157 = vshrl.u32 %v7156, 7
    %v7158 = vsub.s32 0, %v7157
    %v7159 = vrot.slane %v7080, %v7158
    %v7160 = vlaneseq
    %v7161 = vshrl.u32 %v7160, 7
    %v7162 = vsub.s32 0, %v7161
    %v7163 = vrot.slane %v7082, %v7162
    %v7164 = vlaneseq
    %v7165 = vshrl.u32 %v7164, 7
    %v7166 = vsub.s32 0, %v7165
    %v7167 = vrot.slane %v7106, %v7166
    %v7168 = vlaneseq
    %v7169 = vshrl.u32 %v7168, 7
    %v7170 = vsub.s32 0, %v7169
    %v7171 = vrot.slane %v7120, %v7170
    %v7172 = vlaneseq
    %v7173 = vshrl.u32 %v7172, 7
    %v7174 = vsub.s32 0, %v7173
    %v7175 = vrot.slane %v7128, %v7174
    %v7176 = vlaneseq
    %v7177 = vshrl.u32 %v7176, 7
    %v7178 = vsub.s32 0, %v7177
    %v7179 = vrot.slane %v7130, %v7178
    %v7180 = vlaneseq
    %v7181 = vshrl.u32 %v7180, 7
    %v7182 = vsub.s32 0, %v7181
    %v7183 = vrot.slane %v7113, %v7182
    %v7184 = vlaneseq
    %v7185 = vshrl.u32 %v7184, 7
    %v7186 = vsub.s32 0, %v7185
    %v7187 = vrot.slane %v7127, %v7186
    %v7188 = vlaneseq
    %v7189 = vshrl.u32 %v7188, 7
    %v7190 = vsub.s32 0, %v7189
    %v7191 = vrot.slane %v7129, %v7190
    %v7192 = vlaneseq
    %v7193 = vshrl.u32 %v7192, 7
    %v7194 = vsub.s32 0, %v7193
    %v7195 = vrot.slane %v7131, %v7194
    %v7212 = vsub.f32 %v7135, %v6663
    %v7213 = vsub.f32 %v7139, %v6663
    %v7214 = vsub.f32 %v7143, %v6663
    %v7215 = vsub.f32 %v7147, %v6663
    %v7216 = vsub.f32 %v7151, %v6663
    %v7217 = vsub.f32 %v7155, %v6663
    %v7218 = vsub.f32 %v7159, %v6663
    %v7219 = vsub.f32 %v7163, %v6663
    %v7220 = vsub.f32 %v7167, %v6664
    %v7221 = vsub.f32 %v7171, %v6664
    %v7222 = vsub.f32 %v7175, %v6664
    %v7223 = vsub.f32 %v7179, %v6664
    %v7224 = vsub.f32 %v7183, %v6664
    %v7225 = vsub.f32 %v7187, %v6664
    %v7226 = vsub.f32 %v7191, %v6664
    %v7227 = vsub.f32 %v7195, %v6664
    %v7228 = vmul.f32 %v7212, %v7212
    %v7229 = vmul.f32 %v7213, %v7213
    %v7230 = vmul.f32 %v7214, %v7214
    %v7231 = vmul.f32 %v7215, %v7215
    %v7232 = vmul.f32 %v7216, %v7216
    %v7233 = vmul.f32 %v7217, %v7217
    %v7234 = vmul.f32 %v7218, %v7218
    %v7235 = vmul.f32 %v7219, %v7219
    %v7236 = vmul.f32 %v7220, %v7220
    %v7237 = vmul.f32 %v7221, %v7221
    %v7238 = vmul.f32 %v7222, %v7222
    %v7239 = vmul.f32 %v7223, %v7223
    %v7240 = vmul.f32 %v7224, %v7224
    %v7241 = vmul.f32 %v7225, %v7225
    %v7242 = vmul.f32 %v7226, %v7226
    %v7243 = vmul.f32 %v7227, %v7227
    %v7244 = vsel %vm382, %v7228, 0.0
    %7245 = vadd.xlane.f32.xlu0 %v7244
    %v7246 = vpop.xlane.xlu0 %7245
    %v7247 = vsel %vm382, %v7229, 0.0
    %7248 = vadd.xlane.f32.xlu0 %v7247
    %v7249 = vpop.xlane.xlu0 %7248
    %v7250 = vsel %vm382, %v7230, 0.0
    %7251 = vadd.xlane.f32.xlu0 %v7250
    %v7252 = vpop.xlane.xlu0 %7251
    %v7253 = vsel %vm382, %v7231, 0.0
    %7254 = vadd.xlane.f32.xlu0 %v7253
    %v7255 = vpop.xlane.xlu0 %7254
    %v7256 = vsel %vm382, %v7232, 0.0
    %7257 = vadd.xlane.f32.xlu0 %v7256
    %v7258 = vpop.xlane.xlu0 %7257
    %v7259 = vsel %vm382, %v7233, 0.0
    %7260 = vadd.xlane.f32.xlu0 %v7259
    %v7261 = vpop.xlane.xlu0 %7260
    %v7262 = vsel %vm382, %v7234, 0.0
    %7263 = vadd.xlane.f32.xlu0 %v7262
    %v7264 = vpop.xlane.xlu0 %7263
    %v7265 = vsel %vm382, %v7235, 0.0
    %7266 = vadd.xlane.f32.xlu0 %v7265
    %v7267 = vpop.xlane.xlu0 %7266
    %v7268 = vsel %vm382, %v7236, 0.0
    %7269 = vadd.xlane.f32.xlu0 %v7268
    %v7270 = vpop.xlane.xlu0 %7269
    %v7271 = vsel %vm382, %v7237, 0.0
    %7272 = vadd.xlane.f32.xlu0 %v7271
    %v7273 = vpop.xlane.xlu0 %7272
    %v7274 = vsel %vm382, %v7238, 0.0
    %7275 = vadd.xlane.f32.xlu0 %v7274
    %v7276 = vpop.xlane.xlu0 %7275
    %v7277 = vsel %vm382, %v7239, 0.0
    %7278 = vadd.xlane.f32.xlu0 %v7277
    %v7279 = vpop.xlane.xlu0 %7278
    %v7280 = vsel %vm382, %v7240, 0.0
    %7281 = vadd.xlane.f32.xlu0 %v7280
    %v7282 = vpop.xlane.xlu0 %7281
    %v7283 = vsel %vm382, %v7241, 0.0
    %7284 = vadd.xlane.f32.xlu0 %v7283
    %v7285 = vpop.xlane.xlu0 %7284
    %v7286 = vsel %vm382, %v7242, 0.0
    %7287 = vadd.xlane.f32.xlu0 %v7286
    %v7288 = vpop.xlane.xlu0 %7287
    %v7289 = vsel %vm382, %v7243, 0.0
    %7290 = vadd.xlane.f32.xlu0 %v7289
    %v7291 = vpop.xlane.xlu0 %7290
    %v7292 = vrsqrt.pop %v7246
    %v7293 = vmul.f32 %v7246, %v7292
    %vm7294 = vcmp.eq.f32.partialorder %v7246, inf
    %v7295 = vsel %vm7294, %v7246, %v7293
    %vm7296 = vcmp.eq.f32.partialorder %v7246, 0.0
    %v7297 = vand.u32 %v7246, 2147483648
    %v7298 = vsel %vm7296, %v7297, %v7295
    %v7299 = vrsqrt.pop %v7249
    %v7300 = vmul.f32 %v7249, %v7299
    %vm7301 = vcmp.eq.f32.partialorder %v7249, inf
    %v7302 = vsel %vm7301, %v7249, %v7300
    %vm7303 = vcmp.eq.f32.partialorder %v7249, 0.0
    %v7304 = vand.u32 %v7249, 2147483648
    %v7305 = vsel %vm7303, %v7304, %v7302
    %v7306 = vrsqrt.pop %v7252
    %v7307 = vmul.f32 %v7252, %v7306
    %vm7308 = vcmp.eq.f32.partialorder %v7252, inf
    %v7309 = vsel %vm7308, %v7252, %v7307
    %vm7310 = vcmp.eq.f32.partialorder %v7252, 0.0
    %v7311 = vand.u32 %v7252, 2147483648
    %v7312 = vsel %vm7310, %v7311, %v7309
    %v7313 = vrsqrt.pop %v7255
    %v7314 = vmul.f32 %v7255, %v7313
    %vm7315 = vcmp.eq.f32.partialorder %v7255, inf
    %v7316 = vsel %vm7315, %v7255, %v7314
    %vm7317 = vcmp.eq.f32.partialorder %v7255, 0.0
    %v7318 = vand.u32 %v7255, 2147483648
    %v7319 = vsel %vm7317, %v7318, %v7316
    %v7320 = vrsqrt.pop %v7258
    %v7321 = vmul.f32 %v7258, %v7320
    %vm7322 = vcmp.eq.f32.partialorder %v7258, inf
    %v7323 = vsel %vm7322, %v7258, %v7321
    %vm7324 = vcmp.eq.f32.partialorder %v7258, 0.0
    %v7325 = vand.u32 %v7258, 2147483648
    %v7326 = vsel %vm7324, %v7325, %v7323
    %v7327 = vrsqrt.pop %v7261
    %v7328 = vmul.f32 %v7261, %v7327
    %vm7329 = vcmp.eq.f32.partialorder %v7261, inf
    %v7330 = vsel %vm7329, %v7261, %v7328
    %vm7331 = vcmp.eq.f32.partialorder %v7261, 0.0
    %v7332 = vand.u32 %v7261, 2147483648
    %v7333 = vsel %vm7331, %v7332, %v7330
    %v7334 = vrsqrt.pop %v7264
    %v7335 = vmul.f32 %v7264, %v7334
    %vm7336 = vcmp.eq.f32.partialorder %v7264, inf
    %v7337 = vsel %vm7336, %v7264, %v7335
    %vm7338 = vcmp.eq.f32.partialorder %v7264, 0.0
    %v7339 = vand.u32 %v7264, 2147483648
    %v7340 = vsel %vm7338, %v7339, %v7337
    %v7341 = vrsqrt.pop %v7267
    %v7342 = vmul.f32 %v7267, %v7341
    %vm7343 = vcmp.eq.f32.partialorder %v7267, inf
    %v7344 = vsel %vm7343, %v7267, %v7342
    %vm7345 = vcmp.eq.f32.partialorder %v7267, 0.0
    %v7346 = vand.u32 %v7267, 2147483648
    %v7347 = vsel %vm7345, %v7346, %v7344
    %v7348 = vrsqrt.pop %v7270
    %v7349 = vmul.f32 %v7270, %v7348
    %vm7350 = vcmp.eq.f32.partialorder %v7270, inf
    %v7351 = vsel %vm7350, %v7270, %v7349
    %vm7352 = vcmp.eq.f32.partialorder %v7270, 0.0
    %v7353 = vand.u32 %v7270, 2147483648
    %v7354 = vsel %vm7352, %v7353, %v7351
    %v7355 = vrsqrt.pop %v7273
    %v7356 = vmul.f32 %v7273, %v7355
    %vm7357 = vcmp.eq.f32.partialorder %v7273, inf
    %v7358 = vsel %vm7357, %v7273, %v7356
    %vm7359 = vcmp.eq.f32.partialorder %v7273, 0.0
    %v7360 = vand.u32 %v7273, 2147483648
    %v7361 = vsel %vm7359, %v7360, %v7358
    %v7362 = vrsqrt.pop %v7276
    %v7363 = vmul.f32 %v7276, %v7362
    %vm7364 = vcmp.eq.f32.partialorder %v7276, inf
    %v7365 = vsel %vm7364, %v7276, %v7363
    %vm7366 = vcmp.eq.f32.partialorder %v7276, 0.0
    %v7367 = vand.u32 %v7276, 2147483648
    %v7368 = vsel %vm7366, %v7367, %v7365
    %v7369 = vrsqrt.pop %v7279
    %v7370 = vmul.f32 %v7279, %v7369
    %vm7371 = vcmp.eq.f32.partialorder %v7279, inf
    %v7372 = vsel %vm7371, %v7279, %v7370
    %vm7373 = vcmp.eq.f32.partialorder %v7279, 0.0
    %v7374 = vand.u32 %v7279, 2147483648
    %v7375 = vsel %vm7373, %v7374, %v7372
    %v7376 = vrsqrt.pop %v7282
    %v7377 = vmul.f32 %v7282, %v7376
    %vm7378 = vcmp.eq.f32.partialorder %v7282, inf
    %v7379 = vsel %vm7378, %v7282, %v7377
    %vm7380 = vcmp.eq.f32.partialorder %v7282, 0.0
    %v7381 = vand.u32 %v7282, 2147483648
    %v7382 = vsel %vm7380, %v7381, %v7379
    %v7383 = vrsqrt.pop %v7285
    %v7384 = vmul.f32 %v7285, %v7383
    %vm7385 = vcmp.eq.f32.partialorder %v7285, inf
    %v7386 = vsel %vm7385, %v7285, %v7384
    %vm7387 = vcmp.eq.f32.partialorder %v7285, 0.0
    %v7388 = vand.u32 %v7285, 2147483648
    %v7389 = vsel %vm7387, %v7388, %v7386
    %v7390 = vrsqrt.pop %v7288
    %v7391 = vmul.f32 %v7288, %v7390
    %vm7392 = vcmp.eq.f32.partialorder %v7288, inf
    %v7393 = vsel %vm7392, %v7288, %v7391
    %vm7394 = vcmp.eq.f32.partialorder %v7288, 0.0
    %v7395 = vand.u32 %v7288, 2147483648
    %v7396 = vsel %vm7394, %v7395, %v7393
    %v7397 = vrsqrt.pop %v7291
    %v7398 = vmul.f32 %v7291, %v7397
    %vm7399 = vcmp.eq.f32.partialorder %v7291, inf
    %v7400 = vsel %vm7399, %v7291, %v7398
    %vm7401 = vcmp.eq.f32.partialorder %v7291, 0.0
    %v7402 = vand.u32 %v7291, 2147483648
    %v7403 = vsel %vm7401, %v7402, %v7400
    %v7404 = vadd.f32 %v7298, 1.0
    %v7405 = vadd.f32 %v7305, 1.0
    %v7406 = vadd.f32 %v7312, 1.0
    %v7407 = vadd.f32 %v7319, 1.0
    %v7408 = vadd.f32 %v7326, 1.0
    %v7409 = vadd.f32 %v7333, 1.0
    %v7410 = vadd.f32 %v7340, 1.0
    %v7411 = vadd.f32 %v7347, 1.0
    %v7412 = vadd.f32 %v7354, 1.0
    %v7413 = vadd.f32 %v7361, 1.0
    %v7414 = vadd.f32 %v7368, 1.0
    %v7415 = vadd.f32 %v7375, 1.0
    %v7416 = vadd.f32 %v7382, 1.0
    %v7417 = vadd.f32 %v7389, 1.0
    %v7418 = vadd.f32 %v7396, 1.0
    %v7419 = vadd.f32 %v7403, 1.0
    %v7420 = vrcp.pop %v7404
    %v7421 = vrcp.pop %v7405
    %v7422 = vrcp.pop %v7406
    %v7423 = vrcp.pop %v7407
    %v7424 = vrcp.pop %v7408
    %v7425 = vrcp.pop %v7409
    %v7426 = vrcp.pop %v7410
    %v7427 = vrcp.pop %v7411
    %v7428 = vrcp.pop %v7412
    %v7429 = vrcp.pop %v7413
    %v7430 = vrcp.pop %v7414
    %v7431 = vrcp.pop %v7415
    %v7432 = vrcp.pop %v7416
    %v7433 = vrcp.pop %v7417
    %v7434 = vrcp.pop %v7418
    %v7435 = vrcp.pop %v7419
    %v7436 = vmul.f32 %v7212, %v7420
    %v7437 = vmul.f32 %v7213, %v7421
    %v7438 = vmul.f32 %v7214, %v7422
    %v7439 = vmul.f32 %v7215, %v7423
    %v7440 = vmul.f32 %v7216, %v7424
    %v7441 = vmul.f32 %v7217, %v7425
    %v7442 = vmul.f32 %v7218, %v7426
    %v7443 = vmul.f32 %v7219, %v7427
    %v7444 = vmul.f32 %v7220, %v7428
    %v7445 = vmul.f32 %v7221, %v7429
    %v7446 = vmul.f32 %v7222, %v7430
    %v7447 = vmul.f32 %v7223, %v7431
    %v7448 = vmul.f32 %v7224, %v7432
    %v7449 = vmul.f32 %v7225, %v7433
    %v7450 = vmul.f32 %v7226, %v7434
    %v7451 = vmul.f32 %v7227, %v7435
    %s7452 = scalar_lea.vmem %s6, 96
    %v7453 = vld [vmem:[%s7452] sm:$0xff]
    %v7454 = vld [vmem:[%s7452 + $0x8] sm:$0xff]
    %v7455 = vld [vmem:[%s7452 + $0x10] sm:$0xff]
    %v7456 = vld [vmem:[%s7452 + $0x18] sm:$0xff]
    %v7458 = vsel %vm622, %v7013, 0
    %v7461 = vsel %vm622, %v7014, 0
    %7463 = vmatprep.subr.mxu0 0.0
    %7464 = vmatpush1.msra.mxu0 %v7453
    %7465 = vmatprep.subr.mxu0 0.0
    %7466 = vmatpush1.msra.mxu0 %v7454
    %7467 = vmatprep.subr.mxu0 0.0
    %7468 = vmatpush1.msra.mxu0 %v7455
    %7469 = vmatprep.subr.mxu0 0.0
    %7470 = vmatpush1.msra.mxu0 %v7456
    %7471 = vmatprep.subr.mxu0 0.0
    %7472 = vmatpush1.msra.mxu0 0.0
    %7473 = vmatprep.subr.mxu0 0.0
    %7474 = vmatpush1.msra.mxu0 0.0
    %7475 = vmatprep.subr.mxu0 0.0
    %7476 = vmatpush1.msra.mxu0 0.0
    %7477 = vmatprep.subr.mxu0 0.0
    %7478 = vmatpush1.msra.mxu0 0.0
    %7479 = vmatprep.subr.mxu0 0.0
    %7480 = vmatpush1.msra.mxu0 0.0
    %7481 = vmatprep.subr.mxu0 0.0
    %7482 = vmatpush1.msra.mxu0 0.0
    %7483 = vmatprep.subr.mxu0 0.0
    %7484 = vmatpush1.msra.mxu0 0.0
    %7485 = vmatprep.subr.mxu0 0.0
    %7486 = vmatpush1.msra.mxu0 0.0
    %7487 = vmatprep.subr.mxu0 0.0
    %7488 = vmatpush1.msra.mxu0 0.0
    %7489 = vmatprep.subr.mxu0 0.0
    %7490 = vmatpush1.msra.mxu0 0.0
    %7491 = vmatprep.subr.mxu0 0.0
    %7492 = vmatpush1.msra.mxu0 0.0
    %7493 = vmatprep.subr.mxu0 0.0
    %7494 = vmatpush1.msra.mxu0 0.0
    %7495 = vmatprep.subr.mxu0 0.0
    %7496 = vmatpush1.msra.mxu0 0.0
    %7497 = vmatprep.subr.mxu0 0.0
    %7498 = vmatpush1.msra.mxu0 0.0
    %7499 = vmatprep.subr.mxu0 0.0
    %7500 = vmatpush1.msra.mxu0 0.0
    %7501 = vmatprep.subr.mxu0 0.0
    %7502 = vmatpush1.msra.mxu0 0.0
    %7503 = vmatprep.subr.mxu0 0.0
    %7504 = vmatpush1.msra.mxu0 0.0
    %7505 = vmatprep.subr.mxu0 0.0
    %7506 = vmatpush1.msra.mxu0 0.0
    %7507 = vmatprep.subr.mxu0 0.0
    %7508 = vmatpush1.msra.mxu0 0.0
    %7509 = vmatprep.subr.mxu0 0.0
    %7510 = vmatpush1.msra.mxu0 0.0
    %7511 = vmatprep.subr.mxu0 0.0
    %7512 = vmatpush1.msra.mxu0 0.0
    %7513 = vmatprep.subr.mxu0 0.0
    %7514 = vmatpush1.msra.mxu0 0.0
    %7515 = vmatprep.subr.mxu0 0.0
    %7516 = vmatpush1.msra.mxu0 0.0
    %7517 = vmatprep.subr.mxu0 0.0
    %7518 = vmatpush1.msra.mxu0 0.0
    %7519 = vmatprep.subr.mxu0 0.0
    %7520 = vmatpush1.msra.mxu0 0.0
    %7521 = vmatprep.subr.mxu0 0.0
    %7522 = vmatpush1.msra.mxu0 0.0
    %7523 = vmatprep.subr.mxu0 0.0
    %7524 = vmatpush1.msra.mxu0 0.0
    %7525 = vmatprep.subr.mxu0 0.0
    %7526 = vmatpush1.msra.mxu0 0.0
    %7527 = vmatprep.mubr.f32.mxu0 0.0
    %7528 = vmatmul.mubr.f32.gmra.mrb[0].mxu0 %v7458
    %v7529 = vpop.f32.mrb[0].mxu0
    %v7530 = vadd.f32 0.0, %v7529
    %v7531 = vpop.f32.mrb[0].mxu0
    %7532 = vmatprep.mubr.f32.mxu0 0.0
    %7533 = vmatmul.mubr.f32.gmra.mrb[0].mxu0 %v7461
    %v7534 = vpop.f32.mrb[0].mxu0
    %v7535 = vadd.f32 0.0, %v7534
    %v7536 = vpop.f32.mrb[0].mxu0
    %7537 = vdwg.mxu0
    %v7540 = vcombine.high %v7530, %v7530
    %v7542 = vunpack.c.l.s4 1966171168
    %v7543 = vunpack.c.0.s8 %v7542
    %v7544 = vlaneseq
    %v7545 = vshrl.u32 %v7544, 7
    %v7546 = vsub.s32 %v7543, %v7545
    %v7547 = vrot.slane %v7530, %v7546
    %v7549 = vunpack.c.l.s4 1966171168
    %v7550 = vunpack.c.0.s8 %v7549
    %v7551 = vlaneseq
    %v7552 = vshrl.u32 %v7551, 7
    %v7553 = vsub.s32 %v7550, %v7552
    %v7554 = vrot.slane %v7540, %v7553
    %v7555 = vcombine.high %v7547, %v7547
    %v7556 = vcombine.high %v7554, %v7554
    %v7558 = vunpack.c.l.s4 1966171168
    %v7559 = vunpack.c.0.s8 %v7558
    %v7560 = vlaneseq
    %v7561 = vshrl.u32 %v7560, 7
    %v7562 = vsub.s32 %v7559, %v7561
    %v7563 = vrot.slane %v7547, %v7562
    %v7565 = vunpack.c.l.s4 1966171168
    %v7566 = vunpack.c.0.s8 %v7565
    %v7567 = vlaneseq
    %v7568 = vshrl.u32 %v7567, 7
    %v7569 = vsub.s32 %v7566, %v7568
    %v7570 = vrot.slane %v7554, %v7569
    %v7572 = vunpack.c.l.s4 1966171168
    %v7573 = vunpack.c.0.s8 %v7572
    %v7574 = vlaneseq
    %v7575 = vshrl.u32 %v7574, 7
    %v7576 = vsub.s32 %v7573, %v7575
    %v7577 = vrot.slane %v7555, %v7576
    %v7579 = vunpack.c.l.s4 1966171168
    %v7580 = vunpack.c.0.s8 %v7579
    %v7581 = vlaneseq
    %v7582 = vshrl.u32 %v7581, 7
    %v7583 = vsub.s32 %v7580, %v7582
    %v7584 = vrot.slane %v7556, %v7583
    %v7585 = vcombine.high %v7563, %v7563
    %v7586 = vcombine.high %v7570, %v7570
    %v7587 = vcombine.high %v7577, %v7577
    %v7588 = vcombine.high %v7584, %v7584
    %v7589 = vcombine.high %v7535, %v7535
    %v7591 = vunpack.c.l.s4 1966171168
    %v7592 = vunpack.c.0.s8 %v7591
    %v7593 = vlaneseq
    %v7594 = vshrl.u32 %v7593, 7
    %v7595 = vsub.s32 %v7592, %v7594
    %v7596 = vrot.slane %v7535, %v7595
    %v7598 = vunpack.c.l.s4 1966171168
    %v7599 = vunpack.c.0.s8 %v7598
    %v7600 = vlaneseq
    %v7601 = vshrl.u32 %v7600, 7
    %v7602 = vsub.s32 %v7599, %v7601
    %v7603 = vrot.slane %v7589, %v7602
    %v7604 = vcombine.high %v7596, %v7596
    %v7605 = vcombine.high %v7603, %v7603
    %v7607 = vunpack.c.l.s4 1966171168
    %v7608 = vunpack.c.0.s8 %v7607
    %v7609 = vlaneseq
    %v7610 = vshrl.u32 %v7609, 7
    %v7611 = vsub.s32 %v7608, %v7610
    %v7612 = vrot.slane %v7596, %v7611
    %v7614 = vunpack.c.l.s4 1966171168
    %v7615 = vunpack.c.0.s8 %v7614
    %v7616 = vlaneseq
    %v7617 = vshrl.u32 %v7616, 7
    %v7618 = vsub.s32 %v7615, %v7617
    %v7619 = vrot.slane %v7603, %v7618
    %v7621 = vunpack.c.l.s4 1966171168
    %v7622 = vunpack.c.0.s8 %v7621
    %v7623 = vlaneseq
    %v7624 = vshrl.u32 %v7623, 7
    %v7625 = vsub.s32 %v7622, %v7624
    %v7626 = vrot.slane %v7604, %v7625
    %v7628 = vunpack.c.l.s4 1966171168
    %v7629 = vunpack.c.0.s8 %v7628
    %v7630 = vlaneseq
    %v7631 = vshrl.u32 %v7630, 7
    %v7632 = vsub.s32 %v7629, %v7631
    %v7633 = vrot.slane %v7605, %v7632
    %v7634 = vcombine.high %v7612, %v7612
    %v7635 = vcombine.high %v7619, %v7619
    %v7636 = vcombine.high %v7626, %v7626
    %v7637 = vcombine.high %v7633, %v7633
    %v7638 = vlaneseq
    %v7639 = vshrl.u32 %v7638, 7
    %v7640 = vsub.s32 0, %v7639
    %v7641 = vrot.slane %v7563, %v7640
    %v7642 = vlaneseq
    %v7643 = vshrl.u32 %v7642, 7
    %v7644 = vsub.s32 0, %v7643
    %v7645 = vrot.slane %v7577, %v7644
    %v7646 = vlaneseq
    %v7647 = vshrl.u32 %v7646, 7
    %v7648 = vsub.s32 0, %v7647
    %v7649 = vrot.slane %v7585, %v7648
    %v7650 = vlaneseq
    %v7651 = vshrl.u32 %v7650, 7
    %v7652 = vsub.s32 0, %v7651
    %v7653 = vrot.slane %v7587, %v7652
    %v7654 = vlaneseq
    %v7655 = vshrl.u32 %v7654, 7
    %v7656 = vsub.s32 0, %v7655
    %v7657 = vrot.slane %v7570, %v7656
    %v7658 = vlaneseq
    %v7659 = vshrl.u32 %v7658, 7
    %v7660 = vsub.s32 0, %v7659
    %v7661 = vrot.slane %v7584, %v7660
    %v7662 = vlaneseq
    %v7663 = vshrl.u32 %v7662, 7
    %v7664 = vsub.s32 0, %v7663
    %v7665 = vrot.slane %v7586, %v7664
    %v7666 = vlaneseq
    %v7667 = vshrl.u32 %v7666, 7
    %v7668 = vsub.s32 0, %v7667
    %v7669 = vrot.slane %v7588, %v7668
    %v7670 = vlaneseq
    %v7671 = vshrl.u32 %v7670, 7
    %v7672 = vsub.s32 0, %v7671
    %v7673 = vrot.slane %v7612, %v7672
    %v7674 = vlaneseq
    %v7675 = vshrl.u32 %v7674, 7
    %v7676 = vsub.s32 0, %v7675
    %v7677 = vrot.slane %v7626, %v7676
    %v7678 = vlaneseq
    %v7679 = vshrl.u32 %v7678, 7
    %v7680 = vsub.s32 0, %v7679
    %v7681 = vrot.slane %v7634, %v7680
    %v7682 = vlaneseq
    %v7683 = vshrl.u32 %v7682, 7
    %v7684 = vsub.s32 0, %v7683
    %v7685 = vrot.slane %v7636, %v7684
    %v7686 = vlaneseq
    %v7687 = vshrl.u32 %v7686, 7
    %v7688 = vsub.s32 0, %v7687
    %v7689 = vrot.slane %v7619, %v7688
    %v7690 = vlaneseq
    %v7691 = vshrl.u32 %v7690, 7
    %v7692 = vsub.s32 0, %v7691
    %v7693 = vrot.slane %v7633, %v7692
    %v7694 = vlaneseq
    %v7695 = vshrl.u32 %v7694, 7
    %v7696 = vsub.s32 0, %v7695
    %v7697 = vrot.slane %v7635, %v7696
    %v7698 = vlaneseq
    %v7699 = vshrl.u32 %v7698, 7
    %v7700 = vsub.s32 0, %v7699
    %v7701 = vrot.slane %v7637, %v7700
    %7718 = vrot.lane.b32.xlu0 %v7530, 96
    %v7719 = vpop.permute.xlu0 %7718
    %7720 = vrot.lane.b32.xlu0 %v7535, 96
    %v7721 = vpop.permute.xlu0 %7720
    %v7724 = vadd.f32 %v7641, %v7719
    %v7725 = vadd.f32 %v7645, %v7719
    %v7726 = vadd.f32 %v7649, %v7719
    %v7727 = vadd.f32 %v7653, %v7719
    %v7728 = vadd.f32 %v7657, %v7719
    %v7729 = vadd.f32 %v7661, %v7719
    %v7730 = vadd.f32 %v7665, %v7719
    %v7731 = vadd.f32 %v7669, %v7719
    %v7732 = vadd.f32 %v7673, %v7721
    %v7733 = vadd.f32 %v7677, %v7721
    %v7734 = vadd.f32 %v7681, %v7721
    %v7735 = vadd.f32 %v7685, %v7721
    %v7736 = vadd.f32 %v7689, %v7721
    %v7737 = vadd.f32 %v7693, %v7721
    %v7738 = vadd.f32 %v7697, %v7721
    %v7739 = vadd.f32 %v7701, %v7721
    %v7740 = vlaneseq
    %v7741 = vshrl.u32 %v7740, 7
    %v7742 = vsub.s32 0, %v7741
    %v7743 = vrot.slane %v7026, %v7742
    %v7744 = vmul.f32 %v7246, %v7743
    %v7745 = vmul.f32 %v7249, %v7743
    %v7746 = vmul.f32 %v7252, %v7743
    %v7747 = vmul.f32 %v7255, %v7743
    %v7748 = vmul.f32 %v7258, %v7743
    %v7749 = vmul.f32 %v7261, %v7743
    %v7750 = vmul.f32 %v7264, %v7743
    %v7751 = vmul.f32 %v7267, %v7743
    %v7752 = vmul.f32 %v7270, %v7743
    %v7753 = vmul.f32 %v7273, %v7743
    %v7754 = vmul.f32 %v7276, %v7743
    %v7755 = vmul.f32 %v7279, %v7743
    %v7756 = vmul.f32 %v7282, %v7743
    %v7757 = vmul.f32 %v7285, %v7743
    %v7758 = vmul.f32 %v7288, %v7743
    %v7759 = vmul.f32 %v7291, %v7743
    %v7760 = vadd.f32 %v7724, %v7744
    %v7761 = vadd.f32 %v7725, %v7745
    %v7762 = vadd.f32 %v7726, %v7746
    %v7763 = vadd.f32 %v7727, %v7747
    %v7764 = vadd.f32 %v7728, %v7748
    %v7765 = vadd.f32 %v7729, %v7749
    %v7766 = vadd.f32 %v7730, %v7750
    %v7767 = vadd.f32 %v7731, %v7751
    %v7768 = vadd.f32 %v7732, %v7752
    %v7769 = vadd.f32 %v7733, %v7753
    %v7770 = vadd.f32 %v7734, %v7754
    %v7771 = vadd.f32 %v7735, %v7755
    %v7772 = vadd.f32 %v7736, %v7756
    %v7773 = vadd.f32 %v7737, %v7757
    %v7774 = vadd.f32 %v7738, %v7758
    %v7775 = vadd.f32 %v7739, %v7759
    %v7776 = vlaneseq
    %v7777 = vshrl.u32 %v7776, 7
    %v7778 = vsub.s32 0, %v7777
    %v7779 = vrot.slane %v7027, %v7778
    %v7780 = vmul.f32 %v385, %v7779
    %v7781 = vmul.f32 %v388, %v7779
    %v7782 = vmul.f32 %v391, %v7779
    %v7783 = vmul.f32 %v394, %v7779
    %v7784 = vmul.f32 %v397, %v7779
    %v7785 = vmul.f32 %v400, %v7779
    %v7786 = vmul.f32 %v403, %v7779
    %v7787 = vmul.f32 %v406, %v7779
    %v7788 = vmul.f32 %v409, %v7779
    %v7789 = vmul.f32 %v412, %v7779
    %v7790 = vmul.f32 %v415, %v7779
    %v7791 = vmul.f32 %v418, %v7779
    %v7792 = vmul.f32 %v421, %v7779
    %v7793 = vmul.f32 %v424, %v7779
    %v7794 = vmul.f32 %v427, %v7779
    %v7795 = vmul.f32 %v430, %v7779
    %v7796 = vadd.f32 %v7760, %v7780
    %v7797 = vadd.f32 %v7761, %v7781
    %v7798 = vadd.f32 %v7762, %v7782
    %v7799 = vadd.f32 %v7763, %v7783
    %v7800 = vadd.f32 %v7764, %v7784
    %v7801 = vadd.f32 %v7765, %v7785
    %v7802 = vadd.f32 %v7766, %v7786
    %v7803 = vadd.f32 %v7767, %v7787
    %v7804 = vadd.f32 %v7768, %v7788
    %v7805 = vadd.f32 %v7769, %v7789
    %v7806 = vadd.f32 %v7770, %v7790
    %v7807 = vadd.f32 %v7771, %v7791
    %v7808 = vadd.f32 %v7772, %v7792
    %v7809 = vadd.f32 %v7773, %v7793
    %v7810 = vadd.f32 %v7774, %v7794
    %v7811 = vadd.f32 %v7775, %v7795
    %v7812 = vlaneseq
    %v7813 = vshrl.u32 %v7812, 7
    %v7814 = vsub.s32 0, %v7813
    %v7815 = vrot.slane %v7029, %v7814
    %v7816 = vadd.f32 %v7796, %v7815
    %v7817 = vadd.f32 %v7797, %v7815
    %v7818 = vadd.f32 %v7798, %v7815
    %v7819 = vadd.f32 %v7799, %v7815
    %v7820 = vadd.f32 %v7800, %v7815
    %v7821 = vadd.f32 %v7801, %v7815
    %v7822 = vadd.f32 %v7802, %v7815
    %v7823 = vadd.f32 %v7803, %v7815
    %v7824 = vadd.f32 %v7804, %v7815
    %v7825 = vadd.f32 %v7805, %v7815
    %v7826 = vadd.f32 %v7806, %v7815
    %v7827 = vadd.f32 %v7807, %v7815
    %v7828 = vadd.f32 %v7808, %v7815
    %v7829 = vadd.f32 %v7809, %v7815
    %v7830 = vadd.f32 %v7810, %v7815
    %v7831 = vadd.f32 %v7811, %v7815
    %v7832 = vxor.u32 %v7816, 2147483648
    %v7833 = vxor.u32 %v7817, 2147483648
    %v7834 = vxor.u32 %v7818, 2147483648
    %v7835 = vxor.u32 %v7819, 2147483648
    %v7836 = vxor.u32 %v7820, 2147483648
    %v7837 = vxor.u32 %v7821, 2147483648
    %v7838 = vxor.u32 %v7822, 2147483648
    %v7839 = vxor.u32 %v7823, 2147483648
    %v7840 = vxor.u32 %v7824, 2147483648
    %v7841 = vxor.u32 %v7825, 2147483648
    %v7842 = vxor.u32 %v7826, 2147483648
    %v7843 = vxor.u32 %v7827, 2147483648
    %v7844 = vxor.u32 %v7828, 2147483648
    %v7845 = vxor.u32 %v7829, 2147483648
    %v7846 = vxor.u32 %v7830, 2147483648
    %v7847 = vxor.u32 %v7831, 2147483648
    %v7848 = vmul.f32 %v7832, 1.442695
    %v7849 = vpow.pop %v7848
    %v7850 = vmul.f32 %v7833, 1.442695
    %v7851 = vpow.pop %v7850
    %v7852 = vmul.f32 %v7834, 1.442695
    %v7853 = vpow.pop %v7852
    %v7854 = vmul.f32 %v7835, 1.442695
    %v7855 = vpow.pop %v7854
    %v7856 = vmul.f32 %v7836, 1.442695
    %v7857 = vpow.pop %v7856
    %v7858 = vmul.f32 %v7837, 1.442695
    %v7859 = vpow.pop %v7858
    %v7860 = vmul.f32 %v7838, 1.442695
    %v7861 = vpow.pop %v7860
    %v7862 = vmul.f32 %v7839, 1.442695
    %v7863 = vpow.pop %v7862
    %v7864 = vmul.f32 %v7840, 1.442695
    %v7865 = vpow.pop %v7864
    %v7866 = vmul.f32 %v7841, 1.442695
    %v7867 = vpow.pop %v7866
    %v7868 = vmul.f32 %v7842, 1.442695
    %v7869 = vpow.pop %v7868
    %v7870 = vmul.f32 %v7843, 1.442695
    %v7871 = vpow.pop %v7870
    %v7872 = vmul.f32 %v7844, 1.442695
    %v7873 = vpow.pop %v7872
    %v7874 = vmul.f32 %v7845, 1.442695
    %v7875 = vpow.pop %v7874
    %v7876 = vmul.f32 %v7846, 1.442695
    %v7877 = vpow.pop %v7876
    %v7878 = vmul.f32 %v7847, 1.442695
    %v7879 = vpow.pop %v7878
    %v7880 = vadd.f32 %v7849, 1.0
    %v7881 = vadd.f32 %v7851, 1.0
    %v7882 = vadd.f32 %v7853, 1.0
    %v7883 = vadd.f32 %v7855, 1.0
    %v7884 = vadd.f32 %v7857, 1.0
    %v7885 = vadd.f32 %v7859, 1.0
    %v7886 = vadd.f32 %v7861, 1.0
    %v7887 = vadd.f32 %v7863, 1.0
    %v7888 = vadd.f32 %v7865, 1.0
    %v7889 = vadd.f32 %v7867, 1.0
    %v7890 = vadd.f32 %v7869, 1.0
    %v7891 = vadd.f32 %v7871, 1.0
    %v7892 = vadd.f32 %v7873, 1.0
    %v7893 = vadd.f32 %v7875, 1.0
    %v7894 = vadd.f32 %v7877, 1.0
    %v7895 = vadd.f32 %v7879, 1.0
    %v7896 = vrcp.pop %v7880
    %v7897 = vmul.f32 1.0, %v7896
    %v7898 = vrcp.pop %v7881
    %v7899 = vmul.f32 1.0, %v7898
    %v7900 = vrcp.pop %v7882
    %v7901 = vmul.f32 1.0, %v7900
    %v7902 = vrcp.pop %v7883
    %v7903 = vmul.f32 1.0, %v7902
    %v7904 = vrcp.pop %v7884
    %v7905 = vmul.f32 1.0, %v7904
    %v7906 = vrcp.pop %v7885
    %v7907 = vmul.f32 1.0, %v7906
    %v7908 = vrcp.pop %v7886
    %v7909 = vmul.f32 1.0, %v7908
    %v7910 = vrcp.pop %v7887
    %v7911 = vmul.f32 1.0, %v7910
    %v7912 = vrcp.pop %v7888
    %v7913 = vmul.f32 1.0, %v7912
    %v7914 = vrcp.pop %v7889
    %v7915 = vmul.f32 1.0, %v7914
    %v7916 = vrcp.pop %v7890
    %v7917 = vmul.f32 1.0, %v7916
    %v7918 = vrcp.pop %v7891
    %v7919 = vmul.f32 1.0, %v7918
    %v7920 = vrcp.pop %v7892
    %v7921 = vmul.f32 1.0, %v7920
    %v7922 = vrcp.pop %v7893
    %v7923 = vmul.f32 1.0, %v7922
    %v7924 = vrcp.pop %v7894
    %v7925 = vmul.f32 1.0, %v7924
    %v7926 = vrcp.pop %v7895
    %v7927 = vmul.f32 1.0, %v7926
    %v7928 = vmul.f32 %v7816, %v7897
    %v7929 = vmul.f32 %v7817, %v7899
    %v7930 = vmul.f32 %v7818, %v7901
    %v7931 = vmul.f32 %v7819, %v7903
    %v7932 = vmul.f32 %v7820, %v7905
    %v7933 = vmul.f32 %v7821, %v7907
    %v7934 = vmul.f32 %v7822, %v7909
    %v7935 = vmul.f32 %v7823, %v7911
    %v7936 = vmul.f32 %v7824, %v7913
    %v7937 = vmul.f32 %v7825, %v7915
    %v7938 = vmul.f32 %v7826, %v7917
    %v7939 = vmul.f32 %v7827, %v7919
    %v7940 = vmul.f32 %v7828, %v7921
    %v7941 = vmul.f32 %v7829, %v7923
    %v7942 = vmul.f32 %v7830, %v7925
    %v7943 = vmul.f32 %v7831, %v7927
    %v7944 = vlaneseq
    %v7945 = vshrl.u32 %v7944, 7
    %v7946 = vsub.s32 0, %v7945
    %v7947 = vrot.slane %v7030, %v7946
    %v7949 = vsel %vm622, %v7928, 0
    %v7952 = vsel %vm622, %v7929, 0
    %v7955 = vsel %vm622, %v7930, 0
    %v7958 = vsel %vm622, %v7931, 0
    %v7961 = vsel %vm622, %v7932, 0
    %v7964 = vsel %vm622, %v7933, 0
    %v7967 = vsel %vm622, %v7934, 0
    %v7970 = vsel %vm622, %v7935, 0
    %v7973 = vsel %vm622, %v7936, 0
    %v7976 = vsel %vm622, %v7937, 0
    %v7979 = vsel %vm622, %v7938, 0
    %v7982 = vsel %vm622, %v7939, 0
    %v7985 = vsel %vm622, %v7940, 0
    %v7988 = vsel %vm622, %v7941, 0
    %v7991 = vsel %vm622, %v7942, 0
    %v7994 = vsel %vm622, %v7943, 0
    %7996 = vmatprep.subr.mxu0 0.0
    %7997 = vmatpush1.msra.mxu0 %v7016
    %7998 = vmatprep.subr.mxu0 0.0
    %7999 = vmatpush1.msra.mxu0 %v7017
    %8000 = vmatprep.subr.mxu0 0.0
    %8001 = vmatpush1.msra.mxu0 %v7018
    %8002 = vmatprep.subr.mxu0 0.0
    %8003 = vmatpush1.msra.mxu0 %v7019
    %8004 = vmatprep.subr.mxu0 0.0
    %8005 = vmatpush1.msra.mxu0 0.0
    %8006 = vmatprep.subr.mxu0 0.0
    %8007 = vmatpush1.msra.mxu0 0.0
    %8008 = vmatprep.subr.mxu0 0.0
    %8009 = vmatpush1.msra.mxu0 0.0
    %8010 = vmatprep.subr.mxu0 0.0
    %8011 = vmatpush1.msra.mxu0 0.0
    %8012 = vmatprep.subr.mxu0 0.0
    %8013 = vmatpush1.msra.mxu0 0.0
    %8014 = vmatprep.subr.mxu0 0.0
    %8015 = vmatpush1.msra.mxu0 0.0
    %8016 = vmatprep.subr.mxu0 0.0
    %8017 = vmatpush1.msra.mxu0 0.0
    %8018 = vmatprep.subr.mxu0 0.0
    %8019 = vmatpush1.msra.mxu0 0.0
    %8020 = vmatprep.subr.mxu0 0.0
    %8021 = vmatpush1.msra.mxu0 0.0
    %8022 = vmatprep.subr.mxu0 0.0
    %8023 = vmatpush1.msra.mxu0 0.0
    %8024 = vmatprep.subr.mxu0 0.0
    %8025 = vmatpush1.msra.mxu0 0.0
    %8026 = vmatprep.subr.mxu0 0.0
    %8027 = vmatpush1.msra.mxu0 0.0
    %8028 = vmatprep.subr.mxu0 0.0
    %8029 = vmatpush1.msra.mxu0 0.0
    %8030 = vmatprep.subr.mxu0 0.0
    %8031 = vmatpush1.msra.mxu0 0.0
    %8032 = vmatprep.subr.mxu0 0.0
    %8033 = vmatpush1.msra.mxu0 0.0
    %8034 = vmatprep.subr.mxu0 0.0
    %8035 = vmatpush1.msra.mxu0 0.0
    %8036 = vmatprep.subr.mxu0 0.0
    %8037 = vmatpush1.msra.mxu0 0.0
    %8038 = vmatprep.subr.mxu0 0.0
    %8039 = vmatpush1.msra.mxu0 0.0
    %8040 = vmatprep.subr.mxu0 0.0
    %8041 = vmatpush1.msra.mxu0 0.0
    %8042 = vmatprep.subr.mxu0 0.0
    %8043 = vmatpush1.msra.mxu0 0.0
    %8044 = vmatprep.subr.mxu0 0.0
    %8045 = vmatpush1.msra.mxu0 0.0
    %8046 = vmatprep.subr.mxu0 0.0
    %8047 = vmatpush1.msra.mxu0 0.0
    %8048 = vmatprep.subr.mxu0 0.0
    %8049 = vmatpush1.msra.mxu0 0.0
    %8050 = vmatprep.subr.mxu0 0.0
    %8051 = vmatpush1.msra.mxu0 0.0
    %8052 = vmatprep.subr.mxu0 0.0
    %8053 = vmatpush1.msra.mxu0 0.0
    %8054 = vmatprep.subr.mxu0 0.0
    %8055 = vmatpush1.msra.mxu0 0.0
    %8056 = vmatprep.subr.mxu0 0.0
    %8057 = vmatpush1.msra.mxu0 0.0
    %8058 = vmatprep.subr.mxu0 0.0
    %8059 = vmatpush1.msra.mxu0 0.0
    %8060 = vmatprep.mubr.f32.mxu0 0.0
    %8061 = vmatmul.mubr.f32.gmra.mrb[0].mxu0 %v7949
    %v8062 = vpop.f32.mrb[0].mxu0
    %v8063 = vadd.f32 %v7947, %v8062
    %v8064 = vpop.f32.mrb[0].mxu0
    %8065 = vmatprep.mubr.f32.mxu0 0.0
    %8066 = vmatmul.mubr.f32.gmra.mrb[0].mxu0 %v7952
    %v8067 = vpop.f32.mrb[0].mxu0
    %v8068 = vadd.f32 %v7947, %v8067
    %v8069 = vpop.f32.mrb[0].mxu0
    %8070 = vmatprep.mubr.f32.mxu0 0.0
    %8071 = vmatmul.mubr.f32.gmra.mrb[0].mxu0 %v7955
    %v8072 = vpop.f32.mrb[0].mxu0
    %v8073 = vadd.f32 %v7947, %v8072
    %v8074 = vpop.f32.mrb[0].mxu0
    %8075 = vmatprep.mubr.f32.mxu0 0.0
    %8076 = vmatmul.mubr.f32.gmra.mrb[0].mxu0 %v7958
    %v8077 = vpop.f32.mrb[0].mxu0
    %v8078 = vadd.f32 %v7947, %v8077
    %v8079 = vpop.f32.mrb[0].mxu0
    %8080 = vmatprep.mubr.f32.mxu0 0.0
    %8081 = vmatmul.mubr.f32.gmra.mrb[0].mxu0 %v7961
    %v8082 = vpop.f32.mrb[0].mxu0
    %v8083 = vadd.f32 %v7947, %v8082
    %v8084 = vpop.f32.mrb[0].mxu0
    %8085 = vmatprep.mubr.f32.mxu0 0.0
    %8086 = vmatmul.mubr.f32.gmra.mrb[0].mxu0 %v7964
    %v8087 = vpop.f32.mrb[0].mxu0
    %v8088 = vadd.f32 %v7947, %v8087
    %v8089 = vpop.f32.mrb[0].mxu0
    %8090 = vmatprep.mubr.f32.mxu0 0.0
    %8091 = vmatmul.mubr.f32.gmra.mrb[0].mxu0 %v7967
    %v8092 = vpop.f32.mrb[0].mxu0
    %v8093 = vadd.f32 %v7947, %v8092
    %v8094 = vpop.f32.mrb[0].mxu0
    %8095 = vmatprep.mubr.f32.mxu0 0.0
    %8096 = vmatmul.mubr.f32.gmra.mrb[0].mxu0 %v7970
    %v8097 = vpop.f32.mrb[0].mxu0
    %v8098 = vadd.f32 %v7947, %v8097
    %v8099 = vpop.f32.mrb[0].mxu0
    %8100 = vmatprep.mubr.f32.mxu0 0.0
    %8101 = vmatmul.mubr.f32.gmra.mrb[0].mxu0 %v7973
    %v8102 = vpop.f32.mrb[0].mxu0
    %v8103 = vadd.f32 %v7947, %v8102
    %v8104 = vpop.f32.mrb[0].mxu0
    %8105 = vmatprep.mubr.f32.mxu0 0.0
    %8106 = vmatmul.mubr.f32.gmra.mrb[0].mxu0 %v7976
    %v8107 = vpop.f32.mrb[0].mxu0
    %v8108 = vadd.f32 %v7947, %v8107
    %v8109 = vpop.f32.mrb[0].mxu0
    %8110 = vmatprep.mubr.f32.mxu0 0.0
    %8111 = vmatmul.mubr.f32.gmra.mrb[0].mxu0 %v7979
    %v8112 = vpop.f32.mrb[0].mxu0
    %v8113 = vadd.f32 %v7947, %v8112
    %v8114 = vpop.f32.mrb[0].mxu0
    %8115 = vmatprep.mubr.f32.mxu0 0.0
    %8116 = vmatmul.mubr.f32.gmra.mrb[0].mxu0 %v7982
    %v8117 = vpop.f32.mrb[0].mxu0
    %v8118 = vadd.f32 %v7947, %v8117
    %v8119 = vpop.f32.mrb[0].mxu0
    %8120 = vmatprep.mubr.f32.mxu0 0.0
    %8121 = vmatmul.mubr.f32.gmra.mrb[0].mxu0 %v7985
    %v8122 = vpop.f32.mrb[0].mxu0
    %v8123 = vadd.f32 %v7947, %v8122
    %v8124 = vpop.f32.mrb[0].mxu0
    %8125 = vmatprep.mubr.f32.mxu0 0.0
    %8126 = vmatmul.mubr.f32.gmra.mrb[0].mxu0 %v7988
    %v8127 = vpop.f32.mrb[0].mxu0
    %v8128 = vadd.f32 %v7947, %v8127
    %v8129 = vpop.f32.mrb[0].mxu0
    %8130 = vmatprep.mubr.f32.mxu0 0.0
    %8131 = vmatmul.mubr.f32.gmra.mrb[0].mxu0 %v7991
    %v8132 = vpop.f32.mrb[0].mxu0
    %v8133 = vadd.f32 %v7947, %v8132
    %v8134 = vpop.f32.mrb[0].mxu0
    %8135 = vmatprep.mubr.f32.mxu0 0.0
    %8136 = vmatmul.mubr.f32.gmra.mrb[0].mxu0 %v7994
    %v8137 = vpop.f32.mrb[0].mxu0
    %v8138 = vadd.f32 %v7947, %v8137
    %v8139 = vpop.f32.mrb[0].mxu0
    %8140 = vdwg.mxu0
    %v8141 = vxor.u32 %v8063, 2147483648
    %v8142 = vxor.u32 %v8068, 2147483648
    %v8143 = vxor.u32 %v8073, 2147483648
    %v8144 = vxor.u32 %v8078, 2147483648
    %v8145 = vxor.u32 %v8083, 2147483648
    %v8146 = vxor.u32 %v8088, 2147483648
    %v8147 = vxor.u32 %v8093, 2147483648
    %v8148 = vxor.u32 %v8098, 2147483648
    %v8149 = vxor.u32 %v8103, 2147483648
    %v8150 = vxor.u32 %v8108, 2147483648
    %v8151 = vxor.u32 %v8113, 2147483648
    %v8152 = vxor.u32 %v8118, 2147483648
    %v8153 = vxor.u32 %v8123, 2147483648
    %v8154 = vxor.u32 %v8128, 2147483648
    %v8155 = vxor.u32 %v8133, 2147483648
    %v8156 = vxor.u32 %v8138, 2147483648
    %v8157 = vmul.f32 %v8141, 1.442695
    %v8158 = vpow.pop %v8157
    %v8159 = vmul.f32 %v8142, 1.442695
    %v8160 = vpow.pop %v8159
    %v8161 = vmul.f32 %v8143, 1.442695
    %v8162 = vpow.pop %v8161
    %v8163 = vmul.f32 %v8144, 1.442695
    %v8164 = vpow.pop %v8163
    %v8165 = vmul.f32 %v8145, 1.442695
    %v8166 = vpow.pop %v8165
    %v8167 = vmul.f32 %v8146, 1.442695
    %v8168 = vpow.pop %v8167
    %v8169 = vmul.f32 %v8147, 1.442695
    %v8170 = vpow.pop %v8169
    %v8171 = vmul.f32 %v8148, 1.442695
    %v8172 = vpow.pop %v8171
    %v8173 = vmul.f32 %v8149, 1.442695
    %v8174 = vpow.pop %v8173
    %v8175 = vmul.f32 %v8150, 1.442695
    %v8176 = vpow.pop %v8175
    %v8177 = vmul.f32 %v8151, 1.442695
    %v8178 = vpow.pop %v8177
    %v8179 = vmul.f32 %v8152, 1.442695
    %v8180 = vpow.pop %v8179
    %v8181 = vmul.f32 %v8153, 1.442695
    %v8182 = vpow.pop %v8181
    %v8183 = vmul.f32 %v8154, 1.442695
    %v8184 = vpow.pop %v8183
    %v8185 = vmul.f32 %v8155, 1.442695
    %v8186 = vpow.pop %v8185
    %v8187 = vmul.f32 %v8156, 1.442695
    %v8188 = vpow.pop %v8187
    %v8189 = vadd.f32 %v8158, 1.0
    %v8190 = vadd.f32 %v8160, 1.0
    %v8191 = vadd.f32 %v8162, 1.0
    %v8192 = vadd.f32 %v8164, 1.0
    %v8193 = vadd.f32 %v8166, 1.0
    %v8194 = vadd.f32 %v8168, 1.0
    %v8195 = vadd.f32 %v8170, 1.0
    %v8196 = vadd.f32 %v8172, 1.0
    %v8197 = vadd.f32 %v8174, 1.0
    %v8198 = vadd.f32 %v8176, 1.0
    %v8199 = vadd.f32 %v8178, 1.0
    %v8200 = vadd.f32 %v8180, 1.0
    %v8201 = vadd.f32 %v8182, 1.0
    %v8202 = vadd.f32 %v8184, 1.0
    %v8203 = vadd.f32 %v8186, 1.0
    %v8204 = vadd.f32 %v8188, 1.0
    %v8205 = vrcp.pop %v8189
    %v8206 = vmul.f32 1.0, %v8205
    %v8207 = vrcp.pop %v8190
    %v8208 = vmul.f32 1.0, %v8207
    %v8209 = vrcp.pop %v8191
    %v8210 = vmul.f32 1.0, %v8209
    %v8211 = vrcp.pop %v8192
    %v8212 = vmul.f32 1.0, %v8211
    %v8213 = vrcp.pop %v8193
    %v8214 = vmul.f32 1.0, %v8213
    %v8215 = vrcp.pop %v8194
    %v8216 = vmul.f32 1.0, %v8215
    %v8217 = vrcp.pop %v8195
    %v8218 = vmul.f32 1.0, %v8217
    %v8219 = vrcp.pop %v8196
    %v8220 = vmul.f32 1.0, %v8219
    %v8221 = vrcp.pop %v8197
    %v8222 = vmul.f32 1.0, %v8221
    %v8223 = vrcp.pop %v8198
    %v8224 = vmul.f32 1.0, %v8223
    %v8225 = vrcp.pop %v8199
    %v8226 = vmul.f32 1.0, %v8225
    %v8227 = vrcp.pop %v8200
    %v8228 = vmul.f32 1.0, %v8227
    %v8229 = vrcp.pop %v8201
    %v8230 = vmul.f32 1.0, %v8229
    %v8231 = vrcp.pop %v8202
    %v8232 = vmul.f32 1.0, %v8231
    %v8233 = vrcp.pop %v8203
    %v8234 = vmul.f32 1.0, %v8233
    %v8235 = vrcp.pop %v8204
    %v8236 = vmul.f32 1.0, %v8235
    %v8237 = vmul.f32 %v8063, %v8206
    %v8238 = vmul.f32 %v8068, %v8208
    %v8239 = vmul.f32 %v8073, %v8210
    %v8240 = vmul.f32 %v8078, %v8212
    %v8241 = vmul.f32 %v8083, %v8214
    %v8242 = vmul.f32 %v8088, %v8216
    %v8243 = vmul.f32 %v8093, %v8218
    %v8244 = vmul.f32 %v8098, %v8220
    %v8245 = vmul.f32 %v8103, %v8222
    %v8246 = vmul.f32 %v8108, %v8224
    %v8247 = vmul.f32 %v8113, %v8226
    %v8248 = vmul.f32 %v8118, %v8228
    %v8249 = vmul.f32 %v8123, %v8230
    %v8250 = vmul.f32 %v8128, %v8232
    %v8251 = vmul.f32 %v8133, %v8234
    %v8252 = vmul.f32 %v8138, %v8236
    %v8253 = vmul.f32 %v8237, %v1422
    %v8254 = vmul.f32 %v8238, %v1427
    %v8255 = vmul.f32 %v8239, %v1432
    %v8256 = vmul.f32 %v8240, %v1437
    %v8257 = vmul.f32 %v8241, %v1442
    %v8258 = vmul.f32 %v8242, %v1447
    %v8259 = vmul.f32 %v8243, %v1452
    %v8260 = vmul.f32 %v8244, %v1457
    %v8261 = vmul.f32 %v8245, %v1462
    %v8262 = vmul.f32 %v8246, %v1467
    %v8263 = vmul.f32 %v8247, %v1472
    %v8264 = vmul.f32 %v8248, %v1477
    %v8265 = vmul.f32 %v8249, %v1482
    %v8266 = vmul.f32 %v8250, %v1487
    %v8267 = vmul.f32 %v8251, %v1492
    %v8268 = vmul.f32 %v8252, %v1497
    %v8269 = vlaneseq
    %v8270 = vshrl.u32 %v8269, 7
    %v8271 = vsub.s32 0, %v8270
    %v8272 = vrot.slane %v7031, %v8271
    %v8274 = vsel %vm622, %v8253, 0
    %v8277 = vsel %vm622, %v8254, 0
    %v8280 = vsel %vm622, %v8255, 0
    %v8283 = vsel %vm622, %v8256, 0
    %v8286 = vsel %vm622, %v8257, 0
    %v8289 = vsel %vm622, %v8258, 0
    %v8292 = vsel %vm622, %v8259, 0
    %v8295 = vsel %vm622, %v8260, 0
    %v8298 = vsel %vm622, %v8261, 0
    %v8301 = vsel %vm622, %v8262, 0
    %v8304 = vsel %vm622, %v8263, 0
    %v8307 = vsel %vm622, %v8264, 0
    %v8310 = vsel %vm622, %v8265, 0
    %v8313 = vsel %vm622, %v8266, 0
    %v8316 = vsel %vm622, %v8267, 0
    %v8319 = vsel %vm622, %v8268, 0
    %8321 = vmatprep.subr.mxu0 0.0
    %8322 = vmatpush1.msra.mxu0 %v7021
    %8323 = vmatprep.subr.mxu0 0.0
    %8324 = vmatpush1.msra.mxu0 %v7022
    %8325 = vmatprep.subr.mxu0 0.0
    %8326 = vmatpush1.msra.mxu0 %v7023
    %8327 = vmatprep.subr.mxu0 0.0
    %8328 = vmatpush1.msra.mxu0 %v7024
    %8329 = vmatprep.subr.mxu0 0.0
    %8330 = vmatpush1.msra.mxu0 0.0
    %8331 = vmatprep.subr.mxu0 0.0
    %8332 = vmatpush1.msra.mxu0 0.0
    %8333 = vmatprep.subr.mxu0 0.0
    %8334 = vmatpush1.msra.mxu0 0.0
    %8335 = vmatprep.subr.mxu0 0.0
    %8336 = vmatpush1.msra.mxu0 0.0
    %8337 = vmatprep.subr.mxu0 0.0
    %8338 = vmatpush1.msra.mxu0 0.0
    %8339 = vmatprep.subr.mxu0 0.0
    %8340 = vmatpush1.msra.mxu0 0.0
    %8341 = vmatprep.subr.mxu0 0.0
    %8342 = vmatpush1.msra.mxu0 0.0
    %8343 = vmatprep.subr.mxu0 0.0
    %8344 = vmatpush1.msra.mxu0 0.0
    %8345 = vmatprep.subr.mxu0 0.0
    %8346 = vmatpush1.msra.mxu0 0.0
    %8347 = vmatprep.subr.mxu0 0.0
    %8348 = vmatpush1.msra.mxu0 0.0
    %8349 = vmatprep.subr.mxu0 0.0
    %8350 = vmatpush1.msra.mxu0 0.0
    %8351 = vmatprep.subr.mxu0 0.0
    %8352 = vmatpush1.msra.mxu0 0.0
    %8353 = vmatprep.subr.mxu0 0.0
    %8354 = vmatpush1.msra.mxu0 0.0
    %8355 = vmatprep.subr.mxu0 0.0
    %8356 = vmatpush1.msra.mxu0 0.0
    %8357 = vmatprep.subr.mxu0 0.0
    %8358 = vmatpush1.msra.mxu0 0.0
    %8359 = vmatprep.subr.mxu0 0.0
    %8360 = vmatpush1.msra.mxu0 0.0
    %8361 = vmatprep.subr.mxu0 0.0
    %8362 = vmatpush1.msra.mxu0 0.0
    %8363 = vmatprep.subr.mxu0 0.0
    %8364 = vmatpush1.msra.mxu0 0.0
    %8365 = vmatprep.subr.mxu0 0.0
    %8366 = vmatpush1.msra.mxu0 0.0
    %8367 = vmatprep.subr.mxu0 0.0
    %8368 = vmatpush1.msra.mxu0 0.0
    %8369 = vmatprep.subr.mxu0 0.0
    %8370 = vmatpush1.msra.mxu0 0.0
    %8371 = vmatprep.subr.mxu0 0.0
    %8372 = vmatpush1.msra.mxu0 0.0
    %8373 = vmatprep.subr.mxu0 0.0
    %8374 = vmatpush1.msra.mxu0 0.0
    %8375 = vmatprep.subr.mxu0 0.0
    %8376 = vmatpush1.msra.mxu0 0.0
    %8377 = vmatprep.subr.mxu0 0.0
    %8378 = vmatpush1.msra.mxu0 0.0
    %8379 = vmatprep.subr.mxu0 0.0
    %8380 = vmatpush1.msra.mxu0 0.0
    %8381 = vmatprep.subr.mxu0 0.0
    %8382 = vmatpush1.msra.mxu0 0.0
    %8383 = vmatprep.subr.mxu0 0.0
    %8384 = vmatpush1.msra.mxu0 0.0
    %8385 = vmatprep.mubr.f32.mxu0 0.0
    %8386 = vmatmul.mubr.f32.gmra.mrb[0].mxu0 %v8274
    %v8387 = vpop.f32.mrb[0].mxu0
    %v8388 = vadd.f32 %v8272, %v8387
    %v8389 = vpop.f32.mrb[0].mxu0
    %8390 = vmatprep.mubr.f32.mxu0 0.0
    %8391 = vmatmul.mubr.f32.gmra.mrb[0].mxu0 %v8277
    %v8392 = vpop.f32.mrb[0].mxu0
    %v8393 = vadd.f32 %v8272, %v8392
    %v8394 = vpop.f32.mrb[0].mxu0
    %8395 = vmatprep.mubr.f32.mxu0 0.0
    %8396 = vmatmul.mubr.f32.gmra.mrb[0].mxu0 %v8280
    %v8397 = vpop.f32.mrb[0].mxu0
    %v8398 = vadd.f32 %v8272, %v8397
    %v8399 = vpop.f32.mrb[0].mxu0
    %8400 = vmatprep.mubr.f32.mxu0 0.0
    %8401 = vmatmul.mubr.f32.gmra.mrb[0].mxu0 %v8283
    %v8402 = vpop.f32.mrb[0].mxu0
    %v8403 = vadd.f32 %v8272, %v8402
    %v8404 = vpop.f32.mrb[0].mxu0
    %8405 = vmatprep.mubr.f32.mxu0 0.0
    %8406 = vmatmul.mubr.f32.gmra.mrb[0].mxu0 %v8286
    %v8407 = vpop.f32.mrb[0].mxu0
    %v8408 = vadd.f32 %v8272, %v8407
    %v8409 = vpop.f32.mrb[0].mxu0
    %8410 = vmatprep.mubr.f32.mxu0 0.0
    %8411 = vmatmul.mubr.f32.gmra.mrb[0].mxu0 %v8289
    %v8412 = vpop.f32.mrb[0].mxu0
    %v8413 = vadd.f32 %v8272, %v8412
    %v8414 = vpop.f32.mrb[0].mxu0
    %8415 = vmatprep.mubr.f32.mxu0 0.0
    %8416 = vmatmul.mubr.f32.gmra.mrb[0].mxu0 %v8292
    %v8417 = vpop.f32.mrb[0].mxu0
    %v8418 = vadd.f32 %v8272, %v8417
    %v8419 = vpop.f32.mrb[0].mxu0
    %8420 = vmatprep.mubr.f32.mxu0 0.0
    %8421 = vmatmul.mubr.f32.gmra.mrb[0].mxu0 %v8295
    %v8422 = vpop.f32.mrb[0].mxu0
    %v8423 = vadd.f32 %v8272, %v8422
    %v8424 = vpop.f32.mrb[0].mxu0
    %8425 = vmatprep.mubr.f32.mxu0 0.0
    %8426 = vmatmul.mubr.f32.gmra.mrb[0].mxu0 %v8298
    %v8427 = vpop.f32.mrb[0].mxu0
    %v8428 = vadd.f32 %v8272, %v8427
    %v8429 = vpop.f32.mrb[0].mxu0
    %8430 = vmatprep.mubr.f32.mxu0 0.0
    %8431 = vmatmul.mubr.f32.gmra.mrb[0].mxu0 %v8301
    %v8432 = vpop.f32.mrb[0].mxu0
    %v8433 = vadd.f32 %v8272, %v8432
    %v8434 = vpop.f32.mrb[0].mxu0
    %8435 = vmatprep.mubr.f32.mxu0 0.0
    %8436 = vmatmul.mubr.f32.gmra.mrb[0].mxu0 %v8304
    %v8437 = vpop.f32.mrb[0].mxu0
    %v8438 = vadd.f32 %v8272, %v8437
    %v8439 = vpop.f32.mrb[0].mxu0
    %8440 = vmatprep.mubr.f32.mxu0 0.0
    %8441 = vmatmul.mubr.f32.gmra.mrb[0].mxu0 %v8307
    %v8442 = vpop.f32.mrb[0].mxu0
    %v8443 = vadd.f32 %v8272, %v8442
    %v8444 = vpop.f32.mrb[0].mxu0
    %8445 = vmatprep.mubr.f32.mxu0 0.0
    %8446 = vmatmul.mubr.f32.gmra.mrb[0].mxu0 %v8310
    %v8447 = vpop.f32.mrb[0].mxu0
    %v8448 = vadd.f32 %v8272, %v8447
    %v8449 = vpop.f32.mrb[0].mxu0
    %8450 = vmatprep.mubr.f32.mxu0 0.0
    %8451 = vmatmul.mubr.f32.gmra.mrb[0].mxu0 %v8313
    %v8452 = vpop.f32.mrb[0].mxu0
    %v8453 = vadd.f32 %v8272, %v8452
    %v8454 = vpop.f32.mrb[0].mxu0
    %8455 = vmatprep.mubr.f32.mxu0 0.0
    %8456 = vmatmul.mubr.f32.gmra.mrb[0].mxu0 %v8316
    %v8457 = vpop.f32.mrb[0].mxu0
    %v8458 = vadd.f32 %v8272, %v8457
    %v8459 = vpop.f32.mrb[0].mxu0
    %8460 = vmatprep.mubr.f32.mxu0 0.0
    %8461 = vmatmul.mubr.f32.gmra.mrb[0].mxu0 %v8319
    %v8462 = vpop.f32.mrb[0].mxu0
    %v8463 = vadd.f32 %v8272, %v8462
    %v8464 = vpop.f32.mrb[0].mxu0
    %8465 = vdwg.mxu0
    %v8466 = vxor.u32 %v8388, 2147483648
    %v8467 = vxor.u32 %v8393, 2147483648
    %v8468 = vxor.u32 %v8398, 2147483648
    %v8469 = vxor.u32 %v8403, 2147483648
    %v8470 = vxor.u32 %v8408, 2147483648
    %v8471 = vxor.u32 %v8413, 2147483648
    %v8472 = vxor.u32 %v8418, 2147483648
    %v8473 = vxor.u32 %v8423, 2147483648
    %v8474 = vxor.u32 %v8428, 2147483648
    %v8475 = vxor.u32 %v8433, 2147483648
    %v8476 = vxor.u32 %v8438, 2147483648
    %v8477 = vxor.u32 %v8443, 2147483648
    %v8478 = vxor.u32 %v8448, 2147483648
    %v8479 = vxor.u32 %v8453, 2147483648
    %v8480 = vxor.u32 %v8458, 2147483648
    %v8481 = vxor.u32 %v8463, 2147483648
    %v8482 = vmul.f32 %v8466, 1.442695
    %v8483 = vpow.pop %v8482
    %v8484 = vmul.f32 %v8467, 1.442695
    %v8485 = vpow.pop %v8484
    %v8486 = vmul.f32 %v8468, 1.442695
    %v8487 = vpow.pop %v8486
    %v8488 = vmul.f32 %v8469, 1.442695
    %v8489 = vpow.pop %v8488
    %v8490 = vmul.f32 %v8470, 1.442695
    %v8491 = vpow.pop %v8490
    %v8492 = vmul.f32 %v8471, 1.442695
    %v8493 = vpow.pop %v8492
    %v8494 = vmul.f32 %v8472, 1.442695
    %v8495 = vpow.pop %v8494
    %v8496 = vmul.f32 %v8473, 1.442695
    %v8497 = vpow.pop %v8496
    %v8498 = vmul.f32 %v8474, 1.442695
    %v8499 = vpow.pop %v8498
    %v8500 = vmul.f32 %v8475, 1.442695
    %v8501 = vpow.pop %v8500
    %v8502 = vmul.f32 %v8476, 1.442695
    %v8503 = vpow.pop %v8502
    %v8504 = vmul.f32 %v8477, 1.442695
    %v8505 = vpow.pop %v8504
    %v8506 = vmul.f32 %v8478, 1.442695
    %v8507 = vpow.pop %v8506
    %v8508 = vmul.f32 %v8479, 1.442695
    %v8509 = vpow.pop %v8508
    %v8510 = vmul.f32 %v8480, 1.442695
    %v8511 = vpow.pop %v8510
    %v8512 = vmul.f32 %v8481, 1.442695
    %v8513 = vpow.pop %v8512
    %v8514 = vadd.f32 %v8483, 1.0
    %v8515 = vadd.f32 %v8485, 1.0
    %v8516 = vadd.f32 %v8487, 1.0
    %v8517 = vadd.f32 %v8489, 1.0
    %v8518 = vadd.f32 %v8491, 1.0
    %v8519 = vadd.f32 %v8493, 1.0
    %v8520 = vadd.f32 %v8495, 1.0
    %v8521 = vadd.f32 %v8497, 1.0
    %v8522 = vadd.f32 %v8499, 1.0
    %v8523 = vadd.f32 %v8501, 1.0
    %v8524 = vadd.f32 %v8503, 1.0
    %v8525 = vadd.f32 %v8505, 1.0
    %v8526 = vadd.f32 %v8507, 1.0
    %v8527 = vadd.f32 %v8509, 1.0
    %v8528 = vadd.f32 %v8511, 1.0
    %v8529 = vadd.f32 %v8513, 1.0
    %v8530 = vrcp.pop %v8514
    %v8531 = vmul.f32 1.0, %v8530
    %v8532 = vrcp.pop %v8515
    %v8533 = vmul.f32 1.0, %v8532
    %v8534 = vrcp.pop %v8516
    %v8535 = vmul.f32 1.0, %v8534
    %v8536 = vrcp.pop %v8517
    %v8537 = vmul.f32 1.0, %v8536
    %v8538 = vrcp.pop %v8518
    %v8539 = vmul.f32 1.0, %v8538
    %v8540 = vrcp.pop %v8519
    %v8541 = vmul.f32 1.0, %v8540
    %v8542 = vrcp.pop %v8520
    %v8543 = vmul.f32 1.0, %v8542
    %v8544 = vrcp.pop %v8521
    %v8545 = vmul.f32 1.0, %v8544
    %v8546 = vrcp.pop %v8522
    %v8547 = vmul.f32 1.0, %v8546
    %v8548 = vrcp.pop %v8523
    %v8549 = vmul.f32 1.0, %v8548
    %v8550 = vrcp.pop %v8524
    %v8551 = vmul.f32 1.0, %v8550
    %v8552 = vrcp.pop %v8525
    %v8553 = vmul.f32 1.0, %v8552
    %v8554 = vrcp.pop %v8526
    %v8555 = vmul.f32 1.0, %v8554
    %v8556 = vrcp.pop %v8527
    %v8557 = vmul.f32 1.0, %v8556
    %v8558 = vrcp.pop %v8528
    %v8559 = vmul.f32 1.0, %v8558
    %v8560 = vrcp.pop %v8529
    %v8561 = vmul.f32 1.0, %v8560
    %v8562 = vmul.f32 %v8388, %v8531
    %v8563 = vmul.f32 %v8393, %v8533
    %v8564 = vmul.f32 %v8398, %v8535
    %v8565 = vmul.f32 %v8403, %v8537
    %v8566 = vmul.f32 %v8408, %v8539
    %v8567 = vmul.f32 %v8413, %v8541
    %v8568 = vmul.f32 %v8418, %v8543
    %v8569 = vmul.f32 %v8423, %v8545
    %v8570 = vmul.f32 %v8428, %v8547
    %v8571 = vmul.f32 %v8433, %v8549
    %v8572 = vmul.f32 %v8438, %v8551
    %v8573 = vmul.f32 %v8443, %v8553
    %v8574 = vmul.f32 %v8448, %v8555
    %v8575 = vmul.f32 %v8453, %v8557
    %v8576 = vmul.f32 %v8458, %v8559
    %v8577 = vmul.f32 %v8463, %v8561
    %v8578 = vlaneseq
    %v8579 = vshrl.u32 %v8578, 7
    %v8580 = vsub.s32 0, %v8579
    %v8581 = vrot.slane %v7028, %v8580
    %v8582 = vmul.f32 %v8562, %v8581
    %v8583 = vmul.f32 %v8563, %v8581
    %v8584 = vmul.f32 %v8564, %v8581
    %v8585 = vmul.f32 %v8565, %v8581
    %v8586 = vmul.f32 %v8566, %v8581
    %v8587 = vmul.f32 %v8567, %v8581
    %v8588 = vmul.f32 %v8568, %v8581
    %v8589 = vmul.f32 %v8569, %v8581
    %v8590 = vmul.f32 %v8570, %v8581
    %v8591 = vmul.f32 %v8571, %v8581
    %v8592 = vmul.f32 %v8572, %v8581
    %v8593 = vmul.f32 %v8573, %v8581
    %v8594 = vmul.f32 %v8574, %v8581
    %v8595 = vmul.f32 %v8575, %v8581
    %v8596 = vmul.f32 %v8576, %v8581
    %v8597 = vmul.f32 %v8577, %v8581
    %v8598 = vsel %vm622, %v8582, 0.0
    %8599 = vadd.xlane.f32.xlu0 %v8598
    %v8600 = vpop.xlane.xlu0 %8599
    %v8601 = vsel %vm622, %v8583, 0.0
    %8602 = vadd.xlane.f32.xlu0 %v8601
    %v8603 = vpop.xlane.xlu0 %8602
    %v8604 = vsel %vm622, %v8584, 0.0
    %8605 = vadd.xlane.f32.xlu0 %v8604
    %v8606 = vpop.xlane.xlu0 %8605
    %v8607 = vsel %vm622, %v8585, 0.0
    %8608 = vadd.xlane.f32.xlu0 %v8607
    %v8609 = vpop.xlane.xlu0 %8608
    %v8610 = vsel %vm622, %v8586, 0.0
    %8611 = vadd.xlane.f32.xlu0 %v8610
    %v8612 = vpop.xlane.xlu0 %8611
    %v8613 = vsel %vm622, %v8587, 0.0
    %8614 = vadd.xlane.f32.xlu0 %v8613
    %v8615 = vpop.xlane.xlu0 %8614
    %v8616 = vsel %vm622, %v8588, 0.0
    %8617 = vadd.xlane.f32.xlu0 %v8616
    %v8618 = vpop.xlane.xlu0 %8617
    %v8619 = vsel %vm622, %v8589, 0.0
    %8620 = vadd.xlane.f32.xlu0 %v8619
    %v8621 = vpop.xlane.xlu0 %8620
    %v8622 = vsel %vm622, %v8590, 0.0
    %8623 = vadd.xlane.f32.xlu0 %v8622
    %v8624 = vpop.xlane.xlu0 %8623
    %v8625 = vsel %vm622, %v8591, 0.0
    %8626 = vadd.xlane.f32.xlu0 %v8625
    %v8627 = vpop.xlane.xlu0 %8626
    %v8628 = vsel %vm622, %v8592, 0.0
    %8629 = vadd.xlane.f32.xlu0 %v8628
    %v8630 = vpop.xlane.xlu0 %8629
    %v8631 = vsel %vm622, %v8593, 0.0
    %8632 = vadd.xlane.f32.xlu0 %v8631
    %v8633 = vpop.xlane.xlu0 %8632
    %v8634 = vsel %vm622, %v8594, 0.0
    %8635 = vadd.xlane.f32.xlu0 %v8634
    %v8636 = vpop.xlane.xlu0 %8635
    %v8637 = vsel %vm622, %v8595, 0.0
    %8638 = vadd.xlane.f32.xlu0 %v8637
    %v8639 = vpop.xlane.xlu0 %8638
    %v8640 = vsel %vm622, %v8596, 0.0
    %8641 = vadd.xlane.f32.xlu0 %v8640
    %v8642 = vpop.xlane.xlu0 %8641
    %v8643 = vsel %vm622, %v8597, 0.0
    %8644 = vadd.xlane.f32.xlu0 %v8643
    %v8645 = vpop.xlane.xlu0 %8644
    %v8646 = vmul.f32 %v8600, %v48
    %v8647 = vmul.f32 %v8603, %v49
    %v8648 = vmul.f32 %v8606, %v50
    %v8649 = vmul.f32 %v8609, %v51
    %v8650 = vmul.f32 %v8612, %v52
    %v8651 = vmul.f32 %v8615, %v53
    %v8652 = vmul.f32 %v8618, %v54
    %v8653 = vmul.f32 %v8621, %v55
    %v8654 = vmul.f32 %v8624, %v56
    %v8655 = vmul.f32 %v8627, %v57
    %v8656 = vmul.f32 %v8630, %v58
    %v8657 = vmul.f32 %v8633, %v59
    %v8658 = vmul.f32 %v8636, %v60
    %v8659 = vmul.f32 %v8639, %v61
    %v8660 = vmul.f32 %v8642, %v62
    %v8661 = vmul.f32 %v8645, %v63
    %8663 = vset.pattern.permute.xlu0 0
    %8664 = vperm.xlu0 %8663, %v8646
    %v8665 = vpop.permute.xlu0 %8664
    %8668 = vset.pattern.permute.xlu0 0
    %8669 = vperm.xlu0 %8668, %v8647
    %v8670 = vpop.permute.xlu0 %8669
    %8673 = vset.pattern.permute.xlu0 0
    %8674 = vperm.xlu0 %8673, %v8648
    %v8675 = vpop.permute.xlu0 %8674
    %8678 = vset.pattern.permute.xlu0 0
    %8679 = vperm.xlu0 %8678, %v8649
    %v8680 = vpop.permute.xlu0 %8679
    %8683 = vset.pattern.permute.xlu0 0
    %8684 = vperm.xlu0 %8683, %v8650
    %v8685 = vpop.permute.xlu0 %8684
    %8688 = vset.pattern.permute.xlu0 0
    %8689 = vperm.xlu0 %8688, %v8651
    %v8690 = vpop.permute.xlu0 %8689
    %8693 = vset.pattern.permute.xlu0 0
    %8694 = vperm.xlu0 %8693, %v8652
    %v8695 = vpop.permute.xlu0 %8694
    %8698 = vset.pattern.permute.xlu0 0
    %8699 = vperm.xlu0 %8698, %v8653
    %v8700 = vpop.permute.xlu0 %8699
    %8703 = vset.pattern.permute.xlu0 0
    %8704 = vperm.xlu0 %8703, %v8654
    %v8705 = vpop.permute.xlu0 %8704
    %8708 = vset.pattern.permute.xlu0 0
    %8709 = vperm.xlu0 %8708, %v8655
    %v8710 = vpop.permute.xlu0 %8709
    %8713 = vset.pattern.permute.xlu0 0
    %8714 = vperm.xlu0 %8713, %v8656
    %v8715 = vpop.permute.xlu0 %8714
    %8718 = vset.pattern.permute.xlu0 0
    %8719 = vperm.xlu0 %8718, %v8657
    %v8720 = vpop.permute.xlu0 %8719
    %8723 = vset.pattern.permute.xlu0 0
    %8724 = vperm.xlu0 %8723, %v8658
    %v8725 = vpop.permute.xlu0 %8724
    %8728 = vset.pattern.permute.xlu0 0
    %8729 = vperm.xlu0 %8728, %v8659
    %v8730 = vpop.permute.xlu0 %8729
    %8733 = vset.pattern.permute.xlu0 0
    %8734 = vperm.xlu0 %8733, %v8660
    %v8735 = vpop.permute.xlu0 %8734
    %8738 = vset.pattern.permute.xlu0 0
    %8739 = vperm.xlu0 %8738, %v8661
    %v8740 = vpop.permute.xlu0 %8739
    %v8742 = vmul.f32 %v7436, %v8665
    %v8743 = vmul.f32 %v7437, %v8670
    %v8744 = vmul.f32 %v7438, %v8675
    %v8745 = vmul.f32 %v7439, %v8680
    %v8746 = vmul.f32 %v7440, %v8685
    %v8747 = vmul.f32 %v7441, %v8690
    %v8748 = vmul.f32 %v7442, %v8695
    %v8749 = vmul.f32 %v7443, %v8700
    %v8750 = vmul.f32 %v7444, %v8705
    %v8751 = vmul.f32 %v7445, %v8710
    %v8752 = vmul.f32 %v7446, %v8715
    %v8753 = vmul.f32 %v7447, %v8720
    %v8754 = vmul.f32 %v7448, %v8725
    %v8755 = vmul.f32 %v7449, %v8730
    %v8756 = vmul.f32 %v7450, %v8735
    %v8757 = vmul.f32 %v7451, %v8740
    %v8758 = vsel %vm382, %v8742, 0.0
    %v8759 = vrot.slane %v8758, 4
    %v8760 = vadd.f32 %v8758, %v8759
    %v8761 = vrot.slane %v8760, 2
    %v8762 = vadd.f32 %v8760, %v8761
    %v8763 = vrot.slane %v8762, 1
    %v8764 = vadd.f32 %v8762, %v8763
    %v8765 = vsel %vm382, %v8743, 0.0
    %v8766 = vrot.slane %v8765, 4
    %v8767 = vadd.f32 %v8765, %v8766
    %v8768 = vrot.slane %v8767, 2
    %v8769 = vadd.f32 %v8767, %v8768
    %v8770 = vrot.slane %v8769, 1
    %v8771 = vadd.f32 %v8769, %v8770
    %v8772 = vsel %vm382, %v8744, 0.0
    %v8773 = vrot.slane %v8772, 4
    %v8774 = vadd.f32 %v8772, %v8773
    %v8775 = vrot.slane %v8774, 2
    %v8776 = vadd.f32 %v8774, %v8775
    %v8777 = vrot.slane %v8776, 1
    %v8778 = vadd.f32 %v8776, %v8777
    %v8779 = vsel %vm382, %v8745, 0.0
    %v8780 = vrot.slane %v8779, 4
    %v8781 = vadd.f32 %v8779, %v8780
    %v8782 = vrot.slane %v8781, 2
    %v8783 = vadd.f32 %v8781, %v8782
    %v8784 = vrot.slane %v8783, 1
    %v8785 = vadd.f32 %v8783, %v8784
    %v8786 = vsel %vm382, %v8746, 0.0
    %v8787 = vrot.slane %v8786, 4
    %v8788 = vadd.f32 %v8786, %v8787
    %v8789 = vrot.slane %v8788, 2
    %v8790 = vadd.f32 %v8788, %v8789
    %v8791 = vrot.slane %v8790, 1
    %v8792 = vadd.f32 %v8790, %v8791
    %v8793 = vsel %vm382, %v8747, 0.0
    %v8794 = vrot.slane %v8793, 4
    %v8795 = vadd.f32 %v8793, %v8794
    %v8796 = vrot.slane %v8795, 2
    %v8797 = vadd.f32 %v8795, %v8796
    %v8798 = vrot.slane %v8797, 1
    %v8799 = vadd.f32 %v8797, %v8798
    %v8800 = vsel %vm382, %v8748, 0.0
    %v8801 = vrot.slane %v8800, 4
    %v8802 = vadd.f32 %v8800, %v8801
    %v8803 = vrot.slane %v8802, 2
    %v8804 = vadd.f32 %v8802, %v8803
    %v8805 = vrot.slane %v8804, 1
    %v8806 = vadd.f32 %v8804, %v8805
    %v8807 = vsel %vm382, %v8749, 0.0
    %v8808 = vrot.slane %v8807, 4
    %v8809 = vadd.f32 %v8807, %v8808
    %v8810 = vrot.slane %v8809, 2
    %v8811 = vadd.f32 %v8809, %v8810
    %v8812 = vrot.slane %v8811, 1
    %v8813 = vadd.f32 %v8811, %v8812
    %v8814 = vsel %vm382, %v8750, 0.0
    %v8815 = vrot.slane %v8814, 4
    %v8816 = vadd.f32 %v8814, %v8815
    %v8817 = vrot.slane %v8816, 2
    %v8818 = vadd.f32 %v8816, %v8817
    %v8819 = vrot.slane %v8818, 1
    %v8820 = vadd.f32 %v8818, %v8819
    %v8821 = vsel %vm382, %v8751, 0.0
    %v8822 = vrot.slane %v8821, 4
    %v8823 = vadd.f32 %v8821, %v8822
    %v8824 = vrot.slane %v8823, 2
    %v8825 = vadd.f32 %v8823, %v8824
    %v8826 = vrot.slane %v8825, 1
    %v8827 = vadd.f32 %v8825, %v8826
    %v8828 = vsel %vm382, %v8752, 0.0
    %v8829 = vrot.slane %v8828, 4
    %v8830 = vadd.f32 %v8828, %v8829
    %v8831 = vrot.slane %v8830, 2
    %v8832 = vadd.f32 %v8830, %v8831
    %v8833 = vrot.slane %v8832, 1
    %v8834 = vadd.f32 %v8832, %v8833
    %v8835 = vsel %vm382, %v8753, 0.0
    %v8836 = vrot.slane %v8835, 4
    %v8837 = vadd.f32 %v8835, %v8836
    %v8838 = vrot.slane %v8837, 2
    %v8839 = vadd.f32 %v8837, %v8838
    %v8840 = vrot.slane %v8839, 1
    %v8841 = vadd.f32 %v8839, %v8840
    %v8842 = vsel %vm382, %v8754, 0.0
    %v8843 = vrot.slane %v8842, 4
    %v8844 = vadd.f32 %v8842, %v8843
    %v8845 = vrot.slane %v8844, 2
    %v8846 = vadd.f32 %v8844, %v8845
    %v8847 = vrot.slane %v8846, 1
    %v8848 = vadd.f32 %v8846, %v8847
    %v8849 = vsel %vm382, %v8755, 0.0
    %v8850 = vrot.slane %v8849, 4
    %v8851 = vadd.f32 %v8849, %v8850
    %v8852 = vrot.slane %v8851, 2
    %v8853 = vadd.f32 %v8851, %v8852
    %v8854 = vrot.slane %v8853, 1
    %v8855 = vadd.f32 %v8853, %v8854
    %v8856 = vsel %vm382, %v8756, 0.0
    %v8857 = vrot.slane %v8856, 4
    %v8858 = vadd.f32 %v8856, %v8857
    %v8859 = vrot.slane %v8858, 2
    %v8860 = vadd.f32 %v8858, %v8859
    %v8861 = vrot.slane %v8860, 1
    %v8862 = vadd.f32 %v8860, %v8861
    %v8863 = vsel %vm382, %v8757, 0.0
    %v8864 = vrot.slane %v8863, 4
    %v8865 = vadd.f32 %v8863, %v8864
    %v8866 = vrot.slane %v8865, 2
    %v8867 = vadd.f32 %v8865, %v8866
    %v8868 = vrot.slane %v8867, 1
    %v8869 = vadd.f32 %v8867, %v8868
    %v8886 = vsel %vm2132, %v8771, %v8764
    %v8887 = vsel %vm2134, %v8778, %v8886
    %v8888 = vsel %vm2136, %v8785, %v8887
    %v8889 = vsel %vm2138, %v8792, %v8888
    %v8890 = vsel %vm2140, %v8799, %v8889
    %v8891 = vsel %vm2142, %v8806, %v8890
    %v8892 = vsel %vm2144, %v8813, %v8891
    %v8893 = vsel %vm2132, %v8827, %v8820
    %v8894 = vsel %vm2134, %v8834, %v8893
    %v8895 = vsel %vm2136, %v8841, %v8894
    %v8896 = vsel %vm2138, %v8848, %v8895
    %v8897 = vsel %vm2140, %v8855, %v8896
    %v8898 = vsel %vm2142, %v8862, %v8897
    %v8899 = vsel %vm2144, %v8869, %v8898
    %v8902 = vadd.f32 %v6663, %v8892
    %v8903 = vadd.f32 %v6664, %v8899
    %v8904 = vmul.f32 %v8902, %v69
    %v8905 = vmul.f32 %v8903, %v74
    %v8906 = vsub.f32 %v8904, %v76
    %v8907 = vsub.f32 %v8905, %v77
    %v8908 = vmul.f32 %v8906, %v69
    %v8909 = vmul.f32 %v8907, %v74
    %vm8910 = vcmask 7168
    %v8911 = vsel %vm8910, %v46, 0.0
    %v8912 = vrot.slane %v8911, 4
    %v8913 = vadd.f32 %v8911, %v8912
    %v8914 = vrot.slane %v8913, 2
    %v8915 = vadd.f32 %v8913, %v8914
    %v8916 = vrot.slane %v8915, 1
    %v8917 = vadd.f32 %v8915, %v8916
    %v8918 = vsel %vm8910, %v47, 0.0
    %v8919 = vrot.slane %v8918, 4
    %v8920 = vadd.f32 %v8918, %v8919
    %v8921 = vrot.slane %v8920, 2
    %v8922 = vadd.f32 %v8920, %v8921
    %v8923 = vrot.slane %v8922, 1
    %v8924 = vadd.f32 %v8922, %v8923
    %v8925 = vsel %vm382, %v8908, 0.0
    %v8926 = vrot.slane %v8925, 4
    %v8927 = vadd.f32 %v8925, %v8926
    %v8928 = vrot.slane %v8927, 2
    %v8929 = vadd.f32 %v8927, %v8928
    %v8930 = vrot.slane %v8929, 1
    %v8931 = vadd.f32 %v8929, %v8930
    %v8932 = vsel %vm382, %v8909, 0.0
    %v8933 = vrot.slane %v8932, 4
    %v8934 = vadd.f32 %v8932, %v8933
    %v8935 = vrot.slane %v8934, 2
    %v8936 = vadd.f32 %v8934, %v8935
    %v8937 = vrot.slane %v8936, 1
    %v8938 = vadd.f32 %v8936, %v8937
    %v8939 = vmax.f32 %v8917, 1.0
    %v8940 = vmax.f32 %v8924, 1.0
    %8942 = vset.pattern.permute.xlu0 0
    %8943 = vperm.xlu0 %8942, %v8939
    %v8944 = vpop.permute.xlu0 %8943
    %8947 = vset.pattern.permute.xlu0 0
    %8948 = vperm.xlu0 %8947, %v8940
    %v8949 = vpop.permute.xlu0 %8948
    %v8951 = vrcp.pop %v8944
    %v8952 = vmul.f32 %v8931, %v8951
    %v8953 = vrcp.pop %v8949
    %v8954 = vmul.f32 %v8938, %v8953
    %v8955 = vmul.f32 %v8952, %v69
    %v8956 = vmul.f32 %v8954, %v74
    %v8957 = vsub.f32 %v8908, %v8955
    %v8958 = vsub.f32 %v8909, %v8956
    %8959 = vst.msk [vmem:[%s9] sm:$0xff] %vm382, %v8957
    %8960 = vst.msk [vmem:[%s9 + $0x8] sm:$0xff] %vm382, %v8958
    // Predicated region
    $region42: #{tpu_custom_call.1} parent=1 // pred_check
      _
    $region43: #{tpu_custom_call.1} parent=1 // pred_check_branch
      %8962 = sbr.rel (0) target = $region45
    $region44: #{tpu_custom_call.1} parent=1 // pred_region
      _
    $region45: #{tpu_custom_call.1} parent=1 // pred_fallthru
      _
    // Predicated region
    $region46: #{tpu_custom_call.1} parent=1 // pred_check
      _
    $region47: #{tpu_custom_call.1} parent=1 // pred_check_branch
      %8964 = sbr.rel (0) target = $region49
    $region48: #{tpu_custom_call.1} parent=1 // pred_region
      _
    $region49: #{tpu_custom_call.1} parent=1 // pred_fallthru
      _
    %8965 = vsyncpa [#allocation3], 1

</llo_original>
